<compile_context>
chip_gen: v7x
topology: tpu7x:2x2x1
jax: 0.10.0
libtpu: 0.0.40
codegen_flags: <defaults>
</compile_context>

<pallas_src>
import functools

import jax
import jax.numpy as jnp
import numpy as np
from jax.experimental import pallas as pl
from jax.experimental.pallas import tpu as pltpu

BN_EPS = 1e-5
LEAKY_SLOPE = 0.2
KH = KW = 4
STRIDE = 2


def _bn_lrelu(x, gamma, beta):
    """Train-mode BatchNorm2d over (batch, position) + LeakyReLU(0.2).

    x: (N, P, C) activations; gamma/beta: (1, 1, C).
    Two-pass, biased variance — matches nn.BatchNorm2d in training mode.
    """
    inv_m = 1.0 / (x.shape[0] * x.shape[1])
    mean = jnp.sum(jnp.sum(x, axis=1, keepdims=True), axis=0,
                   keepdims=True) * inv_m
    xc = x - mean
    var = jnp.sum(jnp.sum(xc * xc, axis=1, keepdims=True), axis=0,
                  keepdims=True) * inv_m
    y = xc * (gamma * jax.lax.rsqrt(var + BN_EPS)) + beta
    return jnp.where(y >= 0, y, LEAKY_SLOPE * y)


def _critic_fused_kernel(p1_ref, w1_ref, g1_ref, bt1_ref,
                         rbase_ref, w2_ref, g2_ref, bt2_ref,
                         w3map_ref, b3_ref, out_ref, *, ow1):
    n, p1n, k1 = p1_ref.shape          # batch, OH1*OW1, KH*KW*C0
    c1 = w1_ref.shape[1]
    c2 = w2_ref.shape[2]
    q = rbase_ref.shape[0]             # OH2*OW2

    # ---- block 1: conv (batched matmul on pre-im2col'd image) + BN + LReLU --
    w1b = jnp.broadcast_to(w1_ref[...], (n, k1, c1))
    x1 = jnp.einsum('bpk,bkc->bpc', p1_ref[...], w1b,
                    preferred_element_type=jnp.float32)
    a1 = _bn_lrelu(x1, g1_ref[...], bt1_ref[...])          # (n, P1, C1)

    # ---- block 2: conv + BN + LReLU; stride-2 im2col done in-kernel ---------
    # Output position q of block 2 with kernel tap (i, j) reads a1 position
    #     rbase[q] + i*OW1 + j   (identical for every image),
    # gathered with an exact per-image one-hot matmul (iota + integer compare
    # feeding the MXU) -> linear in batch, no gathers / strided ref slicing.
    col_idx = jax.lax.broadcasted_iota(jnp.int32, (n, q, p1n), 2)
    rbase = rbase_ref[...]                                  # (q, 1) int32
    acc2 = jnp.zeros((n, q, c2), jnp.float32)
    for i in range(KH):
        for j in range(KW):
            sel = (col_idx == (rbase + (i * ow1 + j))).astype(jnp.float32)
            patch = jnp.einsum('bqp,bpc->bqc', sel, a1,
                               preferred_element_type=jnp.float32)
            w_t = jnp.broadcast_to(w2_ref[i * KW + j], (n, c1, c2))
            acc2 = acc2 + jnp.einsum('bqc,bcd->bqd', patch, w_t,
                                     preferred_element_type=jnp.float32)
    a2 = _bn_lrelu(acc2, g2_ref[...], bt2_ref[...])         # (n, Q, C2)

    # ---- block 3: 4x4 conv -> one scalar per image, on the VPU/XLU ----------
    # w3map holds the final conv weight expanded onto the block-2 grid (zeros
    # on positions the single valid 4x4 window does not touch).
    weighted = a2 * w3map_ref[...]                          # (n,Q,C2) VPU
    rowsum = jnp.sum(weighted, axis=2, keepdims=True)       # (n,Q,1)  XLU
    out = jnp.sum(rowsum, axis=1)                           # (n,1)
    out_ref[...] = (out + b3_ref[...]).astype(out_ref.dtype)


def _im2col(x_nhwc, kh, kw, stride):
    """(N,H,W,C) -> (N, OH*OW, kh*kw*C) patches, column order (kh, kw, C)."""
    N, H, W, C = x_nhwc.shape
    OH = (H - kh) // stride + 1
    OW = (W - kw) // stride + 1
    cols = []
    for i in range(kh):
        for j in range(kw):
            cols.append(x_nhwc[:, i:i + stride * OH:stride,
                               j:j + stride * OW:stride, :])
    patches = jnp.stack(cols, axis=3).reshape(N, OH * OW, kh * kw * C)
    return patches, OH, OW


def _weight_to_2d(w_oihw):
    """(OC, IC, KH, KW) -> (KH*KW*IC, OC) matching _im2col column order."""
    oc, ic, kh, kw = w_oihw.shape
    return jnp.transpose(w_oihw, (2, 3, 1, 0)).reshape(kh * kw * ic, oc)


def _weight_to_taps(w_oihw):
    """(OC, IC, KH, KW) -> (KH*KW, IC, OC): per-tap (IC, OC) matrices."""
    oc, ic, kh, kw = w_oihw.shape
    return jnp.transpose(w_oihw, (2, 3, 1, 0)).reshape(kh * kw, ic, oc)


def critic_forward(image_nchw, params):
    """image_nchw: (N, im_chan, H, W) float32 -> (N, 1), as crit(x).view(N,-1)."""
    p1, p2, p3 = params
    x = jnp.transpose(image_nchw, (0, 2, 3, 1)).astype(jnp.float32)   # NHWC
    N = x.shape[0]

    patches1, OH1, OW1 = _im2col(x, KH, KW, STRIDE)       # (N, P1, 16*C0)
    P1 = OH1 * OW1
    w1_2d = _weight_to_2d(p1["w"])
    C1 = w1_2d.shape[1]

    OH2 = (OH1 - KH) // STRIDE + 1
    OW2 = (OW1 - KW) // STRIDE + 1
    Q = OH2 * OW2
    w2_taps = _weight_to_taps(p2["w"])                    # (16, C1, C2)
    C2 = w2_taps.shape[2]

    OH3 = (OH2 - KH) // STRIDE + 1
    OW3 = (OW2 - KW) // STRIDE + 1
    # TODO(synk): generalize the block-3 epilogue for inputs whose final conv
    # output is larger than 1x1 (not the case for the 28x28 MNIST-style use).
    assert OH3 == 1 and OW3 == 1, "fused kernel expects final conv -> 1x1"

    # Per-image base row of each block-2 output position (batch-independent,
    # baked as a constant into the jit).
    q_ids = np.arange(Q)
    rbase = (STRIDE * (q_ids // OW2) * OW1
             + STRIDE * (q_ids % OW2)).astype(np.int32).reshape(Q, 1)

    # Final conv weight expanded onto the block-2 spatial grid: position
    # q = i*OW2 + j carries tap (i, j); positions outside the 4x4 window are 0.
    w3_taps = jnp.transpose(p3["w"], (2, 3, 1, 0))[..., 0]           # (KH,KW,C2)
    w3map = jnp.zeros((OH2, OW2, C2), jnp.float32).at[:KH, :KW, :].set(
        w3_taps).reshape(1, Q, C2)
    b3 = p3["b"].reshape(1, 1)

    g1 = p1["gamma"].reshape(1, 1, C1)
    bt1 = p1["beta"].reshape(1, 1, C1)
    g2 = p2["gamma"].reshape(1, 1, C2)
    bt2 = p2["beta"].reshape(1, 1, C2)

    operands = (patches1, w1_2d, g1, bt1, rbase, w2_taps, g2, bt2, w3map, b3)

    flops = 2 * (N * P1 * patches1.shape[2] * C1
                 + KH * KW * (N * Q * P1 * C1 + N * Q * C1 * C2)
                 + N * Q * C2)
    bytes_accessed = int(sum(int(a.size) * a.dtype.itemsize for a in operands)
                         + N * 4)
    cost = pl.CostEstimate(flops=int(flops), transcendentals=int(C1 + C2),
                           bytes_accessed=bytes_accessed)

    vmem = pl.BlockSpec(memory_space=pltpu.MemorySpace.VMEM)
    out = pl.pallas_call(
        functools.partial(_critic_fused_kernel, ow1=OW1),
        out_shape=jax.ShapeDtypeStruct((N, 1), jnp.float32),
        in_specs=[vmem] * len(operands),
        out_specs=vmem,
        cost_estimate=cost,
    )(*operands)
    return out


def init_critic_params(key, im_chan=1, hidden_dim=16):
    """DCGAN-style synthetic parameters.  Conv biases are kept for parity with
    nn.Conv2d; blocks 1-2 biases are mathematically cancelled by train-mode BN
    and therefore never passed to the kernel."""
    dims = [(hidden_dim, im_chan), (2 * hidden_dim, hidden_dim),
            (1, 2 * hidden_dim)]
    params = []
    for oc, ic in dims:
        key, kw_, kb_ = jax.random.split(key, 3)
        params.append(dict(
            w=0.02 * jax.random.normal(kw_, (oc, ic, KH, KW), jnp.float32),
            b=0.01 * jax.random.normal(kb_, (1, oc), jnp.float32),
            gamma=jnp.ones((1, oc), jnp.float32),
            beta=jnp.zeros((1, oc), jnp.float32)))
    return params


def _reference_forward(image_nchw, params):
    """Pure-JAX reference of the PyTorch module (train-mode BN)."""
    x = image_nchw.astype(jnp.float32)
    n_layers = len(params)
    for li, p in enumerate(params):
        x = jax.lax.conv_general_dilated(
            x, p["w"], (STRIDE, STRIDE), "VALID",
            dimension_numbers=("NCHW", "OIHW", "NCHW"),
            precision=jax.lax.Precision.HIGHEST)
        x = x + p["b"].reshape(1, -1, 1, 1)
        if li < n_layers - 1:
            mean = jnp.mean(x, axis=(0, 2, 3), keepdims=True)
            var = jnp.mean((x - mean) ** 2, axis=(0, 2, 3), keepdims=True)
            x = (x - mean) * jax.lax.rsqrt(var + BN_EPS)
            x = x * p["gamma"].reshape(1, -1, 1, 1) + p["beta"].reshape(1, -1, 1, 1)
            x = jnp.where(x >= 0, x, LEAKY_SLOPE * x)
    return x.reshape(x.shape[0], -1)


if __name__ == "__main__":
    key = jax.random.PRNGKey(0)
    k_img, k_par = jax.random.split(key)

    # MNIST-like shapes: three stride-2 valid 4x4 convs take 28x28 -> 1x1.
    batch, im_chan, spatial, hidden_dim = 2, 1, 28, 16
    image = jax.random.normal(k_img, (batch, im_chan, spatial, spatial),
                              dtype=jnp.float32)
    params = init_critic_params(k_par, im_chan=im_chan, hidden_dim=hidden_dim)

    out = jax.jit(critic_forward)(image, params)
    out = jax.block_until_ready(out)
    assert out.shape == (batch, 1), out.shape

    ref = jax.block_until_ready(_reference_forward(image, params))
    np.testing.assert_allclose(np.asarray(out), np.asarray(ref),
                               rtol=1e-2, atol=1e-2)
    print("KERNEL_OK")
</pallas_src>

<mosaic_0001>
module attributes {stable_mosaic.version = 11 : i64} {
  func.func @_critic_fused_kernel(%arg0: memref<2x169x16xf32, #tpu.memory_space<vmem>>, %arg1: memref<16x16xf32, #tpu.memory_space<vmem>>, %arg2: memref<1x1x16xf32, #tpu.memory_space<vmem>>, %arg3: memref<1x1x16xf32, #tpu.memory_space<vmem>>, %arg4: memref<25x1xi32, #tpu.memory_space<vmem>>, %arg5: memref<16x16x32xf32, #tpu.memory_space<vmem>>, %arg6: memref<1x1x32xf32, #tpu.memory_space<vmem>>, %arg7: memref<1x1x32xf32, #tpu.memory_space<vmem>>, %arg8: memref<1x25x32xf32, #tpu.memory_space<vmem>>, %arg9: memref<1x1xf32, #tpu.memory_space<vmem>>, %arg10: memref<2x1xf32, #tpu.memory_space<vmem>>) attributes {dimension_semantics = [], scalar_prefetch = 0 : i64, scratch_operands = 0 : i64, tpu.core_type = #tpu.core_type<tc>} {
    %c0 = arith.constant 0 : index
    %c0_0 = arith.constant 0 : index
    %0 = vector.load %arg1[%c0, %c0_0] : memref<16x16xf32, #tpu.memory_space<vmem>>, vector<16x16xf32>
    %1 = vector.shape_cast %0 : vector<16x16xf32> to vector<1x16x16xf32>
    %2 = vector.broadcast %1 : vector<1x16x16xf32> to vector<2x16x16xf32>
    %c0_1 = arith.constant 0 : index
    %c0_2 = arith.constant 0 : index
    %c0_3 = arith.constant 0 : index
    %3 = vector.load %arg0[%c0_1, %c0_2, %c0_3] : memref<2x169x16xf32, #tpu.memory_space<vmem>>, vector<2x169x16xf32>
    "tpu.trace_start"() <{level = 10 : i32, message = "bpk,bkc->bpc"}> : () -> ()
    %cst = arith.constant dense<0.000000e+00> : vector<2x169x16xf32>
    %4 = tpu.matmul %3, %2, %cst {dimension_numbers = #tpu.dot_dimension_numbers<[2], [1], [1], [2], [0, 0, 0, 1, 1, 2], [0], [0]>} : vector<2x169x16xf32>, vector<2x16x16xf32>, vector<2x169x16xf32> -> vector<2x169x16xf32>
    "tpu.trace_stop"() : () -> ()
    %c0_4 = arith.constant 0 : index
    %c0_5 = arith.constant 0 : index
    %c0_6 = arith.constant 0 : index
    %5 = vector.load %arg2[%c0_4, %c0_5, %c0_6] : memref<1x1x16xf32, #tpu.memory_space<vmem>>, vector<1x1x16xf32>
    %c0_7 = arith.constant 0 : index
    %c0_8 = arith.constant 0 : index
    %c0_9 = arith.constant 0 : index
    %6 = vector.load %arg3[%c0_7, %c0_8, %c0_9] : memref<1x1x16xf32, #tpu.memory_space<vmem>>, vector<1x1x16xf32>
    %cst_10 = arith.constant dense<0.000000e+00> : vector<2x16xf32>
    %7 = vector.multi_reduction <add>, %4, %cst_10 [1] : vector<2x169x16xf32> to vector<2x16xf32>
    %8 = vector.shape_cast %7 : vector<2x16xf32> to vector<2x1x16xf32>
    %cst_11 = arith.constant dense<0.000000e+00> : vector<1x16xf32>
    %9 = vector.multi_reduction <add>, %8, %cst_11 [0] : vector<2x1x16xf32> to vector<1x16xf32>
    %10 = vector.shape_cast %9 : vector<1x16xf32> to vector<1x1x16xf32>
    %cst_12 = arith.constant 2.958580e-03 : f32
    %11 = vector.broadcast %cst_12 : f32 to vector<1x1x16xf32>
    %12 = arith.mulf %10, %11 : vector<1x1x16xf32>
    %13 = vector.broadcast %12 : vector<1x1x16xf32> to vector<2x169x16xf32>
    %14 = arith.subf %4, %13 : vector<2x169x16xf32>
    %15 = arith.mulf %14, %14 : vector<2x169x16xf32>
    %cst_13 = arith.constant dense<0.000000e+00> : vector<2x16xf32>
    %16 = vector.multi_reduction <add>, %15, %cst_13 [1] : vector<2x169x16xf32> to vector<2x16xf32>
    %17 = vector.shape_cast %16 : vector<2x16xf32> to vector<2x1x16xf32>
    %cst_14 = arith.constant dense<0.000000e+00> : vector<1x16xf32>
    %18 = vector.multi_reduction <add>, %17, %cst_14 [0] : vector<2x1x16xf32> to vector<1x16xf32>
    %19 = vector.shape_cast %18 : vector<1x16xf32> to vector<1x1x16xf32>
    %cst_15 = arith.constant 2.958580e-03 : f32
    %20 = vector.broadcast %cst_15 : f32 to vector<1x1x16xf32>
    %21 = arith.mulf %19, %20 : vector<1x1x16xf32>
    %cst_16 = arith.constant 9.99999974E-6 : f32
    %22 = vector.broadcast %cst_16 : f32 to vector<1x1x16xf32>
    %23 = arith.addf %21, %22 : vector<1x1x16xf32>
    %24 = math.rsqrt %23 : vector<1x1x16xf32>
    %25 = arith.mulf %5, %24 : vector<1x1x16xf32>
    %26 = vector.broadcast %25 : vector<1x1x16xf32> to vector<2x169x16xf32>
    %27 = arith.mulf %14, %26 : vector<2x169x16xf32>
    %28 = vector.broadcast %6 : vector<1x1x16xf32> to vector<2x169x16xf32>
    %29 = arith.addf %27, %28 : vector<2x169x16xf32>
    %cst_17 = arith.constant 0.000000e+00 : f32
    %30 = vector.broadcast %cst_17 : f32 to vector<2x169x16xf32>
    %31 = arith.cmpf oge, %29, %30 : vector<2x169x16xf32>
    %cst_18 = arith.constant 2.000000e-01 : f32
    %32 = vector.broadcast %cst_18 : f32 to vector<2x169x16xf32>
    %33 = arith.mulf %32, %29 : vector<2x169x16xf32>
    %34 = arith.select %31, %29, %33 : vector<2x169x16xi1>, vector<2x169x16xf32>
    %35 = tpu.iota {dimensions = array<i32: 2>} : vector<2x25x169xi32>
    %c0_19 = arith.constant 0 : index
    %c0_20 = arith.constant 0 : index
    %36 = vector.load %arg4[%c0_19, %c0_20] : memref<25x1xi32, #tpu.memory_space<vmem>>, vector<25x1xi32>
    %cst_21 = arith.constant 0.000000e+00 : f32
    %37 = vector.broadcast %cst_21 : f32 to vector<2x25x32xf32>
    %c0_i32 = arith.constant 0 : i32
    %38 = vector.broadcast %c0_i32 : i32 to vector<25x1xi32>
    %39 = arith.addi %36, %38 : vector<25x1xi32>
    %40 = vector.shape_cast %39 : vector<25x1xi32> to vector<1x25x1xi32>
    %41 = vector.broadcast %40 : vector<1x25x1xi32> to vector<2x25x169xi32>
    %42 = arith.cmpi eq, %35, %41 : vector<2x25x169xi32>
    %43 = arith.extui %42 : vector<2x25x169xi1> to vector<2x25x169xi32>
    %44 = arith.sitofp %43 : vector<2x25x169xi32> to vector<2x25x169xf32>
    "tpu.trace_start"() <{level = 10 : i32, message = "bqp,bpc->bqc"}> : () -> ()
    %cst_22 = arith.constant dense<0.000000e+00> : vector<2x25x16xf32>
    %45 = tpu.matmul %44, %34, %cst_22 {dimension_numbers = #tpu.dot_dimension_numbers<[2], [1], [1], [2], [0, 0, 0, 1, 1, 2], [0], [0]>} : vector<2x25x169xf32>, vector<2x169x16xf32>, vector<2x25x16xf32> -> vector<2x25x16xf32>
    "tpu.trace_stop"() : () -> ()
    %c0_23 = arith.constant 0 : index
    %c0_24 = arith.constant 0 : index
    %c0_25 = arith.constant 0 : index
    %46 = vector.load %arg5[%c0_23, %c0_24, %c0_25] : memref<16x16x32xf32, #tpu.memory_space<vmem>>, vector<1x16x32xf32>
    %47 = vector.shape_cast %46 : vector<1x16x32xf32> to vector<16x32xf32>
    %48 = vector.shape_cast %47 : vector<16x32xf32> to vector<1x16x32xf32>
    %49 = vector.broadcast %48 : vector<1x16x32xf32> to vector<2x16x32xf32>
    "tpu.trace_start"() <{level = 10 : i32, message = "bqc,bcd->bqd"}> : () -> ()
    %cst_26 = arith.constant dense<0.000000e+00> : vector<2x25x32xf32>
    %50 = tpu.matmul %45, %49, %cst_26 {dimension_numbers = #tpu.dot_dimension_numbers<[2], [1], [1], [2], [0, 0, 0, 1, 1, 2], [0], [0]>} : vector<2x25x16xf32>, vector<2x16x32xf32>, vector<2x25x32xf32> -> vector<2x25x32xf32>
    "tpu.trace_stop"() : () -> ()
    %51 = arith.addf %37, %50 : vector<2x25x32xf32>
    %c1_i32 = arith.constant 1 : i32
    %52 = vector.broadcast %c1_i32 : i32 to vector<25x1xi32>
    %53 = arith.addi %36, %52 : vector<25x1xi32>
    %54 = vector.shape_cast %53 : vector<25x1xi32> to vector<1x25x1xi32>
    %55 = vector.broadcast %54 : vector<1x25x1xi32> to vector<2x25x169xi32>
    %56 = arith.cmpi eq, %35, %55 : vector<2x25x169xi32>
    %57 = arith.extui %56 : vector<2x25x169xi1> to vector<2x25x169xi32>
    %58 = arith.sitofp %57 : vector<2x25x169xi32> to vector<2x25x169xf32>
    "tpu.trace_start"() <{level = 10 : i32, message = "bqp,bpc->bqc"}> : () -> ()
    %cst_27 = arith.constant dense<0.000000e+00> : vector<2x25x16xf32>
    %59 = tpu.matmul %58, %34, %cst_27 {dimension_numbers = #tpu.dot_dimension_numbers<[2], [1], [1], [2], [0, 0, 0, 1, 1, 2], [0], [0]>} : vector<2x25x169xf32>, vector<2x169x16xf32>, vector<2x25x16xf32> -> vector<2x25x16xf32>
    "tpu.trace_stop"() : () -> ()
    %c1 = arith.constant 1 : index
    %c0_28 = arith.constant 0 : index
    %c0_29 = arith.constant 0 : index
    %60 = vector.load %arg5[%c1, %c0_28, %c0_29] : memref<16x16x32xf32, #tpu.memory_space<vmem>>, vector<1x16x32xf32>
    %61 = vector.shape_cast %60 : vector<1x16x32xf32> to vector<16x32xf32>
    %62 = vector.shape_cast %61 : vector<16x32xf32> to vector<1x16x32xf32>
    %63 = vector.broadcast %62 : vector<1x16x32xf32> to vector<2x16x32xf32>
    "tpu.trace_start"() <{level = 10 : i32, message = "bqc,bcd->bqd"}> : () -> ()
    %cst_30 = arith.constant dense<0.000000e+00> : vector<2x25x32xf32>
    %64 = tpu.matmul %59, %63, %cst_30 {dimension_numbers = #tpu.dot_dimension_numbers<[2], [1], [1], [2], [0, 0, 0, 1, 1, 2], [0], [0]>} : vector<2x25x16xf32>, vector<2x16x32xf32>, vector<2x25x32xf32> -> vector<2x25x32xf32>
    "tpu.trace_stop"() : () -> ()
    %65 = arith.addf %51, %64 : vector<2x25x32xf32>
    %c2_i32 = arith.constant 2 : i32
    %66 = vector.broadcast %c2_i32 : i32 to vector<25x1xi32>
    %67 = arith.addi %36, %66 : vector<25x1xi32>
    %68 = vector.shape_cast %67 : vector<25x1xi32> to vector<1x25x1xi32>
    %69 = vector.broadcast %68 : vector<1x25x1xi32> to vector<2x25x169xi32>
    %70 = arith.cmpi eq, %35, %69 : vector<2x25x169xi32>
    %71 = arith.extui %70 : vector<2x25x169xi1> to vector<2x25x169xi32>
    %72 = arith.sitofp %71 : vector<2x25x169xi32> to vector<2x25x169xf32>
    "tpu.trace_start"() <{level = 10 : i32, message = "bqp,bpc->bqc"}> : () -> ()
    %cst_31 = arith.constant dense<0.000000e+00> : vector<2x25x16xf32>
    %73 = tpu.matmul %72, %34, %cst_31 {dimension_numbers = #tpu.dot_dimension_numbers<[2], [1], [1], [2], [0, 0, 0, 1, 1, 2], [0], [0]>} : vector<2x25x169xf32>, vector<2x169x16xf32>, vector<2x25x16xf32> -> vector<2x25x16xf32>
    "tpu.trace_stop"() : () -> ()
    %c2 = arith.constant 2 : index
    %c0_32 = arith.constant 0 : index
    %c0_33 = arith.constant 0 : index
    %74 = vector.load %arg5[%c2, %c0_32, %c0_33] : memref<16x16x32xf32, #tpu.memory_space<vmem>>, vector<1x16x32xf32>
    %75 = vector.shape_cast %74 : vector<1x16x32xf32> to vector<16x32xf32>
    %76 = vector.shape_cast %75 : vector<16x32xf32> to vector<1x16x32xf32>
    %77 = vector.broadcast %76 : vector<1x16x32xf32> to vector<2x16x32xf32>
    "tpu.trace_start"() <{level = 10 : i32, message = "bqc,bcd->bqd"}> : () -> ()
    %cst_34 = arith.constant dense<0.000000e+00> : vector<2x25x32xf32>
    %78 = tpu.matmul %73, %77, %cst_34 {dimension_numbers = #tpu.dot_dimension_numbers<[2], [1], [1], [2], [0, 0, 0, 1, 1, 2], [0], [0]>} : vector<2x25x16xf32>, vector<2x16x32xf32>, vector<2x25x32xf32> -> vector<2x25x32xf32>
    "tpu.trace_stop"() : () -> ()
    %79 = arith.addf %65, %78 : vector<2x25x32xf32>
    %c3_i32 = arith.constant 3 : i32
    %80 = vector.broadcast %c3_i32 : i32 to vector<25x1xi32>
    %81 = arith.addi %36, %80 : vector<25x1xi32>
    %82 = vector.shape_cast %81 : vector<25x1xi32> to vector<1x25x1xi32>
    %83 = vector.broadcast %82 : vector<1x25x1xi32> to vector<2x25x169xi32>
    %84 = arith.cmpi eq, %35, %83 : vector<2x25x169xi32>
    %85 = arith.extui %84 : vector<2x25x169xi1> to vector<2x25x169xi32>
    %86 = arith.sitofp %85 : vector<2x25x169xi32> to vector<2x25x169xf32>
    "tpu.trace_start"() <{level = 10 : i32, message = "bqp,bpc->bqc"}> : () -> ()
    %cst_35 = arith.constant dense<0.000000e+00> : vector<2x25x16xf32>
    %87 = tpu.matmul %86, %34, %cst_35 {dimension_numbers = #tpu.dot_dimension_numbers<[2], [1], [1], [2], [0, 0, 0, 1, 1, 2], [0], [0]>} : vector<2x25x169xf32>, vector<2x169x16xf32>, vector<2x25x16xf32> -> vector<2x25x16xf32>
    "tpu.trace_stop"() : () -> ()
    %c3 = arith.constant 3 : index
    %c0_36 = arith.constant 0 : index
    %c0_37 = arith.constant 0 : index
    %88 = vector.load %arg5[%c3, %c0_36, %c0_37] : memref<16x16x32xf32, #tpu.memory_space<vmem>>, vector<1x16x32xf32>
    %89 = vector.shape_cast %88 : vector<1x16x32xf32> to vector<16x32xf32>
    %90 = vector.shape_cast %89 : vector<16x32xf32> to vector<1x16x32xf32>
    %91 = vector.broadcast %90 : vector<1x16x32xf32> to vector<2x16x32xf32>
    "tpu.trace_start"() <{level = 10 : i32, message = "bqc,bcd->bqd"}> : () -> ()
    %cst_38 = arith.constant dense<0.000000e+00> : vector<2x25x32xf32>
    %92 = tpu.matmul %87, %91, %cst_38 {dimension_numbers = #tpu.dot_dimension_numbers<[2], [1], [1], [2], [0, 0, 0, 1, 1, 2], [0], [0]>} : vector<2x25x16xf32>, vector<2x16x32xf32>, vector<2x25x32xf32> -> vector<2x25x32xf32>
    "tpu.trace_stop"() : () -> ()
    %93 = arith.addf %79, %92 : vector<2x25x32xf32>
    %c13_i32 = arith.constant 13 : i32
    %94 = vector.broadcast %c13_i32 : i32 to vector<25x1xi32>
    %95 = arith.addi %36, %94 : vector<25x1xi32>
    %96 = vector.shape_cast %95 : vector<25x1xi32> to vector<1x25x1xi32>
    %97 = vector.broadcast %96 : vector<1x25x1xi32> to vector<2x25x169xi32>
    %98 = arith.cmpi eq, %35, %97 : vector<2x25x169xi32>
    %99 = arith.extui %98 : vector<2x25x169xi1> to vector<2x25x169xi32>
    %100 = arith.sitofp %99 : vector<2x25x169xi32> to vector<2x25x169xf32>
    "tpu.trace_start"() <{level = 10 : i32, message = "bqp,bpc->bqc"}> : () -> ()
    %cst_39 = arith.constant dense<0.000000e+00> : vector<2x25x16xf32>
    %101 = tpu.matmul %100, %34, %cst_39 {dimension_numbers = #tpu.dot_dimension_numbers<[2], [1], [1], [2], [0, 0, 0, 1, 1, 2], [0], [0]>} : vector<2x25x169xf32>, vector<2x169x16xf32>, vector<2x25x16xf32> -> vector<2x25x16xf32>
    "tpu.trace_stop"() : () -> ()
    %c4 = arith.constant 4 : index
    %c0_40 = arith.constant 0 : index
    %c0_41 = arith.constant 0 : index
    %102 = vector.load %arg5[%c4, %c0_40, %c0_41] : memref<16x16x32xf32, #tpu.memory_space<vmem>>, vector<1x16x32xf32>
    %103 = vector.shape_cast %102 : vector<1x16x32xf32> to vector<16x32xf32>
    %104 = vector.shape_cast %103 : vector<16x32xf32> to vector<1x16x32xf32>
    %105 = vector.broadcast %104 : vector<1x16x32xf32> to vector<2x16x32xf32>
    "tpu.trace_start"() <{level = 10 : i32, message = "bqc,bcd->bqd"}> : () -> ()
    %cst_42 = arith.constant dense<0.000000e+00> : vector<2x25x32xf32>
    %106 = tpu.matmul %101, %105, %cst_42 {dimension_numbers = #tpu.dot_dimension_numbers<[2], [1], [1], [2], [0, 0, 0, 1, 1, 2], [0], [0]>} : vector<2x25x16xf32>, vector<2x16x32xf32>, vector<2x25x32xf32> -> vector<2x25x32xf32>
    "tpu.trace_stop"() : () -> ()
    %107 = arith.addf %93, %106 : vector<2x25x32xf32>
    %c14_i32 = arith.constant 14 : i32
    %108 = vector.broadcast %c14_i32 : i32 to vector<25x1xi32>
    %109 = arith.addi %36, %108 : vector<25x1xi32>
    %110 = vector.shape_cast %109 : vector<25x1xi32> to vector<1x25x1xi32>
    %111 = vector.broadcast %110 : vector<1x25x1xi32> to vector<2x25x169xi32>
    %112 = arith.cmpi eq, %35, %111 : vector<2x25x169xi32>
    %113 = arith.extui %112 : vector<2x25x169xi1> to vector<2x25x169xi32>
    %114 = arith.sitofp %113 : vector<2x25x169xi32> to vector<2x25x169xf32>
    "tpu.trace_start"() <{level = 10 : i32, message = "bqp,bpc->bqc"}> : () -> ()
    %cst_43 = arith.constant dense<0.000000e+00> : vector<2x25x16xf32>
    %115 = tpu.matmul %114, %34, %cst_43 {dimension_numbers = #tpu.dot_dimension_numbers<[2], [1], [1], [2], [0, 0, 0, 1, 1, 2], [0], [0]>} : vector<2x25x169xf32>, vector<2x169x16xf32>, vector<2x25x16xf32> -> vector<2x25x16xf32>
    "tpu.trace_stop"() : () -> ()
    %c5 = arith.constant 5 : index
    %c0_44 = arith.constant 0 : index
    %c0_45 = arith.constant 0 : index
    %116 = vector.load %arg5[%c5, %c0_44, %c0_45] : memref<16x16x32xf32, #tpu.memory_space<vmem>>, vector<1x16x32xf32>
    %117 = vector.shape_cast %116 : vector<1x16x32xf32> to vector<16x32xf32>
    %118 = vector.shape_cast %117 : vector<16x32xf32> to vector<1x16x32xf32>
    %119 = vector.broadcast %118 : vector<1x16x32xf32> to vector<2x16x32xf32>
    "tpu.trace_start"() <{level = 10 : i32, message = "bqc,bcd->bqd"}> : () -> ()
    %cst_46 = arith.constant dense<0.000000e+00> : vector<2x25x32xf32>
    %120 = tpu.matmul %115, %119, %cst_46 {dimension_numbers = #tpu.dot_dimension_numbers<[2], [1], [1], [2], [0, 0, 0, 1, 1, 2], [0], [0]>} : vector<2x25x16xf32>, vector<2x16x32xf32>, vector<2x25x32xf32> -> vector<2x25x32xf32>
    "tpu.trace_stop"() : () -> ()
    %121 = arith.addf %107, %120 : vector<2x25x32xf32>
    %c15_i32 = arith.constant 15 : i32
    %122 = vector.broadcast %c15_i32 : i32 to vector<25x1xi32>
    %123 = arith.addi %36, %122 : vector<25x1xi32>
    %124 = vector.shape_cast %123 : vector<25x1xi32> to vector<1x25x1xi32>
    %125 = vector.broadcast %124 : vector<1x25x1xi32> to vector<2x25x169xi32>
    %126 = arith.cmpi eq, %35, %125 : vector<2x25x169xi32>
    %127 = arith.extui %126 : vector<2x25x169xi1> to vector<2x25x169xi32>
    %128 = arith.sitofp %127 : vector<2x25x169xi32> to vector<2x25x169xf32>
    "tpu.trace_start"() <{level = 10 : i32, message = "bqp,bpc->bqc"}> : () -> ()
    %cst_47 = arith.constant dense<0.000000e+00> : vector<2x25x16xf32>
    %129 = tpu.matmul %128, %34, %cst_47 {dimension_numbers = #tpu.dot_dimension_numbers<[2], [1], [1], [2], [0, 0, 0, 1, 1, 2], [0], [0]>} : vector<2x25x169xf32>, vector<2x169x16xf32>, vector<2x25x16xf32> -> vector<2x25x16xf32>
    "tpu.trace_stop"() : () -> ()
    %c6 = arith.constant 6 : index
    %c0_48 = arith.constant 0 : index
    %c0_49 = arith.constant 0 : index
    %130 = vector.load %arg5[%c6, %c0_48, %c0_49] : memref<16x16x32xf32, #tpu.memory_space<vmem>>, vector<1x16x32xf32>
    %131 = vector.shape_cast %130 : vector<1x16x32xf32> to vector<16x32xf32>
    %132 = vector.shape_cast %131 : vector<16x32xf32> to vector<1x16x32xf32>
    %133 = vector.broadcast %132 : vector<1x16x32xf32> to vector<2x16x32xf32>
    "tpu.trace_start"() <{level = 10 : i32, message = "bqc,bcd->bqd"}> : () -> ()
    %cst_50 = arith.constant dense<0.000000e+00> : vector<2x25x32xf32>
    %134 = tpu.matmul %129, %133, %cst_50 {dimension_numbers = #tpu.dot_dimension_numbers<[2], [1], [1], [2], [0, 0, 0, 1, 1, 2], [0], [0]>} : vector<2x25x16xf32>, vector<2x16x32xf32>, vector<2x25x32xf32> -> vector<2x25x32xf32>
    "tpu.trace_stop"() : () -> ()
    %135 = arith.addf %121, %134 : vector<2x25x32xf32>
    %c16_i32 = arith.constant 16 : i32
    %136 = vector.broadcast %c16_i32 : i32 to vector<25x1xi32>
    %137 = arith.addi %36, %136 : vector<25x1xi32>
    %138 = vector.shape_cast %137 : vector<25x1xi32> to vector<1x25x1xi32>
    %139 = vector.broadcast %138 : vector<1x25x1xi32> to vector<2x25x169xi32>
    %140 = arith.cmpi eq, %35, %139 : vector<2x25x169xi32>
    %141 = arith.extui %140 : vector<2x25x169xi1> to vector<2x25x169xi32>
    %142 = arith.sitofp %141 : vector<2x25x169xi32> to vector<2x25x169xf32>
    "tpu.trace_start"() <{level = 10 : i32, message = "bqp,bpc->bqc"}> : () -> ()
    %cst_51 = arith.constant dense<0.000000e+00> : vector<2x25x16xf32>
    %143 = tpu.matmul %142, %34, %cst_51 {dimension_numbers = #tpu.dot_dimension_numbers<[2], [1], [1], [2], [0, 0, 0, 1, 1, 2], [0], [0]>} : vector<2x25x169xf32>, vector<2x169x16xf32>, vector<2x25x16xf32> -> vector<2x25x16xf32>
    "tpu.trace_stop"() : () -> ()
    %c7 = arith.constant 7 : index
    %c0_52 = arith.constant 0 : index
    %c0_53 = arith.constant 0 : index
    %144 = vector.load %arg5[%c7, %c0_52, %c0_53] : memref<16x16x32xf32, #tpu.memory_space<vmem>>, vector<1x16x32xf32>
    %145 = vector.shape_cast %144 : vector<1x16x32xf32> to vector<16x32xf32>
    %146 = vector.shape_cast %145 : vector<16x32xf32> to vector<1x16x32xf32>
    %147 = vector.broadcast %146 : vector<1x16x32xf32> to vector<2x16x32xf32>
    "tpu.trace_start"() <{level = 10 : i32, message = "bqc,bcd->bqd"}> : () -> ()
    %cst_54 = arith.constant dense<0.000000e+00> : vector<2x25x32xf32>
    %148 = tpu.matmul %143, %147, %cst_54 {dimension_numbers = #tpu.dot_dimension_numbers<[2], [1], [1], [2], [0, 0, 0, 1, 1, 2], [0], [0]>} : vector<2x25x16xf32>, vector<2x16x32xf32>, vector<2x25x32xf32> -> vector<2x25x32xf32>
    "tpu.trace_stop"() : () -> ()
    %149 = arith.addf %135, %148 : vector<2x25x32xf32>
    %c26_i32 = arith.constant 26 : i32
    %150 = vector.broadcast %c26_i32 : i32 to vector<25x1xi32>
    %151 = arith.addi %36, %150 : vector<25x1xi32>
    %152 = vector.shape_cast %151 : vector<25x1xi32> to vector<1x25x1xi32>
    %153 = vector.broadcast %152 : vector<1x25x1xi32> to vector<2x25x169xi32>
    %154 = arith.cmpi eq, %35, %153 : vector<2x25x169xi32>
    %155 = arith.extui %154 : vector<2x25x169xi1> to vector<2x25x169xi32>
    %156 = arith.sitofp %155 : vector<2x25x169xi32> to vector<2x25x169xf32>
    "tpu.trace_start"() <{level = 10 : i32, message = "bqp,bpc->bqc"}> : () -> ()
    %cst_55 = arith.constant dense<0.000000e+00> : vector<2x25x16xf32>
    %157 = tpu.matmul %156, %34, %cst_55 {dimension_numbers = #tpu.dot_dimension_numbers<[2], [1], [1], [2], [0, 0, 0, 1, 1, 2], [0], [0]>} : vector<2x25x169xf32>, vector<2x169x16xf32>, vector<2x25x16xf32> -> vector<2x25x16xf32>
    "tpu.trace_stop"() : () -> ()
    %c8 = arith.constant 8 : index
    %c0_56 = arith.constant 0 : index
    %c0_57 = arith.constant 0 : index
    %158 = vector.load %arg5[%c8, %c0_56, %c0_57] : memref<16x16x32xf32, #tpu.memory_space<vmem>>, vector<1x16x32xf32>
    %159 = vector.shape_cast %158 : vector<1x16x32xf32> to vector<16x32xf32>
    %160 = vector.shape_cast %159 : vector<16x32xf32> to vector<1x16x32xf32>
    %161 = vector.broadcast %160 : vector<1x16x32xf32> to vector<2x16x32xf32>
    "tpu.trace_start"() <{level = 10 : i32, message = "bqc,bcd->bqd"}> : () -> ()
    %cst_58 = arith.constant dense<0.000000e+00> : vector<2x25x32xf32>
    %162 = tpu.matmul %157, %161, %cst_58 {dimension_numbers = #tpu.dot_dimension_numbers<[2], [1], [1], [2], [0, 0, 0, 1, 1, 2], [0], [0]>} : vector<2x25x16xf32>, vector<2x16x32xf32>, vector<2x25x32xf32> -> vector<2x25x32xf32>
    "tpu.trace_stop"() : () -> ()
    %163 = arith.addf %149, %162 : vector<2x25x32xf32>
    %c27_i32 = arith.constant 27 : i32
    %164 = vector.broadcast %c27_i32 : i32 to vector<25x1xi32>
    %165 = arith.addi %36, %164 : vector<25x1xi32>
    %166 = vector.shape_cast %165 : vector<25x1xi32> to vector<1x25x1xi32>
    %167 = vector.broadcast %166 : vector<1x25x1xi32> to vector<2x25x169xi32>
    %168 = arith.cmpi eq, %35, %167 : vector<2x25x169xi32>
    %169 = arith.extui %168 : vector<2x25x169xi1> to vector<2x25x169xi32>
    %170 = arith.sitofp %169 : vector<2x25x169xi32> to vector<2x25x169xf32>
    "tpu.trace_start"() <{level = 10 : i32, message = "bqp,bpc->bqc"}> : () -> ()
    %cst_59 = arith.constant dense<0.000000e+00> : vector<2x25x16xf32>
    %171 = tpu.matmul %170, %34, %cst_59 {dimension_numbers = #tpu.dot_dimension_numbers<[2], [1], [1], [2], [0, 0, 0, 1, 1, 2], [0], [0]>} : vector<2x25x169xf32>, vector<2x169x16xf32>, vector<2x25x16xf32> -> vector<2x25x16xf32>
    "tpu.trace_stop"() : () -> ()
    %c9 = arith.constant 9 : index
    %c0_60 = arith.constant 0 : index
    %c0_61 = arith.constant 0 : index
    %172 = vector.load %arg5[%c9, %c0_60, %c0_61] : memref<16x16x32xf32, #tpu.memory_space<vmem>>, vector<1x16x32xf32>
    %173 = vector.shape_cast %172 : vector<1x16x32xf32> to vector<16x32xf32>
    %174 = vector.shape_cast %173 : vector<16x32xf32> to vector<1x16x32xf32>
    %175 = vector.broadcast %174 : vector<1x16x32xf32> to vector<2x16x32xf32>
    "tpu.trace_start"() <{level = 10 : i32, message = "bqc,bcd->bqd"}> : () -> ()
    %cst_62 = arith.constant dense<0.000000e+00> : vector<2x25x32xf32>
    %176 = tpu.matmul %171, %175, %cst_62 {dimension_numbers = #tpu.dot_dimension_numbers<[2], [1], [1], [2], [0, 0, 0, 1, 1, 2], [0], [0]>} : vector<2x25x16xf32>, vector<2x16x32xf32>, vector<2x25x32xf32> -> vector<2x25x32xf32>
    "tpu.trace_stop"() : () -> ()
    %177 = arith.addf %163, %176 : vector<2x25x32xf32>
    %c28_i32 = arith.constant 28 : i32
    %178 = vector.broadcast %c28_i32 : i32 to vector<25x1xi32>
    %179 = arith.addi %36, %178 : vector<25x1xi32>
    %180 = vector.shape_cast %179 : vector<25x1xi32> to vector<1x25x1xi32>
    %181 = vector.broadcast %180 : vector<1x25x1xi32> to vector<2x25x169xi32>
    %182 = arith.cmpi eq, %35, %181 : vector<2x25x169xi32>
    %183 = arith.extui %182 : vector<2x25x169xi1> to vector<2x25x169xi32>
    %184 = arith.sitofp %183 : vector<2x25x169xi32> to vector<2x25x169xf32>
    "tpu.trace_start"() <{level = 10 : i32, message = "bqp,bpc->bqc"}> : () -> ()
    %cst_63 = arith.constant dense<0.000000e+00> : vector<2x25x16xf32>
    %185 = tpu.matmul %184, %34, %cst_63 {dimension_numbers = #tpu.dot_dimension_numbers<[2], [1], [1], [2], [0, 0, 0, 1, 1, 2], [0], [0]>} : vector<2x25x169xf32>, vector<2x169x16xf32>, vector<2x25x16xf32> -> vector<2x25x16xf32>
    "tpu.trace_stop"() : () -> ()
    %c10 = arith.constant 10 : index
    %c0_64 = arith.constant 0 : index
    %c0_65 = arith.constant 0 : index
    %186 = vector.load %arg5[%c10, %c0_64, %c0_65] : memref<16x16x32xf32, #tpu.memory_space<vmem>>, vector<1x16x32xf32>
    %187 = vector.shape_cast %186 : vector<1x16x32xf32> to vector<16x32xf32>
    %188 = vector.shape_cast %187 : vector<16x32xf32> to vector<1x16x32xf32>
    %189 = vector.broadcast %188 : vector<1x16x32xf32> to vector<2x16x32xf32>
    "tpu.trace_start"() <{level = 10 : i32, message = "bqc,bcd->bqd"}> : () -> ()
    %cst_66 = arith.constant dense<0.000000e+00> : vector<2x25x32xf32>
    %190 = tpu.matmul %185, %189, %cst_66 {dimension_numbers = #tpu.dot_dimension_numbers<[2], [1], [1], [2], [0, 0, 0, 1, 1, 2], [0], [0]>} : vector<2x25x16xf32>, vector<2x16x32xf32>, vector<2x25x32xf32> -> vector<2x25x32xf32>
    "tpu.trace_stop"() : () -> ()
    %191 = arith.addf %177, %190 : vector<2x25x32xf32>
    %c29_i32 = arith.constant 29 : i32
    %192 = vector.broadcast %c29_i32 : i32 to vector<25x1xi32>
    %193 = arith.addi %36, %192 : vector<25x1xi32>
    %194 = vector.shape_cast %193 : vector<25x1xi32> to vector<1x25x1xi32>
    %195 = vector.broadcast %194 : vector<1x25x1xi32> to vector<2x25x169xi32>
    %196 = arith.cmpi eq, %35, %195 : vector<2x25x169xi32>
    %197 = arith.extui %196 : vector<2x25x169xi1> to vector<2x25x169xi32>
    %198 = arith.sitofp %197 : vector<2x25x169xi32> to vector<2x25x169xf32>
    "tpu.trace_start"() <{level = 10 : i32, message = "bqp,bpc->bqc"}> : () -> ()
    %cst_67 = arith.constant dense<0.000000e+00> : vector<2x25x16xf32>
    %199 = tpu.matmul %198, %34, %cst_67 {dimension_numbers = #tpu.dot_dimension_numbers<[2], [1], [1], [2], [0, 0, 0, 1, 1, 2], [0], [0]>} : vector<2x25x169xf32>, vector<2x169x16xf32>, vector<2x25x16xf32> -> vector<2x25x16xf32>
    "tpu.trace_stop"() : () -> ()
    %c11 = arith.constant 11 : index
    %c0_68 = arith.constant 0 : index
    %c0_69 = arith.constant 0 : index
    %200 = vector.load %arg5[%c11, %c0_68, %c0_69] : memref<16x16x32xf32, #tpu.memory_space<vmem>>, vector<1x16x32xf32>
    %201 = vector.shape_cast %200 : vector<1x16x32xf32> to vector<16x32xf32>
    %202 = vector.shape_cast %201 : vector<16x32xf32> to vector<1x16x32xf32>
    %203 = vector.broadcast %202 : vector<1x16x32xf32> to vector<2x16x32xf32>
    "tpu.trace_start"() <{level = 10 : i32, message = "bqc,bcd->bqd"}> : () -> ()
    %cst_70 = arith.constant dense<0.000000e+00> : vector<2x25x32xf32>
    %204 = tpu.matmul %199, %203, %cst_70 {dimension_numbers = #tpu.dot_dimension_numbers<[2], [1], [1], [2], [0, 0, 0, 1, 1, 2], [0], [0]>} : vector<2x25x16xf32>, vector<2x16x32xf32>, vector<2x25x32xf32> -> vector<2x25x32xf32>
    "tpu.trace_stop"() : () -> ()
    %205 = arith.addf %191, %204 : vector<2x25x32xf32>
    %c39_i32 = arith.constant 39 : i32
    %206 = vector.broadcast %c39_i32 : i32 to vector<25x1xi32>
    %207 = arith.addi %36, %206 : vector<25x1xi32>
    %208 = vector.shape_cast %207 : vector<25x1xi32> to vector<1x25x1xi32>
    %209 = vector.broadcast %208 : vector<1x25x1xi32> to vector<2x25x169xi32>
    %210 = arith.cmpi eq, %35, %209 : vector<2x25x169xi32>
    %211 = arith.extui %210 : vector<2x25x169xi1> to vector<2x25x169xi32>
    %212 = arith.sitofp %211 : vector<2x25x169xi32> to vector<2x25x169xf32>
    "tpu.trace_start"() <{level = 10 : i32, message = "bqp,bpc->bqc"}> : () -> ()
    %cst_71 = arith.constant dense<0.000000e+00> : vector<2x25x16xf32>
    %213 = tpu.matmul %212, %34, %cst_71 {dimension_numbers = #tpu.dot_dimension_numbers<[2], [1], [1], [2], [0, 0, 0, 1, 1, 2], [0], [0]>} : vector<2x25x169xf32>, vector<2x169x16xf32>, vector<2x25x16xf32> -> vector<2x25x16xf32>
    "tpu.trace_stop"() : () -> ()
    %c12 = arith.constant 12 : index
    %c0_72 = arith.constant 0 : index
    %c0_73 = arith.constant 0 : index
    %214 = vector.load %arg5[%c12, %c0_72, %c0_73] : memref<16x16x32xf32, #tpu.memory_space<vmem>>, vector<1x16x32xf32>
    %215 = vector.shape_cast %214 : vector<1x16x32xf32> to vector<16x32xf32>
    %216 = vector.shape_cast %215 : vector<16x32xf32> to vector<1x16x32xf32>
    %217 = vector.broadcast %216 : vector<1x16x32xf32> to vector<2x16x32xf32>
    "tpu.trace_start"() <{level = 10 : i32, message = "bqc,bcd->bqd"}> : () -> ()
    %cst_74 = arith.constant dense<0.000000e+00> : vector<2x25x32xf32>
    %218 = tpu.matmul %213, %217, %cst_74 {dimension_numbers = #tpu.dot_dimension_numbers<[2], [1], [1], [2], [0, 0, 0, 1, 1, 2], [0], [0]>} : vector<2x25x16xf32>, vector<2x16x32xf32>, vector<2x25x32xf32> -> vector<2x25x32xf32>
    "tpu.trace_stop"() : () -> ()
    %219 = arith.addf %205, %218 : vector<2x25x32xf32>
    %c40_i32 = arith.constant 40 : i32
    %220 = vector.broadcast %c40_i32 : i32 to vector<25x1xi32>
    %221 = arith.addi %36, %220 : vector<25x1xi32>
    %222 = vector.shape_cast %221 : vector<25x1xi32> to vector<1x25x1xi32>
    %223 = vector.broadcast %222 : vector<1x25x1xi32> to vector<2x25x169xi32>
    %224 = arith.cmpi eq, %35, %223 : vector<2x25x169xi32>
    %225 = arith.extui %224 : vector<2x25x169xi1> to vector<2x25x169xi32>
    %226 = arith.sitofp %225 : vector<2x25x169xi32> to vector<2x25x169xf32>
    "tpu.trace_start"() <{level = 10 : i32, message = "bqp,bpc->bqc"}> : () -> ()
    %cst_75 = arith.constant dense<0.000000e+00> : vector<2x25x16xf32>
    %227 = tpu.matmul %226, %34, %cst_75 {dimension_numbers = #tpu.dot_dimension_numbers<[2], [1], [1], [2], [0, 0, 0, 1, 1, 2], [0], [0]>} : vector<2x25x169xf32>, vector<2x169x16xf32>, vector<2x25x16xf32> -> vector<2x25x16xf32>
    "tpu.trace_stop"() : () -> ()
    %c13 = arith.constant 13 : index
    %c0_76 = arith.constant 0 : index
    %c0_77 = arith.constant 0 : index
    %228 = vector.load %arg5[%c13, %c0_76, %c0_77] : memref<16x16x32xf32, #tpu.memory_space<vmem>>, vector<1x16x32xf32>
    %229 = vector.shape_cast %228 : vector<1x16x32xf32> to vector<16x32xf32>
    %230 = vector.shape_cast %229 : vector<16x32xf32> to vector<1x16x32xf32>
    %231 = vector.broadcast %230 : vector<1x16x32xf32> to vector<2x16x32xf32>
    "tpu.trace_start"() <{level = 10 : i32, message = "bqc,bcd->bqd"}> : () -> ()
    %cst_78 = arith.constant dense<0.000000e+00> : vector<2x25x32xf32>
    %232 = tpu.matmul %227, %231, %cst_78 {dimension_numbers = #tpu.dot_dimension_numbers<[2], [1], [1], [2], [0, 0, 0, 1, 1, 2], [0], [0]>} : vector<2x25x16xf32>, vector<2x16x32xf32>, vector<2x25x32xf32> -> vector<2x25x32xf32>
    "tpu.trace_stop"() : () -> ()
    %233 = arith.addf %219, %232 : vector<2x25x32xf32>
    %c41_i32 = arith.constant 41 : i32
    %234 = vector.broadcast %c41_i32 : i32 to vector<25x1xi32>
    %235 = arith.addi %36, %234 : vector<25x1xi32>
    %236 = vector.shape_cast %235 : vector<25x1xi32> to vector<1x25x1xi32>
    %237 = vector.broadcast %236 : vector<1x25x1xi32> to vector<2x25x169xi32>
    %238 = arith.cmpi eq, %35, %237 : vector<2x25x169xi32>
    %239 = arith.extui %238 : vector<2x25x169xi1> to vector<2x25x169xi32>
    %240 = arith.sitofp %239 : vector<2x25x169xi32> to vector<2x25x169xf32>
    "tpu.trace_start"() <{level = 10 : i32, message = "bqp,bpc->bqc"}> : () -> ()
    %cst_79 = arith.constant dense<0.000000e+00> : vector<2x25x16xf32>
    %241 = tpu.matmul %240, %34, %cst_79 {dimension_numbers = #tpu.dot_dimension_numbers<[2], [1], [1], [2], [0, 0, 0, 1, 1, 2], [0], [0]>} : vector<2x25x169xf32>, vector<2x169x16xf32>, vector<2x25x16xf32> -> vector<2x25x16xf32>
    "tpu.trace_stop"() : () -> ()
    %c14 = arith.constant 14 : index
    %c0_80 = arith.constant 0 : index
    %c0_81 = arith.constant 0 : index
    %242 = vector.load %arg5[%c14, %c0_80, %c0_81] : memref<16x16x32xf32, #tpu.memory_space<vmem>>, vector<1x16x32xf32>
    %243 = vector.shape_cast %242 : vector<1x16x32xf32> to vector<16x32xf32>
    %244 = vector.shape_cast %243 : vector<16x32xf32> to vector<1x16x32xf32>
    %245 = vector.broadcast %244 : vector<1x16x32xf32> to vector<2x16x32xf32>
    "tpu.trace_start"() <{level = 10 : i32, message = "bqc,bcd->bqd"}> : () -> ()
    %cst_82 = arith.constant dense<0.000000e+00> : vector<2x25x32xf32>
    %246 = tpu.matmul %241, %245, %cst_82 {dimension_numbers = #tpu.dot_dimension_numbers<[2], [1], [1], [2], [0, 0, 0, 1, 1, 2], [0], [0]>} : vector<2x25x16xf32>, vector<2x16x32xf32>, vector<2x25x32xf32> -> vector<2x25x32xf32>
    "tpu.trace_stop"() : () -> ()
    %247 = arith.addf %233, %246 : vector<2x25x32xf32>
    %c42_i32 = arith.constant 42 : i32
    %248 = vector.broadcast %c42_i32 : i32 to vector<25x1xi32>
    %249 = arith.addi %36, %248 : vector<25x1xi32>
    %250 = vector.shape_cast %249 : vector<25x1xi32> to vector<1x25x1xi32>
    %251 = vector.broadcast %250 : vector<1x25x1xi32> to vector<2x25x169xi32>
    %252 = arith.cmpi eq, %35, %251 : vector<2x25x169xi32>
    %253 = arith.extui %252 : vector<2x25x169xi1> to vector<2x25x169xi32>
    %254 = arith.sitofp %253 : vector<2x25x169xi32> to vector<2x25x169xf32>
    "tpu.trace_start"() <{level = 10 : i32, message = "bqp,bpc->bqc"}> : () -> ()
    %cst_83 = arith.constant dense<0.000000e+00> : vector<2x25x16xf32>
    %255 = tpu.matmul %254, %34, %cst_83 {dimension_numbers = #tpu.dot_dimension_numbers<[2], [1], [1], [2], [0, 0, 0, 1, 1, 2], [0], [0]>} : vector<2x25x169xf32>, vector<2x169x16xf32>, vector<2x25x16xf32> -> vector<2x25x16xf32>
    "tpu.trace_stop"() : () -> ()
    %c15 = arith.constant 15 : index
    %c0_84 = arith.constant 0 : index
    %c0_85 = arith.constant 0 : index
    %256 = vector.load %arg5[%c15, %c0_84, %c0_85] : memref<16x16x32xf32, #tpu.memory_space<vmem>>, vector<1x16x32xf32>
    %257 = vector.shape_cast %256 : vector<1x16x32xf32> to vector<16x32xf32>
    %258 = vector.shape_cast %257 : vector<16x32xf32> to vector<1x16x32xf32>
    %259 = vector.broadcast %258 : vector<1x16x32xf32> to vector<2x16x32xf32>
    "tpu.trace_start"() <{level = 10 : i32, message = "bqc,bcd->bqd"}> : () -> ()
    %cst_86 = arith.constant dense<0.000000e+00> : vector<2x25x32xf32>
    %260 = tpu.matmul %255, %259, %cst_86 {dimension_numbers = #tpu.dot_dimension_numbers<[2], [1], [1], [2], [0, 0, 0, 1, 1, 2], [0], [0]>} : vector<2x25x16xf32>, vector<2x16x32xf32>, vector<2x25x32xf32> -> vector<2x25x32xf32>
    "tpu.trace_stop"() : () -> ()
    %261 = arith.addf %247, %260 : vector<2x25x32xf32>
    %c0_87 = arith.constant 0 : index
    %c0_88 = arith.constant 0 : index
    %c0_89 = arith.constant 0 : index
    %262 = vector.load %arg6[%c0_87, %c0_88, %c0_89] : memref<1x1x32xf32, #tpu.memory_space<vmem>>, vector<1x1x32xf32>
    %c0_90 = arith.constant 0 : index
    %c0_91 = arith.constant 0 : index
    %c0_92 = arith.constant 0 : index
    %263 = vector.load %arg7[%c0_90, %c0_91, %c0_92] : memref<1x1x32xf32, #tpu.memory_space<vmem>>, vector<1x1x32xf32>
    %cst_93 = arith.constant dense<0.000000e+00> : vector<2x32xf32>
    %264 = vector.multi_reduction <add>, %261, %cst_93 [1] : vector<2x25x32xf32> to vector<2x32xf32>
    %265 = vector.shape_cast %264 : vector<2x32xf32> to vector<2x1x32xf32>
    %cst_94 = arith.constant dense<0.000000e+00> : vector<1x32xf32>
    %266 = vector.multi_reduction <add>, %265, %cst_94 [0] : vector<2x1x32xf32> to vector<1x32xf32>
    %267 = vector.shape_cast %266 : vector<1x32xf32> to vector<1x1x32xf32>
    %cst_95 = arith.constant 2.000000e-02 : f32
    %268 = vector.broadcast %cst_95 : f32 to vector<1x1x32xf32>
    %269 = arith.mulf %267, %268 : vector<1x1x32xf32>
    %270 = vector.broadcast %269 : vector<1x1x32xf32> to vector<2x25x32xf32>
    %271 = arith.subf %261, %270 : vector<2x25x32xf32>
    %272 = arith.mulf %271, %271 : vector<2x25x32xf32>
    %cst_96 = arith.constant dense<0.000000e+00> : vector<2x32xf32>
    %273 = vector.multi_reduction <add>, %272, %cst_96 [1] : vector<2x25x32xf32> to vector<2x32xf32>
    %274 = vector.shape_cast %273 : vector<2x32xf32> to vector<2x1x32xf32>
    %cst_97 = arith.constant dense<0.000000e+00> : vector<1x32xf32>
    %275 = vector.multi_reduction <add>, %274, %cst_97 [0] : vector<2x1x32xf32> to vector<1x32xf32>
    %276 = vector.shape_cast %275 : vector<1x32xf32> to vector<1x1x32xf32>
    %cst_98 = arith.constant 2.000000e-02 : f32
    %277 = vector.broadcast %cst_98 : f32 to vector<1x1x32xf32>
    %278 = arith.mulf %276, %277 : vector<1x1x32xf32>
    %cst_99 = arith.constant 9.99999974E-6 : f32
    %279 = vector.broadcast %cst_99 : f32 to vector<1x1x32xf32>
    %280 = arith.addf %278, %279 : vector<1x1x32xf32>
    %281 = math.rsqrt %280 : vector<1x1x32xf32>
    %282 = arith.mulf %262, %281 : vector<1x1x32xf32>
    %283 = vector.broadcast %282 : vector<1x1x32xf32> to vector<2x25x32xf32>
    %284 = arith.mulf %271, %283 : vector<2x25x32xf32>
    %285 = vector.broadcast %263 : vector<1x1x32xf32> to vector<2x25x32xf32>
    %286 = arith.addf %284, %285 : vector<2x25x32xf32>
    %cst_100 = arith.constant 0.000000e+00 : f32
    %287 = vector.broadcast %cst_100 : f32 to vector<2x25x32xf32>
    %288 = arith.cmpf oge, %286, %287 : vector<2x25x32xf32>
    %cst_101 = arith.constant 2.000000e-01 : f32
    %289 = vector.broadcast %cst_101 : f32 to vector<2x25x32xf32>
    %290 = arith.mulf %289, %286 : vector<2x25x32xf32>
    %291 = arith.select %288, %286, %290 : vector<2x25x32xi1>, vector<2x25x32xf32>
    %c0_102 = arith.constant 0 : index
    %c0_103 = arith.constant 0 : index
    %c0_104 = arith.constant 0 : index
    %292 = vector.load %arg8[%c0_102, %c0_103, %c0_104] : memref<1x25x32xf32, #tpu.memory_space<vmem>>, vector<1x25x32xf32>
    %293 = vector.broadcast %292 : vector<1x25x32xf32> to vector<2x25x32xf32>
    %294 = arith.mulf %291, %293 : vector<2x25x32xf32>
    %cst_105 = arith.constant dense<0.000000e+00> : vector<2x25xf32>
    %295 = vector.multi_reduction <add>, %294, %cst_105 [2] : vector<2x25x32xf32> to vector<2x25xf32>
    %296 = vector.shape_cast %295 : vector<2x25xf32> to vector<2x25x1xf32>
    %cst_106 = arith.constant dense<0.000000e+00> : vector<2x1xf32>
    %297 = vector.multi_reduction <add>, %296, %cst_106 [1] : vector<2x25x1xf32> to vector<2x1xf32>
    %c0_107 = arith.constant 0 : index
    %c0_108 = arith.constant 0 : index
    %298 = vector.load %arg9[%c0_107, %c0_108] : memref<1x1xf32, #tpu.memory_space<vmem>>, vector<1x1xf32>
    %299 = vector.broadcast %298 : vector<1x1xf32> to vector<2x1xf32>
    %300 = arith.addf %297, %299 : vector<2x1xf32>
    %c0_109 = arith.constant 0 : index
    %c0_110 = arith.constant 0 : index
    %301 = vector.load %arg10[%c0_109, %c0_110] : memref<2x1xf32, #tpu.memory_space<vmem>>, vector<2x1xf32>
    tpu.vector_store %arg10[%c0_109, %c0_110], %300 {strides = array<i32>} : memref<2x1xf32, #tpu.memory_space<vmem>>, vector<2x1xf32>,
    return
  }
}

</mosaic_0001>

<llo_original>
// kernel: critic_forward.1
$region0: #{critic_forward.1}
  #allocation0 [shape = 'u32[]', space=smem, size = 0x4, offset = 0x4, fixed_abs, tag = 'smem constant byte address 0x4 - core index']
  #allocation1 [shape = 'u32[144,128]{1,0:T(1,128)}', space=vmem, size = 0x12000, scoped, tag = 'internal scratch']
  #allocation2 [shape = 'f32[1,1]{1,0:T(1,128)S(1)}', space=vmem, size = 0x200, scoped, tag = 'scoped memory for critic_forward.1']
  %s0 = inlined_call_operand.vmem [shape: f32[2,169,16], index: 0, kind: input, shape index: {}]
  %s1 = inlined_call_operand.vmem [shape: f32[16,16], index: 1, kind: input, shape index: {}]
  %s2 = inlined_call_operand.vmem [shape: f32[1,1,16], index: 2, kind: input, shape index: {}]
  %s3 = inlined_call_operand.vmem [shape: f32[1,1,16], index: 3, kind: input, shape index: {}]
  %s4 = inlined_call_operand.vmem [shape: s32[25,1], index: 4, kind: input, shape index: {}]
  %s5 = inlined_call_operand.vmem [shape: f32[16,16,32], index: 5, kind: input, shape index: {}]
  %s6 = inlined_call_operand.vmem [shape: f32[1,1,32], index: 6, kind: input, shape index: {}]
  %s7 = inlined_call_operand.vmem [shape: f32[1,1,32], index: 7, kind: input, shape index: {}]
  %s8 = inlined_call_operand.vmem [shape: f32[1,25,32], index: 8, kind: input, shape index: {}]
  %s9 = inlined_call_operand.<no memory space> [shape: f32[1,1], index: 9, kind: input, shape index: {}]
  %s10 = inlined_call_operand.vmem [shape: f32[2,1], index: 10, kind: output, shape index: {}]
  %s11 = sld [smem:[#allocation0]]
  $region50: #{critic_forward.1} parent=0
    _
  %s13 = ssub.s32 1, %s11
  %s14 = scalar_select 0, %s13, %s11
  %v15 = vstv %s9
  %16 = vst [vmem:[#allocation2] sm:$0x1] %v15
  // Predicated region
  $region2: #{critic_forward.1} parent=0 // pred_check
    _
  $region3: #{critic_forward.1} parent=0 // pred_check_branch
    %18 = sbr.rel (0) target = $region5
  $region4: #{critic_forward.1} parent=0 // pred_region
    _
  $region5: #{critic_forward.1} parent=0 // pred_fallthru
    _
  // Predicated region
  $region6: #{critic_forward.1} parent=0 // pred_check
    _
  $region7: #{critic_forward.1} parent=0 // pred_check_branch
    %20 = sbr.rel (0) target = $region9
  $region8: #{critic_forward.1} parent=0 // pred_region
    _
  $region9: #{critic_forward.1} parent=0 // pred_fallthru
    _
  // Predicated region
  $region10: #{critic_forward.1} parent=0 // pred_check
    _
  $region11: #{critic_forward.1} parent=0 // pred_check_branch
    %22 = sbr.rel (0) target = $region13
  $region12: #{critic_forward.1} parent=0 // pred_region
    _
  $region13: #{critic_forward.1} parent=0 // pred_fallthru
    _
  // Predicated region
  $region14: #{critic_forward.1} parent=0 // pred_check
    _
  $region15: #{critic_forward.1} parent=0 // pred_check_branch
    %24 = sbr.rel (0) target = $region17
  $region16: #{critic_forward.1} parent=0 // pred_region
    _
  $region17: #{critic_forward.1} parent=0 // pred_fallthru
    _
  // Predicated region
  $region18: #{critic_forward.1} parent=0 // pred_check
    _
  $region19: #{critic_forward.1} parent=0 // pred_check_branch
    %26 = sbr.rel (0) target = $region21
  $region20: #{critic_forward.1} parent=0 // pred_region
    _
  $region21: #{critic_forward.1} parent=0 // pred_fallthru
    _
  // Predicated region
  $region22: #{critic_forward.1} parent=0 // pred_check
    _
  $region23: #{critic_forward.1} parent=0 // pred_check_branch
    %28 = sbr.rel (0) target = $region25
  $region24: #{critic_forward.1} parent=0 // pred_region
    _
  $region25: #{critic_forward.1} parent=0 // pred_fallthru
    _
  // Predicated region
  $region26: #{critic_forward.1} parent=0 // pred_check
    _
  $region27: #{critic_forward.1} parent=0 // pred_check_branch
    %30 = sbr.rel (0) target = $region29
  $region28: #{critic_forward.1} parent=0 // pred_region
    _
  $region29: #{critic_forward.1} parent=0 // pred_fallthru
    _
  // Predicated region
  $region30: #{critic_forward.1} parent=0 // pred_check
    _
  $region31: #{critic_forward.1} parent=0 // pred_check_branch
    %32 = sbr.rel (0) target = $region33
  $region32: #{critic_forward.1} parent=0 // pred_region
    _
  $region33: #{critic_forward.1} parent=0 // pred_fallthru
    _
  // Predicated region
  $region34: #{critic_forward.1} parent=0 // pred_check
    _
  $region35: #{critic_forward.1} parent=0 // pred_check_branch
    %34 = sbr.rel (0) target = $region37
  $region36: #{critic_forward.1} parent=0 // pred_region
    _
  $region37: #{critic_forward.1} parent=0 // pred_fallthru
    _
  // Predicated region
  $region38: #{critic_forward.1} parent=0 // pred_check
    _
  $region39: #{critic_forward.1} parent=0 // pred_check_branch
    %36 = sbr.rel (0) target = $region41
  $region40: #{critic_forward.1} parent=0 // pred_region
    _
  $region41: #{critic_forward.1} parent=0 // pred_fallthru
    _
  %v37 = vld [vmem:[%s1] sm:$0xff]
  %v38 = vld [vmem:[%s1 + $0x8] sm:$0xff]
  %v39 = vld [vmem:[%s0] sm:$0xff]
  %v40 = vld [vmem:[%s0 + $0x8] sm:$0xff]
  %v41 = vld [vmem:[%s0 + $0x10] sm:$0xff]
  %v42 = vld [vmem:[%s0 + $0x18] sm:$0xff]
  %v43 = vld [vmem:[%s0 + $0x20] sm:$0xff]
  %v44 = vld [vmem:[%s0 + $0x28] sm:$0xff]
  %v45 = vld [vmem:[%s0 + $0x30] sm:$0xff]
  %v46 = vld [vmem:[%s0 + $0x38] sm:$0xff]
  %v47 = vld [vmem:[%s0 + $0x40] sm:$0xff]
  %v48 = vld [vmem:[%s0 + $0x48] sm:$0xff]
  %v49 = vld [vmem:[%s0 + $0x50] sm:$0xff]
  %v50 = vld [vmem:[%s0 + $0x58] sm:$0xff]
  %v51 = vld [vmem:[%s0 + $0x60] sm:$0xff]
  %v52 = vld [vmem:[%s0 + $0x68] sm:$0xff]
  %v53 = vld [vmem:[%s0 + $0x70] sm:$0xff]
  %v54 = vld [vmem:[%s0 + $0x78] sm:$0xff]
  %v55 = vld [vmem:[%s0 + $0x80] sm:$0xff]
  %v56 = vld [vmem:[%s0 + $0x88] sm:$0xff]
  %v57 = vld [vmem:[%s0 + $0x90] sm:$0xff]
  %v58 = vld [vmem:[%s0 + $0x98] sm:$0xff]
  %v59 = vld [vmem:[%s0 + $0xa0] sm:$0xff]
  %v60 = vld [vmem:[%s0 + $0xa8] sm:$0x1]
  %v61 = vld [vmem:[%s0 + $0xb0] sm:$0xff]
  %v62 = vld [vmem:[%s0 + $0xb8] sm:$0xff]
  %v63 = vld [vmem:[%s0 + $0xc0] sm:$0xff]
  %v64 = vld [vmem:[%s0 + $0xc8] sm:$0xff]
  %v65 = vld [vmem:[%s0 + $0xd0] sm:$0xff]
  %v66 = vld [vmem:[%s0 + $0xd8] sm:$0xff]
  %v67 = vld [vmem:[%s0 + $0xe0] sm:$0xff]
  %v68 = vld [vmem:[%s0 + $0xe8] sm:$0xff]
  %v69 = vld [vmem:[%s0 + $0xf0] sm:$0xff]
  %v70 = vld [vmem:[%s0 + $0xf8] sm:$0xff]
  %v71 = vld [vmem:[%s0 + $0x100] sm:$0xff]
  %v72 = vld [vmem:[%s0 + $0x108] sm:$0xff]
  %v73 = vld [vmem:[%s0 + $0x110] sm:$0xff]
  %v74 = vld [vmem:[%s0 + $0x118] sm:$0xff]
  %v75 = vld [vmem:[%s0 + $0x120] sm:$0xff]
  %v76 = vld [vmem:[%s0 + $0x128] sm:$0xff]
  %v77 = vld [vmem:[%s0 + $0x130] sm:$0xff]
  %v78 = vld [vmem:[%s0 + $0x138] sm:$0xff]
  %v79 = vld [vmem:[%s0 + $0x140] sm:$0xff]
  %v80 = vld [vmem:[%s0 + $0x148] sm:$0xff]
  %v81 = vld [vmem:[%s0 + $0x150] sm:$0xff]
  %v82 = vld [vmem:[%s0 + $0x158] sm:$0x1]
  %vm83 = vcmask 130048
  %v85 = vsel %vm83, %v39, 0
  %v88 = vsel %vm83, %v40, 0
  %v91 = vsel %vm83, %v41, 0
  %v94 = vsel %vm83, %v42, 0
  %v97 = vsel %vm83, %v43, 0
  %v100 = vsel %vm83, %v44, 0
  %v103 = vsel %vm83, %v45, 0
  %v106 = vsel %vm83, %v46, 0
  %v109 = vsel %vm83, %v47, 0
  %v112 = vsel %vm83, %v48, 0
  %v115 = vsel %vm83, %v49, 0
  %v118 = vsel %vm83, %v50, 0
  %v121 = vsel %vm83, %v51, 0
  %v124 = vsel %vm83, %v52, 0
  %v127 = vsel %vm83, %v53, 0
  %v130 = vsel %vm83, %v54, 0
  %v133 = vsel %vm83, %v55, 0
  %v136 = vsel %vm83, %v56, 0
  %v139 = vsel %vm83, %v57, 0
  %v142 = vsel %vm83, %v58, 0
  %v145 = vsel %vm83, %v59, 0
  %v148 = vsel %vm83, %v60, 0
  %150 = vmatprep.subr.mxu0 0.0
  %151 = vmatpush1.msra.mxu0 %v37
  %152 = vmatprep.subr.mxu0 0.0
  %153 = vmatpush1.msra.mxu0 %v38
  %154 = vmatprep.subr.mxu0 0.0
  %155 = vmatpush1.msra.mxu0 0.0
  %156 = vmatprep.subr.mxu0 0.0
  %157 = vmatpush1.msra.mxu0 0.0
  %158 = vmatprep.subr.mxu0 0.0
  %159 = vmatpush1.msra.mxu0 0.0
  %160 = vmatprep.subr.mxu0 0.0
  %161 = vmatpush1.msra.mxu0 0.0
  %162 = vmatprep.subr.mxu0 0.0
  %163 = vmatpush1.msra.mxu0 0.0
  %164 = vmatprep.subr.mxu0 0.0
  %165 = vmatpush1.msra.mxu0 0.0
  %166 = vmatprep.subr.mxu0 0.0
  %167 = vmatpush1.msra.mxu0 0.0
  %168 = vmatprep.subr.mxu0 0.0
  %169 = vmatpush1.msra.mxu0 0.0
  %170 = vmatprep.subr.mxu0 0.0
  %171 = vmatpush1.msra.mxu0 0.0
  %172 = vmatprep.subr.mxu0 0.0
  %173 = vmatpush1.msra.mxu0 0.0
  %174 = vmatprep.subr.mxu0 0.0
  %175 = vmatpush1.msra.mxu0 0.0
  %176 = vmatprep.subr.mxu0 0.0
  %177 = vmatpush1.msra.mxu0 0.0
  %178 = vmatprep.subr.mxu0 0.0
  %179 = vmatpush1.msra.mxu0 0.0
  %180 = vmatprep.subr.mxu0 0.0
  %181 = vmatpush1.msra.mxu0 0.0
  %182 = vmatprep.subr.mxu0 0.0
  %183 = vmatpush1.msra.mxu0 0.0
  %184 = vmatprep.subr.mxu0 0.0
  %185 = vmatpush1.msra.mxu0 0.0
  %186 = vmatprep.subr.mxu0 0.0
  %187 = vmatpush1.msra.mxu0 0.0
  %188 = vmatprep.subr.mxu0 0.0
  %189 = vmatpush1.msra.mxu0 0.0
  %190 = vmatprep.subr.mxu0 0.0
  %191 = vmatpush1.msra.mxu0 0.0
  %192 = vmatprep.subr.mxu0 0.0
  %193 = vmatpush1.msra.mxu0 0.0
  %194 = vmatprep.subr.mxu0 0.0
  %195 = vmatpush1.msra.mxu0 0.0
  %196 = vmatprep.subr.mxu0 0.0
  %197 = vmatpush1.msra.mxu0 0.0
  %198 = vmatprep.subr.mxu0 0.0
  %199 = vmatpush1.msra.mxu0 0.0
  %200 = vmatprep.subr.mxu0 0.0
  %201 = vmatpush1.msra.mxu0 0.0
  %202 = vmatprep.subr.mxu0 0.0
  %203 = vmatpush1.msra.mxu0 0.0
  %204 = vmatprep.subr.mxu0 0.0
  %205 = vmatpush1.msra.mxu0 0.0
  %206 = vmatprep.subr.mxu0 0.0
  %207 = vmatpush1.msra.mxu0 0.0
  %208 = vmatprep.subr.mxu0 0.0
  %209 = vmatpush1.msra.mxu0 0.0
  %210 = vmatprep.subr.mxu0 0.0
  %211 = vmatpush1.msra.mxu0 0.0
  %212 = vmatprep.subr.mxu0 0.0
  %213 = vmatpush1.msra.mxu0 0.0
  %214 = vmatprep.mubr.f32.mxu0 0.0
  %215 = vmatmul.mubr.f32.gmra.mrb[0].mxu0 %v85
  %v216 = vpop.f32.mrb[0].mxu0
  %v217 = vadd.f32 0.0, %v216
  %v218 = vpop.f32.mrb[0].mxu0
  %219 = vmatprep.mubr.f32.mxu0 0.0
  %220 = vmatmul.mubr.f32.gmra.mrb[0].mxu0 %v88
  %v221 = vpop.f32.mrb[0].mxu0
  %v222 = vadd.f32 0.0, %v221
  %v223 = vpop.f32.mrb[0].mxu0
  %224 = vmatprep.mubr.f32.mxu0 0.0
  %225 = vmatmul.mubr.f32.gmra.mrb[0].mxu0 %v91
  %v226 = vpop.f32.mrb[0].mxu0
  %v227 = vadd.f32 0.0, %v226
  %v228 = vpop.f32.mrb[0].mxu0
  %229 = vmatprep.mubr.f32.mxu0 0.0
  %230 = vmatmul.mubr.f32.gmra.mrb[0].mxu0 %v94
  %v231 = vpop.f32.mrb[0].mxu0
  %v232 = vadd.f32 0.0, %v231
  %v233 = vpop.f32.mrb[0].mxu0
  %234 = vmatprep.mubr.f32.mxu0 0.0
  %235 = vmatmul.mubr.f32.gmra.mrb[0].mxu0 %v97
  %v236 = vpop.f32.mrb[0].mxu0
  %v237 = vadd.f32 0.0, %v236
  %v238 = vpop.f32.mrb[0].mxu0
  %239 = vmatprep.mubr.f32.mxu0 0.0
  %240 = vmatmul.mubr.f32.gmra.mrb[0].mxu0 %v100
  %v241 = vpop.f32.mrb[0].mxu0
  %v242 = vadd.f32 0.0, %v241
  %v243 = vpop.f32.mrb[0].mxu0
  %244 = vmatprep.mubr.f32.mxu0 0.0
  %245 = vmatmul.mubr.f32.gmra.mrb[0].mxu0 %v103
  %v246 = vpop.f32.mrb[0].mxu0
  %v247 = vadd.f32 0.0, %v246
  %v248 = vpop.f32.mrb[0].mxu0
  %249 = vmatprep.mubr.f32.mxu0 0.0
  %250 = vmatmul.mubr.f32.gmra.mrb[0].mxu0 %v106
  %v251 = vpop.f32.mrb[0].mxu0
  %v252 = vadd.f32 0.0, %v251
  %v253 = vpop.f32.mrb[0].mxu0
  %254 = vmatprep.mubr.f32.mxu0 0.0
  %255 = vmatmul.mubr.f32.gmra.mrb[0].mxu0 %v109
  %v256 = vpop.f32.mrb[0].mxu0
  %v257 = vadd.f32 0.0, %v256
  %v258 = vpop.f32.mrb[0].mxu0
  %259 = vmatprep.mubr.f32.mxu0 0.0
  %260 = vmatmul.mubr.f32.gmra.mrb[0].mxu0 %v112
  %v261 = vpop.f32.mrb[0].mxu0
  %v262 = vadd.f32 0.0, %v261
  %v263 = vpop.f32.mrb[0].mxu0
  %264 = vmatprep.mubr.f32.mxu0 0.0
  %265 = vmatmul.mubr.f32.gmra.mrb[0].mxu0 %v115
  %v266 = vpop.f32.mrb[0].mxu0
  %v267 = vadd.f32 0.0, %v266
  %v268 = vpop.f32.mrb[0].mxu0
  %269 = vmatprep.mubr.f32.mxu0 0.0
  %270 = vmatmul.mubr.f32.gmra.mrb[0].mxu0 %v118
  %v271 = vpop.f32.mrb[0].mxu0
  %v272 = vadd.f32 0.0, %v271
  %v273 = vpop.f32.mrb[0].mxu0
  %274 = vmatprep.mubr.f32.mxu0 0.0
  %275 = vmatmul.mubr.f32.gmra.mrb[0].mxu0 %v121
  %v276 = vpop.f32.mrb[0].mxu0
  %v277 = vadd.f32 0.0, %v276
  %v278 = vpop.f32.mrb[0].mxu0
  %279 = vmatprep.mubr.f32.mxu0 0.0
  %280 = vmatmul.mubr.f32.gmra.mrb[0].mxu0 %v124
  %v281 = vpop.f32.mrb[0].mxu0
  %v282 = vadd.f32 0.0, %v281
  %v283 = vpop.f32.mrb[0].mxu0
  %284 = vmatprep.mubr.f32.mxu0 0.0
  %285 = vmatmul.mubr.f32.gmra.mrb[0].mxu0 %v127
  %v286 = vpop.f32.mrb[0].mxu0
  %v287 = vadd.f32 0.0, %v286
  %v288 = vpop.f32.mrb[0].mxu0
  %289 = vmatprep.mubr.f32.mxu0 0.0
  %290 = vmatmul.mubr.f32.gmra.mrb[0].mxu0 %v130
  %v291 = vpop.f32.mrb[0].mxu0
  %v292 = vadd.f32 0.0, %v291
  %v293 = vpop.f32.mrb[0].mxu0
  %294 = vmatprep.mubr.f32.mxu0 0.0
  %295 = vmatmul.mubr.f32.gmra.mrb[0].mxu0 %v133
  %v296 = vpop.f32.mrb[0].mxu0
  %v297 = vadd.f32 0.0, %v296
  %v298 = vpop.f32.mrb[0].mxu0
  %299 = vmatprep.mubr.f32.mxu0 0.0
  %300 = vmatmul.mubr.f32.gmra.mrb[0].mxu0 %v136
  %v301 = vpop.f32.mrb[0].mxu0
  %v302 = vadd.f32 0.0, %v301
  %v303 = vpop.f32.mrb[0].mxu0
  %304 = vmatprep.mubr.f32.mxu0 0.0
  %305 = vmatmul.mubr.f32.gmra.mrb[0].mxu0 %v139
  %v306 = vpop.f32.mrb[0].mxu0
  %v307 = vadd.f32 0.0, %v306
  %v308 = vpop.f32.mrb[0].mxu0
  %309 = vmatprep.mubr.f32.mxu0 0.0
  %310 = vmatmul.mubr.f32.gmra.mrb[0].mxu0 %v142
  %v311 = vpop.f32.mrb[0].mxu0
  %v312 = vadd.f32 0.0, %v311
  %v313 = vpop.f32.mrb[0].mxu0
  %314 = vmatprep.mubr.f32.mxu0 0.0
  %315 = vmatmul.mubr.f32.gmra.mrb[0].mxu0 %v145
  %v316 = vpop.f32.mrb[0].mxu0
  %v317 = vadd.f32 0.0, %v316
  %v318 = vpop.f32.mrb[0].mxu0
  %319 = vmatprep.mubr.f32.mxu0 0.0
  %320 = vmatmul.mubr.f32.gmra.mrb[0].mxu0 %v148
  %v321 = vpop.f32.mrb[0].mxu0
  %v322 = vadd.f32 0.0, %v321
  %v323 = vpop.f32.mrb[0].mxu0
  %324 = vdwg.mxu0
  %v326 = vsel %vm83, %v61, 0
  %v329 = vsel %vm83, %v62, 0
  %v332 = vsel %vm83, %v63, 0
  %v335 = vsel %vm83, %v64, 0
  %v338 = vsel %vm83, %v65, 0
  %v341 = vsel %vm83, %v66, 0
  %v344 = vsel %vm83, %v67, 0
  %v347 = vsel %vm83, %v68, 0
  %v350 = vsel %vm83, %v69, 0
  %v353 = vsel %vm83, %v70, 0
  %v356 = vsel %vm83, %v71, 0
  %v359 = vsel %vm83, %v72, 0
  %v362 = vsel %vm83, %v73, 0
  %v365 = vsel %vm83, %v74, 0
  %v368 = vsel %vm83, %v75, 0
  %v371 = vsel %vm83, %v76, 0
  %v374 = vsel %vm83, %v77, 0
  %v377 = vsel %vm83, %v78, 0
  %v380 = vsel %vm83, %v79, 0
  %v383 = vsel %vm83, %v80, 0
  %v386 = vsel %vm83, %v81, 0
  %v389 = vsel %vm83, %v82, 0
  %391 = vmatprep.subr.mxu0 0.0
  %392 = vmatpush1.msra.mxu0 %v37
  %393 = vmatprep.subr.mxu0 0.0
  %394 = vmatpush1.msra.mxu0 %v38
  %395 = vmatprep.subr.mxu0 0.0
  %396 = vmatpush1.msra.mxu0 0.0
  %397 = vmatprep.subr.mxu0 0.0
  %398 = vmatpush1.msra.mxu0 0.0
  %399 = vmatprep.subr.mxu0 0.0
  %400 = vmatpush1.msra.mxu0 0.0
  %401 = vmatprep.subr.mxu0 0.0
  %402 = vmatpush1.msra.mxu0 0.0
  %403 = vmatprep.subr.mxu0 0.0
  %404 = vmatpush1.msra.mxu0 0.0
  %405 = vmatprep.subr.mxu0 0.0
  %406 = vmatpush1.msra.mxu0 0.0
  %407 = vmatprep.subr.mxu0 0.0
  %408 = vmatpush1.msra.mxu0 0.0
  %409 = vmatprep.subr.mxu0 0.0
  %410 = vmatpush1.msra.mxu0 0.0
  %411 = vmatprep.subr.mxu0 0.0
  %412 = vmatpush1.msra.mxu0 0.0
  %413 = vmatprep.subr.mxu0 0.0
  %414 = vmatpush1.msra.mxu0 0.0
  %415 = vmatprep.subr.mxu0 0.0
  %416 = vmatpush1.msra.mxu0 0.0
  %417 = vmatprep.subr.mxu0 0.0
  %418 = vmatpush1.msra.mxu0 0.0
  %419 = vmatprep.subr.mxu0 0.0
  %420 = vmatpush1.msra.mxu0 0.0
  %421 = vmatprep.subr.mxu0 0.0
  %422 = vmatpush1.msra.mxu0 0.0
  %423 = vmatprep.subr.mxu0 0.0
  %424 = vmatpush1.msra.mxu0 0.0
  %425 = vmatprep.subr.mxu0 0.0
  %426 = vmatpush1.msra.mxu0 0.0
  %427 = vmatprep.subr.mxu0 0.0
  %428 = vmatpush1.msra.mxu0 0.0
  %429 = vmatprep.subr.mxu0 0.0
  %430 = vmatpush1.msra.mxu0 0.0
  %431 = vmatprep.subr.mxu0 0.0
  %432 = vmatpush1.msra.mxu0 0.0
  %433 = vmatprep.subr.mxu0 0.0
  %434 = vmatpush1.msra.mxu0 0.0
  %435 = vmatprep.subr.mxu0 0.0
  %436 = vmatpush1.msra.mxu0 0.0
  %437 = vmatprep.subr.mxu0 0.0
  %438 = vmatpush1.msra.mxu0 0.0
  %439 = vmatprep.subr.mxu0 0.0
  %440 = vmatpush1.msra.mxu0 0.0
  %441 = vmatprep.subr.mxu0 0.0
  %442 = vmatpush1.msra.mxu0 0.0
  %443 = vmatprep.subr.mxu0 0.0
  %444 = vmatpush1.msra.mxu0 0.0
  %445 = vmatprep.subr.mxu0 0.0
  %446 = vmatpush1.msra.mxu0 0.0
  %447 = vmatprep.subr.mxu0 0.0
  %448 = vmatpush1.msra.mxu0 0.0
  %449 = vmatprep.subr.mxu0 0.0
  %450 = vmatpush1.msra.mxu0 0.0
  %451 = vmatprep.subr.mxu0 0.0
  %452 = vmatpush1.msra.mxu0 0.0
  %453 = vmatprep.subr.mxu0 0.0
  %454 = vmatpush1.msra.mxu0 0.0
  %455 = vmatprep.mubr.f32.mxu0 0.0
  %456 = vmatmul.mubr.f32.gmra.mrb[0].mxu0 %v326
  %v457 = vpop.f32.mrb[0].mxu0
  %v458 = vadd.f32 0.0, %v457
  %v459 = vpop.f32.mrb[0].mxu0
  %460 = vmatprep.mubr.f32.mxu0 0.0
  %461 = vmatmul.mubr.f32.gmra.mrb[0].mxu0 %v329
  %v462 = vpop.f32.mrb[0].mxu0
  %v463 = vadd.f32 0.0, %v462
  %v464 = vpop.f32.mrb[0].mxu0
  %465 = vmatprep.mubr.f32.mxu0 0.0
  %466 = vmatmul.mubr.f32.gmra.mrb[0].mxu0 %v332
  %v467 = vpop.f32.mrb[0].mxu0
  %v468 = vadd.f32 0.0, %v467
  %v469 = vpop.f32.mrb[0].mxu0
  %470 = vmatprep.mubr.f32.mxu0 0.0
  %471 = vmatmul.mubr.f32.gmra.mrb[0].mxu0 %v335
  %v472 = vpop.f32.mrb[0].mxu0
  %v473 = vadd.f32 0.0, %v472
  %v474 = vpop.f32.mrb[0].mxu0
  %475 = vmatprep.mubr.f32.mxu0 0.0
  %476 = vmatmul.mubr.f32.gmra.mrb[0].mxu0 %v338
  %v477 = vpop.f32.mrb[0].mxu0
  %v478 = vadd.f32 0.0, %v477
  %v479 = vpop.f32.mrb[0].mxu0
  %480 = vmatprep.mubr.f32.mxu0 0.0
  %481 = vmatmul.mubr.f32.gmra.mrb[0].mxu0 %v341
  %v482 = vpop.f32.mrb[0].mxu0
  %v483 = vadd.f32 0.0, %v482
  %v484 = vpop.f32.mrb[0].mxu0
  %485 = vmatprep.mubr.f32.mxu0 0.0
  %486 = vmatmul.mubr.f32.gmra.mrb[0].mxu0 %v344
  %v487 = vpop.f32.mrb[0].mxu0
  %v488 = vadd.f32 0.0, %v487
  %v489 = vpop.f32.mrb[0].mxu0
  %490 = vmatprep.mubr.f32.mxu0 0.0
  %491 = vmatmul.mubr.f32.gmra.mrb[0].mxu0 %v347
  %v492 = vpop.f32.mrb[0].mxu0
  %v493 = vadd.f32 0.0, %v492
  %v494 = vpop.f32.mrb[0].mxu0
  %495 = vmatprep.mubr.f32.mxu0 0.0
  %496 = vmatmul.mubr.f32.gmra.mrb[0].mxu0 %v350
  %v497 = vpop.f32.mrb[0].mxu0
  %v498 = vadd.f32 0.0, %v497
  %v499 = vpop.f32.mrb[0].mxu0
  %500 = vmatprep.mubr.f32.mxu0 0.0
  %501 = vmatmul.mubr.f32.gmra.mrb[0].mxu0 %v353
  %v502 = vpop.f32.mrb[0].mxu0
  %v503 = vadd.f32 0.0, %v502
  %v504 = vpop.f32.mrb[0].mxu0
  %505 = vmatprep.mubr.f32.mxu0 0.0
  %506 = vmatmul.mubr.f32.gmra.mrb[0].mxu0 %v356
  %v507 = vpop.f32.mrb[0].mxu0
  %v508 = vadd.f32 0.0, %v507
  %v509 = vpop.f32.mrb[0].mxu0
  %510 = vmatprep.mubr.f32.mxu0 0.0
  %511 = vmatmul.mubr.f32.gmra.mrb[0].mxu0 %v359
  %v512 = vpop.f32.mrb[0].mxu0
  %v513 = vadd.f32 0.0, %v512
  %v514 = vpop.f32.mrb[0].mxu0
  %515 = vmatprep.mubr.f32.mxu0 0.0
  %516 = vmatmul.mubr.f32.gmra.mrb[0].mxu0 %v362
  %v517 = vpop.f32.mrb[0].mxu0
  %v518 = vadd.f32 0.0, %v517
  %v519 = vpop.f32.mrb[0].mxu0
  %520 = vmatprep.mubr.f32.mxu0 0.0
  %521 = vmatmul.mubr.f32.gmra.mrb[0].mxu0 %v365
  %v522 = vpop.f32.mrb[0].mxu0
  %v523 = vadd.f32 0.0, %v522
  %v524 = vpop.f32.mrb[0].mxu0
  %525 = vmatprep.mubr.f32.mxu0 0.0
  %526 = vmatmul.mubr.f32.gmra.mrb[0].mxu0 %v368
  %v527 = vpop.f32.mrb[0].mxu0
  %v528 = vadd.f32 0.0, %v527
  %v529 = vpop.f32.mrb[0].mxu0
  %530 = vmatprep.mubr.f32.mxu0 0.0
  %531 = vmatmul.mubr.f32.gmra.mrb[0].mxu0 %v371
  %v532 = vpop.f32.mrb[0].mxu0
  %v533 = vadd.f32 0.0, %v532
  %v534 = vpop.f32.mrb[0].mxu0
  %535 = vmatprep.mubr.f32.mxu0 0.0
  %536 = vmatmul.mubr.f32.gmra.mrb[0].mxu0 %v374
  %v537 = vpop.f32.mrb[0].mxu0
  %v538 = vadd.f32 0.0, %v537
  %v539 = vpop.f32.mrb[0].mxu0
  %540 = vmatprep.mubr.f32.mxu0 0.0
  %541 = vmatmul.mubr.f32.gmra.mrb[0].mxu0 %v377
  %v542 = vpop.f32.mrb[0].mxu0
  %v543 = vadd.f32 0.0, %v542
  %v544 = vpop.f32.mrb[0].mxu0
  %545 = vmatprep.mubr.f32.mxu0 0.0
  %546 = vmatmul.mubr.f32.gmra.mrb[0].mxu0 %v380
  %v547 = vpop.f32.mrb[0].mxu0
  %v548 = vadd.f32 0.0, %v547
  %v549 = vpop.f32.mrb[0].mxu0
  %550 = vmatprep.mubr.f32.mxu0 0.0
  %551 = vmatmul.mubr.f32.gmra.mrb[0].mxu0 %v383
  %v552 = vpop.f32.mrb[0].mxu0
  %v553 = vadd.f32 0.0, %v552
  %v554 = vpop.f32.mrb[0].mxu0
  %555 = vmatprep.mubr.f32.mxu0 0.0
  %556 = vmatmul.mubr.f32.gmra.mrb[0].mxu0 %v386
  %v557 = vpop.f32.mrb[0].mxu0
  %v558 = vadd.f32 0.0, %v557
  %v559 = vpop.f32.mrb[0].mxu0
  %560 = vmatprep.mubr.f32.mxu0 0.0
  %561 = vmatmul.mubr.f32.gmra.mrb[0].mxu0 %v389
  %v562 = vpop.f32.mrb[0].mxu0
  %v563 = vadd.f32 0.0, %v562
  %v564 = vpop.f32.mrb[0].mxu0
  %565 = vdwg.mxu0
  %v566 = vld [vmem:[%s2] sm:$0x1]
  %v567 = vld [vmem:[%s3] sm:$0x1]
  %v568 = vsel %vm83, %v217, 0.0
  %v569 = vsel %vm83, %v222, 0.0
  %v570 = vadd.f32 %v568, %v569
  %v571 = vsel %vm83, %v227, 0.0
  %v572 = vadd.f32 %v570, %v571
  %v573 = vsel %vm83, %v232, 0.0
  %v574 = vadd.f32 %v572, %v573
  %v575 = vsel %vm83, %v237, 0.0
  %v576 = vadd.f32 %v574, %v575
  %v577 = vsel %vm83, %v242, 0.0
  %v578 = vadd.f32 %v576, %v577
  %v579 = vsel %vm83, %v247, 0.0
  %v580 = vadd.f32 %v578, %v579
  %v581 = vsel %vm83, %v252, 0.0
  %v582 = vadd.f32 %v580, %v581
  %v583 = vsel %vm83, %v257, 0.0
  %v584 = vadd.f32 %v582, %v583
  %v585 = vsel %vm83, %v262, 0.0
  %v586 = vadd.f32 %v584, %v585
  %v587 = vsel %vm83, %v267, 0.0
  %v588 = vadd.f32 %v586, %v587
  %v589 = vsel %vm83, %v272, 0.0
  %v590 = vadd.f32 %v588, %v589
  %v591 = vsel %vm83, %v277, 0.0
  %v592 = vadd.f32 %v590, %v591
  %v593 = vsel %vm83, %v282, 0.0
  %v594 = vadd.f32 %v592, %v593
  %v595 = vsel %vm83, %v287, 0.0
  %v596 = vadd.f32 %v594, %v595
  %v597 = vsel %vm83, %v292, 0.0
  %v598 = vadd.f32 %v596, %v597
  %v599 = vsel %vm83, %v297, 0.0
  %v600 = vadd.f32 %v598, %v599
  %v601 = vsel %vm83, %v302, 0.0
  %v602 = vadd.f32 %v600, %v601
  %v603 = vsel %vm83, %v307, 0.0
  %v604 = vadd.f32 %v602, %v603
  %v605 = vsel %vm83, %v312, 0.0
  %v606 = vadd.f32 %v604, %v605
  %v607 = vsel %vm83, %v317, 0.0
  %v608 = vadd.f32 %v606, %v607
  %vm609 = vcmask 122880
  %v610 = vsel %vm609, %v322, 0.0
  %v611 = vadd.f32 %v608, %v610
  %v612 = vrot.slane %v611, 4
  %v613 = vadd.f32 %v611, %v612
  %v614 = vrot.slane %v613, 2
  %v615 = vadd.f32 %v613, %v614
  %v616 = vrot.slane %v615, 1
  %v617 = vadd.f32 %v615, %v616
  %v618 = vsel %vm83, %v458, 0.0
  %v619 = vsel %vm83, %v463, 0.0
  %v620 = vadd.f32 %v618, %v619
  %v621 = vsel %vm83, %v468, 0.0
  %v622 = vadd.f32 %v620, %v621
  %v623 = vsel %vm83, %v473, 0.0
  %v624 = vadd.f32 %v622, %v623
  %v625 = vsel %vm83, %v478, 0.0
  %v626 = vadd.f32 %v624, %v625
  %v627 = vsel %vm83, %v483, 0.0
  %v628 = vadd.f32 %v626, %v627
  %v629 = vsel %vm83, %v488, 0.0
  %v630 = vadd.f32 %v628, %v629
  %v631 = vsel %vm83, %v493, 0.0
  %v632 = vadd.f32 %v630, %v631
  %v633 = vsel %vm83, %v498, 0.0
  %v634 = vadd.f32 %v632, %v633
  %v635 = vsel %vm83, %v503, 0.0
  %v636 = vadd.f32 %v634, %v635
  %v637 = vsel %vm83, %v508, 0.0
  %v638 = vadd.f32 %v636, %v637
  %v639 = vsel %vm83, %v513, 0.0
  %v640 = vadd.f32 %v638, %v639
  %v641 = vsel %vm83, %v518, 0.0
  %v642 = vadd.f32 %v640, %v641
  %v643 = vsel %vm83, %v523, 0.0
  %v644 = vadd.f32 %v642, %v643
  %v645 = vsel %vm83, %v528, 0.0
  %v646 = vadd.f32 %v644, %v645
  %v647 = vsel %vm83, %v533, 0.0
  %v648 = vadd.f32 %v646, %v647
  %v649 = vsel %vm83, %v538, 0.0
  %v650 = vadd.f32 %v648, %v649
  %v651 = vsel %vm83, %v543, 0.0
  %v652 = vadd.f32 %v650, %v651
  %v653 = vsel %vm83, %v548, 0.0
  %v654 = vadd.f32 %v652, %v653
  %v655 = vsel %vm83, %v553, 0.0
  %v656 = vadd.f32 %v654, %v655
  %v657 = vsel %vm83, %v558, 0.0
  %v658 = vadd.f32 %v656, %v657
  %v659 = vsel %vm609, %v563, 0.0
  %v660 = vadd.f32 %v658, %v659
  %v661 = vrot.slane %v660, 4
  %v662 = vadd.f32 %v660, %v661
  %v663 = vrot.slane %v662, 2
  %v664 = vadd.f32 %v662, %v663
  %v665 = vrot.slane %v664, 1
  %v666 = vadd.f32 %v664, %v665
  %v667 = vsel %vm83, %v617, 0.0
  %v668 = vsel %vm83, %v666, 0.0
  %v669 = vadd.f32 %v667, %v668
  %v670 = vmul.f32 %v669, 0.00295858
  %v671 = vsub.f32 %v217, %v670
  %v672 = vsub.f32 %v222, %v670
  %v673 = vsub.f32 %v227, %v670
  %v674 = vsub.f32 %v232, %v670
  %v675 = vsub.f32 %v237, %v670
  %v676 = vsub.f32 %v242, %v670
  %v677 = vsub.f32 %v247, %v670
  %v678 = vsub.f32 %v252, %v670
  %v679 = vsub.f32 %v257, %v670
  %v680 = vsub.f32 %v262, %v670
  %v681 = vsub.f32 %v267, %v670
  %v682 = vsub.f32 %v272, %v670
  %v683 = vsub.f32 %v277, %v670
  %v684 = vsub.f32 %v282, %v670
  %v685 = vsub.f32 %v287, %v670
  %v686 = vsub.f32 %v292, %v670
  %v687 = vsub.f32 %v297, %v670
  %v688 = vsub.f32 %v302, %v670
  %v689 = vsub.f32 %v307, %v670
  %v690 = vsub.f32 %v312, %v670
  %v691 = vsub.f32 %v317, %v670
  %v692 = vsub.f32 %v322, %v670
  %v693 = vsub.f32 %v458, %v670
  %v694 = vsub.f32 %v463, %v670
  %v695 = vsub.f32 %v468, %v670
  %v696 = vsub.f32 %v473, %v670
  %v697 = vsub.f32 %v478, %v670
  %v698 = vsub.f32 %v483, %v670
  %v699 = vsub.f32 %v488, %v670
  %v700 = vsub.f32 %v493, %v670
  %v701 = vsub.f32 %v498, %v670
  %v702 = vsub.f32 %v503, %v670
  %v703 = vsub.f32 %v508, %v670
  %v704 = vsub.f32 %v513, %v670
  %v705 = vsub.f32 %v518, %v670
  %v706 = vsub.f32 %v523, %v670
  %v707 = vsub.f32 %v528, %v670
  %v708 = vsub.f32 %v533, %v670
  %v709 = vsub.f32 %v538, %v670
  %v710 = vsub.f32 %v543, %v670
  %v711 = vsub.f32 %v548, %v670
  %v712 = vsub.f32 %v553, %v670
  %v713 = vsub.f32 %v558, %v670
  %v714 = vsub.f32 %v563, %v670
  %v715 = vmul.f32 %v671, %v671
  %v716 = vmul.f32 %v672, %v672
  %v717 = vmul.f32 %v673, %v673
  %v718 = vmul.f32 %v674, %v674
  %v719 = vmul.f32 %v675, %v675
  %v720 = vmul.f32 %v676, %v676
  %v721 = vmul.f32 %v677, %v677
  %v722 = vmul.f32 %v678, %v678
  %v723 = vmul.f32 %v679, %v679
  %v724 = vmul.f32 %v680, %v680
  %v725 = vmul.f32 %v681, %v681
  %v726 = vmul.f32 %v682, %v682
  %v727 = vmul.f32 %v683, %v683
  %v728 = vmul.f32 %v684, %v684
  %v729 = vmul.f32 %v685, %v685
  %v730 = vmul.f32 %v686, %v686
  %v731 = vmul.f32 %v687, %v687
  %v732 = vmul.f32 %v688, %v688
  %v733 = vmul.f32 %v689, %v689
  %v734 = vmul.f32 %v690, %v690
  %v735 = vmul.f32 %v691, %v691
  %v736 = vmul.f32 %v692, %v692
  %v737 = vmul.f32 %v693, %v693
  %v738 = vmul.f32 %v694, %v694
  %v739 = vmul.f32 %v695, %v695
  %v740 = vmul.f32 %v696, %v696
  %v741 = vmul.f32 %v697, %v697
  %v742 = vmul.f32 %v698, %v698
  %v743 = vmul.f32 %v699, %v699
  %v744 = vmul.f32 %v700, %v700
  %v745 = vmul.f32 %v701, %v701
  %v746 = vmul.f32 %v702, %v702
  %v747 = vmul.f32 %v703, %v703
  %v748 = vmul.f32 %v704, %v704
  %v749 = vmul.f32 %v705, %v705
  %v750 = vmul.f32 %v706, %v706
  %v751 = vmul.f32 %v707, %v707
  %v752 = vmul.f32 %v708, %v708
  %v753 = vmul.f32 %v709, %v709
  %v754 = vmul.f32 %v710, %v710
  %v755 = vmul.f32 %v711, %v711
  %v756 = vmul.f32 %v712, %v712
  %v757 = vmul.f32 %v713, %v713
  %v758 = vmul.f32 %v714, %v714
  %v759 = vsel %vm83, %v715, 0.0
  %v760 = vsel %vm83, %v716, 0.0
  %v761 = vadd.f32 %v759, %v760
  %v762 = vsel %vm83, %v717, 0.0
  %v763 = vadd.f32 %v761, %v762
  %v764 = vsel %vm83, %v718, 0.0
  %v765 = vadd.f32 %v763, %v764
  %v766 = vsel %vm83, %v719, 0.0
  %v767 = vadd.f32 %v765, %v766
  %v768 = vsel %vm83, %v720, 0.0
  %v769 = vadd.f32 %v767, %v768
  %v770 = vsel %vm83, %v721, 0.0
  %v771 = vadd.f32 %v769, %v770
  %v772 = vsel %vm83, %v722, 0.0
  %v773 = vadd.f32 %v771, %v772
  %v774 = vsel %vm83, %v723, 0.0
  %v775 = vadd.f32 %v773, %v774
  %v776 = vsel %vm83, %v724, 0.0
  %v777 = vadd.f32 %v775, %v776
  %v778 = vsel %vm83, %v725, 0.0
  %v779 = vadd.f32 %v777, %v778
  %v780 = vsel %vm83, %v726, 0.0
  %v781 = vadd.f32 %v779, %v780
  %v782 = vsel %vm83, %v727, 0.0
  %v783 = vadd.f32 %v781, %v782
  %v784 = vsel %vm83, %v728, 0.0
  %v785 = vadd.f32 %v783, %v784
  %v786 = vsel %vm83, %v729, 0.0
  %v787 = vadd.f32 %v785, %v786
  %v788 = vsel %vm83, %v730, 0.0
  %v789 = vadd.f32 %v787, %v788
  %v790 = vsel %vm83, %v731, 0.0
  %v791 = vadd.f32 %v789, %v790
  %v792 = vsel %vm83, %v732, 0.0
  %v793 = vadd.f32 %v791, %v792
  %v794 = vsel %vm83, %v733, 0.0
  %v795 = vadd.f32 %v793, %v794
  %v796 = vsel %vm83, %v734, 0.0
  %v797 = vadd.f32 %v795, %v796
  %v798 = vsel %vm83, %v735, 0.0
  %v799 = vadd.f32 %v797, %v798
  %v800 = vsel %vm609, %v736, 0.0
  %v801 = vadd.f32 %v799, %v800
  %v802 = vrot.slane %v801, 4
  %v803 = vadd.f32 %v801, %v802
  %v804 = vrot.slane %v803, 2
  %v805 = vadd.f32 %v803, %v804
  %v806 = vrot.slane %v805, 1
  %v807 = vadd.f32 %v805, %v806
  %v808 = vsel %vm83, %v737, 0.0
  %v809 = vsel %vm83, %v738, 0.0
  %v810 = vadd.f32 %v808, %v809
  %v811 = vsel %vm83, %v739, 0.0
  %v812 = vadd.f32 %v810, %v811
  %v813 = vsel %vm83, %v740, 0.0
  %v814 = vadd.f32 %v812, %v813
  %v815 = vsel %vm83, %v741, 0.0
  %v816 = vadd.f32 %v814, %v815
  %v817 = vsel %vm83, %v742, 0.0
  %v818 = vadd.f32 %v816, %v817
  %v819 = vsel %vm83, %v743, 0.0
  %v820 = vadd.f32 %v818, %v819
  %v821 = vsel %vm83, %v744, 0.0
  %v822 = vadd.f32 %v820, %v821
  %v823 = vsel %vm83, %v745, 0.0
  %v824 = vadd.f32 %v822, %v823
  %v825 = vsel %vm83, %v746, 0.0
  %v826 = vadd.f32 %v824, %v825
  %v827 = vsel %vm83, %v747, 0.0
  %v828 = vadd.f32 %v826, %v827
  %v829 = vsel %vm83, %v748, 0.0
  %v830 = vadd.f32 %v828, %v829
  %v831 = vsel %vm83, %v749, 0.0
  %v832 = vadd.f32 %v830, %v831
  %v833 = vsel %vm83, %v750, 0.0
  %v834 = vadd.f32 %v832, %v833
  %v835 = vsel %vm83, %v751, 0.0
  %v836 = vadd.f32 %v834, %v835
  %v837 = vsel %vm83, %v752, 0.0
  %v838 = vadd.f32 %v836, %v837
  %v839 = vsel %vm83, %v753, 0.0
  %v840 = vadd.f32 %v838, %v839
  %v841 = vsel %vm83, %v754, 0.0
  %v842 = vadd.f32 %v840, %v841
  %v843 = vsel %vm83, %v755, 0.0
  %v844 = vadd.f32 %v842, %v843
  %v845 = vsel %vm83, %v756, 0.0
  %v846 = vadd.f32 %v844, %v845
  %v847 = vsel %vm83, %v757, 0.0
  %v848 = vadd.f32 %v846, %v847
  %v849 = vsel %vm609, %v758, 0.0
  %v850 = vadd.f32 %v848, %v849
  %v851 = vrot.slane %v850, 4
  %v852 = vadd.f32 %v850, %v851
  %v853 = vrot.slane %v852, 2
  %v854 = vadd.f32 %v852, %v853
  %v855 = vrot.slane %v854, 1
  %v856 = vadd.f32 %v854, %v855
  %v857 = vsel %vm83, %v807, 0.0
  %v858 = vsel %vm83, %v856, 0.0
  %v859 = vadd.f32 %v857, %v858
  %v860 = vmul.f32 %v859, 0.00295858
  %v861 = vadd.f32 %v860, 1e-05
  %v862 = vrsqrt.pop %v861
  %v863 = vmul.f32 %v566, %v862
  %v865 = vlaneseq
  %v866 = vshrl.u32 %v865, 7
  %v867 = vsub.s32 0, %v866
  %v868 = vrot.slane %v863, %v867
  %v870 = vmul.f32 %v671, %v868
  %v871 = vmul.f32 %v672, %v868
  %v872 = vmul.f32 %v673, %v868
  %v873 = vmul.f32 %v674, %v868
  %v874 = vmul.f32 %v675, %v868
  %v875 = vmul.f32 %v676, %v868
  %v876 = vmul.f32 %v677, %v868
  %v877 = vmul.f32 %v678, %v868
  %v878 = vmul.f32 %v679, %v868
  %v879 = vmul.f32 %v680, %v868
  %v880 = vmul.f32 %v681, %v868
  %v881 = vmul.f32 %v682, %v868
  %v882 = vmul.f32 %v683, %v868
  %v883 = vmul.f32 %v684, %v868
  %v884 = vmul.f32 %v685, %v868
  %v885 = vmul.f32 %v686, %v868
  %v886 = vmul.f32 %v687, %v868
  %v887 = vmul.f32 %v688, %v868
  %v888 = vmul.f32 %v689, %v868
  %v889 = vmul.f32 %v690, %v868
  %v890 = vmul.f32 %v691, %v868
  %v891 = vmul.f32 %v692, %v868
  %v892 = vmul.f32 %v693, %v868
  %v893 = vmul.f32 %v694, %v868
  %v894 = vmul.f32 %v695, %v868
  %v895 = vmul.f32 %v696, %v868
  %v896 = vmul.f32 %v697, %v868
  %v897 = vmul.f32 %v698, %v868
  %v898 = vmul.f32 %v699, %v868
  %v899 = vmul.f32 %v700, %v868
  %v900 = vmul.f32 %v701, %v868
  %v901 = vmul.f32 %v702, %v868
  %v902 = vmul.f32 %v703, %v868
  %v903 = vmul.f32 %v704, %v868
  %v904 = vmul.f32 %v705, %v868
  %v905 = vmul.f32 %v706, %v868
  %v906 = vmul.f32 %v707, %v868
  %v907 = vmul.f32 %v708, %v868
  %v908 = vmul.f32 %v709, %v868
  %v909 = vmul.f32 %v710, %v868
  %v910 = vmul.f32 %v711, %v868
  %v911 = vmul.f32 %v712, %v868
  %v912 = vmul.f32 %v713, %v868
  %v913 = vmul.f32 %v714, %v868
  %v915 = vlaneseq
  %v916 = vshrl.u32 %v915, 7
  %v917 = vsub.s32 0, %v916
  %v918 = vrot.slane %v567, %v917
  %v920 = vadd.f32 %v870, %v918
  %v921 = vadd.f32 %v871, %v918
  %v922 = vadd.f32 %v872, %v918
  %v923 = vadd.f32 %v873, %v918
  %v924 = vadd.f32 %v874, %v918
  %v925 = vadd.f32 %v875, %v918
  %v926 = vadd.f32 %v876, %v918
  %v927 = vadd.f32 %v877, %v918
  %v928 = vadd.f32 %v878, %v918
  %v929 = vadd.f32 %v879, %v918
  %v930 = vadd.f32 %v880, %v918
  %v931 = vadd.f32 %v881, %v918
  %v932 = vadd.f32 %v882, %v918
  %v933 = vadd.f32 %v883, %v918
  %v934 = vadd.f32 %v884, %v918
  %v935 = vadd.f32 %v885, %v918
  %v936 = vadd.f32 %v886, %v918
  %v937 = vadd.f32 %v887, %v918
  %v938 = vadd.f32 %v888, %v918
  %v939 = vadd.f32 %v889, %v918
  %v940 = vadd.f32 %v890, %v918
  %v941 = vadd.f32 %v891, %v918
  %v942 = vadd.f32 %v892, %v918
  %v943 = vadd.f32 %v893, %v918
  %v944 = vadd.f32 %v894, %v918
  %v945 = vadd.f32 %v895, %v918
  %v946 = vadd.f32 %v896, %v918
  %v947 = vadd.f32 %v897, %v918
  %v948 = vadd.f32 %v898, %v918
  %v949 = vadd.f32 %v899, %v918
  %v950 = vadd.f32 %v900, %v918
  %v951 = vadd.f32 %v901, %v918
  %v952 = vadd.f32 %v902, %v918
  %v953 = vadd.f32 %v903, %v918
  %v954 = vadd.f32 %v904, %v918
  %v955 = vadd.f32 %v905, %v918
  %v956 = vadd.f32 %v906, %v918
  %v957 = vadd.f32 %v907, %v918
  %v958 = vadd.f32 %v908, %v918
  %v959 = vadd.f32 %v909, %v918
  %v960 = vadd.f32 %v910, %v918
  %v961 = vadd.f32 %v911, %v918
  %v962 = vadd.f32 %v912, %v918
  %v963 = vadd.f32 %v913, %v918
  %vm964 = vcmp.ge.f32.partialorder %v920, 0.0
  %vm965 = vcmp.ge.f32.partialorder %v921, 0.0
  %vm966 = vcmp.ge.f32.partialorder %v922, 0.0
  %vm967 = vcmp.ge.f32.partialorder %v923, 0.0
  %vm968 = vcmp.ge.f32.partialorder %v924, 0.0
  %vm969 = vcmp.ge.f32.partialorder %v925, 0.0
  %vm970 = vcmp.ge.f32.partialorder %v926, 0.0
  %vm971 = vcmp.ge.f32.partialorder %v927, 0.0
  %vm972 = vcmp.ge.f32.partialorder %v928, 0.0
  %vm973 = vcmp.ge.f32.partialorder %v929, 0.0
  %vm974 = vcmp.ge.f32.partialorder %v930, 0.0
  %vm975 = vcmp.ge.f32.partialorder %v931, 0.0
  %vm976 = vcmp.ge.f32.partialorder %v932, 0.0
  %vm977 = vcmp.ge.f32.partialorder %v933, 0.0
  %vm978 = vcmp.ge.f32.partialorder %v934, 0.0
  %vm979 = vcmp.ge.f32.partialorder %v935, 0.0
  %vm980 = vcmp.ge.f32.partialorder %v936, 0.0
  %vm981 = vcmp.ge.f32.partialorder %v937, 0.0
  %vm982 = vcmp.ge.f32.partialorder %v938, 0.0
  %vm983 = vcmp.ge.f32.partialorder %v939, 0.0
  %vm984 = vcmp.ge.f32.partialorder %v940, 0.0
  %vm985 = vcmp.ge.f32.partialorder %v941, 0.0
  %vm986 = vcmp.ge.f32.partialorder %v942, 0.0
  %vm987 = vcmp.ge.f32.partialorder %v943, 0.0
  %vm988 = vcmp.ge.f32.partialorder %v944, 0.0
  %vm989 = vcmp.ge.f32.partialorder %v945, 0.0
  %vm990 = vcmp.ge.f32.partialorder %v946, 0.0
  %vm991 = vcmp.ge.f32.partialorder %v947, 0.0
  %vm992 = vcmp.ge.f32.partialorder %v948, 0.0
  %vm993 = vcmp.ge.f32.partialorder %v949, 0.0
  %vm994 = vcmp.ge.f32.partialorder %v950, 0.0
  %vm995 = vcmp.ge.f32.partialorder %v951, 0.0
  %vm996 = vcmp.ge.f32.partialorder %v952, 0.0
  %vm997 = vcmp.ge.f32.partialorder %v953, 0.0
  %vm998 = vcmp.ge.f32.partialorder %v954, 0.0
  %vm999 = vcmp.ge.f32.partialorder %v955, 0.0
  %vm1000 = vcmp.ge.f32.partialorder %v956, 0.0
  %vm1001 = vcmp.ge.f32.partialorder %v957, 0.0
  %vm1002 = vcmp.ge.f32.partialorder %v958, 0.0
  %vm1003 = vcmp.ge.f32.partialorder %v959, 0.0
  %vm1004 = vcmp.ge.f32.partialorder %v960, 0.0
  %vm1005 = vcmp.ge.f32.partialorder %v961, 0.0
  %vm1006 = vcmp.ge.f32.partialorder %v962, 0.0
  %vm1007 = vcmp.ge.f32.partialorder %v963, 0.0
  %v1008 = vmul.f32 %v920, 0.2
  %v1009 = vmul.f32 %v921, 0.2
  %v1010 = vmul.f32 %v922, 0.2
  %v1011 = vmul.f32 %v923, 0.2
  %v1012 = vmul.f32 %v924, 0.2
  %v1013 = vmul.f32 %v925, 0.2
  %v1014 = vmul.f32 %v926, 0.2
  %v1015 = vmul.f32 %v927, 0.2
  %v1016 = vmul.f32 %v928, 0.2
  %v1017 = vmul.f32 %v929, 0.2
  %v1018 = vmul.f32 %v930, 0.2
  %v1019 = vmul.f32 %v931, 0.2
  %v1020 = vmul.f32 %v932, 0.2
  %v1021 = vmul.f32 %v933, 0.2
  %v1022 = vmul.f32 %v934, 0.2
  %v1023 = vmul.f32 %v935, 0.2
  %v1024 = vmul.f32 %v936, 0.2
  %v1025 = vmul.f32 %v937, 0.2
  %v1026 = vmul.f32 %v938, 0.2
  %v1027 = vmul.f32 %v939, 0.2
  %v1028 = vmul.f32 %v940, 0.2
  %v1029 = vmul.f32 %v941, 0.2
  %v1030 = vmul.f32 %v942, 0.2
  %v1031 = vmul.f32 %v943, 0.2
  %v1032 = vmul.f32 %v944, 0.2
  %v1033 = vmul.f32 %v945, 0.2
  %v1034 = vmul.f32 %v946, 0.2
  %v1035 = vmul.f32 %v947, 0.2
  %v1036 = vmul.f32 %v948, 0.2
  %v1037 = vmul.f32 %v949, 0.2
  %v1038 = vmul.f32 %v950, 0.2
  %v1039 = vmul.f32 %v951, 0.2
  %v1040 = vmul.f32 %v952, 0.2
  %v1041 = vmul.f32 %v953, 0.2
  %v1042 = vmul.f32 %v954, 0.2
  %v1043 = vmul.f32 %v955, 0.2
  %v1044 = vmul.f32 %v956, 0.2
  %v1045 = vmul.f32 %v957, 0.2
  %v1046 = vmul.f32 %v958, 0.2
  %v1047 = vmul.f32 %v959, 0.2
  %v1048 = vmul.f32 %v960, 0.2
  %v1049 = vmul.f32 %v961, 0.2
  %v1050 = vmul.f32 %v962, 0.2
  %v1051 = vmul.f32 %v963, 0.2
  %v1052 = vsel %vm964, %v920, %v1008
  %v1053 = vsel %vm965, %v921, %v1009
  %v1054 = vsel %vm966, %v922, %v1010
  %v1055 = vsel %vm967, %v923, %v1011
  %v1056 = vsel %vm968, %v924, %v1012
  %v1057 = vsel %vm969, %v925, %v1013
  %v1058 = vsel %vm970, %v926, %v1014
  %v1059 = vsel %vm971, %v927, %v1015
  %v1060 = vsel %vm972, %v928, %v1016
  %v1061 = vsel %vm973, %v929, %v1017
  %v1062 = vsel %vm974, %v930, %v1018
  %v1063 = vsel %vm975, %v931, %v1019
  %v1064 = vsel %vm976, %v932, %v1020
  %v1065 = vsel %vm977, %v933, %v1021
  %v1066 = vsel %vm978, %v934, %v1022
  %v1067 = vsel %vm979, %v935, %v1023
  %v1068 = vsel %vm980, %v936, %v1024
  %v1069 = vsel %vm981, %v937, %v1025
  %v1070 = vsel %vm982, %v938, %v1026
  %v1071 = vsel %vm983, %v939, %v1027
  %v1072 = vsel %vm984, %v940, %v1028
  %v1073 = vsel %vm985, %v941, %v1029
  %v1074 = vsel %vm986, %v942, %v1030
  %v1075 = vsel %vm987, %v943, %v1031
  %v1076 = vsel %vm988, %v944, %v1032
  %v1077 = vsel %vm989, %v945, %v1033
  %v1078 = vsel %vm990, %v946, %v1034
  %v1079 = vsel %vm991, %v947, %v1035
  %v1080 = vsel %vm992, %v948, %v1036
  %v1081 = vsel %vm993, %v949, %v1037
  %v1082 = vsel %vm994, %v950, %v1038
  %v1083 = vsel %vm995, %v951, %v1039
  %v1084 = vsel %vm996, %v952, %v1040
  %v1085 = vsel %vm997, %v953, %v1041
  %v1086 = vsel %vm998, %v954, %v1042
  %v1087 = vsel %vm999, %v955, %v1043
  %v1088 = vsel %vm1000, %v956, %v1044
  %v1089 = vsel %vm1001, %v957, %v1045
  %v1090 = vsel %vm1002, %v958, %v1046
  %v1091 = vsel %vm1003, %v959, %v1047
  %v1092 = vsel %vm1004, %v960, %v1048
  %v1093 = vsel %vm1005, %v961, %v1049
  %v1094 = vsel %vm1006, %v962, %v1050
  %v1095 = vsel %vm1007, %v963, %v1051
  %v1096 = vlaneseq
  %v1097 = vand.u32 %v1096, 127
  %v1098 = vadd.s32 %v1097, 128
  %v1099 = vld [vmem:[%s4] sm:$0xff]
  %v1100 = vld [vmem:[%s4 + $0x8] sm:$0xff]
  %v1101 = vld [vmem:[%s4 + $0x10] sm:$0xff]
  %v1102 = vld [vmem:[%s4 + $0x18] sm:$0x1]
  %1103 = vset.pattern.permute.xlu0 0
  %1104 = vperm.xlu0 %1103, %v1099
  %v1105 = vpop.permute.xlu0 %1104
  %1106 = vset.pattern.permute.xlu0 0
  %1107 = vperm.xlu0 %1106, %v1100
  %v1108 = vpop.permute.xlu0 %1107
  %1109 = vset.pattern.permute.xlu0 0
  %1110 = vperm.xlu0 %1109, %v1101
  %v1111 = vpop.permute.xlu0 %1110
  %1112 = vset.pattern.permute.xlu0 0
  %1113 = vperm.xlu0 %1112, %v1102
  %v1114 = vpop.permute.xlu0 %1113
  %vm1115 = vcmp.eq.s32.totalorder %v1097, %v1105
  %vm1116 = vcmp.eq.s32.totalorder %v1098, %v1105
  %vm1117 = vcmp.eq.s32.totalorder %v1097, %v1108
  %vm1118 = vcmp.eq.s32.totalorder %v1098, %v1108
  %vm1119 = vcmp.eq.s32.totalorder %v1097, %v1111
  %vm1120 = vcmp.eq.s32.totalorder %v1098, %v1111
  %vm1121 = vcmp.eq.s32.totalorder %v1097, %v1114
  %vm1122 = vcmp.eq.s32.totalorder %v1098, %v1114
  %v1123 = vsel %vm1115, 1, 0
  %v1124 = vsel %vm1116, 1, 0
  %v1125 = vsel %vm1117, 1, 0
  %v1126 = vsel %vm1118, 1, 0
  %v1127 = vsel %vm1119, 1, 0
  %v1128 = vsel %vm1120, 1, 0
  %v1129 = vsel %vm1121, 1, 0
  %v1130 = vsel %vm1122, 1, 0
  %v1131 = vcvt.s32.f32 %v1123
  %v1132 = vcvt.s32.f32 %v1124
  %v1133 = vcvt.s32.f32 %v1125
  %v1134 = vcvt.s32.f32 %v1126
  %v1135 = vcvt.s32.f32 %v1127
  %v1136 = vcvt.s32.f32 %v1128
  %v1137 = vcvt.s32.f32 %v1129
  %v1138 = vcvt.s32.f32 %v1130
  %vm1139 = vcmask 334848
  %v1141 = vsel %vm1139, %v1132, 0
  %v1144 = vsel %vm1139, %v1134, 0
  %v1147 = vsel %vm1139, %v1136, 0
  %v1150 = vsel %vm1139, %v1138, 0
  %vm1152 = vcmask 1040384
  %v1154 = vsel %vm1152, %v1073, 0
  %1156 = vmatprep.subr.mxu0 0.0
  %1157 = vmatpush1.msra.mxu0 %v1052
  %1158 = vmatprep.subr.mxu0 0.0
  %1159 = vmatpush1.msra.mxu0 %v1053
  %1160 = vmatprep.subr.mxu0 0.0
  %1161 = vmatpush1.msra.mxu0 %v1054
  %1162 = vmatprep.subr.mxu0 0.0
  %1163 = vmatpush1.msra.mxu0 %v1055
  %1164 = vmatprep.subr.mxu0 0.0
  %1165 = vmatpush1.msra.mxu0 %v1056
  %1166 = vmatprep.subr.mxu0 0.0
  %1167 = vmatpush1.msra.mxu0 %v1057
  %1168 = vmatprep.subr.mxu0 0.0
  %1169 = vmatpush1.msra.mxu0 %v1058
  %1170 = vmatprep.subr.mxu0 0.0
  %1171 = vmatpush1.msra.mxu0 %v1059
  %1172 = vmatprep.subr.mxu0 0.0
  %1173 = vmatpush1.msra.mxu0 %v1060
  %1174 = vmatprep.subr.mxu0 0.0
  %1175 = vmatpush1.msra.mxu0 %v1061
  %1176 = vmatprep.subr.mxu0 0.0
  %1177 = vmatpush1.msra.mxu0 %v1062
  %1178 = vmatprep.subr.mxu0 0.0
  %1179 = vmatpush1.msra.mxu0 %v1063
  %1180 = vmatprep.subr.mxu0 0.0
  %1181 = vmatpush1.msra.mxu0 %v1064
  %1182 = vmatprep.subr.mxu0 0.0
  %1183 = vmatpush1.msra.mxu0 %v1065
  %1184 = vmatprep.subr.mxu0 0.0
  %1185 = vmatpush1.msra.mxu0 %v1066
  %1186 = vmatprep.subr.mxu0 0.0
  %1187 = vmatpush1.msra.mxu0 %v1067
  %1188 = vmatprep.subr.mxu0 0.0
  %1189 = vmatpush1.msra.mxu0 %v1068
  %1190 = vmatprep.subr.mxu0 0.0
  %1191 = vmatpush1.msra.mxu0 %v1069
  %1192 = vmatprep.subr.mxu0 0.0
  %1193 = vmatpush1.msra.mxu0 %v1070
  %1194 = vmatprep.subr.mxu0 0.0
  %1195 = vmatpush1.msra.mxu0 %v1071
  %1196 = vmatprep.subr.mxu0 0.0
  %1197 = vmatpush1.msra.mxu0 %v1072
  %1198 = vmatprep.subr.mxu0 0.0
  %1199 = vmatpush1.msra.mxu0 %v1154
  %1200 = vmatprep.subr.mxu0 0.0
  %1201 = vmatpush1.msra.mxu0 0.0
  %1202 = vmatprep.subr.mxu0 0.0
  %1203 = vmatpush1.msra.mxu0 0.0
  %1204 = vmatprep.subr.mxu0 0.0
  %1205 = vmatpush1.msra.mxu0 0.0
  %1206 = vmatprep.subr.mxu0 0.0
  %1207 = vmatpush1.msra.mxu0 0.0
  %1208 = vmatprep.subr.mxu0 0.0
  %1209 = vmatpush1.msra.mxu0 0.0
  %1210 = vmatprep.subr.mxu0 0.0
  %1211 = vmatpush1.msra.mxu0 0.0
  %1212 = vmatprep.subr.mxu0 0.0
  %1213 = vmatpush1.msra.mxu0 0.0
  %1214 = vmatprep.subr.mxu0 0.0
  %1215 = vmatpush1.msra.mxu0 0.0
  %1216 = vmatprep.subr.mxu0 0.0
  %1217 = vmatpush1.msra.mxu0 0.0
  %1218 = vmatprep.subr.mxu0 0.0
  %1219 = vmatpush1.msra.mxu0 0.0
  %1220 = vmatprep.mubr.f32.mxu0 %v1141
  %1221 = vmatmul.mubr.f32.gmra.mrb[0].mxu0 %v1131
  %v1222 = vpop.f32.mrb[0].mxu0
  %v1223 = vadd.f32 0.0, %v1222
  %v1224 = vpop.f32.mrb[0].mxu0
  %1225 = vmatprep.mubr.f32.mxu0 %v1144
  %1226 = vmatmul.mubr.f32.gmra.mrb[0].mxu0 %v1133
  %v1227 = vpop.f32.mrb[0].mxu0
  %v1228 = vadd.f32 0.0, %v1227
  %v1229 = vpop.f32.mrb[0].mxu0
  %1230 = vmatprep.mubr.f32.mxu0 %v1147
  %1231 = vmatmul.mubr.f32.gmra.mrb[0].mxu0 %v1135
  %v1232 = vpop.f32.mrb[0].mxu0
  %v1233 = vadd.f32 0.0, %v1232
  %v1234 = vpop.f32.mrb[0].mxu0
  %1235 = vmatprep.mubr.f32.mxu0 %v1150
  %1236 = vmatmul.mubr.f32.gmra.mrb[0].mxu0 %v1137
  %v1237 = vpop.f32.mrb[0].mxu0
  %v1238 = vadd.f32 0.0, %v1237
  %v1239 = vpop.f32.mrb[0].mxu0
  %1240 = vdwg.mxu0
  %v1242 = vsel %vm1152, %v1095, 0
  %1244 = vmatprep.subr.mxu0 0.0
  %1245 = vmatpush1.msra.mxu0 %v1074
  %1246 = vmatprep.subr.mxu0 0.0
  %1247 = vmatpush1.msra.mxu0 %v1075
  %1248 = vmatprep.subr.mxu0 0.0
  %1249 = vmatpush1.msra.mxu0 %v1076
  %1250 = vmatprep.subr.mxu0 0.0
  %1251 = vmatpush1.msra.mxu0 %v1077
  %1252 = vmatprep.subr.mxu0 0.0
  %1253 = vmatpush1.msra.mxu0 %v1078
  %1254 = vmatprep.subr.mxu0 0.0
  %1255 = vmatpush1.msra.mxu0 %v1079
  %1256 = vmatprep.subr.mxu0 0.0
  %1257 = vmatpush1.msra.mxu0 %v1080
  %1258 = vmatprep.subr.mxu0 0.0
  %1259 = vmatpush1.msra.mxu0 %v1081
  %1260 = vmatprep.subr.mxu0 0.0
  %1261 = vmatpush1.msra.mxu0 %v1082
  %1262 = vmatprep.subr.mxu0 0.0
  %1263 = vmatpush1.msra.mxu0 %v1083
  %1264 = vmatprep.subr.mxu0 0.0
  %1265 = vmatpush1.msra.mxu0 %v1084
  %1266 = vmatprep.subr.mxu0 0.0
  %1267 = vmatpush1.msra.mxu0 %v1085
  %1268 = vmatprep.subr.mxu0 0.0
  %1269 = vmatpush1.msra.mxu0 %v1086
  %1270 = vmatprep.subr.mxu0 0.0
  %1271 = vmatpush1.msra.mxu0 %v1087
  %1272 = vmatprep.subr.mxu0 0.0
  %1273 = vmatpush1.msra.mxu0 %v1088
  %1274 = vmatprep.subr.mxu0 0.0
  %1275 = vmatpush1.msra.mxu0 %v1089
  %1276 = vmatprep.subr.mxu0 0.0
  %1277 = vmatpush1.msra.mxu0 %v1090
  %1278 = vmatprep.subr.mxu0 0.0
  %1279 = vmatpush1.msra.mxu0 %v1091
  %1280 = vmatprep.subr.mxu0 0.0
  %1281 = vmatpush1.msra.mxu0 %v1092
  %1282 = vmatprep.subr.mxu0 0.0
  %1283 = vmatpush1.msra.mxu0 %v1093
  %1284 = vmatprep.subr.mxu0 0.0
  %1285 = vmatpush1.msra.mxu0 %v1094
  %1286 = vmatprep.subr.mxu0 0.0
  %1287 = vmatpush1.msra.mxu0 %v1242
  %1288 = vmatprep.subr.mxu0 0.0
  %1289 = vmatpush1.msra.mxu0 0.0
  %1290 = vmatprep.subr.mxu0 0.0
  %1291 = vmatpush1.msra.mxu0 0.0
  %1292 = vmatprep.subr.mxu0 0.0
  %1293 = vmatpush1.msra.mxu0 0.0
  %1294 = vmatprep.subr.mxu0 0.0
  %1295 = vmatpush1.msra.mxu0 0.0
  %1296 = vmatprep.subr.mxu0 0.0
  %1297 = vmatpush1.msra.mxu0 0.0
  %1298 = vmatprep.subr.mxu0 0.0
  %1299 = vmatpush1.msra.mxu0 0.0
  %1300 = vmatprep.subr.mxu0 0.0
  %1301 = vmatpush1.msra.mxu0 0.0
  %1302 = vmatprep.subr.mxu0 0.0
  %1303 = vmatpush1.msra.mxu0 0.0
  %1304 = vmatprep.subr.mxu0 0.0
  %1305 = vmatpush1.msra.mxu0 0.0
  %1306 = vmatprep.subr.mxu0 0.0
  %1307 = vmatpush1.msra.mxu0 0.0
  %1308 = vmatprep.mubr.f32.mxu0 %v1141
  %1309 = vmatmul.mubr.f32.gmra.mrb[0].mxu0 %v1131
  %v1310 = vpop.f32.mrb[0].mxu0
  %v1311 = vadd.f32 0.0, %v1310
  %v1312 = vpop.f32.mrb[0].mxu0
  %1313 = vmatprep.mubr.f32.mxu0 %v1144
  %1314 = vmatmul.mubr.f32.gmra.mrb[0].mxu0 %v1133
  %v1315 = vpop.f32.mrb[0].mxu0
  %v1316 = vadd.f32 0.0, %v1315
  %v1317 = vpop.f32.mrb[0].mxu0
  %1318 = vmatprep.mubr.f32.mxu0 %v1147
  %1319 = vmatmul.mubr.f32.gmra.mrb[0].mxu0 %v1135
  %v1320 = vpop.f32.mrb[0].mxu0
  %v1321 = vadd.f32 0.0, %v1320
  %v1322 = vpop.f32.mrb[0].mxu0
  %1323 = vmatprep.mubr.f32.mxu0 %v1150
  %1324 = vmatmul.mubr.f32.gmra.mrb[0].mxu0 %v1137
  %v1325 = vpop.f32.mrb[0].mxu0
  %v1326 = vadd.f32 0.0, %v1325
  %v1327 = vpop.f32.mrb[0].mxu0
  %1328 = vdwg.mxu0
  %v1329 = vld [vmem:[%s5] sm:$0xff]
  %v1330 = vld [vmem:[%s5 + $0x8] sm:$0xff]
  %v1331 = vadd.s32 %v1099, 1
  %v1332 = vadd.s32 %v1100, 1
  %v1333 = vadd.s32 %v1101, 1
  %v1334 = vadd.s32 %v1102, 1
  %1335 = vset.pattern.permute.xlu0 0
  %1336 = vperm.xlu0 %1335, %v1331
  %v1337 = vpop.permute.xlu0 %1336
  %1338 = vset.pattern.permute.xlu0 0
  %1339 = vperm.xlu0 %1338, %v1332
  %v1340 = vpop.permute.xlu0 %1339
  %1341 = vset.pattern.permute.xlu0 0
  %1342 = vperm.xlu0 %1341, %v1333
  %v1343 = vpop.permute.xlu0 %1342
  %1344 = vset.pattern.permute.xlu0 0
  %1345 = vperm.xlu0 %1344, %v1334
  %v1346 = vpop.permute.xlu0 %1345
  %vm1347 = vcmp.eq.s32.totalorder %v1097, %v1337
  %vm1348 = vcmp.eq.s32.totalorder %v1098, %v1337
  %vm1349 = vcmp.eq.s32.totalorder %v1097, %v1340
  %vm1350 = vcmp.eq.s32.totalorder %v1098, %v1340
  %vm1351 = vcmp.eq.s32.totalorder %v1097, %v1343
  %vm1352 = vcmp.eq.s32.totalorder %v1098, %v1343
  %vm1353 = vcmp.eq.s32.totalorder %v1097, %v1346
  %vm1354 = vcmp.eq.s32.totalorder %v1098, %v1346
  %v1355 = vsel %vm1347, 1, 0
  %v1356 = vsel %vm1348, 1, 0
  %v1357 = vsel %vm1349, 1, 0
  %v1358 = vsel %vm1350, 1, 0
  %v1359 = vsel %vm1351, 1, 0
  %v1360 = vsel %vm1352, 1, 0
  %v1361 = vsel %vm1353, 1, 0
  %v1362 = vsel %vm1354, 1, 0
  %v1363 = vcvt.s32.f32 %v1355
  %v1364 = vcvt.s32.f32 %v1356
  %v1365 = vcvt.s32.f32 %v1357
  %v1366 = vcvt.s32.f32 %v1358
  %v1367 = vcvt.s32.f32 %v1359
  %v1368 = vcvt.s32.f32 %v1360
  %v1369 = vcvt.s32.f32 %v1361
  %v1370 = vcvt.s32.f32 %v1362
  %v1372 = vsel %vm1139, %v1364, 0
  %v1375 = vsel %vm1139, %v1366, 0
  %v1378 = vsel %vm1139, %v1368, 0
  %v1381 = vsel %vm1139, %v1370, 0
  %1383 = vmatprep.subr.mxu0 0.0
  %1384 = vmatpush1.msra.mxu0 %v1052
  %1385 = vmatprep.subr.mxu0 0.0
  %1386 = vmatpush1.msra.mxu0 %v1053
  %1387 = vmatprep.subr.mxu0 0.0
  %1388 = vmatpush1.msra.mxu0 %v1054
  %1389 = vmatprep.subr.mxu0 0.0
  %1390 = vmatpush1.msra.mxu0 %v1055
  %1391 = vmatprep.subr.mxu0 0.0
  %1392 = vmatpush1.msra.mxu0 %v1056
  %1393 = vmatprep.subr.mxu0 0.0
  %1394 = vmatpush1.msra.mxu0 %v1057
  %1395 = vmatprep.subr.mxu0 0.0
  %1396 = vmatpush1.msra.mxu0 %v1058
  %1397 = vmatprep.subr.mxu0 0.0
  %1398 = vmatpush1.msra.mxu0 %v1059
  %1399 = vmatprep.subr.mxu0 0.0
  %1400 = vmatpush1.msra.mxu0 %v1060
  %1401 = vmatprep.subr.mxu0 0.0
  %1402 = vmatpush1.msra.mxu0 %v1061
  %1403 = vmatprep.subr.mxu0 0.0
  %1404 = vmatpush1.msra.mxu0 %v1062
  %1405 = vmatprep.subr.mxu0 0.0
  %1406 = vmatpush1.msra.mxu0 %v1063
  %1407 = vmatprep.subr.mxu0 0.0
  %1408 = vmatpush1.msra.mxu0 %v1064
  %1409 = vmatprep.subr.mxu0 0.0
  %1410 = vmatpush1.msra.mxu0 %v1065
  %1411 = vmatprep.subr.mxu0 0.0
  %1412 = vmatpush1.msra.mxu0 %v1066
  %1413 = vmatprep.subr.mxu0 0.0
  %1414 = vmatpush1.msra.mxu0 %v1067
  %1415 = vmatprep.subr.mxu0 0.0
  %1416 = vmatpush1.msra.mxu0 %v1068
  %1417 = vmatprep.subr.mxu0 0.0
  %1418 = vmatpush1.msra.mxu0 %v1069
  %1419 = vmatprep.subr.mxu0 0.0
  %1420 = vmatpush1.msra.mxu0 %v1070
  %1421 = vmatprep.subr.mxu0 0.0
  %1422 = vmatpush1.msra.mxu0 %v1071
  %1423 = vmatprep.subr.mxu0 0.0
  %1424 = vmatpush1.msra.mxu0 %v1072
  %1425 = vmatprep.subr.mxu0 0.0
  %1426 = vmatpush1.msra.mxu0 %v1154
  %1427 = vmatprep.subr.mxu0 0.0
  %1428 = vmatpush1.msra.mxu0 0.0
  %1429 = vmatprep.subr.mxu0 0.0
  %1430 = vmatpush1.msra.mxu0 0.0
  %1431 = vmatprep.subr.mxu0 0.0
  %1432 = vmatpush1.msra.mxu0 0.0
  %1433 = vmatprep.subr.mxu0 0.0
  %1434 = vmatpush1.msra.mxu0 0.0
  %1435 = vmatprep.subr.mxu0 0.0
  %1436 = vmatpush1.msra.mxu0 0.0
  %1437 = vmatprep.subr.mxu0 0.0
  %1438 = vmatpush1.msra.mxu0 0.0
  %1439 = vmatprep.subr.mxu0 0.0
  %1440 = vmatpush1.msra.mxu0 0.0
  %1441 = vmatprep.subr.mxu0 0.0
  %1442 = vmatpush1.msra.mxu0 0.0
  %1443 = vmatprep.subr.mxu0 0.0
  %1444 = vmatpush1.msra.mxu0 0.0
  %1445 = vmatprep.subr.mxu0 0.0
  %1446 = vmatpush1.msra.mxu0 0.0
  %1447 = vmatprep.mubr.f32.mxu0 %v1372
  %1448 = vmatmul.mubr.f32.gmra.mrb[0].mxu0 %v1363
  %v1449 = vpop.f32.mrb[0].mxu0
  %v1450 = vadd.f32 0.0, %v1449
  %v1451 = vpop.f32.mrb[0].mxu0
  %1452 = vmatprep.mubr.f32.mxu0 %v1375
  %1453 = vmatmul.mubr.f32.gmra.mrb[0].mxu0 %v1365
  %v1454 = vpop.f32.mrb[0].mxu0
  %v1455 = vadd.f32 0.0, %v1454
  %v1456 = vpop.f32.mrb[0].mxu0
  %1457 = vmatprep.mubr.f32.mxu0 %v1378
  %1458 = vmatmul.mubr.f32.gmra.mrb[0].mxu0 %v1367
  %v1459 = vpop.f32.mrb[0].mxu0
  %v1460 = vadd.f32 0.0, %v1459
  %v1461 = vpop.f32.mrb[0].mxu0
  %1462 = vmatprep.mubr.f32.mxu0 %v1381
  %1463 = vmatmul.mubr.f32.gmra.mrb[0].mxu0 %v1369
  %v1464 = vpop.f32.mrb[0].mxu0
  %v1465 = vadd.f32 0.0, %v1464
  %v1466 = vpop.f32.mrb[0].mxu0
  %1467 = vdwg.mxu0
  %1468 = vmatprep.subr.mxu0 0.0
  %1469 = vmatpush1.msra.mxu0 %v1074
  %1470 = vmatprep.subr.mxu0 0.0
  %1471 = vmatpush1.msra.mxu0 %v1075
  %1472 = vmatprep.subr.mxu0 0.0
  %1473 = vmatpush1.msra.mxu0 %v1076
  %1474 = vmatprep.subr.mxu0 0.0
  %1475 = vmatpush1.msra.mxu0 %v1077
  %1476 = vmatprep.subr.mxu0 0.0
  %1477 = vmatpush1.msra.mxu0 %v1078
  %1478 = vmatprep.subr.mxu0 0.0
  %1479 = vmatpush1.msra.mxu0 %v1079
  %1480 = vmatprep.subr.mxu0 0.0
  %1481 = vmatpush1.msra.mxu0 %v1080
  %1482 = vmatprep.subr.mxu0 0.0
  %1483 = vmatpush1.msra.mxu0 %v1081
  %1484 = vmatprep.subr.mxu0 0.0
  %1485 = vmatpush1.msra.mxu0 %v1082
  %1486 = vmatprep.subr.mxu0 0.0
  %1487 = vmatpush1.msra.mxu0 %v1083
  %1488 = vmatprep.subr.mxu0 0.0
  %1489 = vmatpush1.msra.mxu0 %v1084
  %1490 = vmatprep.subr.mxu0 0.0
  %1491 = vmatpush1.msra.mxu0 %v1085
  %1492 = vmatprep.subr.mxu0 0.0
  %1493 = vmatpush1.msra.mxu0 %v1086
  %1494 = vmatprep.subr.mxu0 0.0
  %1495 = vmatpush1.msra.mxu0 %v1087
  %1496 = vmatprep.subr.mxu0 0.0
  %1497 = vmatpush1.msra.mxu0 %v1088
  %1498 = vmatprep.subr.mxu0 0.0
  %1499 = vmatpush1.msra.mxu0 %v1089
  %1500 = vmatprep.subr.mxu0 0.0
  %1501 = vmatpush1.msra.mxu0 %v1090
  %1502 = vmatprep.subr.mxu0 0.0
  %1503 = vmatpush1.msra.mxu0 %v1091
  %1504 = vmatprep.subr.mxu0 0.0
  %1505 = vmatpush1.msra.mxu0 %v1092
  %1506 = vmatprep.subr.mxu0 0.0
  %1507 = vmatpush1.msra.mxu0 %v1093
  %1508 = vmatprep.subr.mxu0 0.0
  %1509 = vmatpush1.msra.mxu0 %v1094
  %1510 = vmatprep.subr.mxu0 0.0
  %1511 = vmatpush1.msra.mxu0 %v1242
  %1512 = vmatprep.subr.mxu0 0.0
  %1513 = vmatpush1.msra.mxu0 0.0
  %1514 = vmatprep.subr.mxu0 0.0
  %1515 = vmatpush1.msra.mxu0 0.0
  %1516 = vmatprep.subr.mxu0 0.0
  %1517 = vmatpush1.msra.mxu0 0.0
  %1518 = vmatprep.subr.mxu0 0.0
  %1519 = vmatpush1.msra.mxu0 0.0
  %1520 = vmatprep.subr.mxu0 0.0
  %1521 = vmatpush1.msra.mxu0 0.0
  %1522 = vmatprep.subr.mxu0 0.0
  %1523 = vmatpush1.msra.mxu0 0.0
  %1524 = vmatprep.subr.mxu0 0.0
  %1525 = vmatpush1.msra.mxu0 0.0
  %1526 = vmatprep.subr.mxu0 0.0
  %1527 = vmatpush1.msra.mxu0 0.0
  %1528 = vmatprep.subr.mxu0 0.0
  %1529 = vmatpush1.msra.mxu0 0.0
  %1530 = vmatprep.subr.mxu0 0.0
  %1531 = vmatpush1.msra.mxu0 0.0
  %1532 = vmatprep.mubr.f32.mxu0 %v1372
  %1533 = vmatmul.mubr.f32.gmra.mrb[0].mxu0 %v1363
  %v1534 = vpop.f32.mrb[0].mxu0
  %v1535 = vadd.f32 0.0, %v1534
  %v1536 = vpop.f32.mrb[0].mxu0
  %1537 = vmatprep.mubr.f32.mxu0 %v1375
  %1538 = vmatmul.mubr.f32.gmra.mrb[0].mxu0 %v1365
  %v1539 = vpop.f32.mrb[0].mxu0
  %v1540 = vadd.f32 0.0, %v1539
  %v1541 = vpop.f32.mrb[0].mxu0
  %1542 = vmatprep.mubr.f32.mxu0 %v1378
  %1543 = vmatmul.mubr.f32.gmra.mrb[0].mxu0 %v1367
  %v1544 = vpop.f32.mrb[0].mxu0
  %v1545 = vadd.f32 0.0, %v1544
  %v1546 = vpop.f32.mrb[0].mxu0
  %1547 = vmatprep.mubr.f32.mxu0 %v1381
  %1548 = vmatmul.mubr.f32.gmra.mrb[0].mxu0 %v1369
  %v1549 = vpop.f32.mrb[0].mxu0
  %v1550 = vadd.f32 0.0, %v1549
  %v1551 = vpop.f32.mrb[0].mxu0
  %1552 = vdwg.mxu0
  %s1553 = scalar_lea.vmem %s5, 16
  %v1554 = vld [vmem:[%s1553] sm:$0xff]
  %v1555 = vld [vmem:[%s1553 + $0x8] sm:$0xff]
  %v1557 = vsel %vm83, %v1450, 0
  %v1560 = vsel %vm83, %v1455, 0
  %v1563 = vsel %vm83, %v1460, 0
  %v1566 = vsel %vm83, %v1465, 0
  %1568 = vmatprep.subr.mxu0 0.0
  %1569 = vmatpush1.msra.mxu0 %v1554
  %1570 = vmatprep.subr.mxu0 0.0
  %1571 = vmatpush1.msra.mxu0 %v1555
  %1572 = vmatprep.subr.mxu0 0.0
  %1573 = vmatpush1.msra.mxu0 0.0
  %1574 = vmatprep.subr.mxu0 0.0
  %1575 = vmatpush1.msra.mxu0 0.0
  %1576 = vmatprep.subr.mxu0 0.0
  %1577 = vmatpush1.msra.mxu0 0.0
  %1578 = vmatprep.subr.mxu0 0.0
  %1579 = vmatpush1.msra.mxu0 0.0
  %1580 = vmatprep.subr.mxu0 0.0
  %1581 = vmatpush1.msra.mxu0 0.0
  %1582 = vmatprep.subr.mxu0 0.0
  %1583 = vmatpush1.msra.mxu0 0.0
  %1584 = vmatprep.subr.mxu0 0.0
  %1585 = vmatpush1.msra.mxu0 0.0
  %1586 = vmatprep.subr.mxu0 0.0
  %1587 = vmatpush1.msra.mxu0 0.0
  %1588 = vmatprep.subr.mxu0 0.0
  %1589 = vmatpush1.msra.mxu0 0.0
  %1590 = vmatprep.subr.mxu0 0.0
  %1591 = vmatpush1.msra.mxu0 0.0
  %1592 = vmatprep.subr.mxu0 0.0
  %1593 = vmatpush1.msra.mxu0 0.0
  %1594 = vmatprep.subr.mxu0 0.0
  %1595 = vmatpush1.msra.mxu0 0.0
  %1596 = vmatprep.subr.mxu0 0.0
  %1597 = vmatpush1.msra.mxu0 0.0
  %1598 = vmatprep.subr.mxu0 0.0
  %1599 = vmatpush1.msra.mxu0 0.0
  %1600 = vmatprep.subr.mxu0 0.0
  %1601 = vmatpush1.msra.mxu0 0.0
  %1602 = vmatprep.subr.mxu0 0.0
  %1603 = vmatpush1.msra.mxu0 0.0
  %1604 = vmatprep.subr.mxu0 0.0
  %1605 = vmatpush1.msra.mxu0 0.0
  %1606 = vmatprep.subr.mxu0 0.0
  %1607 = vmatpush1.msra.mxu0 0.0
  %1608 = vmatprep.subr.mxu0 0.0
  %1609 = vmatpush1.msra.mxu0 0.0
  %1610 = vmatprep.subr.mxu0 0.0
  %1611 = vmatpush1.msra.mxu0 0.0
  %1612 = vmatprep.subr.mxu0 0.0
  %1613 = vmatpush1.msra.mxu0 0.0
  %1614 = vmatprep.subr.mxu0 0.0
  %1615 = vmatpush1.msra.mxu0 0.0
  %1616 = vmatprep.subr.mxu0 0.0
  %1617 = vmatpush1.msra.mxu0 0.0
  %1618 = vmatprep.subr.mxu0 0.0
  %1619 = vmatpush1.msra.mxu0 0.0
  %1620 = vmatprep.subr.mxu0 0.0
  %1621 = vmatpush1.msra.mxu0 0.0
  %1622 = vmatprep.subr.mxu0 0.0
  %1623 = vmatpush1.msra.mxu0 0.0
  %1624 = vmatprep.subr.mxu0 0.0
  %1625 = vmatpush1.msra.mxu0 0.0
  %1626 = vmatprep.subr.mxu0 0.0
  %1627 = vmatpush1.msra.mxu0 0.0
  %1628 = vmatprep.subr.mxu0 0.0
  %1629 = vmatpush1.msra.mxu0 0.0
  %1630 = vmatprep.subr.mxu0 0.0
  %1631 = vmatpush1.msra.mxu0 0.0
  %1632 = vmatprep.mubr.f32.mxu0 0.0
  %1633 = vmatmul.mubr.f32.gmra.mrb[0].mxu0 %v1557
  %v1634 = vpop.f32.mrb[0].mxu0
  %v1635 = vadd.f32 0.0, %v1634
  %v1636 = vpop.f32.mrb[0].mxu0
  %1637 = vmatprep.mubr.f32.mxu0 0.0
  %1638 = vmatmul.mubr.f32.gmra.mrb[0].mxu0 %v1560
  %v1639 = vpop.f32.mrb[0].mxu0
  %v1640 = vadd.f32 0.0, %v1639
  %v1641 = vpop.f32.mrb[0].mxu0
  %1642 = vmatprep.mubr.f32.mxu0 0.0
  %1643 = vmatmul.mubr.f32.gmra.mrb[0].mxu0 %v1563
  %v1644 = vpop.f32.mrb[0].mxu0
  %v1645 = vadd.f32 0.0, %v1644
  %v1646 = vpop.f32.mrb[0].mxu0
  %1647 = vmatprep.mubr.f32.mxu0 0.0
  %1648 = vmatmul.mubr.f32.gmra.mrb[0].mxu0 %v1566
  %v1649 = vpop.f32.mrb[0].mxu0
  %v1650 = vadd.f32 0.0, %v1649
  %v1651 = vpop.f32.mrb[0].mxu0
  %1652 = vdwg.mxu0
  %v1654 = vsel %vm83, %v1535, 0
  %v1657 = vsel %vm83, %v1540, 0
  %v1660 = vsel %vm83, %v1545, 0
  %v1663 = vsel %vm83, %v1550, 0
  %1665 = vmatprep.subr.mxu0 0.0
  %1666 = vmatpush1.msra.mxu0 %v1554
  %1667 = vmatprep.subr.mxu0 0.0
  %1668 = vmatpush1.msra.mxu0 %v1555
  %1669 = vmatprep.subr.mxu0 0.0
  %1670 = vmatpush1.msra.mxu0 0.0
  %1671 = vmatprep.subr.mxu0 0.0
  %1672 = vmatpush1.msra.mxu0 0.0
  %1673 = vmatprep.subr.mxu0 0.0
  %1674 = vmatpush1.msra.mxu0 0.0
  %1675 = vmatprep.subr.mxu0 0.0
  %1676 = vmatpush1.msra.mxu0 0.0
  %1677 = vmatprep.subr.mxu0 0.0
  %1678 = vmatpush1.msra.mxu0 0.0
  %1679 = vmatprep.subr.mxu0 0.0
  %1680 = vmatpush1.msra.mxu0 0.0
  %1681 = vmatprep.subr.mxu0 0.0
  %1682 = vmatpush1.msra.mxu0 0.0
  %1683 = vmatprep.subr.mxu0 0.0
  %1684 = vmatpush1.msra.mxu0 0.0
  %1685 = vmatprep.subr.mxu0 0.0
  %1686 = vmatpush1.msra.mxu0 0.0
  %1687 = vmatprep.subr.mxu0 0.0
  %1688 = vmatpush1.msra.mxu0 0.0
  %1689 = vmatprep.subr.mxu0 0.0
  %1690 = vmatpush1.msra.mxu0 0.0
  %1691 = vmatprep.subr.mxu0 0.0
  %1692 = vmatpush1.msra.mxu0 0.0
  %1693 = vmatprep.subr.mxu0 0.0
  %1694 = vmatpush1.msra.mxu0 0.0
  %1695 = vmatprep.subr.mxu0 0.0
  %1696 = vmatpush1.msra.mxu0 0.0
  %1697 = vmatprep.subr.mxu0 0.0
  %1698 = vmatpush1.msra.mxu0 0.0
  %1699 = vmatprep.subr.mxu0 0.0
  %1700 = vmatpush1.msra.mxu0 0.0
  %1701 = vmatprep.subr.mxu0 0.0
  %1702 = vmatpush1.msra.mxu0 0.0
  %1703 = vmatprep.subr.mxu0 0.0
  %1704 = vmatpush1.msra.mxu0 0.0
  %1705 = vmatprep.subr.mxu0 0.0
  %1706 = vmatpush1.msra.mxu0 0.0
  %1707 = vmatprep.subr.mxu0 0.0
  %1708 = vmatpush1.msra.mxu0 0.0
  %1709 = vmatprep.subr.mxu0 0.0
  %1710 = vmatpush1.msra.mxu0 0.0
  %1711 = vmatprep.subr.mxu0 0.0
  %1712 = vmatpush1.msra.mxu0 0.0
  %1713 = vmatprep.subr.mxu0 0.0
  %1714 = vmatpush1.msra.mxu0 0.0
  %1715 = vmatprep.subr.mxu0 0.0
  %1716 = vmatpush1.msra.mxu0 0.0
  %1717 = vmatprep.subr.mxu0 0.0
  %1718 = vmatpush1.msra.mxu0 0.0
  %1719 = vmatprep.subr.mxu0 0.0
  %1720 = vmatpush1.msra.mxu0 0.0
  %1721 = vmatprep.subr.mxu0 0.0
  %1722 = vmatpush1.msra.mxu0 0.0
  %1723 = vmatprep.subr.mxu0 0.0
  %1724 = vmatpush1.msra.mxu0 0.0
  %1725 = vmatprep.subr.mxu0 0.0
  %1726 = vmatpush1.msra.mxu0 0.0
  %1727 = vmatprep.subr.mxu0 0.0
  %1728 = vmatpush1.msra.mxu0 0.0
  %1729 = vmatprep.mubr.f32.mxu0 0.0
  %1730 = vmatmul.mubr.f32.gmra.mrb[0].mxu0 %v1654
  %v1731 = vpop.f32.mrb[0].mxu0
  %v1732 = vadd.f32 0.0, %v1731
  %v1733 = vpop.f32.mrb[0].mxu0
  %1734 = vmatprep.mubr.f32.mxu0 0.0
  %1735 = vmatmul.mubr.f32.gmra.mrb[0].mxu0 %v1657
  %v1736 = vpop.f32.mrb[0].mxu0
  %v1737 = vadd.f32 0.0, %v1736
  %v1738 = vpop.f32.mrb[0].mxu0
  %1739 = vmatprep.mubr.f32.mxu0 0.0
  %1740 = vmatmul.mubr.f32.gmra.mrb[0].mxu0 %v1660
  %v1741 = vpop.f32.mrb[0].mxu0
  %v1742 = vadd.f32 0.0, %v1741
  %v1743 = vpop.f32.mrb[0].mxu0
  %1744 = vmatprep.mubr.f32.mxu0 0.0
  %1745 = vmatmul.mubr.f32.gmra.mrb[0].mxu0 %v1663
  %v1746 = vpop.f32.mrb[0].mxu0
  %v1747 = vadd.f32 0.0, %v1746
  %v1748 = vpop.f32.mrb[0].mxu0
  %1749 = vdwg.mxu0
  %v1751 = vsel %vm83, %v1223, 0
  %v1754 = vsel %vm83, %v1228, 0
  %v1757 = vsel %vm83, %v1233, 0
  %v1760 = vsel %vm83, %v1238, 0
  %1762 = vmatprep.subr.mxu0 0.0
  %1763 = vmatpush1.msra.mxu0 %v1329
  %1764 = vmatprep.subr.mxu0 0.0
  %1765 = vmatpush1.msra.mxu0 %v1330
  %1766 = vmatprep.subr.mxu0 0.0
  %1767 = vmatpush1.msra.mxu0 0.0
  %1768 = vmatprep.subr.mxu0 0.0
  %1769 = vmatpush1.msra.mxu0 0.0
  %1770 = vmatprep.subr.mxu0 0.0
  %1771 = vmatpush1.msra.mxu0 0.0
  %1772 = vmatprep.subr.mxu0 0.0
  %1773 = vmatpush1.msra.mxu0 0.0
  %1774 = vmatprep.subr.mxu0 0.0
  %1775 = vmatpush1.msra.mxu0 0.0
  %1776 = vmatprep.subr.mxu0 0.0
  %1777 = vmatpush1.msra.mxu0 0.0
  %1778 = vmatprep.subr.mxu0 0.0
  %1779 = vmatpush1.msra.mxu0 0.0
  %1780 = vmatprep.subr.mxu0 0.0
  %1781 = vmatpush1.msra.mxu0 0.0
  %1782 = vmatprep.subr.mxu0 0.0
  %1783 = vmatpush1.msra.mxu0 0.0
  %1784 = vmatprep.subr.mxu0 0.0
  %1785 = vmatpush1.msra.mxu0 0.0
  %1786 = vmatprep.subr.mxu0 0.0
  %1787 = vmatpush1.msra.mxu0 0.0
  %1788 = vmatprep.subr.mxu0 0.0
  %1789 = vmatpush1.msra.mxu0 0.0
  %1790 = vmatprep.subr.mxu0 0.0
  %1791 = vmatpush1.msra.mxu0 0.0
  %1792 = vmatprep.subr.mxu0 0.0
  %1793 = vmatpush1.msra.mxu0 0.0
  %1794 = vmatprep.subr.mxu0 0.0
  %1795 = vmatpush1.msra.mxu0 0.0
  %1796 = vmatprep.subr.mxu0 0.0
  %1797 = vmatpush1.msra.mxu0 0.0
  %1798 = vmatprep.subr.mxu0 0.0
  %1799 = vmatpush1.msra.mxu0 0.0
  %1800 = vmatprep.subr.mxu0 0.0
  %1801 = vmatpush1.msra.mxu0 0.0
  %1802 = vmatprep.subr.mxu0 0.0
  %1803 = vmatpush1.msra.mxu0 0.0
  %1804 = vmatprep.subr.mxu0 0.0
  %1805 = vmatpush1.msra.mxu0 0.0
  %1806 = vmatprep.subr.mxu0 0.0
  %1807 = vmatpush1.msra.mxu0 0.0
  %1808 = vmatprep.subr.mxu0 0.0
  %1809 = vmatpush1.msra.mxu0 0.0
  %1810 = vmatprep.subr.mxu0 0.0
  %1811 = vmatpush1.msra.mxu0 0.0
  %1812 = vmatprep.subr.mxu0 0.0
  %1813 = vmatpush1.msra.mxu0 0.0
  %1814 = vmatprep.subr.mxu0 0.0
  %1815 = vmatpush1.msra.mxu0 0.0
  %1816 = vmatprep.subr.mxu0 0.0
  %1817 = vmatpush1.msra.mxu0 0.0
  %1818 = vmatprep.subr.mxu0 0.0
  %1819 = vmatpush1.msra.mxu0 0.0
  %1820 = vmatprep.subr.mxu0 0.0
  %1821 = vmatpush1.msra.mxu0 0.0
  %1822 = vmatprep.subr.mxu0 0.0
  %1823 = vmatpush1.msra.mxu0 0.0
  %1824 = vmatprep.subr.mxu0 0.0
  %1825 = vmatpush1.msra.mxu0 0.0
  %1826 = vmatprep.mubr.f32.mxu0 0.0
  %1827 = vmatmul.mubr.f32.gmra.mrb[0].mxu0 %v1751
  %v1828 = vpop.f32.mrb[0].mxu0
  %v1829 = vadd.f32 %v1635, %v1828
  %v1830 = vpop.f32.mrb[0].mxu0
  %1831 = vmatprep.mubr.f32.mxu0 0.0
  %1832 = vmatmul.mubr.f32.gmra.mrb[0].mxu0 %v1754
  %v1833 = vpop.f32.mrb[0].mxu0
  %v1834 = vadd.f32 %v1640, %v1833
  %v1835 = vpop.f32.mrb[0].mxu0
  %1836 = vmatprep.mubr.f32.mxu0 0.0
  %1837 = vmatmul.mubr.f32.gmra.mrb[0].mxu0 %v1757
  %v1838 = vpop.f32.mrb[0].mxu0
  %v1839 = vadd.f32 %v1645, %v1838
  %v1840 = vpop.f32.mrb[0].mxu0
  %1841 = vmatprep.mubr.f32.mxu0 0.0
  %1842 = vmatmul.mubr.f32.gmra.mrb[0].mxu0 %v1760
  %v1843 = vpop.f32.mrb[0].mxu0
  %v1844 = vadd.f32 %v1650, %v1843
  %v1845 = vpop.f32.mrb[0].mxu0
  %1846 = vdwg.mxu0
  %v1848 = vsel %vm83, %v1311, 0
  %v1851 = vsel %vm83, %v1316, 0
  %v1854 = vsel %vm83, %v1321, 0
  %v1857 = vsel %vm83, %v1326, 0
  %1859 = vmatprep.subr.mxu0 0.0
  %1860 = vmatpush1.msra.mxu0 %v1329
  %1861 = vmatprep.subr.mxu0 0.0
  %1862 = vmatpush1.msra.mxu0 %v1330
  %1863 = vmatprep.subr.mxu0 0.0
  %1864 = vmatpush1.msra.mxu0 0.0
  %1865 = vmatprep.subr.mxu0 0.0
  %1866 = vmatpush1.msra.mxu0 0.0
  %1867 = vmatprep.subr.mxu0 0.0
  %1868 = vmatpush1.msra.mxu0 0.0
  %1869 = vmatprep.subr.mxu0 0.0
  %1870 = vmatpush1.msra.mxu0 0.0
  %1871 = vmatprep.subr.mxu0 0.0
  %1872 = vmatpush1.msra.mxu0 0.0
  %1873 = vmatprep.subr.mxu0 0.0
  %1874 = vmatpush1.msra.mxu0 0.0
  %1875 = vmatprep.subr.mxu0 0.0
  %1876 = vmatpush1.msra.mxu0 0.0
  %1877 = vmatprep.subr.mxu0 0.0
  %1878 = vmatpush1.msra.mxu0 0.0
  %1879 = vmatprep.subr.mxu0 0.0
  %1880 = vmatpush1.msra.mxu0 0.0
  %1881 = vmatprep.subr.mxu0 0.0
  %1882 = vmatpush1.msra.mxu0 0.0
  %1883 = vmatprep.subr.mxu0 0.0
  %1884 = vmatpush1.msra.mxu0 0.0
  %1885 = vmatprep.subr.mxu0 0.0
  %1886 = vmatpush1.msra.mxu0 0.0
  %1887 = vmatprep.subr.mxu0 0.0
  %1888 = vmatpush1.msra.mxu0 0.0
  %1889 = vmatprep.subr.mxu0 0.0
  %1890 = vmatpush1.msra.mxu0 0.0
  %1891 = vmatprep.subr.mxu0 0.0
  %1892 = vmatpush1.msra.mxu0 0.0
  %1893 = vmatprep.subr.mxu0 0.0
  %1894 = vmatpush1.msra.mxu0 0.0
  %1895 = vmatprep.subr.mxu0 0.0
  %1896 = vmatpush1.msra.mxu0 0.0
  %1897 = vmatprep.subr.mxu0 0.0
  %1898 = vmatpush1.msra.mxu0 0.0
  %1899 = vmatprep.subr.mxu0 0.0
  %1900 = vmatpush1.msra.mxu0 0.0
  %1901 = vmatprep.subr.mxu0 0.0
  %1902 = vmatpush1.msra.mxu0 0.0
  %1903 = vmatprep.subr.mxu0 0.0
  %1904 = vmatpush1.msra.mxu0 0.0
  %1905 = vmatprep.subr.mxu0 0.0
  %1906 = vmatpush1.msra.mxu0 0.0
  %1907 = vmatprep.subr.mxu0 0.0
  %1908 = vmatpush1.msra.mxu0 0.0
  %1909 = vmatprep.subr.mxu0 0.0
  %1910 = vmatpush1.msra.mxu0 0.0
  %1911 = vmatprep.subr.mxu0 0.0
  %1912 = vmatpush1.msra.mxu0 0.0
  %1913 = vmatprep.subr.mxu0 0.0
  %1914 = vmatpush1.msra.mxu0 0.0
  %1915 = vmatprep.subr.mxu0 0.0
  %1916 = vmatpush1.msra.mxu0 0.0
  %1917 = vmatprep.subr.mxu0 0.0
  %1918 = vmatpush1.msra.mxu0 0.0
  %1919 = vmatprep.subr.mxu0 0.0
  %1920 = vmatpush1.msra.mxu0 0.0
  %1921 = vmatprep.subr.mxu0 0.0
  %1922 = vmatpush1.msra.mxu0 0.0
  %1923 = vmatprep.mubr.f32.mxu0 0.0
  %1924 = vmatmul.mubr.f32.gmra.mrb[0].mxu0 %v1848
  %v1925 = vpop.f32.mrb[0].mxu0
  %v1926 = vadd.f32 %v1732, %v1925
  %v1927 = vpop.f32.mrb[0].mxu0
  %1928 = vmatprep.mubr.f32.mxu0 0.0
  %1929 = vmatmul.mubr.f32.gmra.mrb[0].mxu0 %v1851
  %v1930 = vpop.f32.mrb[0].mxu0
  %v1931 = vadd.f32 %v1737, %v1930
  %v1932 = vpop.f32.mrb[0].mxu0
  %1933 = vmatprep.mubr.f32.mxu0 0.0
  %1934 = vmatmul.mubr.f32.gmra.mrb[0].mxu0 %v1854
  %v1935 = vpop.f32.mrb[0].mxu0
  %v1936 = vadd.f32 %v1742, %v1935
  %v1937 = vpop.f32.mrb[0].mxu0
  %1938 = vmatprep.mubr.f32.mxu0 0.0
  %1939 = vmatmul.mubr.f32.gmra.mrb[0].mxu0 %v1857
  %v1940 = vpop.f32.mrb[0].mxu0
  %v1941 = vadd.f32 %v1747, %v1940
  %v1942 = vpop.f32.mrb[0].mxu0
  %1943 = vdwg.mxu0
  %v1944 = vadd.s32 %v1099, 2
  %v1945 = vadd.s32 %v1100, 2
  %v1946 = vadd.s32 %v1101, 2
  %v1947 = vadd.s32 %v1102, 2
  %1948 = vset.pattern.permute.xlu0 0
  %1949 = vperm.xlu0 %1948, %v1944
  %v1950 = vpop.permute.xlu0 %1949
  %1951 = vset.pattern.permute.xlu0 0
  %1952 = vperm.xlu0 %1951, %v1945
  %v1953 = vpop.permute.xlu0 %1952
  %1954 = vset.pattern.permute.xlu0 0
  %1955 = vperm.xlu0 %1954, %v1946
  %v1956 = vpop.permute.xlu0 %1955
  %1957 = vset.pattern.permute.xlu0 0
  %1958 = vperm.xlu0 %1957, %v1947
  %v1959 = vpop.permute.xlu0 %1958
  %vm1960 = vcmp.eq.s32.totalorder %v1097, %v1950
  %vm1961 = vcmp.eq.s32.totalorder %v1098, %v1950
  %vm1962 = vcmp.eq.s32.totalorder %v1097, %v1953
  %vm1963 = vcmp.eq.s32.totalorder %v1098, %v1953
  %vm1964 = vcmp.eq.s32.totalorder %v1097, %v1956
  %vm1965 = vcmp.eq.s32.totalorder %v1098, %v1956
  %vm1966 = vcmp.eq.s32.totalorder %v1097, %v1959
  %vm1967 = vcmp.eq.s32.totalorder %v1098, %v1959
  %v1968 = vsel %vm1960, 1, 0
  %v1969 = vsel %vm1961, 1, 0
  %v1970 = vsel %vm1962, 1, 0
  %v1971 = vsel %vm1963, 1, 0
  %v1972 = vsel %vm1964, 1, 0
  %v1973 = vsel %vm1965, 1, 0
  %v1974 = vsel %vm1966, 1, 0
  %v1975 = vsel %vm1967, 1, 0
  %v1976 = vcvt.s32.f32 %v1968
  %v1977 = vcvt.s32.f32 %v1969
  %v1978 = vcvt.s32.f32 %v1970
  %v1979 = vcvt.s32.f32 %v1971
  %v1980 = vcvt.s32.f32 %v1972
  %v1981 = vcvt.s32.f32 %v1973
  %v1982 = vcvt.s32.f32 %v1974
  %v1983 = vcvt.s32.f32 %v1975
  %v1985 = vsel %vm1139, %v1977, 0
  %v1988 = vsel %vm1139, %v1979, 0
  %v1991 = vsel %vm1139, %v1981, 0
  %v1994 = vsel %vm1139, %v1983, 0
  %1996 = vmatprep.subr.mxu0 0.0
  %1997 = vmatpush1.msra.mxu0 %v1052
  %1998 = vmatprep.subr.mxu0 0.0
  %1999 = vmatpush1.msra.mxu0 %v1053
  %2000 = vmatprep.subr.mxu0 0.0
  %2001 = vmatpush1.msra.mxu0 %v1054
  %2002 = vmatprep.subr.mxu0 0.0
  %2003 = vmatpush1.msra.mxu0 %v1055
  %2004 = vmatprep.subr.mxu0 0.0
  %2005 = vmatpush1.msra.mxu0 %v1056
  %2006 = vmatprep.subr.mxu0 0.0
  %2007 = vmatpush1.msra.mxu0 %v1057
  %2008 = vmatprep.subr.mxu0 0.0
  %2009 = vmatpush1.msra.mxu0 %v1058
  %2010 = vmatprep.subr.mxu0 0.0
  %2011 = vmatpush1.msra.mxu0 %v1059
  %2012 = vmatprep.subr.mxu0 0.0
  %2013 = vmatpush1.msra.mxu0 %v1060
  %2014 = vmatprep.subr.mxu0 0.0
  %2015 = vmatpush1.msra.mxu0 %v1061
  %2016 = vmatprep.subr.mxu0 0.0
  %2017 = vmatpush1.msra.mxu0 %v1062
  %2018 = vmatprep.subr.mxu0 0.0
  %2019 = vmatpush1.msra.mxu0 %v1063
  %2020 = vmatprep.subr.mxu0 0.0
  %2021 = vmatpush1.msra.mxu0 %v1064
  %2022 = vmatprep.subr.mxu0 0.0
  %2023 = vmatpush1.msra.mxu0 %v1065
  %2024 = vmatprep.subr.mxu0 0.0
  %2025 = vmatpush1.msra.mxu0 %v1066
  %2026 = vmatprep.subr.mxu0 0.0
  %2027 = vmatpush1.msra.mxu0 %v1067
  %2028 = vmatprep.subr.mxu0 0.0
  %2029 = vmatpush1.msra.mxu0 %v1068
  %2030 = vmatprep.subr.mxu0 0.0
  %2031 = vmatpush1.msra.mxu0 %v1069
  %2032 = vmatprep.subr.mxu0 0.0
  %2033 = vmatpush1.msra.mxu0 %v1070
  %2034 = vmatprep.subr.mxu0 0.0
  %2035 = vmatpush1.msra.mxu0 %v1071
  %2036 = vmatprep.subr.mxu0 0.0
  %2037 = vmatpush1.msra.mxu0 %v1072
  %2038 = vmatprep.subr.mxu0 0.0
  %2039 = vmatpush1.msra.mxu0 %v1154
  %2040 = vmatprep.subr.mxu0 0.0
  %2041 = vmatpush1.msra.mxu0 0.0
  %2042 = vmatprep.subr.mxu0 0.0
  %2043 = vmatpush1.msra.mxu0 0.0
  %2044 = vmatprep.subr.mxu0 0.0
  %2045 = vmatpush1.msra.mxu0 0.0
  %2046 = vmatprep.subr.mxu0 0.0
  %2047 = vmatpush1.msra.mxu0 0.0
  %2048 = vmatprep.subr.mxu0 0.0
  %2049 = vmatpush1.msra.mxu0 0.0
  %2050 = vmatprep.subr.mxu0 0.0
  %2051 = vmatpush1.msra.mxu0 0.0
  %2052 = vmatprep.subr.mxu0 0.0
  %2053 = vmatpush1.msra.mxu0 0.0
  %2054 = vmatprep.subr.mxu0 0.0
  %2055 = vmatpush1.msra.mxu0 0.0
  %2056 = vmatprep.subr.mxu0 0.0
  %2057 = vmatpush1.msra.mxu0 0.0
  %2058 = vmatprep.subr.mxu0 0.0
  %2059 = vmatpush1.msra.mxu0 0.0
  %2060 = vmatprep.mubr.f32.mxu0 %v1985
  %2061 = vmatmul.mubr.f32.gmra.mrb[0].mxu0 %v1976
  %v2062 = vpop.f32.mrb[0].mxu0
  %v2063 = vadd.f32 0.0, %v2062
  %v2064 = vpop.f32.mrb[0].mxu0
  %2065 = vmatprep.mubr.f32.mxu0 %v1988
  %2066 = vmatmul.mubr.f32.gmra.mrb[0].mxu0 %v1978
  %v2067 = vpop.f32.mrb[0].mxu0
  %v2068 = vadd.f32 0.0, %v2067
  %v2069 = vpop.f32.mrb[0].mxu0
  %2070 = vmatprep.mubr.f32.mxu0 %v1991
  %2071 = vmatmul.mubr.f32.gmra.mrb[0].mxu0 %v1980
  %v2072 = vpop.f32.mrb[0].mxu0
  %v2073 = vadd.f32 0.0, %v2072
  %v2074 = vpop.f32.mrb[0].mxu0
  %2075 = vmatprep.mubr.f32.mxu0 %v1994
  %2076 = vmatmul.mubr.f32.gmra.mrb[0].mxu0 %v1982
  %v2077 = vpop.f32.mrb[0].mxu0
  %v2078 = vadd.f32 0.0, %v2077
  %v2079 = vpop.f32.mrb[0].mxu0
  %2080 = vdwg.mxu0
  %2081 = vmatprep.subr.mxu0 0.0
  %2082 = vmatpush1.msra.mxu0 %v1074
  %2083 = vmatprep.subr.mxu0 0.0
  %2084 = vmatpush1.msra.mxu0 %v1075
  %2085 = vmatprep.subr.mxu0 0.0
  %2086 = vmatpush1.msra.mxu0 %v1076
  %2087 = vmatprep.subr.mxu0 0.0
  %2088 = vmatpush1.msra.mxu0 %v1077
  %2089 = vmatprep.subr.mxu0 0.0
  %2090 = vmatpush1.msra.mxu0 %v1078
  %2091 = vmatprep.subr.mxu0 0.0
  %2092 = vmatpush1.msra.mxu0 %v1079
  %2093 = vmatprep.subr.mxu0 0.0
  %2094 = vmatpush1.msra.mxu0 %v1080
  %2095 = vmatprep.subr.mxu0 0.0
  %2096 = vmatpush1.msra.mxu0 %v1081
  %2097 = vmatprep.subr.mxu0 0.0
  %2098 = vmatpush1.msra.mxu0 %v1082
  %2099 = vmatprep.subr.mxu0 0.0
  %2100 = vmatpush1.msra.mxu0 %v1083
  %2101 = vmatprep.subr.mxu0 0.0
  %2102 = vmatpush1.msra.mxu0 %v1084
  %2103 = vmatprep.subr.mxu0 0.0
  %2104 = vmatpush1.msra.mxu0 %v1085
  %2105 = vmatprep.subr.mxu0 0.0
  %2106 = vmatpush1.msra.mxu0 %v1086
  %2107 = vmatprep.subr.mxu0 0.0
  %2108 = vmatpush1.msra.mxu0 %v1087
  %2109 = vmatprep.subr.mxu0 0.0
  %2110 = vmatpush1.msra.mxu0 %v1088
  %2111 = vmatprep.subr.mxu0 0.0
  %2112 = vmatpush1.msra.mxu0 %v1089
  %2113 = vmatprep.subr.mxu0 0.0
  %2114 = vmatpush1.msra.mxu0 %v1090
  %2115 = vmatprep.subr.mxu0 0.0
  %2116 = vmatpush1.msra.mxu0 %v1091
  %2117 = vmatprep.subr.mxu0 0.0
  %2118 = vmatpush1.msra.mxu0 %v1092
  %2119 = vmatprep.subr.mxu0 0.0
  %2120 = vmatpush1.msra.mxu0 %v1093
  %2121 = vmatprep.subr.mxu0 0.0
  %2122 = vmatpush1.msra.mxu0 %v1094
  %2123 = vmatprep.subr.mxu0 0.0
  %2124 = vmatpush1.msra.mxu0 %v1242
  %2125 = vmatprep.subr.mxu0 0.0
  %2126 = vmatpush1.msra.mxu0 0.0
  %2127 = vmatprep.subr.mxu0 0.0
  %2128 = vmatpush1.msra.mxu0 0.0
  %2129 = vmatprep.subr.mxu0 0.0
  %2130 = vmatpush1.msra.mxu0 0.0
  %2131 = vmatprep.subr.mxu0 0.0
  %2132 = vmatpush1.msra.mxu0 0.0
  %2133 = vmatprep.subr.mxu0 0.0
  %2134 = vmatpush1.msra.mxu0 0.0
  %2135 = vmatprep.subr.mxu0 0.0
  %2136 = vmatpush1.msra.mxu0 0.0
  %2137 = vmatprep.subr.mxu0 0.0
  %2138 = vmatpush1.msra.mxu0 0.0
  %2139 = vmatprep.subr.mxu0 0.0
  %2140 = vmatpush1.msra.mxu0 0.0
  %2141 = vmatprep.subr.mxu0 0.0
  %2142 = vmatpush1.msra.mxu0 0.0
  %2143 = vmatprep.subr.mxu0 0.0
  %2144 = vmatpush1.msra.mxu0 0.0
  %2145 = vmatprep.mubr.f32.mxu0 %v1985
  %2146 = vmatmul.mubr.f32.gmra.mrb[0].mxu0 %v1976
  %v2147 = vpop.f32.mrb[0].mxu0
  %v2148 = vadd.f32 0.0, %v2147
  %v2149 = vpop.f32.mrb[0].mxu0
  %2150 = vmatprep.mubr.f32.mxu0 %v1988
  %2151 = vmatmul.mubr.f32.gmra.mrb[0].mxu0 %v1978
  %v2152 = vpop.f32.mrb[0].mxu0
  %v2153 = vadd.f32 0.0, %v2152
  %v2154 = vpop.f32.mrb[0].mxu0
  %2155 = vmatprep.mubr.f32.mxu0 %v1991
  %2156 = vmatmul.mubr.f32.gmra.mrb[0].mxu0 %v1980
  %v2157 = vpop.f32.mrb[0].mxu0
  %v2158 = vadd.f32 0.0, %v2157
  %v2159 = vpop.f32.mrb[0].mxu0
  %2160 = vmatprep.mubr.f32.mxu0 %v1994
  %2161 = vmatmul.mubr.f32.gmra.mrb[0].mxu0 %v1982
  %v2162 = vpop.f32.mrb[0].mxu0
  %v2163 = vadd.f32 0.0, %v2162
  %v2164 = vpop.f32.mrb[0].mxu0
  %2165 = vdwg.mxu0
  %s2166 = scalar_lea.vmem %s5, 32
  %v2167 = vld [vmem:[%s2166] sm:$0xff]
  %v2168 = vld [vmem:[%s2166 + $0x8] sm:$0xff]
  %v2170 = vsel %vm83, %v2063, 0
  %v2173 = vsel %vm83, %v2068, 0
  %v2176 = vsel %vm83, %v2073, 0
  %v2179 = vsel %vm83, %v2078, 0
  %2181 = vmatprep.subr.mxu0 0.0
  %2182 = vmatpush1.msra.mxu0 %v2167
  %2183 = vmatprep.subr.mxu0 0.0
  %2184 = vmatpush1.msra.mxu0 %v2168
  %2185 = vmatprep.subr.mxu0 0.0
  %2186 = vmatpush1.msra.mxu0 0.0
  %2187 = vmatprep.subr.mxu0 0.0
  %2188 = vmatpush1.msra.mxu0 0.0
  %2189 = vmatprep.subr.mxu0 0.0
  %2190 = vmatpush1.msra.mxu0 0.0
  %2191 = vmatprep.subr.mxu0 0.0
  %2192 = vmatpush1.msra.mxu0 0.0
  %2193 = vmatprep.subr.mxu0 0.0
  %2194 = vmatpush1.msra.mxu0 0.0
  %2195 = vmatprep.subr.mxu0 0.0
  %2196 = vmatpush1.msra.mxu0 0.0
  %2197 = vmatprep.subr.mxu0 0.0
  %2198 = vmatpush1.msra.mxu0 0.0
  %2199 = vmatprep.subr.mxu0 0.0
  %2200 = vmatpush1.msra.mxu0 0.0
  %2201 = vmatprep.subr.mxu0 0.0
  %2202 = vmatpush1.msra.mxu0 0.0
  %2203 = vmatprep.subr.mxu0 0.0
  %2204 = vmatpush1.msra.mxu0 0.0
  %2205 = vmatprep.subr.mxu0 0.0
  %2206 = vmatpush1.msra.mxu0 0.0
  %2207 = vmatprep.subr.mxu0 0.0
  %2208 = vmatpush1.msra.mxu0 0.0
  %2209 = vmatprep.subr.mxu0 0.0
  %2210 = vmatpush1.msra.mxu0 0.0
  %2211 = vmatprep.subr.mxu0 0.0
  %2212 = vmatpush1.msra.mxu0 0.0
  %2213 = vmatprep.subr.mxu0 0.0
  %2214 = vmatpush1.msra.mxu0 0.0
  %2215 = vmatprep.subr.mxu0 0.0
  %2216 = vmatpush1.msra.mxu0 0.0
  %2217 = vmatprep.subr.mxu0 0.0
  %2218 = vmatpush1.msra.mxu0 0.0
  %2219 = vmatprep.subr.mxu0 0.0
  %2220 = vmatpush1.msra.mxu0 0.0
  %2221 = vmatprep.subr.mxu0 0.0
  %2222 = vmatpush1.msra.mxu0 0.0
  %2223 = vmatprep.subr.mxu0 0.0
  %2224 = vmatpush1.msra.mxu0 0.0
  %2225 = vmatprep.subr.mxu0 0.0
  %2226 = vmatpush1.msra.mxu0 0.0
  %2227 = vmatprep.subr.mxu0 0.0
  %2228 = vmatpush1.msra.mxu0 0.0
  %2229 = vmatprep.subr.mxu0 0.0
  %2230 = vmatpush1.msra.mxu0 0.0
  %2231 = vmatprep.subr.mxu0 0.0
  %2232 = vmatpush1.msra.mxu0 0.0
  %2233 = vmatprep.subr.mxu0 0.0
  %2234 = vmatpush1.msra.mxu0 0.0
  %2235 = vmatprep.subr.mxu0 0.0
  %2236 = vmatpush1.msra.mxu0 0.0
  %2237 = vmatprep.subr.mxu0 0.0
  %2238 = vmatpush1.msra.mxu0 0.0
  %2239 = vmatprep.subr.mxu0 0.0
  %2240 = vmatpush1.msra.mxu0 0.0
  %2241 = vmatprep.subr.mxu0 0.0
  %2242 = vmatpush1.msra.mxu0 0.0
  %2243 = vmatprep.subr.mxu0 0.0
  %2244 = vmatpush1.msra.mxu0 0.0
  %2245 = vmatprep.mubr.f32.mxu0 0.0
  %2246 = vmatmul.mubr.f32.gmra.mrb[0].mxu0 %v2170
  %v2247 = vpop.f32.mrb[0].mxu0
  %v2248 = vadd.f32 0.0, %v2247
  %v2249 = vpop.f32.mrb[0].mxu0
  %2250 = vmatprep.mubr.f32.mxu0 0.0
  %2251 = vmatmul.mubr.f32.gmra.mrb[0].mxu0 %v2173
  %v2252 = vpop.f32.mrb[0].mxu0
  %v2253 = vadd.f32 0.0, %v2252
  %v2254 = vpop.f32.mrb[0].mxu0
  %2255 = vmatprep.mubr.f32.mxu0 0.0
  %2256 = vmatmul.mubr.f32.gmra.mrb[0].mxu0 %v2176
  %v2257 = vpop.f32.mrb[0].mxu0
  %v2258 = vadd.f32 0.0, %v2257
  %v2259 = vpop.f32.mrb[0].mxu0
  %2260 = vmatprep.mubr.f32.mxu0 0.0
  %2261 = vmatmul.mubr.f32.gmra.mrb[0].mxu0 %v2179
  %v2262 = vpop.f32.mrb[0].mxu0
  %v2263 = vadd.f32 0.0, %v2262
  %v2264 = vpop.f32.mrb[0].mxu0
  %2265 = vdwg.mxu0
  %v2267 = vsel %vm83, %v2148, 0
  %v2270 = vsel %vm83, %v2153, 0
  %v2273 = vsel %vm83, %v2158, 0
  %v2276 = vsel %vm83, %v2163, 0
  %2278 = vmatprep.subr.mxu0 0.0
  %2279 = vmatpush1.msra.mxu0 %v2167
  %2280 = vmatprep.subr.mxu0 0.0
  %2281 = vmatpush1.msra.mxu0 %v2168
  %2282 = vmatprep.subr.mxu0 0.0
  %2283 = vmatpush1.msra.mxu0 0.0
  %2284 = vmatprep.subr.mxu0 0.0
  %2285 = vmatpush1.msra.mxu0 0.0
  %2286 = vmatprep.subr.mxu0 0.0
  %2287 = vmatpush1.msra.mxu0 0.0
  %2288 = vmatprep.subr.mxu0 0.0
  %2289 = vmatpush1.msra.mxu0 0.0
  %2290 = vmatprep.subr.mxu0 0.0
  %2291 = vmatpush1.msra.mxu0 0.0
  %2292 = vmatprep.subr.mxu0 0.0
  %2293 = vmatpush1.msra.mxu0 0.0
  %2294 = vmatprep.subr.mxu0 0.0
  %2295 = vmatpush1.msra.mxu0 0.0
  %2296 = vmatprep.subr.mxu0 0.0
  %2297 = vmatpush1.msra.mxu0 0.0
  %2298 = vmatprep.subr.mxu0 0.0
  %2299 = vmatpush1.msra.mxu0 0.0
  %2300 = vmatprep.subr.mxu0 0.0
  %2301 = vmatpush1.msra.mxu0 0.0
  %2302 = vmatprep.subr.mxu0 0.0
  %2303 = vmatpush1.msra.mxu0 0.0
  %2304 = vmatprep.subr.mxu0 0.0
  %2305 = vmatpush1.msra.mxu0 0.0
  %2306 = vmatprep.subr.mxu0 0.0
  %2307 = vmatpush1.msra.mxu0 0.0
  %2308 = vmatprep.subr.mxu0 0.0
  %2309 = vmatpush1.msra.mxu0 0.0
  %2310 = vmatprep.subr.mxu0 0.0
  %2311 = vmatpush1.msra.mxu0 0.0
  %2312 = vmatprep.subr.mxu0 0.0
  %2313 = vmatpush1.msra.mxu0 0.0
  %2314 = vmatprep.subr.mxu0 0.0
  %2315 = vmatpush1.msra.mxu0 0.0
  %2316 = vmatprep.subr.mxu0 0.0
  %2317 = vmatpush1.msra.mxu0 0.0
  %2318 = vmatprep.subr.mxu0 0.0
  %2319 = vmatpush1.msra.mxu0 0.0
  %2320 = vmatprep.subr.mxu0 0.0
  %2321 = vmatpush1.msra.mxu0 0.0
  %2322 = vmatprep.subr.mxu0 0.0
  %2323 = vmatpush1.msra.mxu0 0.0
  %2324 = vmatprep.subr.mxu0 0.0
  %2325 = vmatpush1.msra.mxu0 0.0
  %2326 = vmatprep.subr.mxu0 0.0
  %2327 = vmatpush1.msra.mxu0 0.0
  %2328 = vmatprep.subr.mxu0 0.0
  %2329 = vmatpush1.msra.mxu0 0.0
  %2330 = vmatprep.subr.mxu0 0.0
  %2331 = vmatpush1.msra.mxu0 0.0
  %2332 = vmatprep.subr.mxu0 0.0
  %2333 = vmatpush1.msra.mxu0 0.0
  %2334 = vmatprep.subr.mxu0 0.0
  %2335 = vmatpush1.msra.mxu0 0.0
  %2336 = vmatprep.subr.mxu0 0.0
  %2337 = vmatpush1.msra.mxu0 0.0
  %2338 = vmatprep.subr.mxu0 0.0
  %2339 = vmatpush1.msra.mxu0 0.0
  %2340 = vmatprep.subr.mxu0 0.0
  %2341 = vmatpush1.msra.mxu0 0.0
  %2342 = vmatprep.mubr.f32.mxu0 0.0
  %2343 = vmatmul.mubr.f32.gmra.mrb[0].mxu0 %v2267
  %v2344 = vpop.f32.mrb[0].mxu0
  %v2345 = vadd.f32 0.0, %v2344
  %v2346 = vpop.f32.mrb[0].mxu0
  %2347 = vmatprep.mubr.f32.mxu0 0.0
  %2348 = vmatmul.mubr.f32.gmra.mrb[0].mxu0 %v2270
  %v2349 = vpop.f32.mrb[0].mxu0
  %v2350 = vadd.f32 0.0, %v2349
  %v2351 = vpop.f32.mrb[0].mxu0
  %2352 = vmatprep.mubr.f32.mxu0 0.0
  %2353 = vmatmul.mubr.f32.gmra.mrb[0].mxu0 %v2273
  %v2354 = vpop.f32.mrb[0].mxu0
  %v2355 = vadd.f32 0.0, %v2354
  %v2356 = vpop.f32.mrb[0].mxu0
  %2357 = vmatprep.mubr.f32.mxu0 0.0
  %2358 = vmatmul.mubr.f32.gmra.mrb[0].mxu0 %v2276
  %v2359 = vpop.f32.mrb[0].mxu0
  %v2360 = vadd.f32 0.0, %v2359
  %v2361 = vpop.f32.mrb[0].mxu0
  %2362 = vdwg.mxu0
  %v2363 = vadd.f32 %v1829, %v2248
  %v2364 = vadd.f32 %v1834, %v2253
  %v2365 = vadd.f32 %v1839, %v2258
  %v2366 = vadd.f32 %v1844, %v2263
  %v2367 = vadd.f32 %v1926, %v2345
  %v2368 = vadd.f32 %v1931, %v2350
  %v2369 = vadd.f32 %v1936, %v2355
  %v2370 = vadd.f32 %v1941, %v2360
  %v2371 = vadd.s32 %v1099, 3
  %v2372 = vadd.s32 %v1100, 3
  %v2373 = vadd.s32 %v1101, 3
  %v2374 = vadd.s32 %v1102, 3
  %2375 = vset.pattern.permute.xlu0 0
  %2376 = vperm.xlu0 %2375, %v2371
  %v2377 = vpop.permute.xlu0 %2376
  %2378 = vset.pattern.permute.xlu0 0
  %2379 = vperm.xlu0 %2378, %v2372
  %v2380 = vpop.permute.xlu0 %2379
  %2381 = vset.pattern.permute.xlu0 0
  %2382 = vperm.xlu0 %2381, %v2373
  %v2383 = vpop.permute.xlu0 %2382
  %2384 = vset.pattern.permute.xlu0 0
  %2385 = vperm.xlu0 %2384, %v2374
  %v2386 = vpop.permute.xlu0 %2385
  %vm2387 = vcmp.eq.s32.totalorder %v1097, %v2377
  %vm2388 = vcmp.eq.s32.totalorder %v1098, %v2377
  %vm2389 = vcmp.eq.s32.totalorder %v1097, %v2380
  %vm2390 = vcmp.eq.s32.totalorder %v1098, %v2380
  %vm2391 = vcmp.eq.s32.totalorder %v1097, %v2383
  %vm2392 = vcmp.eq.s32.totalorder %v1098, %v2383
  %vm2393 = vcmp.eq.s32.totalorder %v1097, %v2386
  %vm2394 = vcmp.eq.s32.totalorder %v1098, %v2386
  %v2395 = vsel %vm2387, 1, 0
  %v2396 = vsel %vm2388, 1, 0
  %v2397 = vsel %vm2389, 1, 0
  %v2398 = vsel %vm2390, 1, 0
  %v2399 = vsel %vm2391, 1, 0
  %v2400 = vsel %vm2392, 1, 0
  %v2401 = vsel %vm2393, 1, 0
  %v2402 = vsel %vm2394, 1, 0
  %v2403 = vcvt.s32.f32 %v2395
  %v2404 = vcvt.s32.f32 %v2396
  %v2405 = vcvt.s32.f32 %v2397
  %v2406 = vcvt.s32.f32 %v2398
  %v2407 = vcvt.s32.f32 %v2399
  %v2408 = vcvt.s32.f32 %v2400
  %v2409 = vcvt.s32.f32 %v2401
  %v2410 = vcvt.s32.f32 %v2402
  %v2412 = vsel %vm1139, %v2404, 0
  %v2415 = vsel %vm1139, %v2406, 0
  %v2418 = vsel %vm1139, %v2408, 0
  %v2421 = vsel %vm1139, %v2410, 0
  %2423 = vmatprep.subr.mxu0 0.0
  %2424 = vmatpush1.msra.mxu0 %v1052
  %2425 = vmatprep.subr.mxu0 0.0
  %2426 = vmatpush1.msra.mxu0 %v1053
  %2427 = vmatprep.subr.mxu0 0.0
  %2428 = vmatpush1.msra.mxu0 %v1054
  %2429 = vmatprep.subr.mxu0 0.0
  %2430 = vmatpush1.msra.mxu0 %v1055
  %2431 = vmatprep.subr.mxu0 0.0
  %2432 = vmatpush1.msra.mxu0 %v1056
  %2433 = vmatprep.subr.mxu0 0.0
  %2434 = vmatpush1.msra.mxu0 %v1057
  %2435 = vmatprep.subr.mxu0 0.0
  %2436 = vmatpush1.msra.mxu0 %v1058
  %2437 = vmatprep.subr.mxu0 0.0
  %2438 = vmatpush1.msra.mxu0 %v1059
  %2439 = vmatprep.subr.mxu0 0.0
  %2440 = vmatpush1.msra.mxu0 %v1060
  %2441 = vmatprep.subr.mxu0 0.0
  %2442 = vmatpush1.msra.mxu0 %v1061
  %2443 = vmatprep.subr.mxu0 0.0
  %2444 = vmatpush1.msra.mxu0 %v1062
  %2445 = vmatprep.subr.mxu0 0.0
  %2446 = vmatpush1.msra.mxu0 %v1063
  %2447 = vmatprep.subr.mxu0 0.0
  %2448 = vmatpush1.msra.mxu0 %v1064
  %2449 = vmatprep.subr.mxu0 0.0
  %2450 = vmatpush1.msra.mxu0 %v1065
  %2451 = vmatprep.subr.mxu0 0.0
  %2452 = vmatpush1.msra.mxu0 %v1066
  %2453 = vmatprep.subr.mxu0 0.0
  %2454 = vmatpush1.msra.mxu0 %v1067
  %2455 = vmatprep.subr.mxu0 0.0
  %2456 = vmatpush1.msra.mxu0 %v1068
  %2457 = vmatprep.subr.mxu0 0.0
  %2458 = vmatpush1.msra.mxu0 %v1069
  %2459 = vmatprep.subr.mxu0 0.0
  %2460 = vmatpush1.msra.mxu0 %v1070
  %2461 = vmatprep.subr.mxu0 0.0
  %2462 = vmatpush1.msra.mxu0 %v1071
  %2463 = vmatprep.subr.mxu0 0.0
  %2464 = vmatpush1.msra.mxu0 %v1072
  %2465 = vmatprep.subr.mxu0 0.0
  %2466 = vmatpush1.msra.mxu0 %v1154
  %2467 = vmatprep.subr.mxu0 0.0
  %2468 = vmatpush1.msra.mxu0 0.0
  %2469 = vmatprep.subr.mxu0 0.0
  %2470 = vmatpush1.msra.mxu0 0.0
  %2471 = vmatprep.subr.mxu0 0.0
  %2472 = vmatpush1.msra.mxu0 0.0
  %2473 = vmatprep.subr.mxu0 0.0
  %2474 = vmatpush1.msra.mxu0 0.0
  %2475 = vmatprep.subr.mxu0 0.0
  %2476 = vmatpush1.msra.mxu0 0.0
  %2477 = vmatprep.subr.mxu0 0.0
  %2478 = vmatpush1.msra.mxu0 0.0
  %2479 = vmatprep.subr.mxu0 0.0
  %2480 = vmatpush1.msra.mxu0 0.0
  %2481 = vmatprep.subr.mxu0 0.0
  %2482 = vmatpush1.msra.mxu0 0.0
  %2483 = vmatprep.subr.mxu0 0.0
  %2484 = vmatpush1.msra.mxu0 0.0
  %2485 = vmatprep.subr.mxu0 0.0
  %2486 = vmatpush1.msra.mxu0 0.0
  %2487 = vmatprep.mubr.f32.mxu0 %v2412
  %2488 = vmatmul.mubr.f32.gmra.mrb[0].mxu0 %v2403
  %v2489 = vpop.f32.mrb[0].mxu0
  %v2490 = vadd.f32 0.0, %v2489
  %v2491 = vpop.f32.mrb[0].mxu0
  %2492 = vmatprep.mubr.f32.mxu0 %v2415
  %2493 = vmatmul.mubr.f32.gmra.mrb[0].mxu0 %v2405
  %v2494 = vpop.f32.mrb[0].mxu0
  %v2495 = vadd.f32 0.0, %v2494
  %v2496 = vpop.f32.mrb[0].mxu0
  %2497 = vmatprep.mubr.f32.mxu0 %v2418
  %2498 = vmatmul.mubr.f32.gmra.mrb[0].mxu0 %v2407
  %v2499 = vpop.f32.mrb[0].mxu0
  %v2500 = vadd.f32 0.0, %v2499
  %v2501 = vpop.f32.mrb[0].mxu0
  %2502 = vmatprep.mubr.f32.mxu0 %v2421
  %2503 = vmatmul.mubr.f32.gmra.mrb[0].mxu0 %v2409
  %v2504 = vpop.f32.mrb[0].mxu0
  %v2505 = vadd.f32 0.0, %v2504
  %v2506 = vpop.f32.mrb[0].mxu0
  %2507 = vdwg.mxu0
  %2508 = vmatprep.subr.mxu0 0.0
  %2509 = vmatpush1.msra.mxu0 %v1074
  %2510 = vmatprep.subr.mxu0 0.0
  %2511 = vmatpush1.msra.mxu0 %v1075
  %2512 = vmatprep.subr.mxu0 0.0
  %2513 = vmatpush1.msra.mxu0 %v1076
  %2514 = vmatprep.subr.mxu0 0.0
  %2515 = vmatpush1.msra.mxu0 %v1077
  %2516 = vmatprep.subr.mxu0 0.0
  %2517 = vmatpush1.msra.mxu0 %v1078
  %2518 = vmatprep.subr.mxu0 0.0
  %2519 = vmatpush1.msra.mxu0 %v1079
  %2520 = vmatprep.subr.mxu0 0.0
  %2521 = vmatpush1.msra.mxu0 %v1080
  %2522 = vmatprep.subr.mxu0 0.0
  %2523 = vmatpush1.msra.mxu0 %v1081
  %2524 = vmatprep.subr.mxu0 0.0
  %2525 = vmatpush1.msra.mxu0 %v1082
  %2526 = vmatprep.subr.mxu0 0.0
  %2527 = vmatpush1.msra.mxu0 %v1083
  %2528 = vmatprep.subr.mxu0 0.0
  %2529 = vmatpush1.msra.mxu0 %v1084
  %2530 = vmatprep.subr.mxu0 0.0
  %2531 = vmatpush1.msra.mxu0 %v1085
  %2532 = vmatprep.subr.mxu0 0.0
  %2533 = vmatpush1.msra.mxu0 %v1086
  %2534 = vmatprep.subr.mxu0 0.0
  %2535 = vmatpush1.msra.mxu0 %v1087
  %2536 = vmatprep.subr.mxu0 0.0
  %2537 = vmatpush1.msra.mxu0 %v1088
  %2538 = vmatprep.subr.mxu0 0.0
  %2539 = vmatpush1.msra.mxu0 %v1089
  %2540 = vmatprep.subr.mxu0 0.0
  %2541 = vmatpush1.msra.mxu0 %v1090
  %2542 = vmatprep.subr.mxu0 0.0
  %2543 = vmatpush1.msra.mxu0 %v1091
  %2544 = vmatprep.subr.mxu0 0.0
  %2545 = vmatpush1.msra.mxu0 %v1092
  %2546 = vmatprep.subr.mxu0 0.0
  %2547 = vmatpush1.msra.mxu0 %v1093
  %2548 = vmatprep.subr.mxu0 0.0
  %2549 = vmatpush1.msra.mxu0 %v1094
  %2550 = vmatprep.subr.mxu0 0.0
  %2551 = vmatpush1.msra.mxu0 %v1242
  %2552 = vmatprep.subr.mxu0 0.0
  %2553 = vmatpush1.msra.mxu0 0.0
  %2554 = vmatprep.subr.mxu0 0.0
  %2555 = vmatpush1.msra.mxu0 0.0
  %2556 = vmatprep.subr.mxu0 0.0
  %2557 = vmatpush1.msra.mxu0 0.0
  %2558 = vmatprep.subr.mxu0 0.0
  %2559 = vmatpush1.msra.mxu0 0.0
  %2560 = vmatprep.subr.mxu0 0.0
  %2561 = vmatpush1.msra.mxu0 0.0
  %2562 = vmatprep.subr.mxu0 0.0
  %2563 = vmatpush1.msra.mxu0 0.0
  %2564 = vmatprep.subr.mxu0 0.0
  %2565 = vmatpush1.msra.mxu0 0.0
  %2566 = vmatprep.subr.mxu0 0.0
  %2567 = vmatpush1.msra.mxu0 0.0
  %2568 = vmatprep.subr.mxu0 0.0
  %2569 = vmatpush1.msra.mxu0 0.0
  %2570 = vmatprep.subr.mxu0 0.0
  %2571 = vmatpush1.msra.mxu0 0.0
  %2572 = vmatprep.mubr.f32.mxu0 %v2412
  %2573 = vmatmul.mubr.f32.gmra.mrb[0].mxu0 %v2403
  %v2574 = vpop.f32.mrb[0].mxu0
  %v2575 = vadd.f32 0.0, %v2574
  %v2576 = vpop.f32.mrb[0].mxu0
  %2577 = vmatprep.mubr.f32.mxu0 %v2415
  %2578 = vmatmul.mubr.f32.gmra.mrb[0].mxu0 %v2405
  %v2579 = vpop.f32.mrb[0].mxu0
  %v2580 = vadd.f32 0.0, %v2579
  %v2581 = vpop.f32.mrb[0].mxu0
  %2582 = vmatprep.mubr.f32.mxu0 %v2418
  %2583 = vmatmul.mubr.f32.gmra.mrb[0].mxu0 %v2407
  %v2584 = vpop.f32.mrb[0].mxu0
  %v2585 = vadd.f32 0.0, %v2584
  %v2586 = vpop.f32.mrb[0].mxu0
  %2587 = vmatprep.mubr.f32.mxu0 %v2421
  %2588 = vmatmul.mubr.f32.gmra.mrb[0].mxu0 %v2409
  %v2589 = vpop.f32.mrb[0].mxu0
  %v2590 = vadd.f32 0.0, %v2589
  %v2591 = vpop.f32.mrb[0].mxu0
  %2592 = vdwg.mxu0
  %s2593 = scalar_lea.vmem %s5, 48
  %v2594 = vld [vmem:[%s2593] sm:$0xff]
  %v2595 = vld [vmem:[%s2593 + $0x8] sm:$0xff]
  %v2597 = vsel %vm83, %v2490, 0
  %v2600 = vsel %vm83, %v2495, 0
  %v2603 = vsel %vm83, %v2500, 0
  %v2606 = vsel %vm83, %v2505, 0
  %2608 = vmatprep.subr.mxu0 0.0
  %2609 = vmatpush1.msra.mxu0 %v2594
  %2610 = vmatprep.subr.mxu0 0.0
  %2611 = vmatpush1.msra.mxu0 %v2595
  %2612 = vmatprep.subr.mxu0 0.0
  %2613 = vmatpush1.msra.mxu0 0.0
  %2614 = vmatprep.subr.mxu0 0.0
  %2615 = vmatpush1.msra.mxu0 0.0
  %2616 = vmatprep.subr.mxu0 0.0
  %2617 = vmatpush1.msra.mxu0 0.0
  %2618 = vmatprep.subr.mxu0 0.0
  %2619 = vmatpush1.msra.mxu0 0.0
  %2620 = vmatprep.subr.mxu0 0.0
  %2621 = vmatpush1.msra.mxu0 0.0
  %2622 = vmatprep.subr.mxu0 0.0
  %2623 = vmatpush1.msra.mxu0 0.0
  %2624 = vmatprep.subr.mxu0 0.0
  %2625 = vmatpush1.msra.mxu0 0.0
  %2626 = vmatprep.subr.mxu0 0.0
  %2627 = vmatpush1.msra.mxu0 0.0
  %2628 = vmatprep.subr.mxu0 0.0
  %2629 = vmatpush1.msra.mxu0 0.0
  %2630 = vmatprep.subr.mxu0 0.0
  %2631 = vmatpush1.msra.mxu0 0.0
  %2632 = vmatprep.subr.mxu0 0.0
  %2633 = vmatpush1.msra.mxu0 0.0
  %2634 = vmatprep.subr.mxu0 0.0
  %2635 = vmatpush1.msra.mxu0 0.0
  %2636 = vmatprep.subr.mxu0 0.0
  %2637 = vmatpush1.msra.mxu0 0.0
  %2638 = vmatprep.subr.mxu0 0.0
  %2639 = vmatpush1.msra.mxu0 0.0
  %2640 = vmatprep.subr.mxu0 0.0
  %2641 = vmatpush1.msra.mxu0 0.0
  %2642 = vmatprep.subr.mxu0 0.0
  %2643 = vmatpush1.msra.mxu0 0.0
  %2644 = vmatprep.subr.mxu0 0.0
  %2645 = vmatpush1.msra.mxu0 0.0
  %2646 = vmatprep.subr.mxu0 0.0
  %2647 = vmatpush1.msra.mxu0 0.0
  %2648 = vmatprep.subr.mxu0 0.0
  %2649 = vmatpush1.msra.mxu0 0.0
  %2650 = vmatprep.subr.mxu0 0.0
  %2651 = vmatpush1.msra.mxu0 0.0
  %2652 = vmatprep.subr.mxu0 0.0
  %2653 = vmatpush1.msra.mxu0 0.0
  %2654 = vmatprep.subr.mxu0 0.0
  %2655 = vmatpush1.msra.mxu0 0.0
  %2656 = vmatprep.subr.mxu0 0.0
  %2657 = vmatpush1.msra.mxu0 0.0
  %2658 = vmatprep.subr.mxu0 0.0
  %2659 = vmatpush1.msra.mxu0 0.0
  %2660 = vmatprep.subr.mxu0 0.0
  %2661 = vmatpush1.msra.mxu0 0.0
  %2662 = vmatprep.subr.mxu0 0.0
  %2663 = vmatpush1.msra.mxu0 0.0
  %2664 = vmatprep.subr.mxu0 0.0
  %2665 = vmatpush1.msra.mxu0 0.0
  %2666 = vmatprep.subr.mxu0 0.0
  %2667 = vmatpush1.msra.mxu0 0.0
  %2668 = vmatprep.subr.mxu0 0.0
  %2669 = vmatpush1.msra.mxu0 0.0
  %2670 = vmatprep.subr.mxu0 0.0
  %2671 = vmatpush1.msra.mxu0 0.0
  %2672 = vmatprep.mubr.f32.mxu0 0.0
  %2673 = vmatmul.mubr.f32.gmra.mrb[0].mxu0 %v2597
  %v2674 = vpop.f32.mrb[0].mxu0
  %v2675 = vadd.f32 0.0, %v2674
  %v2676 = vpop.f32.mrb[0].mxu0
  %2677 = vmatprep.mubr.f32.mxu0 0.0
  %2678 = vmatmul.mubr.f32.gmra.mrb[0].mxu0 %v2600
  %v2679 = vpop.f32.mrb[0].mxu0
  %v2680 = vadd.f32 0.0, %v2679
  %v2681 = vpop.f32.mrb[0].mxu0
  %2682 = vmatprep.mubr.f32.mxu0 0.0
  %2683 = vmatmul.mubr.f32.gmra.mrb[0].mxu0 %v2603
  %v2684 = vpop.f32.mrb[0].mxu0
  %v2685 = vadd.f32 0.0, %v2684
  %v2686 = vpop.f32.mrb[0].mxu0
  %2687 = vmatprep.mubr.f32.mxu0 0.0
  %2688 = vmatmul.mubr.f32.gmra.mrb[0].mxu0 %v2606
  %v2689 = vpop.f32.mrb[0].mxu0
  %v2690 = vadd.f32 0.0, %v2689
  %v2691 = vpop.f32.mrb[0].mxu0
  %2692 = vdwg.mxu0
  %v2694 = vsel %vm83, %v2575, 0
  %v2697 = vsel %vm83, %v2580, 0
  %v2700 = vsel %vm83, %v2585, 0
  %v2703 = vsel %vm83, %v2590, 0
  %2705 = vmatprep.subr.mxu0 0.0
  %2706 = vmatpush1.msra.mxu0 %v2594
  %2707 = vmatprep.subr.mxu0 0.0
  %2708 = vmatpush1.msra.mxu0 %v2595
  %2709 = vmatprep.subr.mxu0 0.0
  %2710 = vmatpush1.msra.mxu0 0.0
  %2711 = vmatprep.subr.mxu0 0.0
  %2712 = vmatpush1.msra.mxu0 0.0
  %2713 = vmatprep.subr.mxu0 0.0
  %2714 = vmatpush1.msra.mxu0 0.0
  %2715 = vmatprep.subr.mxu0 0.0
  %2716 = vmatpush1.msra.mxu0 0.0
  %2717 = vmatprep.subr.mxu0 0.0
  %2718 = vmatpush1.msra.mxu0 0.0
  %2719 = vmatprep.subr.mxu0 0.0
  %2720 = vmatpush1.msra.mxu0 0.0
  %2721 = vmatprep.subr.mxu0 0.0
  %2722 = vmatpush1.msra.mxu0 0.0
  %2723 = vmatprep.subr.mxu0 0.0
  %2724 = vmatpush1.msra.mxu0 0.0
  %2725 = vmatprep.subr.mxu0 0.0
  %2726 = vmatpush1.msra.mxu0 0.0
  %2727 = vmatprep.subr.mxu0 0.0
  %2728 = vmatpush1.msra.mxu0 0.0
  %2729 = vmatprep.subr.mxu0 0.0
  %2730 = vmatpush1.msra.mxu0 0.0
  %2731 = vmatprep.subr.mxu0 0.0
  %2732 = vmatpush1.msra.mxu0 0.0
  %2733 = vmatprep.subr.mxu0 0.0
  %2734 = vmatpush1.msra.mxu0 0.0
  %2735 = vmatprep.subr.mxu0 0.0
  %2736 = vmatpush1.msra.mxu0 0.0
  %2737 = vmatprep.subr.mxu0 0.0
  %2738 = vmatpush1.msra.mxu0 0.0
  %2739 = vmatprep.subr.mxu0 0.0
  %2740 = vmatpush1.msra.mxu0 0.0
  %2741 = vmatprep.subr.mxu0 0.0
  %2742 = vmatpush1.msra.mxu0 0.0
  %2743 = vmatprep.subr.mxu0 0.0
  %2744 = vmatpush1.msra.mxu0 0.0
  %2745 = vmatprep.subr.mxu0 0.0
  %2746 = vmatpush1.msra.mxu0 0.0
  %2747 = vmatprep.subr.mxu0 0.0
  %2748 = vmatpush1.msra.mxu0 0.0
  %2749 = vmatprep.subr.mxu0 0.0
  %2750 = vmatpush1.msra.mxu0 0.0
  %2751 = vmatprep.subr.mxu0 0.0
  %2752 = vmatpush1.msra.mxu0 0.0
  %2753 = vmatprep.subr.mxu0 0.0
  %2754 = vmatpush1.msra.mxu0 0.0
  %2755 = vmatprep.subr.mxu0 0.0
  %2756 = vmatpush1.msra.mxu0 0.0
  %2757 = vmatprep.subr.mxu0 0.0
  %2758 = vmatpush1.msra.mxu0 0.0
  %2759 = vmatprep.subr.mxu0 0.0
  %2760 = vmatpush1.msra.mxu0 0.0
  %2761 = vmatprep.subr.mxu0 0.0
  %2762 = vmatpush1.msra.mxu0 0.0
  %2763 = vmatprep.subr.mxu0 0.0
  %2764 = vmatpush1.msra.mxu0 0.0
  %2765 = vmatprep.subr.mxu0 0.0
  %2766 = vmatpush1.msra.mxu0 0.0
  %2767 = vmatprep.subr.mxu0 0.0
  %2768 = vmatpush1.msra.mxu0 0.0
  %2769 = vmatprep.mubr.f32.mxu0 0.0
  %2770 = vmatmul.mubr.f32.gmra.mrb[0].mxu0 %v2694
  %v2771 = vpop.f32.mrb[0].mxu0
  %v2772 = vadd.f32 0.0, %v2771
  %v2773 = vpop.f32.mrb[0].mxu0
  %2774 = vmatprep.mubr.f32.mxu0 0.0
  %2775 = vmatmul.mubr.f32.gmra.mrb[0].mxu0 %v2697
  %v2776 = vpop.f32.mrb[0].mxu0
  %v2777 = vadd.f32 0.0, %v2776
  %v2778 = vpop.f32.mrb[0].mxu0
  %2779 = vmatprep.mubr.f32.mxu0 0.0
  %2780 = vmatmul.mubr.f32.gmra.mrb[0].mxu0 %v2700
  %v2781 = vpop.f32.mrb[0].mxu0
  %v2782 = vadd.f32 0.0, %v2781
  %v2783 = vpop.f32.mrb[0].mxu0
  %2784 = vmatprep.mubr.f32.mxu0 0.0
  %2785 = vmatmul.mubr.f32.gmra.mrb[0].mxu0 %v2703
  %v2786 = vpop.f32.mrb[0].mxu0
  %v2787 = vadd.f32 0.0, %v2786
  %v2788 = vpop.f32.mrb[0].mxu0
  %2789 = vdwg.mxu0
  %v2790 = vadd.f32 %v2363, %v2675
  %v2791 = vadd.f32 %v2364, %v2680
  %v2792 = vadd.f32 %v2365, %v2685
  %v2793 = vadd.f32 %v2366, %v2690
  %v2794 = vadd.f32 %v2367, %v2772
  %v2795 = vadd.f32 %v2368, %v2777
  %v2796 = vadd.f32 %v2369, %v2782
  %v2797 = vadd.f32 %v2370, %v2787
  %v2798 = vadd.s32 %v1099, 13
  %v2799 = vadd.s32 %v1100, 13
  %v2800 = vadd.s32 %v1101, 13
  %v2801 = vadd.s32 %v1102, 13
  %2802 = vset.pattern.permute.xlu0 0
  %2803 = vperm.xlu0 %2802, %v2798
  %v2804 = vpop.permute.xlu0 %2803
  %2805 = vset.pattern.permute.xlu0 0
  %2806 = vperm.xlu0 %2805, %v2799
  %v2807 = vpop.permute.xlu0 %2806
  %2808 = vset.pattern.permute.xlu0 0
  %2809 = vperm.xlu0 %2808, %v2800
  %v2810 = vpop.permute.xlu0 %2809
  %2811 = vset.pattern.permute.xlu0 0
  %2812 = vperm.xlu0 %2811, %v2801
  %v2813 = vpop.permute.xlu0 %2812
  %vm2814 = vcmp.eq.s32.totalorder %v1097, %v2804
  %vm2815 = vcmp.eq.s32.totalorder %v1098, %v2804
  %vm2816 = vcmp.eq.s32.totalorder %v1097, %v2807
  %vm2817 = vcmp.eq.s32.totalorder %v1098, %v2807
  %vm2818 = vcmp.eq.s32.totalorder %v1097, %v2810
  %vm2819 = vcmp.eq.s32.totalorder %v1098, %v2810
  %vm2820 = vcmp.eq.s32.totalorder %v1097, %v2813
  %vm2821 = vcmp.eq.s32.totalorder %v1098, %v2813
  %v2822 = vsel %vm2814, 1, 0
  %v2823 = vsel %vm2815, 1, 0
  %v2824 = vsel %vm2816, 1, 0
  %v2825 = vsel %vm2817, 1, 0
  %v2826 = vsel %vm2818, 1, 0
  %v2827 = vsel %vm2819, 1, 0
  %v2828 = vsel %vm2820, 1, 0
  %v2829 = vsel %vm2821, 1, 0
  %v2830 = vcvt.s32.f32 %v2822
  %v2831 = vcvt.s32.f32 %v2823
  %v2832 = vcvt.s32.f32 %v2824
  %v2833 = vcvt.s32.f32 %v2825
  %v2834 = vcvt.s32.f32 %v2826
  %v2835 = vcvt.s32.f32 %v2827
  %v2836 = vcvt.s32.f32 %v2828
  %v2837 = vcvt.s32.f32 %v2829
  %v2839 = vsel %vm1139, %v2831, 0
  %v2842 = vsel %vm1139, %v2833, 0
  %v2845 = vsel %vm1139, %v2835, 0
  %v2848 = vsel %vm1139, %v2837, 0
  %2850 = vmatprep.subr.mxu0 0.0
  %2851 = vmatpush1.msra.mxu0 %v1052
  %2852 = vmatprep.subr.mxu0 0.0
  %2853 = vmatpush1.msra.mxu0 %v1053
  %2854 = vmatprep.subr.mxu0 0.0
  %2855 = vmatpush1.msra.mxu0 %v1054
  %2856 = vmatprep.subr.mxu0 0.0
  %2857 = vmatpush1.msra.mxu0 %v1055
  %2858 = vmatprep.subr.mxu0 0.0
  %2859 = vmatpush1.msra.mxu0 %v1056
  %2860 = vmatprep.subr.mxu0 0.0
  %2861 = vmatpush1.msra.mxu0 %v1057
  %2862 = vmatprep.subr.mxu0 0.0
  %2863 = vmatpush1.msra.mxu0 %v1058
  %2864 = vmatprep.subr.mxu0 0.0
  %2865 = vmatpush1.msra.mxu0 %v1059
  %2866 = vmatprep.subr.mxu0 0.0
  %2867 = vmatpush1.msra.mxu0 %v1060
  %2868 = vmatprep.subr.mxu0 0.0
  %2869 = vmatpush1.msra.mxu0 %v1061
  %2870 = vmatprep.subr.mxu0 0.0
  %2871 = vmatpush1.msra.mxu0 %v1062
  %2872 = vmatprep.subr.mxu0 0.0
  %2873 = vmatpush1.msra.mxu0 %v1063
  %2874 = vmatprep.subr.mxu0 0.0
  %2875 = vmatpush1.msra.mxu0 %v1064
  %2876 = vmatprep.subr.mxu0 0.0
  %2877 = vmatpush1.msra.mxu0 %v1065
  %2878 = vmatprep.subr.mxu0 0.0
  %2879 = vmatpush1.msra.mxu0 %v1066
  %2880 = vmatprep.subr.mxu0 0.0
  %2881 = vmatpush1.msra.mxu0 %v1067
  %2882 = vmatprep.subr.mxu0 0.0
  %2883 = vmatpush1.msra.mxu0 %v1068
  %2884 = vmatprep.subr.mxu0 0.0
  %2885 = vmatpush1.msra.mxu0 %v1069
  %2886 = vmatprep.subr.mxu0 0.0
  %2887 = vmatpush1.msra.mxu0 %v1070
  %2888 = vmatprep.subr.mxu0 0.0
  %2889 = vmatpush1.msra.mxu0 %v1071
  %2890 = vmatprep.subr.mxu0 0.0
  %2891 = vmatpush1.msra.mxu0 %v1072
  %2892 = vmatprep.subr.mxu0 0.0
  %2893 = vmatpush1.msra.mxu0 %v1154
  %2894 = vmatprep.subr.mxu0 0.0
  %2895 = vmatpush1.msra.mxu0 0.0
  %2896 = vmatprep.subr.mxu0 0.0
  %2897 = vmatpush1.msra.mxu0 0.0
  %2898 = vmatprep.subr.mxu0 0.0
  %2899 = vmatpush1.msra.mxu0 0.0
  %2900 = vmatprep.subr.mxu0 0.0
  %2901 = vmatpush1.msra.mxu0 0.0
  %2902 = vmatprep.subr.mxu0 0.0
  %2903 = vmatpush1.msra.mxu0 0.0
  %2904 = vmatprep.subr.mxu0 0.0
  %2905 = vmatpush1.msra.mxu0 0.0
  %2906 = vmatprep.subr.mxu0 0.0
  %2907 = vmatpush1.msra.mxu0 0.0
  %2908 = vmatprep.subr.mxu0 0.0
  %2909 = vmatpush1.msra.mxu0 0.0
  %2910 = vmatprep.subr.mxu0 0.0
  %2911 = vmatpush1.msra.mxu0 0.0
  %2912 = vmatprep.subr.mxu0 0.0
  %2913 = vmatpush1.msra.mxu0 0.0
  %2914 = vmatprep.mubr.f32.mxu0 %v2839
  %2915 = vmatmul.mubr.f32.gmra.mrb[0].mxu0 %v2830
  %v2916 = vpop.f32.mrb[0].mxu0
  %v2917 = vadd.f32 0.0, %v2916
  %v2918 = vpop.f32.mrb[0].mxu0
  %2919 = vmatprep.mubr.f32.mxu0 %v2842
  %2920 = vmatmul.mubr.f32.gmra.mrb[0].mxu0 %v2832
  %v2921 = vpop.f32.mrb[0].mxu0
  %v2922 = vadd.f32 0.0, %v2921
  %v2923 = vpop.f32.mrb[0].mxu0
  %2924 = vmatprep.mubr.f32.mxu0 %v2845
  %2925 = vmatmul.mubr.f32.gmra.mrb[0].mxu0 %v2834
  %v2926 = vpop.f32.mrb[0].mxu0
  %v2927 = vadd.f32 0.0, %v2926
  %v2928 = vpop.f32.mrb[0].mxu0
  %2929 = vmatprep.mubr.f32.mxu0 %v2848
  %2930 = vmatmul.mubr.f32.gmra.mrb[0].mxu0 %v2836
  %v2931 = vpop.f32.mrb[0].mxu0
  %v2932 = vadd.f32 0.0, %v2931
  %v2933 = vpop.f32.mrb[0].mxu0
  %2934 = vdwg.mxu0
  %2935 = vmatprep.subr.mxu0 0.0
  %2936 = vmatpush1.msra.mxu0 %v1074
  %2937 = vmatprep.subr.mxu0 0.0
  %2938 = vmatpush1.msra.mxu0 %v1075
  %2939 = vmatprep.subr.mxu0 0.0
  %2940 = vmatpush1.msra.mxu0 %v1076
  %2941 = vmatprep.subr.mxu0 0.0
  %2942 = vmatpush1.msra.mxu0 %v1077
  %2943 = vmatprep.subr.mxu0 0.0
  %2944 = vmatpush1.msra.mxu0 %v1078
  %2945 = vmatprep.subr.mxu0 0.0
  %2946 = vmatpush1.msra.mxu0 %v1079
  %2947 = vmatprep.subr.mxu0 0.0
  %2948 = vmatpush1.msra.mxu0 %v1080
  %2949 = vmatprep.subr.mxu0 0.0
  %2950 = vmatpush1.msra.mxu0 %v1081
  %2951 = vmatprep.subr.mxu0 0.0
  %2952 = vmatpush1.msra.mxu0 %v1082
  %2953 = vmatprep.subr.mxu0 0.0
  %2954 = vmatpush1.msra.mxu0 %v1083
  %2955 = vmatprep.subr.mxu0 0.0
  %2956 = vmatpush1.msra.mxu0 %v1084
  %2957 = vmatprep.subr.mxu0 0.0
  %2958 = vmatpush1.msra.mxu0 %v1085
  %2959 = vmatprep.subr.mxu0 0.0
  %2960 = vmatpush1.msra.mxu0 %v1086
  %2961 = vmatprep.subr.mxu0 0.0
  %2962 = vmatpush1.msra.mxu0 %v1087
  %2963 = vmatprep.subr.mxu0 0.0
  %2964 = vmatpush1.msra.mxu0 %v1088
  %2965 = vmatprep.subr.mxu0 0.0
  %2966 = vmatpush1.msra.mxu0 %v1089
  %2967 = vmatprep.subr.mxu0 0.0
  %2968 = vmatpush1.msra.mxu0 %v1090
  %2969 = vmatprep.subr.mxu0 0.0
  %2970 = vmatpush1.msra.mxu0 %v1091
  %2971 = vmatprep.subr.mxu0 0.0
  %2972 = vmatpush1.msra.mxu0 %v1092
  %2973 = vmatprep.subr.mxu0 0.0
  %2974 = vmatpush1.msra.mxu0 %v1093
  %2975 = vmatprep.subr.mxu0 0.0
  %2976 = vmatpush1.msra.mxu0 %v1094
  %2977 = vmatprep.subr.mxu0 0.0
  %2978 = vmatpush1.msra.mxu0 %v1242
  %2979 = vmatprep.subr.mxu0 0.0
  %2980 = vmatpush1.msra.mxu0 0.0
  %2981 = vmatprep.subr.mxu0 0.0
  %2982 = vmatpush1.msra.mxu0 0.0
  %2983 = vmatprep.subr.mxu0 0.0
  %2984 = vmatpush1.msra.mxu0 0.0
  %2985 = vmatprep.subr.mxu0 0.0
  %2986 = vmatpush1.msra.mxu0 0.0
  %2987 = vmatprep.subr.mxu0 0.0
  %2988 = vmatpush1.msra.mxu0 0.0
  %2989 = vmatprep.subr.mxu0 0.0
  %2990 = vmatpush1.msra.mxu0 0.0
  %2991 = vmatprep.subr.mxu0 0.0
  %2992 = vmatpush1.msra.mxu0 0.0
  %2993 = vmatprep.subr.mxu0 0.0
  %2994 = vmatpush1.msra.mxu0 0.0
  %2995 = vmatprep.subr.mxu0 0.0
  %2996 = vmatpush1.msra.mxu0 0.0
  %2997 = vmatprep.subr.mxu0 0.0
  %2998 = vmatpush1.msra.mxu0 0.0
  %2999 = vmatprep.mubr.f32.mxu0 %v2839
  %3000 = vmatmul.mubr.f32.gmra.mrb[0].mxu0 %v2830
  %v3001 = vpop.f32.mrb[0].mxu0
  %v3002 = vadd.f32 0.0, %v3001
  %v3003 = vpop.f32.mrb[0].mxu0
  %3004 = vmatprep.mubr.f32.mxu0 %v2842
  %3005 = vmatmul.mubr.f32.gmra.mrb[0].mxu0 %v2832
  %v3006 = vpop.f32.mrb[0].mxu0
  %v3007 = vadd.f32 0.0, %v3006
  %v3008 = vpop.f32.mrb[0].mxu0
  %3009 = vmatprep.mubr.f32.mxu0 %v2845
  %3010 = vmatmul.mubr.f32.gmra.mrb[0].mxu0 %v2834
  %v3011 = vpop.f32.mrb[0].mxu0
  %v3012 = vadd.f32 0.0, %v3011
  %v3013 = vpop.f32.mrb[0].mxu0
  %3014 = vmatprep.mubr.f32.mxu0 %v2848
  %3015 = vmatmul.mubr.f32.gmra.mrb[0].mxu0 %v2836
  %v3016 = vpop.f32.mrb[0].mxu0
  %v3017 = vadd.f32 0.0, %v3016
  %v3018 = vpop.f32.mrb[0].mxu0
  %3019 = vdwg.mxu0
  %s3020 = scalar_lea.vmem %s5, 64
  %v3021 = vld [vmem:[%s3020] sm:$0xff]
  %v3022 = vld [vmem:[%s3020 + $0x8] sm:$0xff]
  %v3024 = vsel %vm83, %v2917, 0
  %v3027 = vsel %vm83, %v2922, 0
  %v3030 = vsel %vm83, %v2927, 0
  %v3033 = vsel %vm83, %v2932, 0
  %3035 = vmatprep.subr.mxu0 0.0
  %3036 = vmatpush1.msra.mxu0 %v3021
  %3037 = vmatprep.subr.mxu0 0.0
  %3038 = vmatpush1.msra.mxu0 %v3022
  %3039 = vmatprep.subr.mxu0 0.0
  %3040 = vmatpush1.msra.mxu0 0.0
  %3041 = vmatprep.subr.mxu0 0.0
  %3042 = vmatpush1.msra.mxu0 0.0
  %3043 = vmatprep.subr.mxu0 0.0
  %3044 = vmatpush1.msra.mxu0 0.0
  %3045 = vmatprep.subr.mxu0 0.0
  %3046 = vmatpush1.msra.mxu0 0.0
  %3047 = vmatprep.subr.mxu0 0.0
  %3048 = vmatpush1.msra.mxu0 0.0
  %3049 = vmatprep.subr.mxu0 0.0
  %3050 = vmatpush1.msra.mxu0 0.0
  %3051 = vmatprep.subr.mxu0 0.0
  %3052 = vmatpush1.msra.mxu0 0.0
  %3053 = vmatprep.subr.mxu0 0.0
  %3054 = vmatpush1.msra.mxu0 0.0
  %3055 = vmatprep.subr.mxu0 0.0
  %3056 = vmatpush1.msra.mxu0 0.0
  %3057 = vmatprep.subr.mxu0 0.0
  %3058 = vmatpush1.msra.mxu0 0.0
  %3059 = vmatprep.subr.mxu0 0.0
  %3060 = vmatpush1.msra.mxu0 0.0
  %3061 = vmatprep.subr.mxu0 0.0
  %3062 = vmatpush1.msra.mxu0 0.0
  %3063 = vmatprep.subr.mxu0 0.0
  %3064 = vmatpush1.msra.mxu0 0.0
  %3065 = vmatprep.subr.mxu0 0.0
  %3066 = vmatpush1.msra.mxu0 0.0
  %3067 = vmatprep.subr.mxu0 0.0
  %3068 = vmatpush1.msra.mxu0 0.0
  %3069 = vmatprep.subr.mxu0 0.0
  %3070 = vmatpush1.msra.mxu0 0.0
  %3071 = vmatprep.subr.mxu0 0.0
  %3072 = vmatpush1.msra.mxu0 0.0
  %3073 = vmatprep.subr.mxu0 0.0
  %3074 = vmatpush1.msra.mxu0 0.0
  %3075 = vmatprep.subr.mxu0 0.0
  %3076 = vmatpush1.msra.mxu0 0.0
  %3077 = vmatprep.subr.mxu0 0.0
  %3078 = vmatpush1.msra.mxu0 0.0
  %3079 = vmatprep.subr.mxu0 0.0
  %3080 = vmatpush1.msra.mxu0 0.0
  %3081 = vmatprep.subr.mxu0 0.0
  %3082 = vmatpush1.msra.mxu0 0.0
  %3083 = vmatprep.subr.mxu0 0.0
  %3084 = vmatpush1.msra.mxu0 0.0
  %3085 = vmatprep.subr.mxu0 0.0
  %3086 = vmatpush1.msra.mxu0 0.0
  %3087 = vmatprep.subr.mxu0 0.0
  %3088 = vmatpush1.msra.mxu0 0.0
  %3089 = vmatprep.subr.mxu0 0.0
  %3090 = vmatpush1.msra.mxu0 0.0
  %3091 = vmatprep.subr.mxu0 0.0
  %3092 = vmatpush1.msra.mxu0 0.0
  %3093 = vmatprep.subr.mxu0 0.0
  %3094 = vmatpush1.msra.mxu0 0.0
  %3095 = vmatprep.subr.mxu0 0.0
  %3096 = vmatpush1.msra.mxu0 0.0
  %3097 = vmatprep.subr.mxu0 0.0
  %3098 = vmatpush1.msra.mxu0 0.0
  %3099 = vmatprep.mubr.f32.mxu0 0.0
  %3100 = vmatmul.mubr.f32.gmra.mrb[0].mxu0 %v3024
  %v3101 = vpop.f32.mrb[0].mxu0
  %v3102 = vadd.f32 0.0, %v3101
  %v3103 = vpop.f32.mrb[0].mxu0
  %3104 = vmatprep.mubr.f32.mxu0 0.0
  %3105 = vmatmul.mubr.f32.gmra.mrb[0].mxu0 %v3027
  %v3106 = vpop.f32.mrb[0].mxu0
  %v3107 = vadd.f32 0.0, %v3106
  %v3108 = vpop.f32.mrb[0].mxu0
  %3109 = vmatprep.mubr.f32.mxu0 0.0
  %3110 = vmatmul.mubr.f32.gmra.mrb[0].mxu0 %v3030
  %v3111 = vpop.f32.mrb[0].mxu0
  %v3112 = vadd.f32 0.0, %v3111
  %v3113 = vpop.f32.mrb[0].mxu0
  %3114 = vmatprep.mubr.f32.mxu0 0.0
  %3115 = vmatmul.mubr.f32.gmra.mrb[0].mxu0 %v3033
  %v3116 = vpop.f32.mrb[0].mxu0
  %v3117 = vadd.f32 0.0, %v3116
  %v3118 = vpop.f32.mrb[0].mxu0
  %3119 = vdwg.mxu0
  %v3121 = vsel %vm83, %v3002, 0
  %v3124 = vsel %vm83, %v3007, 0
  %v3127 = vsel %vm83, %v3012, 0
  %v3130 = vsel %vm83, %v3017, 0
  %3132 = vmatprep.subr.mxu0 0.0
  %3133 = vmatpush1.msra.mxu0 %v3021
  %3134 = vmatprep.subr.mxu0 0.0
  %3135 = vmatpush1.msra.mxu0 %v3022
  %3136 = vmatprep.subr.mxu0 0.0
  %3137 = vmatpush1.msra.mxu0 0.0
  %3138 = vmatprep.subr.mxu0 0.0
  %3139 = vmatpush1.msra.mxu0 0.0
  %3140 = vmatprep.subr.mxu0 0.0
  %3141 = vmatpush1.msra.mxu0 0.0
  %3142 = vmatprep.subr.mxu0 0.0
  %3143 = vmatpush1.msra.mxu0 0.0
  %3144 = vmatprep.subr.mxu0 0.0
  %3145 = vmatpush1.msra.mxu0 0.0
  %3146 = vmatprep.subr.mxu0 0.0
  %3147 = vmatpush1.msra.mxu0 0.0
  %3148 = vmatprep.subr.mxu0 0.0
  %3149 = vmatpush1.msra.mxu0 0.0
  %3150 = vmatprep.subr.mxu0 0.0
  %3151 = vmatpush1.msra.mxu0 0.0
  %3152 = vmatprep.subr.mxu0 0.0
  %3153 = vmatpush1.msra.mxu0 0.0
  %3154 = vmatprep.subr.mxu0 0.0
  %3155 = vmatpush1.msra.mxu0 0.0
  %3156 = vmatprep.subr.mxu0 0.0
  %3157 = vmatpush1.msra.mxu0 0.0
  %3158 = vmatprep.subr.mxu0 0.0
  %3159 = vmatpush1.msra.mxu0 0.0
  %3160 = vmatprep.subr.mxu0 0.0
  %3161 = vmatpush1.msra.mxu0 0.0
  %3162 = vmatprep.subr.mxu0 0.0
  %3163 = vmatpush1.msra.mxu0 0.0
  %3164 = vmatprep.subr.mxu0 0.0
  %3165 = vmatpush1.msra.mxu0 0.0
  %3166 = vmatprep.subr.mxu0 0.0
  %3167 = vmatpush1.msra.mxu0 0.0
  %3168 = vmatprep.subr.mxu0 0.0
  %3169 = vmatpush1.msra.mxu0 0.0
  %3170 = vmatprep.subr.mxu0 0.0
  %3171 = vmatpush1.msra.mxu0 0.0
  %3172 = vmatprep.subr.mxu0 0.0
  %3173 = vmatpush1.msra.mxu0 0.0
  %3174 = vmatprep.subr.mxu0 0.0
  %3175 = vmatpush1.msra.mxu0 0.0
  %3176 = vmatprep.subr.mxu0 0.0
  %3177 = vmatpush1.msra.mxu0 0.0
  %3178 = vmatprep.subr.mxu0 0.0
  %3179 = vmatpush1.msra.mxu0 0.0
  %3180 = vmatprep.subr.mxu0 0.0
  %3181 = vmatpush1.msra.mxu0 0.0
  %3182 = vmatprep.subr.mxu0 0.0
  %3183 = vmatpush1.msra.mxu0 0.0
  %3184 = vmatprep.subr.mxu0 0.0
  %3185 = vmatpush1.msra.mxu0 0.0
  %3186 = vmatprep.subr.mxu0 0.0
  %3187 = vmatpush1.msra.mxu0 0.0
  %3188 = vmatprep.subr.mxu0 0.0
  %3189 = vmatpush1.msra.mxu0 0.0
  %3190 = vmatprep.subr.mxu0 0.0
  %3191 = vmatpush1.msra.mxu0 0.0
  %3192 = vmatprep.subr.mxu0 0.0
  %3193 = vmatpush1.msra.mxu0 0.0
  %3194 = vmatprep.subr.mxu0 0.0
  %3195 = vmatpush1.msra.mxu0 0.0
  %3196 = vmatprep.mubr.f32.mxu0 0.0
  %3197 = vmatmul.mubr.f32.gmra.mrb[0].mxu0 %v3121
  %v3198 = vpop.f32.mrb[0].mxu0
  %v3199 = vadd.f32 0.0, %v3198
  %v3200 = vpop.f32.mrb[0].mxu0
  %3201 = vmatprep.mubr.f32.mxu0 0.0
  %3202 = vmatmul.mubr.f32.gmra.mrb[0].mxu0 %v3124
  %v3203 = vpop.f32.mrb[0].mxu0
  %v3204 = vadd.f32 0.0, %v3203
  %v3205 = vpop.f32.mrb[0].mxu0
  %3206 = vmatprep.mubr.f32.mxu0 0.0
  %3207 = vmatmul.mubr.f32.gmra.mrb[0].mxu0 %v3127
  %v3208 = vpop.f32.mrb[0].mxu0
  %v3209 = vadd.f32 0.0, %v3208
  %v3210 = vpop.f32.mrb[0].mxu0
  %3211 = vmatprep.mubr.f32.mxu0 0.0
  %3212 = vmatmul.mubr.f32.gmra.mrb[0].mxu0 %v3130
  %v3213 = vpop.f32.mrb[0].mxu0
  %v3214 = vadd.f32 0.0, %v3213
  %v3215 = vpop.f32.mrb[0].mxu0
  %3216 = vdwg.mxu0
  %v3217 = vadd.f32 %v2790, %v3102
  %v3218 = vadd.f32 %v2791, %v3107
  %v3219 = vadd.f32 %v2792, %v3112
  %v3220 = vadd.f32 %v2793, %v3117
  %v3221 = vadd.f32 %v2794, %v3199
  %v3222 = vadd.f32 %v2795, %v3204
  %v3223 = vadd.f32 %v2796, %v3209
  %v3224 = vadd.f32 %v2797, %v3214
  %v3225 = vadd.s32 %v1099, 14
  %v3226 = vadd.s32 %v1100, 14
  %v3227 = vadd.s32 %v1101, 14
  %v3228 = vadd.s32 %v1102, 14
  %3229 = vset.pattern.permute.xlu0 0
  %3230 = vperm.xlu0 %3229, %v3225
  %v3231 = vpop.permute.xlu0 %3230
  %3232 = vset.pattern.permute.xlu0 0
  %3233 = vperm.xlu0 %3232, %v3226
  %v3234 = vpop.permute.xlu0 %3233
  %3235 = vset.pattern.permute.xlu0 0
  %3236 = vperm.xlu0 %3235, %v3227
  %v3237 = vpop.permute.xlu0 %3236
  %3238 = vset.pattern.permute.xlu0 0
  %3239 = vperm.xlu0 %3238, %v3228
  %v3240 = vpop.permute.xlu0 %3239
  %vm3241 = vcmp.eq.s32.totalorder %v1097, %v3231
  %vm3242 = vcmp.eq.s32.totalorder %v1098, %v3231
  %vm3243 = vcmp.eq.s32.totalorder %v1097, %v3234
  %vm3244 = vcmp.eq.s32.totalorder %v1098, %v3234
  %vm3245 = vcmp.eq.s32.totalorder %v1097, %v3237
  %vm3246 = vcmp.eq.s32.totalorder %v1098, %v3237
  %vm3247 = vcmp.eq.s32.totalorder %v1097, %v3240
  %vm3248 = vcmp.eq.s32.totalorder %v1098, %v3240
  %v3249 = vsel %vm3241, 1, 0
  %v3250 = vsel %vm3242, 1, 0
  %v3251 = vsel %vm3243, 1, 0
  %v3252 = vsel %vm3244, 1, 0
  %v3253 = vsel %vm3245, 1, 0
  %v3254 = vsel %vm3246, 1, 0
  %v3255 = vsel %vm3247, 1, 0
  %v3256 = vsel %vm3248, 1, 0
  %v3257 = vcvt.s32.f32 %v3249
  %v3258 = vcvt.s32.f32 %v3250
  %v3259 = vcvt.s32.f32 %v3251
  %v3260 = vcvt.s32.f32 %v3252
  %v3261 = vcvt.s32.f32 %v3253
  %v3262 = vcvt.s32.f32 %v3254
  %v3263 = vcvt.s32.f32 %v3255
  %v3264 = vcvt.s32.f32 %v3256
  %v3266 = vsel %vm1139, %v3258, 0
  %v3269 = vsel %vm1139, %v3260, 0
  %v3272 = vsel %vm1139, %v3262, 0
  %v3275 = vsel %vm1139, %v3264, 0
  %3277 = vmatprep.subr.mxu0 0.0
  %3278 = vmatpush1.msra.mxu0 %v1052
  %3279 = vmatprep.subr.mxu0 0.0
  %3280 = vmatpush1.msra.mxu0 %v1053
  %3281 = vmatprep.subr.mxu0 0.0
  %3282 = vmatpush1.msra.mxu0 %v1054
  %3283 = vmatprep.subr.mxu0 0.0
  %3284 = vmatpush1.msra.mxu0 %v1055
  %3285 = vmatprep.subr.mxu0 0.0
  %3286 = vmatpush1.msra.mxu0 %v1056
  %3287 = vmatprep.subr.mxu0 0.0
  %3288 = vmatpush1.msra.mxu0 %v1057
  %3289 = vmatprep.subr.mxu0 0.0
  %3290 = vmatpush1.msra.mxu0 %v1058
  %3291 = vmatprep.subr.mxu0 0.0
  %3292 = vmatpush1.msra.mxu0 %v1059
  %3293 = vmatprep.subr.mxu0 0.0
  %3294 = vmatpush1.msra.mxu0 %v1060
  %3295 = vmatprep.subr.mxu0 0.0
  %3296 = vmatpush1.msra.mxu0 %v1061
  %3297 = vmatprep.subr.mxu0 0.0
  %3298 = vmatpush1.msra.mxu0 %v1062
  %3299 = vmatprep.subr.mxu0 0.0
  %3300 = vmatpush1.msra.mxu0 %v1063
  %3301 = vmatprep.subr.mxu0 0.0
  %3302 = vmatpush1.msra.mxu0 %v1064
  %3303 = vmatprep.subr.mxu0 0.0
  %3304 = vmatpush1.msra.mxu0 %v1065
  %3305 = vmatprep.subr.mxu0 0.0
  %3306 = vmatpush1.msra.mxu0 %v1066
  %3307 = vmatprep.subr.mxu0 0.0
  %3308 = vmatpush1.msra.mxu0 %v1067
  %3309 = vmatprep.subr.mxu0 0.0
  %3310 = vmatpush1.msra.mxu0 %v1068
  %3311 = vmatprep.subr.mxu0 0.0
  %3312 = vmatpush1.msra.mxu0 %v1069
  %3313 = vmatprep.subr.mxu0 0.0
  %3314 = vmatpush1.msra.mxu0 %v1070
  %3315 = vmatprep.subr.mxu0 0.0
  %3316 = vmatpush1.msra.mxu0 %v1071
  %3317 = vmatprep.subr.mxu0 0.0
  %3318 = vmatpush1.msra.mxu0 %v1072
  %3319 = vmatprep.subr.mxu0 0.0
  %3320 = vmatpush1.msra.mxu0 %v1154
  %3321 = vmatprep.subr.mxu0 0.0
  %3322 = vmatpush1.msra.mxu0 0.0
  %3323 = vmatprep.subr.mxu0 0.0
  %3324 = vmatpush1.msra.mxu0 0.0
  %3325 = vmatprep.subr.mxu0 0.0
  %3326 = vmatpush1.msra.mxu0 0.0
  %3327 = vmatprep.subr.mxu0 0.0
  %3328 = vmatpush1.msra.mxu0 0.0
  %3329 = vmatprep.subr.mxu0 0.0
  %3330 = vmatpush1.msra.mxu0 0.0
  %3331 = vmatprep.subr.mxu0 0.0
  %3332 = vmatpush1.msra.mxu0 0.0
  %3333 = vmatprep.subr.mxu0 0.0
  %3334 = vmatpush1.msra.mxu0 0.0
  %3335 = vmatprep.subr.mxu0 0.0
  %3336 = vmatpush1.msra.mxu0 0.0
  %3337 = vmatprep.subr.mxu0 0.0
  %3338 = vmatpush1.msra.mxu0 0.0
  %3339 = vmatprep.subr.mxu0 0.0
  %3340 = vmatpush1.msra.mxu0 0.0
  %3341 = vmatprep.mubr.f32.mxu0 %v3266
  %3342 = vmatmul.mubr.f32.gmra.mrb[0].mxu0 %v3257
  %v3343 = vpop.f32.mrb[0].mxu0
  %v3344 = vadd.f32 0.0, %v3343
  %v3345 = vpop.f32.mrb[0].mxu0
  %3346 = vmatprep.mubr.f32.mxu0 %v3269
  %3347 = vmatmul.mubr.f32.gmra.mrb[0].mxu0 %v3259
  %v3348 = vpop.f32.mrb[0].mxu0
  %v3349 = vadd.f32 0.0, %v3348
  %v3350 = vpop.f32.mrb[0].mxu0
  %3351 = vmatprep.mubr.f32.mxu0 %v3272
  %3352 = vmatmul.mubr.f32.gmra.mrb[0].mxu0 %v3261
  %v3353 = vpop.f32.mrb[0].mxu0
  %v3354 = vadd.f32 0.0, %v3353
  %v3355 = vpop.f32.mrb[0].mxu0
  %3356 = vmatprep.mubr.f32.mxu0 %v3275
  %3357 = vmatmul.mubr.f32.gmra.mrb[0].mxu0 %v3263
  %v3358 = vpop.f32.mrb[0].mxu0
  %v3359 = vadd.f32 0.0, %v3358
  %v3360 = vpop.f32.mrb[0].mxu0
  %3361 = vdwg.mxu0
  %3362 = vmatprep.subr.mxu0 0.0
  %3363 = vmatpush1.msra.mxu0 %v1074
  %3364 = vmatprep.subr.mxu0 0.0
  %3365 = vmatpush1.msra.mxu0 %v1075
  %3366 = vmatprep.subr.mxu0 0.0
  %3367 = vmatpush1.msra.mxu0 %v1076
  %3368 = vmatprep.subr.mxu0 0.0
  %3369 = vmatpush1.msra.mxu0 %v1077
  %3370 = vmatprep.subr.mxu0 0.0
  %3371 = vmatpush1.msra.mxu0 %v1078
  %3372 = vmatprep.subr.mxu0 0.0
  %3373 = vmatpush1.msra.mxu0 %v1079
  %3374 = vmatprep.subr.mxu0 0.0
  %3375 = vmatpush1.msra.mxu0 %v1080
  %3376 = vmatprep.subr.mxu0 0.0
  %3377 = vmatpush1.msra.mxu0 %v1081
  %3378 = vmatprep.subr.mxu0 0.0
  %3379 = vmatpush1.msra.mxu0 %v1082
  %3380 = vmatprep.subr.mxu0 0.0
  %3381 = vmatpush1.msra.mxu0 %v1083
  %3382 = vmatprep.subr.mxu0 0.0
  %3383 = vmatpush1.msra.mxu0 %v1084
  %3384 = vmatprep.subr.mxu0 0.0
  %3385 = vmatpush1.msra.mxu0 %v1085
  %3386 = vmatprep.subr.mxu0 0.0
  %3387 = vmatpush1.msra.mxu0 %v1086
  %3388 = vmatprep.subr.mxu0 0.0
  %3389 = vmatpush1.msra.mxu0 %v1087
  %3390 = vmatprep.subr.mxu0 0.0
  %3391 = vmatpush1.msra.mxu0 %v1088
  %3392 = vmatprep.subr.mxu0 0.0
  %3393 = vmatpush1.msra.mxu0 %v1089
  %3394 = vmatprep.subr.mxu0 0.0
  %3395 = vmatpush1.msra.mxu0 %v1090
  %3396 = vmatprep.subr.mxu0 0.0
  %3397 = vmatpush1.msra.mxu0 %v1091
  %3398 = vmatprep.subr.mxu0 0.0
  %3399 = vmatpush1.msra.mxu0 %v1092
  %3400 = vmatprep.subr.mxu0 0.0
  %3401 = vmatpush1.msra.mxu0 %v1093
  %3402 = vmatprep.subr.mxu0 0.0
  %3403 = vmatpush1.msra.mxu0 %v1094
  %3404 = vmatprep.subr.mxu0 0.0
  %3405 = vmatpush1.msra.mxu0 %v1242
  %3406 = vmatprep.subr.mxu0 0.0
  %3407 = vmatpush1.msra.mxu0 0.0
  %3408 = vmatprep.subr.mxu0 0.0
  %3409 = vmatpush1.msra.mxu0 0.0
  %3410 = vmatprep.subr.mxu0 0.0
  %3411 = vmatpush1.msra.mxu0 0.0
  %3412 = vmatprep.subr.mxu0 0.0
  %3413 = vmatpush1.msra.mxu0 0.0
  %3414 = vmatprep.subr.mxu0 0.0
  %3415 = vmatpush1.msra.mxu0 0.0
  %3416 = vmatprep.subr.mxu0 0.0
  %3417 = vmatpush1.msra.mxu0 0.0
  %3418 = vmatprep.subr.mxu0 0.0
  %3419 = vmatpush1.msra.mxu0 0.0
  %3420 = vmatprep.subr.mxu0 0.0
  %3421 = vmatpush1.msra.mxu0 0.0
  %3422 = vmatprep.subr.mxu0 0.0
  %3423 = vmatpush1.msra.mxu0 0.0
  %3424 = vmatprep.subr.mxu0 0.0
  %3425 = vmatpush1.msra.mxu0 0.0
  %3426 = vmatprep.mubr.f32.mxu0 %v3266
  %3427 = vmatmul.mubr.f32.gmra.mrb[0].mxu0 %v3257
  %v3428 = vpop.f32.mrb[0].mxu0
  %v3429 = vadd.f32 0.0, %v3428
  %v3430 = vpop.f32.mrb[0].mxu0
  %3431 = vmatprep.mubr.f32.mxu0 %v3269
  %3432 = vmatmul.mubr.f32.gmra.mrb[0].mxu0 %v3259
  %v3433 = vpop.f32.mrb[0].mxu0
  %v3434 = vadd.f32 0.0, %v3433
  %v3435 = vpop.f32.mrb[0].mxu0
  %3436 = vmatprep.mubr.f32.mxu0 %v3272
  %3437 = vmatmul.mubr.f32.gmra.mrb[0].mxu0 %v3261
  %v3438 = vpop.f32.mrb[0].mxu0
  %v3439 = vadd.f32 0.0, %v3438
  %v3440 = vpop.f32.mrb[0].mxu0
  %3441 = vmatprep.mubr.f32.mxu0 %v3275
  %3442 = vmatmul.mubr.f32.gmra.mrb[0].mxu0 %v3263
  %v3443 = vpop.f32.mrb[0].mxu0
  %v3444 = vadd.f32 0.0, %v3443
  %v3445 = vpop.f32.mrb[0].mxu0
  %3446 = vdwg.mxu0
  %s3447 = scalar_lea.vmem %s5, 80
  %v3448 = vld [vmem:[%s3447] sm:$0xff]
  %v3449 = vld [vmem:[%s3447 + $0x8] sm:$0xff]
  %v3451 = vsel %vm83, %v3344, 0
  %v3454 = vsel %vm83, %v3349, 0
  %v3457 = vsel %vm83, %v3354, 0
  %v3460 = vsel %vm83, %v3359, 0
  %3462 = vmatprep.subr.mxu0 0.0
  %3463 = vmatpush1.msra.mxu0 %v3448
  %3464 = vmatprep.subr.mxu0 0.0
  %3465 = vmatpush1.msra.mxu0 %v3449
  %3466 = vmatprep.subr.mxu0 0.0
  %3467 = vmatpush1.msra.mxu0 0.0
  %3468 = vmatprep.subr.mxu0 0.0
  %3469 = vmatpush1.msra.mxu0 0.0
  %3470 = vmatprep.subr.mxu0 0.0
  %3471 = vmatpush1.msra.mxu0 0.0
  %3472 = vmatprep.subr.mxu0 0.0
  %3473 = vmatpush1.msra.mxu0 0.0
  %3474 = vmatprep.subr.mxu0 0.0
  %3475 = vmatpush1.msra.mxu0 0.0
  %3476 = vmatprep.subr.mxu0 0.0
  %3477 = vmatpush1.msra.mxu0 0.0
  %3478 = vmatprep.subr.mxu0 0.0
  %3479 = vmatpush1.msra.mxu0 0.0
  %3480 = vmatprep.subr.mxu0 0.0
  %3481 = vmatpush1.msra.mxu0 0.0
  %3482 = vmatprep.subr.mxu0 0.0
  %3483 = vmatpush1.msra.mxu0 0.0
  %3484 = vmatprep.subr.mxu0 0.0
  %3485 = vmatpush1.msra.mxu0 0.0
  %3486 = vmatprep.subr.mxu0 0.0
  %3487 = vmatpush1.msra.mxu0 0.0
  %3488 = vmatprep.subr.mxu0 0.0
  %3489 = vmatpush1.msra.mxu0 0.0
  %3490 = vmatprep.subr.mxu0 0.0
  %3491 = vmatpush1.msra.mxu0 0.0
  %3492 = vmatprep.subr.mxu0 0.0
  %3493 = vmatpush1.msra.mxu0 0.0
  %3494 = vmatprep.subr.mxu0 0.0
  %3495 = vmatpush1.msra.mxu0 0.0
  %3496 = vmatprep.subr.mxu0 0.0
  %3497 = vmatpush1.msra.mxu0 0.0
  %3498 = vmatprep.subr.mxu0 0.0
  %3499 = vmatpush1.msra.mxu0 0.0
  %3500 = vmatprep.subr.mxu0 0.0
  %3501 = vmatpush1.msra.mxu0 0.0
  %3502 = vmatprep.subr.mxu0 0.0
  %3503 = vmatpush1.msra.mxu0 0.0
  %3504 = vmatprep.subr.mxu0 0.0
  %3505 = vmatpush1.msra.mxu0 0.0
  %3506 = vmatprep.subr.mxu0 0.0
  %3507 = vmatpush1.msra.mxu0 0.0
  %3508 = vmatprep.subr.mxu0 0.0
  %3509 = vmatpush1.msra.mxu0 0.0
  %3510 = vmatprep.subr.mxu0 0.0
  %3511 = vmatpush1.msra.mxu0 0.0
  %3512 = vmatprep.subr.mxu0 0.0
  %3513 = vmatpush1.msra.mxu0 0.0
  %3514 = vmatprep.subr.mxu0 0.0
  %3515 = vmatpush1.msra.mxu0 0.0
  %3516 = vmatprep.subr.mxu0 0.0
  %3517 = vmatpush1.msra.mxu0 0.0
  %3518 = vmatprep.subr.mxu0 0.0
  %3519 = vmatpush1.msra.mxu0 0.0
  %3520 = vmatprep.subr.mxu0 0.0
  %3521 = vmatpush1.msra.mxu0 0.0
  %3522 = vmatprep.subr.mxu0 0.0
  %3523 = vmatpush1.msra.mxu0 0.0
  %3524 = vmatprep.subr.mxu0 0.0
  %3525 = vmatpush1.msra.mxu0 0.0
  %3526 = vmatprep.mubr.f32.mxu0 0.0
  %3527 = vmatmul.mubr.f32.gmra.mrb[0].mxu0 %v3451
  %v3528 = vpop.f32.mrb[0].mxu0
  %v3529 = vadd.f32 0.0, %v3528
  %v3530 = vpop.f32.mrb[0].mxu0
  %3531 = vmatprep.mubr.f32.mxu0 0.0
  %3532 = vmatmul.mubr.f32.gmra.mrb[0].mxu0 %v3454
  %v3533 = vpop.f32.mrb[0].mxu0
  %v3534 = vadd.f32 0.0, %v3533
  %v3535 = vpop.f32.mrb[0].mxu0
  %3536 = vmatprep.mubr.f32.mxu0 0.0
  %3537 = vmatmul.mubr.f32.gmra.mrb[0].mxu0 %v3457
  %v3538 = vpop.f32.mrb[0].mxu0
  %v3539 = vadd.f32 0.0, %v3538
  %v3540 = vpop.f32.mrb[0].mxu0
  %3541 = vmatprep.mubr.f32.mxu0 0.0
  %3542 = vmatmul.mubr.f32.gmra.mrb[0].mxu0 %v3460
  %v3543 = vpop.f32.mrb[0].mxu0
  %v3544 = vadd.f32 0.0, %v3543
  %v3545 = vpop.f32.mrb[0].mxu0
  %3546 = vdwg.mxu0
  %v3548 = vsel %vm83, %v3429, 0
  %v3551 = vsel %vm83, %v3434, 0
  %v3554 = vsel %vm83, %v3439, 0
  %v3557 = vsel %vm83, %v3444, 0
  %3559 = vmatprep.subr.mxu0 0.0
  %3560 = vmatpush1.msra.mxu0 %v3448
  %3561 = vmatprep.subr.mxu0 0.0
  %3562 = vmatpush1.msra.mxu0 %v3449
  %3563 = vmatprep.subr.mxu0 0.0
  %3564 = vmatpush1.msra.mxu0 0.0
  %3565 = vmatprep.subr.mxu0 0.0
  %3566 = vmatpush1.msra.mxu0 0.0
  %3567 = vmatprep.subr.mxu0 0.0
  %3568 = vmatpush1.msra.mxu0 0.0
  %3569 = vmatprep.subr.mxu0 0.0
  %3570 = vmatpush1.msra.mxu0 0.0
  %3571 = vmatprep.subr.mxu0 0.0
  %3572 = vmatpush1.msra.mxu0 0.0
  %3573 = vmatprep.subr.mxu0 0.0
  %3574 = vmatpush1.msra.mxu0 0.0
  %3575 = vmatprep.subr.mxu0 0.0
  %3576 = vmatpush1.msra.mxu0 0.0
  %3577 = vmatprep.subr.mxu0 0.0
  %3578 = vmatpush1.msra.mxu0 0.0
  %3579 = vmatprep.subr.mxu0 0.0
  %3580 = vmatpush1.msra.mxu0 0.0
  %3581 = vmatprep.subr.mxu0 0.0
  %3582 = vmatpush1.msra.mxu0 0.0
  %3583 = vmatprep.subr.mxu0 0.0
  %3584 = vmatpush1.msra.mxu0 0.0
  %3585 = vmatprep.subr.mxu0 0.0
  %3586 = vmatpush1.msra.mxu0 0.0
  %3587 = vmatprep.subr.mxu0 0.0
  %3588 = vmatpush1.msra.mxu0 0.0
  %3589 = vmatprep.subr.mxu0 0.0
  %3590 = vmatpush1.msra.mxu0 0.0
  %3591 = vmatprep.subr.mxu0 0.0
  %3592 = vmatpush1.msra.mxu0 0.0
  %3593 = vmatprep.subr.mxu0 0.0
  %3594 = vmatpush1.msra.mxu0 0.0
  %3595 = vmatprep.subr.mxu0 0.0
  %3596 = vmatpush1.msra.mxu0 0.0
  %3597 = vmatprep.subr.mxu0 0.0
  %3598 = vmatpush1.msra.mxu0 0.0
  %3599 = vmatprep.subr.mxu0 0.0
  %3600 = vmatpush1.msra.mxu0 0.0
  %3601 = vmatprep.subr.mxu0 0.0
  %3602 = vmatpush1.msra.mxu0 0.0
  %3603 = vmatprep.subr.mxu0 0.0
  %3604 = vmatpush1.msra.mxu0 0.0
  %3605 = vmatprep.subr.mxu0 0.0
  %3606 = vmatpush1.msra.mxu0 0.0
  %3607 = vmatprep.subr.mxu0 0.0
  %3608 = vmatpush1.msra.mxu0 0.0
  %3609 = vmatprep.subr.mxu0 0.0
  %3610 = vmatpush1.msra.mxu0 0.0
  %3611 = vmatprep.subr.mxu0 0.0
  %3612 = vmatpush1.msra.mxu0 0.0
  %3613 = vmatprep.subr.mxu0 0.0
  %3614 = vmatpush1.msra.mxu0 0.0
  %3615 = vmatprep.subr.mxu0 0.0
  %3616 = vmatpush1.msra.mxu0 0.0
  %3617 = vmatprep.subr.mxu0 0.0
  %3618 = vmatpush1.msra.mxu0 0.0
  %3619 = vmatprep.subr.mxu0 0.0
  %3620 = vmatpush1.msra.mxu0 0.0
  %3621 = vmatprep.subr.mxu0 0.0
  %3622 = vmatpush1.msra.mxu0 0.0
  %3623 = vmatprep.mubr.f32.mxu0 0.0
  %3624 = vmatmul.mubr.f32.gmra.mrb[0].mxu0 %v3548
  %v3625 = vpop.f32.mrb[0].mxu0
  %v3626 = vadd.f32 0.0, %v3625
  %v3627 = vpop.f32.mrb[0].mxu0
  %3628 = vmatprep.mubr.f32.mxu0 0.0
  %3629 = vmatmul.mubr.f32.gmra.mrb[0].mxu0 %v3551
  %v3630 = vpop.f32.mrb[0].mxu0
  %v3631 = vadd.f32 0.0, %v3630
  %v3632 = vpop.f32.mrb[0].mxu0
  %3633 = vmatprep.mubr.f32.mxu0 0.0
  %3634 = vmatmul.mubr.f32.gmra.mrb[0].mxu0 %v3554
  %v3635 = vpop.f32.mrb[0].mxu0
  %v3636 = vadd.f32 0.0, %v3635
  %v3637 = vpop.f32.mrb[0].mxu0
  %3638 = vmatprep.mubr.f32.mxu0 0.0
  %3639 = vmatmul.mubr.f32.gmra.mrb[0].mxu0 %v3557
  %v3640 = vpop.f32.mrb[0].mxu0
  %v3641 = vadd.f32 0.0, %v3640
  %v3642 = vpop.f32.mrb[0].mxu0
  %3643 = vdwg.mxu0
  %v3644 = vadd.f32 %v3217, %v3529
  %v3645 = vadd.f32 %v3218, %v3534
  %v3646 = vadd.f32 %v3219, %v3539
  %v3647 = vadd.f32 %v3220, %v3544
  %v3648 = vadd.f32 %v3221, %v3626
  %v3649 = vadd.f32 %v3222, %v3631
  %v3650 = vadd.f32 %v3223, %v3636
  %v3651 = vadd.f32 %v3224, %v3641
  %v3652 = vadd.s32 %v1099, 15
  %v3653 = vadd.s32 %v1100, 15
  %v3654 = vadd.s32 %v1101, 15
  %v3655 = vadd.s32 %v1102, 15
  %3656 = vset.pattern.permute.xlu0 0
  %3657 = vperm.xlu0 %3656, %v3652
  %v3658 = vpop.permute.xlu0 %3657
  %3659 = vset.pattern.permute.xlu0 0
  %3660 = vperm.xlu0 %3659, %v3653
  %v3661 = vpop.permute.xlu0 %3660
  %3662 = vset.pattern.permute.xlu0 0
  %3663 = vperm.xlu0 %3662, %v3654
  %v3664 = vpop.permute.xlu0 %3663
  %3665 = vset.pattern.permute.xlu0 0
  %3666 = vperm.xlu0 %3665, %v3655
  %v3667 = vpop.permute.xlu0 %3666
  %vm3668 = vcmp.eq.s32.totalorder %v1097, %v3658
  %vm3669 = vcmp.eq.s32.totalorder %v1098, %v3658
  %vm3670 = vcmp.eq.s32.totalorder %v1097, %v3661
  %vm3671 = vcmp.eq.s32.totalorder %v1098, %v3661
  %vm3672 = vcmp.eq.s32.totalorder %v1097, %v3664
  %vm3673 = vcmp.eq.s32.totalorder %v1098, %v3664
  %vm3674 = vcmp.eq.s32.totalorder %v1097, %v3667
  %vm3675 = vcmp.eq.s32.totalorder %v1098, %v3667
  %v3676 = vsel %vm3668, 1, 0
  %v3677 = vsel %vm3669, 1, 0
  %v3678 = vsel %vm3670, 1, 0
  %v3679 = vsel %vm3671, 1, 0
  %v3680 = vsel %vm3672, 1, 0
  %v3681 = vsel %vm3673, 1, 0
  %v3682 = vsel %vm3674, 1, 0
  %v3683 = vsel %vm3675, 1, 0
  %v3684 = vcvt.s32.f32 %v3676
  %v3685 = vcvt.s32.f32 %v3677
  %v3686 = vcvt.s32.f32 %v3678
  %v3687 = vcvt.s32.f32 %v3679
  %v3688 = vcvt.s32.f32 %v3680
  %v3689 = vcvt.s32.f32 %v3681
  %v3690 = vcvt.s32.f32 %v3682
  %v3691 = vcvt.s32.f32 %v3683
  %v3693 = vsel %vm1139, %v3685, 0
  %v3696 = vsel %vm1139, %v3687, 0
  %v3699 = vsel %vm1139, %v3689, 0
  %v3702 = vsel %vm1139, %v3691, 0
  %3704 = vmatprep.subr.mxu0 0.0
  %3705 = vmatpush1.msra.mxu0 %v1052
  %3706 = vmatprep.subr.mxu0 0.0
  %3707 = vmatpush1.msra.mxu0 %v1053
  %3708 = vmatprep.subr.mxu0 0.0
  %3709 = vmatpush1.msra.mxu0 %v1054
  %3710 = vmatprep.subr.mxu0 0.0
  %3711 = vmatpush1.msra.mxu0 %v1055
  %3712 = vmatprep.subr.mxu0 0.0
  %3713 = vmatpush1.msra.mxu0 %v1056
  %3714 = vmatprep.subr.mxu0 0.0
  %3715 = vmatpush1.msra.mxu0 %v1057
  %3716 = vmatprep.subr.mxu0 0.0
  %3717 = vmatpush1.msra.mxu0 %v1058
  %3718 = vmatprep.subr.mxu0 0.0
  %3719 = vmatpush1.msra.mxu0 %v1059
  %3720 = vmatprep.subr.mxu0 0.0
  %3721 = vmatpush1.msra.mxu0 %v1060
  %3722 = vmatprep.subr.mxu0 0.0
  %3723 = vmatpush1.msra.mxu0 %v1061
  %3724 = vmatprep.subr.mxu0 0.0
  %3725 = vmatpush1.msra.mxu0 %v1062
  %3726 = vmatprep.subr.mxu0 0.0
  %3727 = vmatpush1.msra.mxu0 %v1063
  %3728 = vmatprep.subr.mxu0 0.0
  %3729 = vmatpush1.msra.mxu0 %v1064
  %3730 = vmatprep.subr.mxu0 0.0
  %3731 = vmatpush1.msra.mxu0 %v1065
  %3732 = vmatprep.subr.mxu0 0.0
  %3733 = vmatpush1.msra.mxu0 %v1066
  %3734 = vmatprep.subr.mxu0 0.0
  %3735 = vmatpush1.msra.mxu0 %v1067
  %3736 = vmatprep.subr.mxu0 0.0
  %3737 = vmatpush1.msra.mxu0 %v1068
  %3738 = vmatprep.subr.mxu0 0.0
  %3739 = vmatpush1.msra.mxu0 %v1069
  %3740 = vmatprep.subr.mxu0 0.0
  %3741 = vmatpush1.msra.mxu0 %v1070
  %3742 = vmatprep.subr.mxu0 0.0
  %3743 = vmatpush1.msra.mxu0 %v1071
  %3744 = vmatprep.subr.mxu0 0.0
  %3745 = vmatpush1.msra.mxu0 %v1072
  %3746 = vmatprep.subr.mxu0 0.0
  %3747 = vmatpush1.msra.mxu0 %v1154
  %3748 = vmatprep.subr.mxu0 0.0
  %3749 = vmatpush1.msra.mxu0 0.0
  %3750 = vmatprep.subr.mxu0 0.0
  %3751 = vmatpush1.msra.mxu0 0.0
  %3752 = vmatprep.subr.mxu0 0.0
  %3753 = vmatpush1.msra.mxu0 0.0
  %3754 = vmatprep.subr.mxu0 0.0
  %3755 = vmatpush1.msra.mxu0 0.0
  %3756 = vmatprep.subr.mxu0 0.0
  %3757 = vmatpush1.msra.mxu0 0.0
  %3758 = vmatprep.subr.mxu0 0.0
  %3759 = vmatpush1.msra.mxu0 0.0
  %3760 = vmatprep.subr.mxu0 0.0
  %3761 = vmatpush1.msra.mxu0 0.0
  %3762 = vmatprep.subr.mxu0 0.0
  %3763 = vmatpush1.msra.mxu0 0.0
  %3764 = vmatprep.subr.mxu0 0.0
  %3765 = vmatpush1.msra.mxu0 0.0
  %3766 = vmatprep.subr.mxu0 0.0
  %3767 = vmatpush1.msra.mxu0 0.0
  %3768 = vmatprep.mubr.f32.mxu0 %v3693
  %3769 = vmatmul.mubr.f32.gmra.mrb[0].mxu0 %v3684
  %v3770 = vpop.f32.mrb[0].mxu0
  %v3771 = vadd.f32 0.0, %v3770
  %v3772 = vpop.f32.mrb[0].mxu0
  %3773 = vmatprep.mubr.f32.mxu0 %v3696
  %3774 = vmatmul.mubr.f32.gmra.mrb[0].mxu0 %v3686
  %v3775 = vpop.f32.mrb[0].mxu0
  %v3776 = vadd.f32 0.0, %v3775
  %v3777 = vpop.f32.mrb[0].mxu0
  %3778 = vmatprep.mubr.f32.mxu0 %v3699
  %3779 = vmatmul.mubr.f32.gmra.mrb[0].mxu0 %v3688
  %v3780 = vpop.f32.mrb[0].mxu0
  %v3781 = vadd.f32 0.0, %v3780
  %v3782 = vpop.f32.mrb[0].mxu0
  %3783 = vmatprep.mubr.f32.mxu0 %v3702
  %3784 = vmatmul.mubr.f32.gmra.mrb[0].mxu0 %v3690
  %v3785 = vpop.f32.mrb[0].mxu0
  %v3786 = vadd.f32 0.0, %v3785
  %v3787 = vpop.f32.mrb[0].mxu0
  %3788 = vdwg.mxu0
  %3789 = vmatprep.subr.mxu0 0.0
  %3790 = vmatpush1.msra.mxu0 %v1074
  %3791 = vmatprep.subr.mxu0 0.0
  %3792 = vmatpush1.msra.mxu0 %v1075
  %3793 = vmatprep.subr.mxu0 0.0
  %3794 = vmatpush1.msra.mxu0 %v1076
  %3795 = vmatprep.subr.mxu0 0.0
  %3796 = vmatpush1.msra.mxu0 %v1077
  %3797 = vmatprep.subr.mxu0 0.0
  %3798 = vmatpush1.msra.mxu0 %v1078
  %3799 = vmatprep.subr.mxu0 0.0
  %3800 = vmatpush1.msra.mxu0 %v1079
  %3801 = vmatprep.subr.mxu0 0.0
  %3802 = vmatpush1.msra.mxu0 %v1080
  %3803 = vmatprep.subr.mxu0 0.0
  %3804 = vmatpush1.msra.mxu0 %v1081
  %3805 = vmatprep.subr.mxu0 0.0
  %3806 = vmatpush1.msra.mxu0 %v1082
  %3807 = vmatprep.subr.mxu0 0.0
  %3808 = vmatpush1.msra.mxu0 %v1083
  %3809 = vmatprep.subr.mxu0 0.0
  %3810 = vmatpush1.msra.mxu0 %v1084
  %3811 = vmatprep.subr.mxu0 0.0
  %3812 = vmatpush1.msra.mxu0 %v1085
  %3813 = vmatprep.subr.mxu0 0.0
  %3814 = vmatpush1.msra.mxu0 %v1086
  %3815 = vmatprep.subr.mxu0 0.0
  %3816 = vmatpush1.msra.mxu0 %v1087
  %3817 = vmatprep.subr.mxu0 0.0
  %3818 = vmatpush1.msra.mxu0 %v1088
  %3819 = vmatprep.subr.mxu0 0.0
  %3820 = vmatpush1.msra.mxu0 %v1089
  %3821 = vmatprep.subr.mxu0 0.0
  %3822 = vmatpush1.msra.mxu0 %v1090
  %3823 = vmatprep.subr.mxu0 0.0
  %3824 = vmatpush1.msra.mxu0 %v1091
  %3825 = vmatprep.subr.mxu0 0.0
  %3826 = vmatpush1.msra.mxu0 %v1092
  %3827 = vmatprep.subr.mxu0 0.0
  %3828 = vmatpush1.msra.mxu0 %v1093
  %3829 = vmatprep.subr.mxu0 0.0
  %3830 = vmatpush1.msra.mxu0 %v1094
  %3831 = vmatprep.subr.mxu0 0.0
  %3832 = vmatpush1.msra.mxu0 %v1242
  %3833 = vmatprep.subr.mxu0 0.0
  %3834 = vmatpush1.msra.mxu0 0.0
  %3835 = vmatprep.subr.mxu0 0.0
  %3836 = vmatpush1.msra.mxu0 0.0
  %3837 = vmatprep.subr.mxu0 0.0
  %3838 = vmatpush1.msra.mxu0 0.0
  %3839 = vmatprep.subr.mxu0 0.0
  %3840 = vmatpush1.msra.mxu0 0.0
  %3841 = vmatprep.subr.mxu0 0.0
  %3842 = vmatpush1.msra.mxu0 0.0
  %3843 = vmatprep.subr.mxu0 0.0
  %3844 = vmatpush1.msra.mxu0 0.0
  %3845 = vmatprep.subr.mxu0 0.0
  %3846 = vmatpush1.msra.mxu0 0.0
  %3847 = vmatprep.subr.mxu0 0.0
  %3848 = vmatpush1.msra.mxu0 0.0
  %3849 = vmatprep.subr.mxu0 0.0
  %3850 = vmatpush1.msra.mxu0 0.0
  %3851 = vmatprep.subr.mxu0 0.0
  %3852 = vmatpush1.msra.mxu0 0.0
  %3853 = vmatprep.mubr.f32.mxu0 %v3693
  %3854 = vmatmul.mubr.f32.gmra.mrb[0].mxu0 %v3684
  %v3855 = vpop.f32.mrb[0].mxu0
  %v3856 = vadd.f32 0.0, %v3855
  %v3857 = vpop.f32.mrb[0].mxu0
  %3858 = vmatprep.mubr.f32.mxu0 %v3696
  %3859 = vmatmul.mubr.f32.gmra.mrb[0].mxu0 %v3686
  %v3860 = vpop.f32.mrb[0].mxu0
  %v3861 = vadd.f32 0.0, %v3860
  %v3862 = vpop.f32.mrb[0].mxu0
  %3863 = vmatprep.mubr.f32.mxu0 %v3699
  %3864 = vmatmul.mubr.f32.gmra.mrb[0].mxu0 %v3688
  %v3865 = vpop.f32.mrb[0].mxu0
  %v3866 = vadd.f32 0.0, %v3865
  %v3867 = vpop.f32.mrb[0].mxu0
  %3868 = vmatprep.mubr.f32.mxu0 %v3702
  %3869 = vmatmul.mubr.f32.gmra.mrb[0].mxu0 %v3690
  %v3870 = vpop.f32.mrb[0].mxu0
  %v3871 = vadd.f32 0.0, %v3870
  %v3872 = vpop.f32.mrb[0].mxu0
  %3873 = vdwg.mxu0
  %s3874 = scalar_lea.vmem %s5, 96
  %v3875 = vld [vmem:[%s3874] sm:$0xff]
  %v3876 = vld [vmem:[%s3874 + $0x8] sm:$0xff]
  %v3878 = vsel %vm83, %v3771, 0
  %v3881 = vsel %vm83, %v3776, 0
  %v3884 = vsel %vm83, %v3781, 0
  %v3887 = vsel %vm83, %v3786, 0
  %3889 = vmatprep.subr.mxu0 0.0
  %3890 = vmatpush1.msra.mxu0 %v3875
  %3891 = vmatprep.subr.mxu0 0.0
  %3892 = vmatpush1.msra.mxu0 %v3876
  %3893 = vmatprep.subr.mxu0 0.0
  %3894 = vmatpush1.msra.mxu0 0.0
  %3895 = vmatprep.subr.mxu0 0.0
  %3896 = vmatpush1.msra.mxu0 0.0
  %3897 = vmatprep.subr.mxu0 0.0
  %3898 = vmatpush1.msra.mxu0 0.0
  %3899 = vmatprep.subr.mxu0 0.0
  %3900 = vmatpush1.msra.mxu0 0.0
  %3901 = vmatprep.subr.mxu0 0.0
  %3902 = vmatpush1.msra.mxu0 0.0
  %3903 = vmatprep.subr.mxu0 0.0
  %3904 = vmatpush1.msra.mxu0 0.0
  %3905 = vmatprep.subr.mxu0 0.0
  %3906 = vmatpush1.msra.mxu0 0.0
  %3907 = vmatprep.subr.mxu0 0.0
  %3908 = vmatpush1.msra.mxu0 0.0
  %3909 = vmatprep.subr.mxu0 0.0
  %3910 = vmatpush1.msra.mxu0 0.0
  %3911 = vmatprep.subr.mxu0 0.0
  %3912 = vmatpush1.msra.mxu0 0.0
  %3913 = vmatprep.subr.mxu0 0.0
  %3914 = vmatpush1.msra.mxu0 0.0
  %3915 = vmatprep.subr.mxu0 0.0
  %3916 = vmatpush1.msra.mxu0 0.0
  %3917 = vmatprep.subr.mxu0 0.0
  %3918 = vmatpush1.msra.mxu0 0.0
  %3919 = vmatprep.subr.mxu0 0.0
  %3920 = vmatpush1.msra.mxu0 0.0
  %3921 = vmatprep.subr.mxu0 0.0
  %3922 = vmatpush1.msra.mxu0 0.0
  %3923 = vmatprep.subr.mxu0 0.0
  %3924 = vmatpush1.msra.mxu0 0.0
  %3925 = vmatprep.subr.mxu0 0.0
  %3926 = vmatpush1.msra.mxu0 0.0
  %3927 = vmatprep.subr.mxu0 0.0
  %3928 = vmatpush1.msra.mxu0 0.0
  %3929 = vmatprep.subr.mxu0 0.0
  %3930 = vmatpush1.msra.mxu0 0.0
  %3931 = vmatprep.subr.mxu0 0.0
  %3932 = vmatpush1.msra.mxu0 0.0
  %3933 = vmatprep.subr.mxu0 0.0
  %3934 = vmatpush1.msra.mxu0 0.0
  %3935 = vmatprep.subr.mxu0 0.0
  %3936 = vmatpush1.msra.mxu0 0.0
  %3937 = vmatprep.subr.mxu0 0.0
  %3938 = vmatpush1.msra.mxu0 0.0
  %3939 = vmatprep.subr.mxu0 0.0
  %3940 = vmatpush1.msra.mxu0 0.0
  %3941 = vmatprep.subr.mxu0 0.0
  %3942 = vmatpush1.msra.mxu0 0.0
  %3943 = vmatprep.subr.mxu0 0.0
  %3944 = vmatpush1.msra.mxu0 0.0
  %3945 = vmatprep.subr.mxu0 0.0
  %3946 = vmatpush1.msra.mxu0 0.0
  %3947 = vmatprep.subr.mxu0 0.0
  %3948 = vmatpush1.msra.mxu0 0.0
  %3949 = vmatprep.subr.mxu0 0.0
  %3950 = vmatpush1.msra.mxu0 0.0
  %3951 = vmatprep.subr.mxu0 0.0
  %3952 = vmatpush1.msra.mxu0 0.0
  %3953 = vmatprep.mubr.f32.mxu0 0.0
  %3954 = vmatmul.mubr.f32.gmra.mrb[0].mxu0 %v3878
  %v3955 = vpop.f32.mrb[0].mxu0
  %v3956 = vadd.f32 0.0, %v3955
  %v3957 = vpop.f32.mrb[0].mxu0
  %3958 = vmatprep.mubr.f32.mxu0 0.0
  %3959 = vmatmul.mubr.f32.gmra.mrb[0].mxu0 %v3881
  %v3960 = vpop.f32.mrb[0].mxu0
  %v3961 = vadd.f32 0.0, %v3960
  %v3962 = vpop.f32.mrb[0].mxu0
  %3963 = vmatprep.mubr.f32.mxu0 0.0
  %3964 = vmatmul.mubr.f32.gmra.mrb[0].mxu0 %v3884
  %v3965 = vpop.f32.mrb[0].mxu0
  %v3966 = vadd.f32 0.0, %v3965
  %v3967 = vpop.f32.mrb[0].mxu0
  %3968 = vmatprep.mubr.f32.mxu0 0.0
  %3969 = vmatmul.mubr.f32.gmra.mrb[0].mxu0 %v3887
  %v3970 = vpop.f32.mrb[0].mxu0
  %v3971 = vadd.f32 0.0, %v3970
  %v3972 = vpop.f32.mrb[0].mxu0
  %3973 = vdwg.mxu0
  %v3975 = vsel %vm83, %v3856, 0
  %v3978 = vsel %vm83, %v3861, 0
  %v3981 = vsel %vm83, %v3866, 0
  %v3984 = vsel %vm83, %v3871, 0
  %3986 = vmatprep.subr.mxu0 0.0
  %3987 = vmatpush1.msra.mxu0 %v3875
  %3988 = vmatprep.subr.mxu0 0.0
  %3989 = vmatpush1.msra.mxu0 %v3876
  %3990 = vmatprep.subr.mxu0 0.0
  %3991 = vmatpush1.msra.mxu0 0.0
  %3992 = vmatprep.subr.mxu0 0.0
  %3993 = vmatpush1.msra.mxu0 0.0
  %3994 = vmatprep.subr.mxu0 0.0
  %3995 = vmatpush1.msra.mxu0 0.0
  %3996 = vmatprep.subr.mxu0 0.0
  %3997 = vmatpush1.msra.mxu0 0.0
  %3998 = vmatprep.subr.mxu0 0.0
  %3999 = vmatpush1.msra.mxu0 0.0
  %4000 = vmatprep.subr.mxu0 0.0
  %4001 = vmatpush1.msra.mxu0 0.0
  %4002 = vmatprep.subr.mxu0 0.0
  %4003 = vmatpush1.msra.mxu0 0.0
  %4004 = vmatprep.subr.mxu0 0.0
  %4005 = vmatpush1.msra.mxu0 0.0
  %4006 = vmatprep.subr.mxu0 0.0
  %4007 = vmatpush1.msra.mxu0 0.0
  %4008 = vmatprep.subr.mxu0 0.0
  %4009 = vmatpush1.msra.mxu0 0.0
  %4010 = vmatprep.subr.mxu0 0.0
  %4011 = vmatpush1.msra.mxu0 0.0
  %4012 = vmatprep.subr.mxu0 0.0
  %4013 = vmatpush1.msra.mxu0 0.0
  %4014 = vmatprep.subr.mxu0 0.0
  %4015 = vmatpush1.msra.mxu0 0.0
  %4016 = vmatprep.subr.mxu0 0.0
  %4017 = vmatpush1.msra.mxu0 0.0
  %4018 = vmatprep.subr.mxu0 0.0
  %4019 = vmatpush1.msra.mxu0 0.0
  %4020 = vmatprep.subr.mxu0 0.0
  %4021 = vmatpush1.msra.mxu0 0.0
  %4022 = vmatprep.subr.mxu0 0.0
  %4023 = vmatpush1.msra.mxu0 0.0
  %4024 = vmatprep.subr.mxu0 0.0
  %4025 = vmatpush1.msra.mxu0 0.0
  %4026 = vmatprep.subr.mxu0 0.0
  %4027 = vmatpush1.msra.mxu0 0.0
  %4028 = vmatprep.subr.mxu0 0.0
  %4029 = vmatpush1.msra.mxu0 0.0
  %4030 = vmatprep.subr.mxu0 0.0
  %4031 = vmatpush1.msra.mxu0 0.0
  %4032 = vmatprep.subr.mxu0 0.0
  %4033 = vmatpush1.msra.mxu0 0.0
  %4034 = vmatprep.subr.mxu0 0.0
  %4035 = vmatpush1.msra.mxu0 0.0
  %4036 = vmatprep.subr.mxu0 0.0
  %4037 = vmatpush1.msra.mxu0 0.0
  %4038 = vmatprep.subr.mxu0 0.0
  %4039 = vmatpush1.msra.mxu0 0.0
  %4040 = vmatprep.subr.mxu0 0.0
  %4041 = vmatpush1.msra.mxu0 0.0
  %4042 = vmatprep.subr.mxu0 0.0
  %4043 = vmatpush1.msra.mxu0 0.0
  %4044 = vmatprep.subr.mxu0 0.0
  %4045 = vmatpush1.msra.mxu0 0.0
  %4046 = vmatprep.subr.mxu0 0.0
  %4047 = vmatpush1.msra.mxu0 0.0
  %4048 = vmatprep.subr.mxu0 0.0
  %4049 = vmatpush1.msra.mxu0 0.0
  %4050 = vmatprep.mubr.f32.mxu0 0.0
  %4051 = vmatmul.mubr.f32.gmra.mrb[0].mxu0 %v3975
  %v4052 = vpop.f32.mrb[0].mxu0
  %v4053 = vadd.f32 0.0, %v4052
  %v4054 = vpop.f32.mrb[0].mxu0
  %4055 = vmatprep.mubr.f32.mxu0 0.0
  %4056 = vmatmul.mubr.f32.gmra.mrb[0].mxu0 %v3978
  %v4057 = vpop.f32.mrb[0].mxu0
  %v4058 = vadd.f32 0.0, %v4057
  %v4059 = vpop.f32.mrb[0].mxu0
  %4060 = vmatprep.mubr.f32.mxu0 0.0
  %4061 = vmatmul.mubr.f32.gmra.mrb[0].mxu0 %v3981
  %v4062 = vpop.f32.mrb[0].mxu0
  %v4063 = vadd.f32 0.0, %v4062
  %v4064 = vpop.f32.mrb[0].mxu0
  %4065 = vmatprep.mubr.f32.mxu0 0.0
  %4066 = vmatmul.mubr.f32.gmra.mrb[0].mxu0 %v3984
  %v4067 = vpop.f32.mrb[0].mxu0
  %v4068 = vadd.f32 0.0, %v4067
  %v4069 = vpop.f32.mrb[0].mxu0
  %4070 = vdwg.mxu0
  %v4071 = vadd.f32 %v3644, %v3956
  %v4072 = vadd.f32 %v3645, %v3961
  %v4073 = vadd.f32 %v3646, %v3966
  %v4074 = vadd.f32 %v3647, %v3971
  %v4075 = vadd.f32 %v3648, %v4053
  %v4076 = vadd.f32 %v3649, %v4058
  %v4077 = vadd.f32 %v3650, %v4063
  %v4078 = vadd.f32 %v3651, %v4068
  %v4079 = vadd.s32 %v1099, 16
  %v4080 = vadd.s32 %v1100, 16
  %v4081 = vadd.s32 %v1101, 16
  %v4082 = vadd.s32 %v1102, 16
  %4083 = vset.pattern.permute.xlu0 0
  %4084 = vperm.xlu0 %4083, %v4079
  %v4085 = vpop.permute.xlu0 %4084
  %4086 = vset.pattern.permute.xlu0 0
  %4087 = vperm.xlu0 %4086, %v4080
  %v4088 = vpop.permute.xlu0 %4087
  %4089 = vset.pattern.permute.xlu0 0
  %4090 = vperm.xlu0 %4089, %v4081
  %v4091 = vpop.permute.xlu0 %4090
  %4092 = vset.pattern.permute.xlu0 0
  %4093 = vperm.xlu0 %4092, %v4082
  %v4094 = vpop.permute.xlu0 %4093
  %vm4095 = vcmp.eq.s32.totalorder %v1097, %v4085
  %vm4096 = vcmp.eq.s32.totalorder %v1098, %v4085
  %vm4097 = vcmp.eq.s32.totalorder %v1097, %v4088
  %vm4098 = vcmp.eq.s32.totalorder %v1098, %v4088
  %vm4099 = vcmp.eq.s32.totalorder %v1097, %v4091
  %vm4100 = vcmp.eq.s32.totalorder %v1098, %v4091
  %vm4101 = vcmp.eq.s32.totalorder %v1097, %v4094
  %vm4102 = vcmp.eq.s32.totalorder %v1098, %v4094
  %v4103 = vsel %vm4095, 1, 0
  %v4104 = vsel %vm4096, 1, 0
  %v4105 = vsel %vm4097, 1, 0
  %v4106 = vsel %vm4098, 1, 0
  %v4107 = vsel %vm4099, 1, 0
  %v4108 = vsel %vm4100, 1, 0
  %v4109 = vsel %vm4101, 1, 0
  %v4110 = vsel %vm4102, 1, 0
  %v4111 = vcvt.s32.f32 %v4103
  %v4112 = vcvt.s32.f32 %v4104
  %v4113 = vcvt.s32.f32 %v4105
  %v4114 = vcvt.s32.f32 %v4106
  %v4115 = vcvt.s32.f32 %v4107
  %v4116 = vcvt.s32.f32 %v4108
  %v4117 = vcvt.s32.f32 %v4109
  %v4118 = vcvt.s32.f32 %v4110
  %v4120 = vsel %vm1139, %v4112, 0
  %v4123 = vsel %vm1139, %v4114, 0
  %v4126 = vsel %vm1139, %v4116, 0
  %v4129 = vsel %vm1139, %v4118, 0
  %4131 = vmatprep.subr.mxu0 0.0
  %4132 = vmatpush1.msra.mxu0 %v1052
  %4133 = vmatprep.subr.mxu0 0.0
  %4134 = vmatpush1.msra.mxu0 %v1053
  %4135 = vmatprep.subr.mxu0 0.0
  %4136 = vmatpush1.msra.mxu0 %v1054
  %4137 = vmatprep.subr.mxu0 0.0
  %4138 = vmatpush1.msra.mxu0 %v1055
  %4139 = vmatprep.subr.mxu0 0.0
  %4140 = vmatpush1.msra.mxu0 %v1056
  %4141 = vmatprep.subr.mxu0 0.0
  %4142 = vmatpush1.msra.mxu0 %v1057
  %4143 = vmatprep.subr.mxu0 0.0
  %4144 = vmatpush1.msra.mxu0 %v1058
  %4145 = vmatprep.subr.mxu0 0.0
  %4146 = vmatpush1.msra.mxu0 %v1059
  %4147 = vmatprep.subr.mxu0 0.0
  %4148 = vmatpush1.msra.mxu0 %v1060
  %4149 = vmatprep.subr.mxu0 0.0
  %4150 = vmatpush1.msra.mxu0 %v1061
  %4151 = vmatprep.subr.mxu0 0.0
  %4152 = vmatpush1.msra.mxu0 %v1062
  %4153 = vmatprep.subr.mxu0 0.0
  %4154 = vmatpush1.msra.mxu0 %v1063
  %4155 = vmatprep.subr.mxu0 0.0
  %4156 = vmatpush1.msra.mxu0 %v1064
  %4157 = vmatprep.subr.mxu0 0.0
  %4158 = vmatpush1.msra.mxu0 %v1065
  %4159 = vmatprep.subr.mxu0 0.0
  %4160 = vmatpush1.msra.mxu0 %v1066
  %4161 = vmatprep.subr.mxu0 0.0
  %4162 = vmatpush1.msra.mxu0 %v1067
  %4163 = vmatprep.subr.mxu0 0.0
  %4164 = vmatpush1.msra.mxu0 %v1068
  %4165 = vmatprep.subr.mxu0 0.0
  %4166 = vmatpush1.msra.mxu0 %v1069
  %4167 = vmatprep.subr.mxu0 0.0
  %4168 = vmatpush1.msra.mxu0 %v1070
  %4169 = vmatprep.subr.mxu0 0.0
  %4170 = vmatpush1.msra.mxu0 %v1071
  %4171 = vmatprep.subr.mxu0 0.0
  %4172 = vmatpush1.msra.mxu0 %v1072
  %4173 = vmatprep.subr.mxu0 0.0
  %4174 = vmatpush1.msra.mxu0 %v1154
  %4175 = vmatprep.subr.mxu0 0.0
  %4176 = vmatpush1.msra.mxu0 0.0
  %4177 = vmatprep.subr.mxu0 0.0
  %4178 = vmatpush1.msra.mxu0 0.0
  %4179 = vmatprep.subr.mxu0 0.0
  %4180 = vmatpush1.msra.mxu0 0.0
  %4181 = vmatprep.subr.mxu0 0.0
  %4182 = vmatpush1.msra.mxu0 0.0
  %4183 = vmatprep.subr.mxu0 0.0
  %4184 = vmatpush1.msra.mxu0 0.0
  %4185 = vmatprep.subr.mxu0 0.0
  %4186 = vmatpush1.msra.mxu0 0.0
  %4187 = vmatprep.subr.mxu0 0.0
  %4188 = vmatpush1.msra.mxu0 0.0
  %4189 = vmatprep.subr.mxu0 0.0
  %4190 = vmatpush1.msra.mxu0 0.0
  %4191 = vmatprep.subr.mxu0 0.0
  %4192 = vmatpush1.msra.mxu0 0.0
  %4193 = vmatprep.subr.mxu0 0.0
  %4194 = vmatpush1.msra.mxu0 0.0
  %4195 = vmatprep.mubr.f32.mxu0 %v4120
  %4196 = vmatmul.mubr.f32.gmra.mrb[0].mxu0 %v4111
  %v4197 = vpop.f32.mrb[0].mxu0
  %v4198 = vadd.f32 0.0, %v4197
  %v4199 = vpop.f32.mrb[0].mxu0
  %4200 = vmatprep.mubr.f32.mxu0 %v4123
  %4201 = vmatmul.mubr.f32.gmra.mrb[0].mxu0 %v4113
  %v4202 = vpop.f32.mrb[0].mxu0
  %v4203 = vadd.f32 0.0, %v4202
  %v4204 = vpop.f32.mrb[0].mxu0
  %4205 = vmatprep.mubr.f32.mxu0 %v4126
  %4206 = vmatmul.mubr.f32.gmra.mrb[0].mxu0 %v4115
  %v4207 = vpop.f32.mrb[0].mxu0
  %v4208 = vadd.f32 0.0, %v4207
  %v4209 = vpop.f32.mrb[0].mxu0
  %4210 = vmatprep.mubr.f32.mxu0 %v4129
  %4211 = vmatmul.mubr.f32.gmra.mrb[0].mxu0 %v4117
  %v4212 = vpop.f32.mrb[0].mxu0
  %v4213 = vadd.f32 0.0, %v4212
  %v4214 = vpop.f32.mrb[0].mxu0
  %4215 = vdwg.mxu0
  %4216 = vmatprep.subr.mxu0 0.0
  %4217 = vmatpush1.msra.mxu0 %v1074
  %4218 = vmatprep.subr.mxu0 0.0
  %4219 = vmatpush1.msra.mxu0 %v1075
  %4220 = vmatprep.subr.mxu0 0.0
  %4221 = vmatpush1.msra.mxu0 %v1076
  %4222 = vmatprep.subr.mxu0 0.0
  %4223 = vmatpush1.msra.mxu0 %v1077
  %4224 = vmatprep.subr.mxu0 0.0
  %4225 = vmatpush1.msra.mxu0 %v1078
  %4226 = vmatprep.subr.mxu0 0.0
  %4227 = vmatpush1.msra.mxu0 %v1079
  %4228 = vmatprep.subr.mxu0 0.0
  %4229 = vmatpush1.msra.mxu0 %v1080
  %4230 = vmatprep.subr.mxu0 0.0
  %4231 = vmatpush1.msra.mxu0 %v1081
  %4232 = vmatprep.subr.mxu0 0.0
  %4233 = vmatpush1.msra.mxu0 %v1082
  %4234 = vmatprep.subr.mxu0 0.0
  %4235 = vmatpush1.msra.mxu0 %v1083
  %4236 = vmatprep.subr.mxu0 0.0
  %4237 = vmatpush1.msra.mxu0 %v1084
  %4238 = vmatprep.subr.mxu0 0.0
  %4239 = vmatpush1.msra.mxu0 %v1085
  %4240 = vmatprep.subr.mxu0 0.0
  %4241 = vmatpush1.msra.mxu0 %v1086
  %4242 = vmatprep.subr.mxu0 0.0
  %4243 = vmatpush1.msra.mxu0 %v1087
  %4244 = vmatprep.subr.mxu0 0.0
  %4245 = vmatpush1.msra.mxu0 %v1088
  %4246 = vmatprep.subr.mxu0 0.0
  %4247 = vmatpush1.msra.mxu0 %v1089
  %4248 = vmatprep.subr.mxu0 0.0
  %4249 = vmatpush1.msra.mxu0 %v1090
  %4250 = vmatprep.subr.mxu0 0.0
  %4251 = vmatpush1.msra.mxu0 %v1091
  %4252 = vmatprep.subr.mxu0 0.0
  %4253 = vmatpush1.msra.mxu0 %v1092
  %4254 = vmatprep.subr.mxu0 0.0
  %4255 = vmatpush1.msra.mxu0 %v1093
  %4256 = vmatprep.subr.mxu0 0.0
  %4257 = vmatpush1.msra.mxu0 %v1094
  %4258 = vmatprep.subr.mxu0 0.0
  %4259 = vmatpush1.msra.mxu0 %v1242
  %4260 = vmatprep.subr.mxu0 0.0
  %4261 = vmatpush1.msra.mxu0 0.0
  %4262 = vmatprep.subr.mxu0 0.0
  %4263 = vmatpush1.msra.mxu0 0.0
  %4264 = vmatprep.subr.mxu0 0.0
  %4265 = vmatpush1.msra.mxu0 0.0
  %4266 = vmatprep.subr.mxu0 0.0
  %4267 = vmatpush1.msra.mxu0 0.0
  %4268 = vmatprep.subr.mxu0 0.0
  %4269 = vmatpush1.msra.mxu0 0.0
  %4270 = vmatprep.subr.mxu0 0.0
  %4271 = vmatpush1.msra.mxu0 0.0
  %4272 = vmatprep.subr.mxu0 0.0
  %4273 = vmatpush1.msra.mxu0 0.0
  %4274 = vmatprep.subr.mxu0 0.0
  %4275 = vmatpush1.msra.mxu0 0.0
  %4276 = vmatprep.subr.mxu0 0.0
  %4277 = vmatpush1.msra.mxu0 0.0
  %4278 = vmatprep.subr.mxu0 0.0
  %4279 = vmatpush1.msra.mxu0 0.0
  %4280 = vmatprep.mubr.f32.mxu0 %v4120
  %4281 = vmatmul.mubr.f32.gmra.mrb[0].mxu0 %v4111
  %v4282 = vpop.f32.mrb[0].mxu0
  %v4283 = vadd.f32 0.0, %v4282
  %v4284 = vpop.f32.mrb[0].mxu0
  %4285 = vmatprep.mubr.f32.mxu0 %v4123
  %4286 = vmatmul.mubr.f32.gmra.mrb[0].mxu0 %v4113
  %v4287 = vpop.f32.mrb[0].mxu0
  %v4288 = vadd.f32 0.0, %v4287
  %v4289 = vpop.f32.mrb[0].mxu0
  %4290 = vmatprep.mubr.f32.mxu0 %v4126
  %4291 = vmatmul.mubr.f32.gmra.mrb[0].mxu0 %v4115
  %v4292 = vpop.f32.mrb[0].mxu0
  %v4293 = vadd.f32 0.0, %v4292
  %v4294 = vpop.f32.mrb[0].mxu0
  %4295 = vmatprep.mubr.f32.mxu0 %v4129
  %4296 = vmatmul.mubr.f32.gmra.mrb[0].mxu0 %v4117
  %v4297 = vpop.f32.mrb[0].mxu0
  %v4298 = vadd.f32 0.0, %v4297
  %v4299 = vpop.f32.mrb[0].mxu0
  %4300 = vdwg.mxu0
  %s4301 = scalar_lea.vmem %s5, 112
  %v4302 = vld [vmem:[%s4301] sm:$0xff]
  %v4303 = vld [vmem:[%s4301 + $0x8] sm:$0xff]
  %v4305 = vsel %vm83, %v4198, 0
  %v4308 = vsel %vm83, %v4203, 0
  %v4311 = vsel %vm83, %v4208, 0
  %v4314 = vsel %vm83, %v4213, 0
  %4316 = vmatprep.subr.mxu0 0.0
  %4317 = vmatpush1.msra.mxu0 %v4302
  %4318 = vmatprep.subr.mxu0 0.0
  %4319 = vmatpush1.msra.mxu0 %v4303
  %4320 = vmatprep.subr.mxu0 0.0
  %4321 = vmatpush1.msra.mxu0 0.0
  %4322 = vmatprep.subr.mxu0 0.0
  %4323 = vmatpush1.msra.mxu0 0.0
  %4324 = vmatprep.subr.mxu0 0.0
  %4325 = vmatpush1.msra.mxu0 0.0
  %4326 = vmatprep.subr.mxu0 0.0
  %4327 = vmatpush1.msra.mxu0 0.0
  %4328 = vmatprep.subr.mxu0 0.0
  %4329 = vmatpush1.msra.mxu0 0.0
  %4330 = vmatprep.subr.mxu0 0.0
  %4331 = vmatpush1.msra.mxu0 0.0
  %4332 = vmatprep.subr.mxu0 0.0
  %4333 = vmatpush1.msra.mxu0 0.0
  %4334 = vmatprep.subr.mxu0 0.0
  %4335 = vmatpush1.msra.mxu0 0.0
  %4336 = vmatprep.subr.mxu0 0.0
  %4337 = vmatpush1.msra.mxu0 0.0
  %4338 = vmatprep.subr.mxu0 0.0
  %4339 = vmatpush1.msra.mxu0 0.0
  %4340 = vmatprep.subr.mxu0 0.0
  %4341 = vmatpush1.msra.mxu0 0.0
  %4342 = vmatprep.subr.mxu0 0.0
  %4343 = vmatpush1.msra.mxu0 0.0
  %4344 = vmatprep.subr.mxu0 0.0
  %4345 = vmatpush1.msra.mxu0 0.0
  %4346 = vmatprep.subr.mxu0 0.0
  %4347 = vmatpush1.msra.mxu0 0.0
  %4348 = vmatprep.subr.mxu0 0.0
  %4349 = vmatpush1.msra.mxu0 0.0
  %4350 = vmatprep.subr.mxu0 0.0
  %4351 = vmatpush1.msra.mxu0 0.0
  %4352 = vmatprep.subr.mxu0 0.0
  %4353 = vmatpush1.msra.mxu0 0.0
  %4354 = vmatprep.subr.mxu0 0.0
  %4355 = vmatpush1.msra.mxu0 0.0
  %4356 = vmatprep.subr.mxu0 0.0
  %4357 = vmatpush1.msra.mxu0 0.0
  %4358 = vmatprep.subr.mxu0 0.0
  %4359 = vmatpush1.msra.mxu0 0.0
  %4360 = vmatprep.subr.mxu0 0.0
  %4361 = vmatpush1.msra.mxu0 0.0
  %4362 = vmatprep.subr.mxu0 0.0
  %4363 = vmatpush1.msra.mxu0 0.0
  %4364 = vmatprep.subr.mxu0 0.0
  %4365 = vmatpush1.msra.mxu0 0.0
  %4366 = vmatprep.subr.mxu0 0.0
  %4367 = vmatpush1.msra.mxu0 0.0
  %4368 = vmatprep.subr.mxu0 0.0
  %4369 = vmatpush1.msra.mxu0 0.0
  %4370 = vmatprep.subr.mxu0 0.0
  %4371 = vmatpush1.msra.mxu0 0.0
  %4372 = vmatprep.subr.mxu0 0.0
  %4373 = vmatpush1.msra.mxu0 0.0
  %4374 = vmatprep.subr.mxu0 0.0
  %4375 = vmatpush1.msra.mxu0 0.0
  %4376 = vmatprep.subr.mxu0 0.0
  %4377 = vmatpush1.msra.mxu0 0.0
  %4378 = vmatprep.subr.mxu0 0.0
  %4379 = vmatpush1.msra.mxu0 0.0
  %4380 = vmatprep.mubr.f32.mxu0 0.0
  %4381 = vmatmul.mubr.f32.gmra.mrb[0].mxu0 %v4305
  %v4382 = vpop.f32.mrb[0].mxu0
  %v4383 = vadd.f32 0.0, %v4382
  %v4384 = vpop.f32.mrb[0].mxu0
  %4385 = vmatprep.mubr.f32.mxu0 0.0
  %4386 = vmatmul.mubr.f32.gmra.mrb[0].mxu0 %v4308
  %v4387 = vpop.f32.mrb[0].mxu0
  %v4388 = vadd.f32 0.0, %v4387
  %v4389 = vpop.f32.mrb[0].mxu0
  %4390 = vmatprep.mubr.f32.mxu0 0.0
  %4391 = vmatmul.mubr.f32.gmra.mrb[0].mxu0 %v4311
  %v4392 = vpop.f32.mrb[0].mxu0
  %v4393 = vadd.f32 0.0, %v4392
  %v4394 = vpop.f32.mrb[0].mxu0
  %4395 = vmatprep.mubr.f32.mxu0 0.0
  %4396 = vmatmul.mubr.f32.gmra.mrb[0].mxu0 %v4314
  %v4397 = vpop.f32.mrb[0].mxu0
  %v4398 = vadd.f32 0.0, %v4397
  %v4399 = vpop.f32.mrb[0].mxu0
  %4400 = vdwg.mxu0
  %v4402 = vsel %vm83, %v4283, 0
  %v4405 = vsel %vm83, %v4288, 0
  %v4408 = vsel %vm83, %v4293, 0
  %v4411 = vsel %vm83, %v4298, 0
  %4413 = vmatprep.subr.mxu0 0.0
  %4414 = vmatpush1.msra.mxu0 %v4302
  %4415 = vmatprep.subr.mxu0 0.0
  %4416 = vmatpush1.msra.mxu0 %v4303
  %4417 = vmatprep.subr.mxu0 0.0
  %4418 = vmatpush1.msra.mxu0 0.0
  %4419 = vmatprep.subr.mxu0 0.0
  %4420 = vmatpush1.msra.mxu0 0.0
  %4421 = vmatprep.subr.mxu0 0.0
  %4422 = vmatpush1.msra.mxu0 0.0
  %4423 = vmatprep.subr.mxu0 0.0
  %4424 = vmatpush1.msra.mxu0 0.0
  %4425 = vmatprep.subr.mxu0 0.0
  %4426 = vmatpush1.msra.mxu0 0.0
  %4427 = vmatprep.subr.mxu0 0.0
  %4428 = vmatpush1.msra.mxu0 0.0
  %4429 = vmatprep.subr.mxu0 0.0
  %4430 = vmatpush1.msra.mxu0 0.0
  %4431 = vmatprep.subr.mxu0 0.0
  %4432 = vmatpush1.msra.mxu0 0.0
  %4433 = vmatprep.subr.mxu0 0.0
  %4434 = vmatpush1.msra.mxu0 0.0
  %4435 = vmatprep.subr.mxu0 0.0
  %4436 = vmatpush1.msra.mxu0 0.0
  %4437 = vmatprep.subr.mxu0 0.0
  %4438 = vmatpush1.msra.mxu0 0.0
  %4439 = vmatprep.subr.mxu0 0.0
  %4440 = vmatpush1.msra.mxu0 0.0
  %4441 = vmatprep.subr.mxu0 0.0
  %4442 = vmatpush1.msra.mxu0 0.0
  %4443 = vmatprep.subr.mxu0 0.0
  %4444 = vmatpush1.msra.mxu0 0.0
  %4445 = vmatprep.subr.mxu0 0.0
  %4446 = vmatpush1.msra.mxu0 0.0
  %4447 = vmatprep.subr.mxu0 0.0
  %4448 = vmatpush1.msra.mxu0 0.0
  %4449 = vmatprep.subr.mxu0 0.0
  %4450 = vmatpush1.msra.mxu0 0.0
  %4451 = vmatprep.subr.mxu0 0.0
  %4452 = vmatpush1.msra.mxu0 0.0
  %4453 = vmatprep.subr.mxu0 0.0
  %4454 = vmatpush1.msra.mxu0 0.0
  %4455 = vmatprep.subr.mxu0 0.0
  %4456 = vmatpush1.msra.mxu0 0.0
  %4457 = vmatprep.subr.mxu0 0.0
  %4458 = vmatpush1.msra.mxu0 0.0
  %4459 = vmatprep.subr.mxu0 0.0
  %4460 = vmatpush1.msra.mxu0 0.0
  %4461 = vmatprep.subr.mxu0 0.0
  %4462 = vmatpush1.msra.mxu0 0.0
  %4463 = vmatprep.subr.mxu0 0.0
  %4464 = vmatpush1.msra.mxu0 0.0
  %4465 = vmatprep.subr.mxu0 0.0
  %4466 = vmatpush1.msra.mxu0 0.0
  %4467 = vmatprep.subr.mxu0 0.0
  %4468 = vmatpush1.msra.mxu0 0.0
  %4469 = vmatprep.subr.mxu0 0.0
  %4470 = vmatpush1.msra.mxu0 0.0
  %4471 = vmatprep.subr.mxu0 0.0
  %4472 = vmatpush1.msra.mxu0 0.0
  %4473 = vmatprep.subr.mxu0 0.0
  %4474 = vmatpush1.msra.mxu0 0.0
  %4475 = vmatprep.subr.mxu0 0.0
  %4476 = vmatpush1.msra.mxu0 0.0
  %4477 = vmatprep.mubr.f32.mxu0 0.0
  %4478 = vmatmul.mubr.f32.gmra.mrb[0].mxu0 %v4402
  %v4479 = vpop.f32.mrb[0].mxu0
  %v4480 = vadd.f32 0.0, %v4479
  %v4481 = vpop.f32.mrb[0].mxu0
  %4482 = vmatprep.mubr.f32.mxu0 0.0
  %4483 = vmatmul.mubr.f32.gmra.mrb[0].mxu0 %v4405
  %v4484 = vpop.f32.mrb[0].mxu0
  %v4485 = vadd.f32 0.0, %v4484
  %v4486 = vpop.f32.mrb[0].mxu0
  %4487 = vmatprep.mubr.f32.mxu0 0.0
  %4488 = vmatmul.mubr.f32.gmra.mrb[0].mxu0 %v4408
  %v4489 = vpop.f32.mrb[0].mxu0
  %v4490 = vadd.f32 0.0, %v4489
  %v4491 = vpop.f32.mrb[0].mxu0
  %4492 = vmatprep.mubr.f32.mxu0 0.0
  %4493 = vmatmul.mubr.f32.gmra.mrb[0].mxu0 %v4411
  %v4494 = vpop.f32.mrb[0].mxu0
  %v4495 = vadd.f32 0.0, %v4494
  %v4496 = vpop.f32.mrb[0].mxu0
  %4497 = vdwg.mxu0
  %v4498 = vadd.f32 %v4071, %v4383
  %v4499 = vadd.f32 %v4072, %v4388
  %v4500 = vadd.f32 %v4073, %v4393
  %v4501 = vadd.f32 %v4074, %v4398
  %v4502 = vadd.f32 %v4075, %v4480
  %v4503 = vadd.f32 %v4076, %v4485
  %v4504 = vadd.f32 %v4077, %v4490
  %v4505 = vadd.f32 %v4078, %v4495
  %v4506 = vadd.s32 %v1099, 26
  %v4507 = vadd.s32 %v1100, 26
  %v4508 = vadd.s32 %v1101, 26
  %v4509 = vadd.s32 %v1102, 26
  %4510 = vset.pattern.permute.xlu0 0
  %4511 = vperm.xlu0 %4510, %v4506
  %v4512 = vpop.permute.xlu0 %4511
  %4513 = vset.pattern.permute.xlu0 0
  %4514 = vperm.xlu0 %4513, %v4507
  %v4515 = vpop.permute.xlu0 %4514
  %4516 = vset.pattern.permute.xlu0 0
  %4517 = vperm.xlu0 %4516, %v4508
  %v4518 = vpop.permute.xlu0 %4517
  %4519 = vset.pattern.permute.xlu0 0
  %4520 = vperm.xlu0 %4519, %v4509
  %v4521 = vpop.permute.xlu0 %4520
  %vm4522 = vcmp.eq.s32.totalorder %v1097, %v4512
  %vm4523 = vcmp.eq.s32.totalorder %v1098, %v4512
  %vm4524 = vcmp.eq.s32.totalorder %v1097, %v4515
  %vm4525 = vcmp.eq.s32.totalorder %v1098, %v4515
  %vm4526 = vcmp.eq.s32.totalorder %v1097, %v4518
  %vm4527 = vcmp.eq.s32.totalorder %v1098, %v4518
  %vm4528 = vcmp.eq.s32.totalorder %v1097, %v4521
  %vm4529 = vcmp.eq.s32.totalorder %v1098, %v4521
  %v4530 = vsel %vm4522, 1, 0
  %v4531 = vsel %vm4523, 1, 0
  %v4532 = vsel %vm4524, 1, 0
  %v4533 = vsel %vm4525, 1, 0
  %v4534 = vsel %vm4526, 1, 0
  %v4535 = vsel %vm4527, 1, 0
  %v4536 = vsel %vm4528, 1, 0
  %v4537 = vsel %vm4529, 1, 0
  %v4538 = vcvt.s32.f32 %v4530
  %v4539 = vcvt.s32.f32 %v4531
  %v4540 = vcvt.s32.f32 %v4532
  %v4541 = vcvt.s32.f32 %v4533
  %v4542 = vcvt.s32.f32 %v4534
  %v4543 = vcvt.s32.f32 %v4535
  %v4544 = vcvt.s32.f32 %v4536
  %v4545 = vcvt.s32.f32 %v4537
  %v4547 = vsel %vm1139, %v4539, 0
  %v4550 = vsel %vm1139, %v4541, 0
  %v4553 = vsel %vm1139, %v4543, 0
  %v4556 = vsel %vm1139, %v4545, 0
  %4558 = vmatprep.subr.mxu0 0.0
  %4559 = vmatpush1.msra.mxu0 %v1052
  %4560 = vmatprep.subr.mxu0 0.0
  %4561 = vmatpush1.msra.mxu0 %v1053
  %4562 = vmatprep.subr.mxu0 0.0
  %4563 = vmatpush1.msra.mxu0 %v1054
  %4564 = vmatprep.subr.mxu0 0.0
  %4565 = vmatpush1.msra.mxu0 %v1055
  %4566 = vmatprep.subr.mxu0 0.0
  %4567 = vmatpush1.msra.mxu0 %v1056
  %4568 = vmatprep.subr.mxu0 0.0
  %4569 = vmatpush1.msra.mxu0 %v1057
  %4570 = vmatprep.subr.mxu0 0.0
  %4571 = vmatpush1.msra.mxu0 %v1058
  %4572 = vmatprep.subr.mxu0 0.0
  %4573 = vmatpush1.msra.mxu0 %v1059
  %4574 = vmatprep.subr.mxu0 0.0
  %4575 = vmatpush1.msra.mxu0 %v1060
  %4576 = vmatprep.subr.mxu0 0.0
  %4577 = vmatpush1.msra.mxu0 %v1061
  %4578 = vmatprep.subr.mxu0 0.0
  %4579 = vmatpush1.msra.mxu0 %v1062
  %4580 = vmatprep.subr.mxu0 0.0
  %4581 = vmatpush1.msra.mxu0 %v1063
  %4582 = vmatprep.subr.mxu0 0.0
  %4583 = vmatpush1.msra.mxu0 %v1064
  %4584 = vmatprep.subr.mxu0 0.0
  %4585 = vmatpush1.msra.mxu0 %v1065
  %4586 = vmatprep.subr.mxu0 0.0
  %4587 = vmatpush1.msra.mxu0 %v1066
  %4588 = vmatprep.subr.mxu0 0.0
  %4589 = vmatpush1.msra.mxu0 %v1067
  %4590 = vmatprep.subr.mxu0 0.0
  %4591 = vmatpush1.msra.mxu0 %v1068
  %4592 = vmatprep.subr.mxu0 0.0
  %4593 = vmatpush1.msra.mxu0 %v1069
  %4594 = vmatprep.subr.mxu0 0.0
  %4595 = vmatpush1.msra.mxu0 %v1070
  %4596 = vmatprep.subr.mxu0 0.0
  %4597 = vmatpush1.msra.mxu0 %v1071
  %4598 = vmatprep.subr.mxu0 0.0
  %4599 = vmatpush1.msra.mxu0 %v1072
  %4600 = vmatprep.subr.mxu0 0.0
  %4601 = vmatpush1.msra.mxu0 %v1154
  %4602 = vmatprep.subr.mxu0 0.0
  %4603 = vmatpush1.msra.mxu0 0.0
  %4604 = vmatprep.subr.mxu0 0.0
  %4605 = vmatpush1.msra.mxu0 0.0
  %4606 = vmatprep.subr.mxu0 0.0
  %4607 = vmatpush1.msra.mxu0 0.0
  %4608 = vmatprep.subr.mxu0 0.0
  %4609 = vmatpush1.msra.mxu0 0.0
  %4610 = vmatprep.subr.mxu0 0.0
  %4611 = vmatpush1.msra.mxu0 0.0
  %4612 = vmatprep.subr.mxu0 0.0
  %4613 = vmatpush1.msra.mxu0 0.0
  %4614 = vmatprep.subr.mxu0 0.0
  %4615 = vmatpush1.msra.mxu0 0.0
  %4616 = vmatprep.subr.mxu0 0.0
  %4617 = vmatpush1.msra.mxu0 0.0
  %4618 = vmatprep.subr.mxu0 0.0
  %4619 = vmatpush1.msra.mxu0 0.0
  %4620 = vmatprep.subr.mxu0 0.0
  %4621 = vmatpush1.msra.mxu0 0.0
  %4622 = vmatprep.mubr.f32.mxu0 %v4547
  %4623 = vmatmul.mubr.f32.gmra.mrb[0].mxu0 %v4538
  %v4624 = vpop.f32.mrb[0].mxu0
  %v4625 = vadd.f32 0.0, %v4624
  %v4626 = vpop.f32.mrb[0].mxu0
  %4627 = vmatprep.mubr.f32.mxu0 %v4550
  %4628 = vmatmul.mubr.f32.gmra.mrb[0].mxu0 %v4540
  %v4629 = vpop.f32.mrb[0].mxu0
  %v4630 = vadd.f32 0.0, %v4629
  %v4631 = vpop.f32.mrb[0].mxu0
  %4632 = vmatprep.mubr.f32.mxu0 %v4553
  %4633 = vmatmul.mubr.f32.gmra.mrb[0].mxu0 %v4542
  %v4634 = vpop.f32.mrb[0].mxu0
  %v4635 = vadd.f32 0.0, %v4634
  %v4636 = vpop.f32.mrb[0].mxu0
  %4637 = vmatprep.mubr.f32.mxu0 %v4556
  %4638 = vmatmul.mubr.f32.gmra.mrb[0].mxu0 %v4544
  %v4639 = vpop.f32.mrb[0].mxu0
  %v4640 = vadd.f32 0.0, %v4639
  %v4641 = vpop.f32.mrb[0].mxu0
  %4642 = vdwg.mxu0
  %4643 = vmatprep.subr.mxu0 0.0
  %4644 = vmatpush1.msra.mxu0 %v1074
  %4645 = vmatprep.subr.mxu0 0.0
  %4646 = vmatpush1.msra.mxu0 %v1075
  %4647 = vmatprep.subr.mxu0 0.0
  %4648 = vmatpush1.msra.mxu0 %v1076
  %4649 = vmatprep.subr.mxu0 0.0
  %4650 = vmatpush1.msra.mxu0 %v1077
  %4651 = vmatprep.subr.mxu0 0.0
  %4652 = vmatpush1.msra.mxu0 %v1078
  %4653 = vmatprep.subr.mxu0 0.0
  %4654 = vmatpush1.msra.mxu0 %v1079
  %4655 = vmatprep.subr.mxu0 0.0
  %4656 = vmatpush1.msra.mxu0 %v1080
  %4657 = vmatprep.subr.mxu0 0.0
  %4658 = vmatpush1.msra.mxu0 %v1081
  %4659 = vmatprep.subr.mxu0 0.0
  %4660 = vmatpush1.msra.mxu0 %v1082
  %4661 = vmatprep.subr.mxu0 0.0
  %4662 = vmatpush1.msra.mxu0 %v1083
  %4663 = vmatprep.subr.mxu0 0.0
  %4664 = vmatpush1.msra.mxu0 %v1084
  %4665 = vmatprep.subr.mxu0 0.0
  %4666 = vmatpush1.msra.mxu0 %v1085
  %4667 = vmatprep.subr.mxu0 0.0
  %4668 = vmatpush1.msra.mxu0 %v1086
  %4669 = vmatprep.subr.mxu0 0.0
  %4670 = vmatpush1.msra.mxu0 %v1087
  %4671 = vmatprep.subr.mxu0 0.0
  %4672 = vmatpush1.msra.mxu0 %v1088
  %4673 = vmatprep.subr.mxu0 0.0
  %4674 = vmatpush1.msra.mxu0 %v1089
  %4675 = vmatprep.subr.mxu0 0.0
  %4676 = vmatpush1.msra.mxu0 %v1090
  %4677 = vmatprep.subr.mxu0 0.0
  %4678 = vmatpush1.msra.mxu0 %v1091
  %4679 = vmatprep.subr.mxu0 0.0
  %4680 = vmatpush1.msra.mxu0 %v1092
  %4681 = vmatprep.subr.mxu0 0.0
  %4682 = vmatpush1.msra.mxu0 %v1093
  %4683 = vmatprep.subr.mxu0 0.0
  %4684 = vmatpush1.msra.mxu0 %v1094
  %4685 = vmatprep.subr.mxu0 0.0
  %4686 = vmatpush1.msra.mxu0 %v1242
  %4687 = vmatprep.subr.mxu0 0.0
  %4688 = vmatpush1.msra.mxu0 0.0
  %4689 = vmatprep.subr.mxu0 0.0
  %4690 = vmatpush1.msra.mxu0 0.0
  %4691 = vmatprep.subr.mxu0 0.0
  %4692 = vmatpush1.msra.mxu0 0.0
  %4693 = vmatprep.subr.mxu0 0.0
  %4694 = vmatpush1.msra.mxu0 0.0
  %4695 = vmatprep.subr.mxu0 0.0
  %4696 = vmatpush1.msra.mxu0 0.0
  %4697 = vmatprep.subr.mxu0 0.0
  %4698 = vmatpush1.msra.mxu0 0.0
  %4699 = vmatprep.subr.mxu0 0.0
  %4700 = vmatpush1.msra.mxu0 0.0
  %4701 = vmatprep.subr.mxu0 0.0
  %4702 = vmatpush1.msra.mxu0 0.0
  %4703 = vmatprep.subr.mxu0 0.0
  %4704 = vmatpush1.msra.mxu0 0.0
  %4705 = vmatprep.subr.mxu0 0.0
  %4706 = vmatpush1.msra.mxu0 0.0
  %4707 = vmatprep.mubr.f32.mxu0 %v4547
  %4708 = vmatmul.mubr.f32.gmra.mrb[0].mxu0 %v4538
  %v4709 = vpop.f32.mrb[0].mxu0
  %v4710 = vadd.f32 0.0, %v4709
  %v4711 = vpop.f32.mrb[0].mxu0
  %4712 = vmatprep.mubr.f32.mxu0 %v4550
  %4713 = vmatmul.mubr.f32.gmra.mrb[0].mxu0 %v4540
  %v4714 = vpop.f32.mrb[0].mxu0
  %v4715 = vadd.f32 0.0, %v4714
  %v4716 = vpop.f32.mrb[0].mxu0
  %4717 = vmatprep.mubr.f32.mxu0 %v4553
  %4718 = vmatmul.mubr.f32.gmra.mrb[0].mxu0 %v4542
  %v4719 = vpop.f32.mrb[0].mxu0
  %v4720 = vadd.f32 0.0, %v4719
  %v4721 = vpop.f32.mrb[0].mxu0
  %4722 = vmatprep.mubr.f32.mxu0 %v4556
  %4723 = vmatmul.mubr.f32.gmra.mrb[0].mxu0 %v4544
  %v4724 = vpop.f32.mrb[0].mxu0
  %v4725 = vadd.f32 0.0, %v4724
  %v4726 = vpop.f32.mrb[0].mxu0
  %4727 = vdwg.mxu0
  %s4728 = scalar_lea.vmem %s5, 128
  %v4729 = vld [vmem:[%s4728] sm:$0xff]
  %v4730 = vld [vmem:[%s4728 + $0x8] sm:$0xff]
  %v4732 = vsel %vm83, %v4625, 0
  %v4735 = vsel %vm83, %v4630, 0
  %v4738 = vsel %vm83, %v4635, 0
  %v4741 = vsel %vm83, %v4640, 0
  %4743 = vmatprep.subr.mxu0 0.0
  %4744 = vmatpush1.msra.mxu0 %v4729
  %4745 = vmatprep.subr.mxu0 0.0
  %4746 = vmatpush1.msra.mxu0 %v4730
  %4747 = vmatprep.subr.mxu0 0.0
  %4748 = vmatpush1.msra.mxu0 0.0
  %4749 = vmatprep.subr.mxu0 0.0
  %4750 = vmatpush1.msra.mxu0 0.0
  %4751 = vmatprep.subr.mxu0 0.0
  %4752 = vmatpush1.msra.mxu0 0.0
  %4753 = vmatprep.subr.mxu0 0.0
  %4754 = vmatpush1.msra.mxu0 0.0
  %4755 = vmatprep.subr.mxu0 0.0
  %4756 = vmatpush1.msra.mxu0 0.0
  %4757 = vmatprep.subr.mxu0 0.0
  %4758 = vmatpush1.msra.mxu0 0.0
  %4759 = vmatprep.subr.mxu0 0.0
  %4760 = vmatpush1.msra.mxu0 0.0
  %4761 = vmatprep.subr.mxu0 0.0
  %4762 = vmatpush1.msra.mxu0 0.0
  %4763 = vmatprep.subr.mxu0 0.0
  %4764 = vmatpush1.msra.mxu0 0.0
  %4765 = vmatprep.subr.mxu0 0.0
  %4766 = vmatpush1.msra.mxu0 0.0
  %4767 = vmatprep.subr.mxu0 0.0
  %4768 = vmatpush1.msra.mxu0 0.0
  %4769 = vmatprep.subr.mxu0 0.0
  %4770 = vmatpush1.msra.mxu0 0.0
  %4771 = vmatprep.subr.mxu0 0.0
  %4772 = vmatpush1.msra.mxu0 0.0
  %4773 = vmatprep.subr.mxu0 0.0
  %4774 = vmatpush1.msra.mxu0 0.0
  %4775 = vmatprep.subr.mxu0 0.0
  %4776 = vmatpush1.msra.mxu0 0.0
  %4777 = vmatprep.subr.mxu0 0.0
  %4778 = vmatpush1.msra.mxu0 0.0
  %4779 = vmatprep.subr.mxu0 0.0
  %4780 = vmatpush1.msra.mxu0 0.0
  %4781 = vmatprep.subr.mxu0 0.0
  %4782 = vmatpush1.msra.mxu0 0.0
  %4783 = vmatprep.subr.mxu0 0.0
  %4784 = vmatpush1.msra.mxu0 0.0
  %4785 = vmatprep.subr.mxu0 0.0
  %4786 = vmatpush1.msra.mxu0 0.0
  %4787 = vmatprep.subr.mxu0 0.0
  %4788 = vmatpush1.msra.mxu0 0.0
  %4789 = vmatprep.subr.mxu0 0.0
  %4790 = vmatpush1.msra.mxu0 0.0
  %4791 = vmatprep.subr.mxu0 0.0
  %4792 = vmatpush1.msra.mxu0 0.0
  %4793 = vmatprep.subr.mxu0 0.0
  %4794 = vmatpush1.msra.mxu0 0.0
  %4795 = vmatprep.subr.mxu0 0.0
  %4796 = vmatpush1.msra.mxu0 0.0
  %4797 = vmatprep.subr.mxu0 0.0
  %4798 = vmatpush1.msra.mxu0 0.0
  %4799 = vmatprep.subr.mxu0 0.0
  %4800 = vmatpush1.msra.mxu0 0.0
  %4801 = vmatprep.subr.mxu0 0.0
  %4802 = vmatpush1.msra.mxu0 0.0
  %4803 = vmatprep.subr.mxu0 0.0
  %4804 = vmatpush1.msra.mxu0 0.0
  %4805 = vmatprep.subr.mxu0 0.0
  %4806 = vmatpush1.msra.mxu0 0.0
  %4807 = vmatprep.mubr.f32.mxu0 0.0
  %4808 = vmatmul.mubr.f32.gmra.mrb[0].mxu0 %v4732
  %v4809 = vpop.f32.mrb[0].mxu0
  %v4810 = vadd.f32 0.0, %v4809
  %v4811 = vpop.f32.mrb[0].mxu0
  %4812 = vmatprep.mubr.f32.mxu0 0.0
  %4813 = vmatmul.mubr.f32.gmra.mrb[0].mxu0 %v4735
  %v4814 = vpop.f32.mrb[0].mxu0
  %v4815 = vadd.f32 0.0, %v4814
  %v4816 = vpop.f32.mrb[0].mxu0
  %4817 = vmatprep.mubr.f32.mxu0 0.0
  %4818 = vmatmul.mubr.f32.gmra.mrb[0].mxu0 %v4738
  %v4819 = vpop.f32.mrb[0].mxu0
  %v4820 = vadd.f32 0.0, %v4819
  %v4821 = vpop.f32.mrb[0].mxu0
  %4822 = vmatprep.mubr.f32.mxu0 0.0
  %4823 = vmatmul.mubr.f32.gmra.mrb[0].mxu0 %v4741
  %v4824 = vpop.f32.mrb[0].mxu0
  %v4825 = vadd.f32 0.0, %v4824
  %v4826 = vpop.f32.mrb[0].mxu0
  %4827 = vdwg.mxu0
  %v4829 = vsel %vm83, %v4710, 0
  %v4832 = vsel %vm83, %v4715, 0
  %v4835 = vsel %vm83, %v4720, 0
  %v4838 = vsel %vm83, %v4725, 0
  %4840 = vmatprep.subr.mxu0 0.0
  %4841 = vmatpush1.msra.mxu0 %v4729
  %4842 = vmatprep.subr.mxu0 0.0
  %4843 = vmatpush1.msra.mxu0 %v4730
  %4844 = vmatprep.subr.mxu0 0.0
  %4845 = vmatpush1.msra.mxu0 0.0
  %4846 = vmatprep.subr.mxu0 0.0
  %4847 = vmatpush1.msra.mxu0 0.0
  %4848 = vmatprep.subr.mxu0 0.0
  %4849 = vmatpush1.msra.mxu0 0.0
  %4850 = vmatprep.subr.mxu0 0.0
  %4851 = vmatpush1.msra.mxu0 0.0
  %4852 = vmatprep.subr.mxu0 0.0
  %4853 = vmatpush1.msra.mxu0 0.0
  %4854 = vmatprep.subr.mxu0 0.0
  %4855 = vmatpush1.msra.mxu0 0.0
  %4856 = vmatprep.subr.mxu0 0.0
  %4857 = vmatpush1.msra.mxu0 0.0
  %4858 = vmatprep.subr.mxu0 0.0
  %4859 = vmatpush1.msra.mxu0 0.0
  %4860 = vmatprep.subr.mxu0 0.0
  %4861 = vmatpush1.msra.mxu0 0.0
  %4862 = vmatprep.subr.mxu0 0.0
  %4863 = vmatpush1.msra.mxu0 0.0
  %4864 = vmatprep.subr.mxu0 0.0
  %4865 = vmatpush1.msra.mxu0 0.0
  %4866 = vmatprep.subr.mxu0 0.0
  %4867 = vmatpush1.msra.mxu0 0.0
  %4868 = vmatprep.subr.mxu0 0.0
  %4869 = vmatpush1.msra.mxu0 0.0
  %4870 = vmatprep.subr.mxu0 0.0
  %4871 = vmatpush1.msra.mxu0 0.0
  %4872 = vmatprep.subr.mxu0 0.0
  %4873 = vmatpush1.msra.mxu0 0.0
  %4874 = vmatprep.subr.mxu0 0.0
  %4875 = vmatpush1.msra.mxu0 0.0
  %4876 = vmatprep.subr.mxu0 0.0
  %4877 = vmatpush1.msra.mxu0 0.0
  %4878 = vmatprep.subr.mxu0 0.0
  %4879 = vmatpush1.msra.mxu0 0.0
  %4880 = vmatprep.subr.mxu0 0.0
  %4881 = vmatpush1.msra.mxu0 0.0
  %4882 = vmatprep.subr.mxu0 0.0
  %4883 = vmatpush1.msra.mxu0 0.0
  %4884 = vmatprep.subr.mxu0 0.0
  %4885 = vmatpush1.msra.mxu0 0.0
  %4886 = vmatprep.subr.mxu0 0.0
  %4887 = vmatpush1.msra.mxu0 0.0
  %4888 = vmatprep.subr.mxu0 0.0
  %4889 = vmatpush1.msra.mxu0 0.0
  %4890 = vmatprep.subr.mxu0 0.0
  %4891 = vmatpush1.msra.mxu0 0.0
  %4892 = vmatprep.subr.mxu0 0.0
  %4893 = vmatpush1.msra.mxu0 0.0
  %4894 = vmatprep.subr.mxu0 0.0
  %4895 = vmatpush1.msra.mxu0 0.0
  %4896 = vmatprep.subr.mxu0 0.0
  %4897 = vmatpush1.msra.mxu0 0.0
  %4898 = vmatprep.subr.mxu0 0.0
  %4899 = vmatpush1.msra.mxu0 0.0
  %4900 = vmatprep.subr.mxu0 0.0
  %4901 = vmatpush1.msra.mxu0 0.0
  %4902 = vmatprep.subr.mxu0 0.0
  %4903 = vmatpush1.msra.mxu0 0.0
  %4904 = vmatprep.mubr.f32.mxu0 0.0
  %4905 = vmatmul.mubr.f32.gmra.mrb[0].mxu0 %v4829
  %v4906 = vpop.f32.mrb[0].mxu0
  %v4907 = vadd.f32 0.0, %v4906
  %v4908 = vpop.f32.mrb[0].mxu0
  %4909 = vmatprep.mubr.f32.mxu0 0.0
  %4910 = vmatmul.mubr.f32.gmra.mrb[0].mxu0 %v4832
  %v4911 = vpop.f32.mrb[0].mxu0
  %v4912 = vadd.f32 0.0, %v4911
  %v4913 = vpop.f32.mrb[0].mxu0
  %4914 = vmatprep.mubr.f32.mxu0 0.0
  %4915 = vmatmul.mubr.f32.gmra.mrb[0].mxu0 %v4835
  %v4916 = vpop.f32.mrb[0].mxu0
  %v4917 = vadd.f32 0.0, %v4916
  %v4918 = vpop.f32.mrb[0].mxu0
  %4919 = vmatprep.mubr.f32.mxu0 0.0
  %4920 = vmatmul.mubr.f32.gmra.mrb[0].mxu0 %v4838
  %v4921 = vpop.f32.mrb[0].mxu0
  %v4922 = vadd.f32 0.0, %v4921
  %v4923 = vpop.f32.mrb[0].mxu0
  %4924 = vdwg.mxu0
  %v4925 = vadd.f32 %v4498, %v4810
  %v4926 = vadd.f32 %v4499, %v4815
  %v4927 = vadd.f32 %v4500, %v4820
  %v4928 = vadd.f32 %v4501, %v4825
  %v4929 = vadd.f32 %v4502, %v4907
  %v4930 = vadd.f32 %v4503, %v4912
  %v4931 = vadd.f32 %v4504, %v4917
  %v4932 = vadd.f32 %v4505, %v4922
  %v4933 = vadd.s32 %v1099, 27
  %v4934 = vadd.s32 %v1100, 27
  %v4935 = vadd.s32 %v1101, 27
  %v4936 = vadd.s32 %v1102, 27
  %4937 = vset.pattern.permute.xlu0 0
  %4938 = vperm.xlu0 %4937, %v4933
  %v4939 = vpop.permute.xlu0 %4938
  %4940 = vset.pattern.permute.xlu0 0
  %4941 = vperm.xlu0 %4940, %v4934
  %v4942 = vpop.permute.xlu0 %4941
  %4943 = vset.pattern.permute.xlu0 0
  %4944 = vperm.xlu0 %4943, %v4935
  %v4945 = vpop.permute.xlu0 %4944
  %4946 = vset.pattern.permute.xlu0 0
  %4947 = vperm.xlu0 %4946, %v4936
  %v4948 = vpop.permute.xlu0 %4947
  %vm4949 = vcmp.eq.s32.totalorder %v1097, %v4939
  %vm4950 = vcmp.eq.s32.totalorder %v1098, %v4939
  %vm4951 = vcmp.eq.s32.totalorder %v1097, %v4942
  %vm4952 = vcmp.eq.s32.totalorder %v1098, %v4942
  %vm4953 = vcmp.eq.s32.totalorder %v1097, %v4945
  %vm4954 = vcmp.eq.s32.totalorder %v1098, %v4945
  %vm4955 = vcmp.eq.s32.totalorder %v1097, %v4948
  %vm4956 = vcmp.eq.s32.totalorder %v1098, %v4948
  %v4957 = vsel %vm4949, 1, 0
  %v4958 = vsel %vm4950, 1, 0
  %v4959 = vsel %vm4951, 1, 0
  %v4960 = vsel %vm4952, 1, 0
  %v4961 = vsel %vm4953, 1, 0
  %v4962 = vsel %vm4954, 1, 0
  %v4963 = vsel %vm4955, 1, 0
  %v4964 = vsel %vm4956, 1, 0
  %v4965 = vcvt.s32.f32 %v4957
  %v4966 = vcvt.s32.f32 %v4958
  %v4967 = vcvt.s32.f32 %v4959
  %v4968 = vcvt.s32.f32 %v4960
  %v4969 = vcvt.s32.f32 %v4961
  %v4970 = vcvt.s32.f32 %v4962
  %v4971 = vcvt.s32.f32 %v4963
  %v4972 = vcvt.s32.f32 %v4964
  %v4974 = vsel %vm1139, %v4966, 0
  %v4977 = vsel %vm1139, %v4968, 0
  %v4980 = vsel %vm1139, %v4970, 0
  %v4983 = vsel %vm1139, %v4972, 0
  %4985 = vmatprep.subr.mxu0 0.0
  %4986 = vmatpush1.msra.mxu0 %v1052
  %4987 = vmatprep.subr.mxu0 0.0
  %4988 = vmatpush1.msra.mxu0 %v1053
  %4989 = vmatprep.subr.mxu0 0.0
  %4990 = vmatpush1.msra.mxu0 %v1054
  %4991 = vmatprep.subr.mxu0 0.0
  %4992 = vmatpush1.msra.mxu0 %v1055
  %4993 = vmatprep.subr.mxu0 0.0
  %4994 = vmatpush1.msra.mxu0 %v1056
  %4995 = vmatprep.subr.mxu0 0.0
  %4996 = vmatpush1.msra.mxu0 %v1057
  %4997 = vmatprep.subr.mxu0 0.0
  %4998 = vmatpush1.msra.mxu0 %v1058
  %4999 = vmatprep.subr.mxu0 0.0
  %5000 = vmatpush1.msra.mxu0 %v1059
  %5001 = vmatprep.subr.mxu0 0.0
  %5002 = vmatpush1.msra.mxu0 %v1060
  %5003 = vmatprep.subr.mxu0 0.0
  %5004 = vmatpush1.msra.mxu0 %v1061
  %5005 = vmatprep.subr.mxu0 0.0
  %5006 = vmatpush1.msra.mxu0 %v1062
  %5007 = vmatprep.subr.mxu0 0.0
  %5008 = vmatpush1.msra.mxu0 %v1063
  %5009 = vmatprep.subr.mxu0 0.0
  %5010 = vmatpush1.msra.mxu0 %v1064
  %5011 = vmatprep.subr.mxu0 0.0
  %5012 = vmatpush1.msra.mxu0 %v1065
  %5013 = vmatprep.subr.mxu0 0.0
  %5014 = vmatpush1.msra.mxu0 %v1066
  %5015 = vmatprep.subr.mxu0 0.0
  %5016 = vmatpush1.msra.mxu0 %v1067
  %5017 = vmatprep.subr.mxu0 0.0
  %5018 = vmatpush1.msra.mxu0 %v1068
  %5019 = vmatprep.subr.mxu0 0.0
  %5020 = vmatpush1.msra.mxu0 %v1069
  %5021 = vmatprep.subr.mxu0 0.0
  %5022 = vmatpush1.msra.mxu0 %v1070
  %5023 = vmatprep.subr.mxu0 0.0
  %5024 = vmatpush1.msra.mxu0 %v1071
  %5025 = vmatprep.subr.mxu0 0.0
  %5026 = vmatpush1.msra.mxu0 %v1072
  %5027 = vmatprep.subr.mxu0 0.0
  %5028 = vmatpush1.msra.mxu0 %v1154
  %5029 = vmatprep.subr.mxu0 0.0
  %5030 = vmatpush1.msra.mxu0 0.0
  %5031 = vmatprep.subr.mxu0 0.0
  %5032 = vmatpush1.msra.mxu0 0.0
  %5033 = vmatprep.subr.mxu0 0.0
  %5034 = vmatpush1.msra.mxu0 0.0
  %5035 = vmatprep.subr.mxu0 0.0
  %5036 = vmatpush1.msra.mxu0 0.0
  %5037 = vmatprep.subr.mxu0 0.0
  %5038 = vmatpush1.msra.mxu0 0.0
  %5039 = vmatprep.subr.mxu0 0.0
  %5040 = vmatpush1.msra.mxu0 0.0
  %5041 = vmatprep.subr.mxu0 0.0
  %5042 = vmatpush1.msra.mxu0 0.0
  %5043 = vmatprep.subr.mxu0 0.0
  %5044 = vmatpush1.msra.mxu0 0.0
  %5045 = vmatprep.subr.mxu0 0.0
  %5046 = vmatpush1.msra.mxu0 0.0
  %5047 = vmatprep.subr.mxu0 0.0
  %5048 = vmatpush1.msra.mxu0 0.0
  %5049 = vmatprep.mubr.f32.mxu0 %v4974
  %5050 = vmatmul.mubr.f32.gmra.mrb[0].mxu0 %v4965
  %v5051 = vpop.f32.mrb[0].mxu0
  %v5052 = vadd.f32 0.0, %v5051
  %v5053 = vpop.f32.mrb[0].mxu0
  %5054 = vmatprep.mubr.f32.mxu0 %v4977
  %5055 = vmatmul.mubr.f32.gmra.mrb[0].mxu0 %v4967
  %v5056 = vpop.f32.mrb[0].mxu0
  %v5057 = vadd.f32 0.0, %v5056
  %v5058 = vpop.f32.mrb[0].mxu0
  %5059 = vmatprep.mubr.f32.mxu0 %v4980
  %5060 = vmatmul.mubr.f32.gmra.mrb[0].mxu0 %v4969
  %v5061 = vpop.f32.mrb[0].mxu0
  %v5062 = vadd.f32 0.0, %v5061
  %v5063 = vpop.f32.mrb[0].mxu0
  %5064 = vmatprep.mubr.f32.mxu0 %v4983
  %5065 = vmatmul.mubr.f32.gmra.mrb[0].mxu0 %v4971
  %v5066 = vpop.f32.mrb[0].mxu0
  %v5067 = vadd.f32 0.0, %v5066
  %v5068 = vpop.f32.mrb[0].mxu0
  %5069 = vdwg.mxu0
  %5070 = vmatprep.subr.mxu0 0.0
  %5071 = vmatpush1.msra.mxu0 %v1074
  %5072 = vmatprep.subr.mxu0 0.0
  %5073 = vmatpush1.msra.mxu0 %v1075
  %5074 = vmatprep.subr.mxu0 0.0
  %5075 = vmatpush1.msra.mxu0 %v1076
  %5076 = vmatprep.subr.mxu0 0.0
  %5077 = vmatpush1.msra.mxu0 %v1077
  %5078 = vmatprep.subr.mxu0 0.0
  %5079 = vmatpush1.msra.mxu0 %v1078
  %5080 = vmatprep.subr.mxu0 0.0
  %5081 = vmatpush1.msra.mxu0 %v1079
  %5082 = vmatprep.subr.mxu0 0.0
  %5083 = vmatpush1.msra.mxu0 %v1080
  %5084 = vmatprep.subr.mxu0 0.0
  %5085 = vmatpush1.msra.mxu0 %v1081
  %5086 = vmatprep.subr.mxu0 0.0
  %5087 = vmatpush1.msra.mxu0 %v1082
  %5088 = vmatprep.subr.mxu0 0.0
  %5089 = vmatpush1.msra.mxu0 %v1083
  %5090 = vmatprep.subr.mxu0 0.0
  %5091 = vmatpush1.msra.mxu0 %v1084
  %5092 = vmatprep.subr.mxu0 0.0
  %5093 = vmatpush1.msra.mxu0 %v1085
  %5094 = vmatprep.subr.mxu0 0.0
  %5095 = vmatpush1.msra.mxu0 %v1086
  %5096 = vmatprep.subr.mxu0 0.0
  %5097 = vmatpush1.msra.mxu0 %v1087
  %5098 = vmatprep.subr.mxu0 0.0
  %5099 = vmatpush1.msra.mxu0 %v1088
  %5100 = vmatprep.subr.mxu0 0.0
  %5101 = vmatpush1.msra.mxu0 %v1089
  %5102 = vmatprep.subr.mxu0 0.0
  %5103 = vmatpush1.msra.mxu0 %v1090
  %5104 = vmatprep.subr.mxu0 0.0
  %5105 = vmatpush1.msra.mxu0 %v1091
  %5106 = vmatprep.subr.mxu0 0.0
  %5107 = vmatpush1.msra.mxu0 %v1092
  %5108 = vmatprep.subr.mxu0 0.0
  %5109 = vmatpush1.msra.mxu0 %v1093
  %5110 = vmatprep.subr.mxu0 0.0
  %5111 = vmatpush1.msra.mxu0 %v1094
  %5112 = vmatprep.subr.mxu0 0.0
  %5113 = vmatpush1.msra.mxu0 %v1242
  %5114 = vmatprep.subr.mxu0 0.0
  %5115 = vmatpush1.msra.mxu0 0.0
  %5116 = vmatprep.subr.mxu0 0.0
  %5117 = vmatpush1.msra.mxu0 0.0
  %5118 = vmatprep.subr.mxu0 0.0
  %5119 = vmatpush1.msra.mxu0 0.0
  %5120 = vmatprep.subr.mxu0 0.0
  %5121 = vmatpush1.msra.mxu0 0.0
  %5122 = vmatprep.subr.mxu0 0.0
  %5123 = vmatpush1.msra.mxu0 0.0
  %5124 = vmatprep.subr.mxu0 0.0
  %5125 = vmatpush1.msra.mxu0 0.0
  %5126 = vmatprep.subr.mxu0 0.0
  %5127 = vmatpush1.msra.mxu0 0.0
  %5128 = vmatprep.subr.mxu0 0.0
  %5129 = vmatpush1.msra.mxu0 0.0
  %5130 = vmatprep.subr.mxu0 0.0
  %5131 = vmatpush1.msra.mxu0 0.0
  %5132 = vmatprep.subr.mxu0 0.0
  %5133 = vmatpush1.msra.mxu0 0.0
  %5134 = vmatprep.mubr.f32.mxu0 %v4974
  %5135 = vmatmul.mubr.f32.gmra.mrb[0].mxu0 %v4965
  %v5136 = vpop.f32.mrb[0].mxu0
  %v5137 = vadd.f32 0.0, %v5136
  %v5138 = vpop.f32.mrb[0].mxu0
  %5139 = vmatprep.mubr.f32.mxu0 %v4977
  %5140 = vmatmul.mubr.f32.gmra.mrb[0].mxu0 %v4967
  %v5141 = vpop.f32.mrb[0].mxu0
  %v5142 = vadd.f32 0.0, %v5141
  %v5143 = vpop.f32.mrb[0].mxu0
  %5144 = vmatprep.mubr.f32.mxu0 %v4980
  %5145 = vmatmul.mubr.f32.gmra.mrb[0].mxu0 %v4969
  %v5146 = vpop.f32.mrb[0].mxu0
  %v5147 = vadd.f32 0.0, %v5146
  %v5148 = vpop.f32.mrb[0].mxu0
  %5149 = vmatprep.mubr.f32.mxu0 %v4983
  %5150 = vmatmul.mubr.f32.gmra.mrb[0].mxu0 %v4971
  %v5151 = vpop.f32.mrb[0].mxu0
  %v5152 = vadd.f32 0.0, %v5151
  %v5153 = vpop.f32.mrb[0].mxu0
  %5154 = vdwg.mxu0
  %s5155 = scalar_lea.vmem %s5, 144
  %v5156 = vld [vmem:[%s5155] sm:$0xff]
  %v5157 = vld [vmem:[%s5155 + $0x8] sm:$0xff]
  %v5159 = vsel %vm83, %v5052, 0
  %v5162 = vsel %vm83, %v5057, 0
  %v5165 = vsel %vm83, %v5062, 0
  %v5168 = vsel %vm83, %v5067, 0
  %5170 = vmatprep.subr.mxu0 0.0
  %5171 = vmatpush1.msra.mxu0 %v5156
  %5172 = vmatprep.subr.mxu0 0.0
  %5173 = vmatpush1.msra.mxu0 %v5157
  %5174 = vmatprep.subr.mxu0 0.0
  %5175 = vmatpush1.msra.mxu0 0.0
  %5176 = vmatprep.subr.mxu0 0.0
  %5177 = vmatpush1.msra.mxu0 0.0
  %5178 = vmatprep.subr.mxu0 0.0
  %5179 = vmatpush1.msra.mxu0 0.0
  %5180 = vmatprep.subr.mxu0 0.0
  %5181 = vmatpush1.msra.mxu0 0.0
  %5182 = vmatprep.subr.mxu0 0.0
  %5183 = vmatpush1.msra.mxu0 0.0
  %5184 = vmatprep.subr.mxu0 0.0
  %5185 = vmatpush1.msra.mxu0 0.0
  %5186 = vmatprep.subr.mxu0 0.0
  %5187 = vmatpush1.msra.mxu0 0.0
  %5188 = vmatprep.subr.mxu0 0.0
  %5189 = vmatpush1.msra.mxu0 0.0
  %5190 = vmatprep.subr.mxu0 0.0
  %5191 = vmatpush1.msra.mxu0 0.0
  %5192 = vmatprep.subr.mxu0 0.0
  %5193 = vmatpush1.msra.mxu0 0.0
  %5194 = vmatprep.subr.mxu0 0.0
  %5195 = vmatpush1.msra.mxu0 0.0
  %5196 = vmatprep.subr.mxu0 0.0
  %5197 = vmatpush1.msra.mxu0 0.0
  %5198 = vmatprep.subr.mxu0 0.0
  %5199 = vmatpush1.msra.mxu0 0.0
  %5200 = vmatprep.subr.mxu0 0.0
  %5201 = vmatpush1.msra.mxu0 0.0
  %5202 = vmatprep.subr.mxu0 0.0
  %5203 = vmatpush1.msra.mxu0 0.0
  %5204 = vmatprep.subr.mxu0 0.0
  %5205 = vmatpush1.msra.mxu0 0.0
  %5206 = vmatprep.subr.mxu0 0.0
  %5207 = vmatpush1.msra.mxu0 0.0
  %5208 = vmatprep.subr.mxu0 0.0
  %5209 = vmatpush1.msra.mxu0 0.0
  %5210 = vmatprep.subr.mxu0 0.0
  %5211 = vmatpush1.msra.mxu0 0.0
  %5212 = vmatprep.subr.mxu0 0.0
  %5213 = vmatpush1.msra.mxu0 0.0
  %5214 = vmatprep.subr.mxu0 0.0
  %5215 = vmatpush1.msra.mxu0 0.0
  %5216 = vmatprep.subr.mxu0 0.0
  %5217 = vmatpush1.msra.mxu0 0.0
  %5218 = vmatprep.subr.mxu0 0.0
  %5219 = vmatpush1.msra.mxu0 0.0
  %5220 = vmatprep.subr.mxu0 0.0
  %5221 = vmatpush1.msra.mxu0 0.0
  %5222 = vmatprep.subr.mxu0 0.0
  %5223 = vmatpush1.msra.mxu0 0.0
  %5224 = vmatprep.subr.mxu0 0.0
  %5225 = vmatpush1.msra.mxu0 0.0
  %5226 = vmatprep.subr.mxu0 0.0
  %5227 = vmatpush1.msra.mxu0 0.0
  %5228 = vmatprep.subr.mxu0 0.0
  %5229 = vmatpush1.msra.mxu0 0.0
  %5230 = vmatprep.subr.mxu0 0.0
  %5231 = vmatpush1.msra.mxu0 0.0
  %5232 = vmatprep.subr.mxu0 0.0
  %5233 = vmatpush1.msra.mxu0 0.0
  %5234 = vmatprep.mubr.f32.mxu0 0.0
  %5235 = vmatmul.mubr.f32.gmra.mrb[0].mxu0 %v5159
  %v5236 = vpop.f32.mrb[0].mxu0
  %v5237 = vadd.f32 0.0, %v5236
  %v5238 = vpop.f32.mrb[0].mxu0
  %5239 = vmatprep.mubr.f32.mxu0 0.0
  %5240 = vmatmul.mubr.f32.gmra.mrb[0].mxu0 %v5162
  %v5241 = vpop.f32.mrb[0].mxu0
  %v5242 = vadd.f32 0.0, %v5241
  %v5243 = vpop.f32.mrb[0].mxu0
  %5244 = vmatprep.mubr.f32.mxu0 0.0
  %5245 = vmatmul.mubr.f32.gmra.mrb[0].mxu0 %v5165
  %v5246 = vpop.f32.mrb[0].mxu0
  %v5247 = vadd.f32 0.0, %v5246
  %v5248 = vpop.f32.mrb[0].mxu0
  %5249 = vmatprep.mubr.f32.mxu0 0.0
  %5250 = vmatmul.mubr.f32.gmra.mrb[0].mxu0 %v5168
  %v5251 = vpop.f32.mrb[0].mxu0
  %v5252 = vadd.f32 0.0, %v5251
  %v5253 = vpop.f32.mrb[0].mxu0
  %5254 = vdwg.mxu0
  %v5256 = vsel %vm83, %v5137, 0
  %v5259 = vsel %vm83, %v5142, 0
  %v5262 = vsel %vm83, %v5147, 0
  %v5265 = vsel %vm83, %v5152, 0
  %5267 = vmatprep.subr.mxu0 0.0
  %5268 = vmatpush1.msra.mxu0 %v5156
  %5269 = vmatprep.subr.mxu0 0.0
  %5270 = vmatpush1.msra.mxu0 %v5157
  %5271 = vmatprep.subr.mxu0 0.0
  %5272 = vmatpush1.msra.mxu0 0.0
  %5273 = vmatprep.subr.mxu0 0.0
  %5274 = vmatpush1.msra.mxu0 0.0
  %5275 = vmatprep.subr.mxu0 0.0
  %5276 = vmatpush1.msra.mxu0 0.0
  %5277 = vmatprep.subr.mxu0 0.0
  %5278 = vmatpush1.msra.mxu0 0.0
  %5279 = vmatprep.subr.mxu0 0.0
  %5280 = vmatpush1.msra.mxu0 0.0
  %5281 = vmatprep.subr.mxu0 0.0
  %5282 = vmatpush1.msra.mxu0 0.0
  %5283 = vmatprep.subr.mxu0 0.0
  %5284 = vmatpush1.msra.mxu0 0.0
  %5285 = vmatprep.subr.mxu0 0.0
  %5286 = vmatpush1.msra.mxu0 0.0
  %5287 = vmatprep.subr.mxu0 0.0
  %5288 = vmatpush1.msra.mxu0 0.0
  %5289 = vmatprep.subr.mxu0 0.0
  %5290 = vmatpush1.msra.mxu0 0.0
  %5291 = vmatprep.subr.mxu0 0.0
  %5292 = vmatpush1.msra.mxu0 0.0
  %5293 = vmatprep.subr.mxu0 0.0
  %5294 = vmatpush1.msra.mxu0 0.0
  %5295 = vmatprep.subr.mxu0 0.0
  %5296 = vmatpush1.msra.mxu0 0.0
  %5297 = vmatprep.subr.mxu0 0.0
  %5298 = vmatpush1.msra.mxu0 0.0
  %5299 = vmatprep.subr.mxu0 0.0
  %5300 = vmatpush1.msra.mxu0 0.0
  %5301 = vmatprep.subr.mxu0 0.0
  %5302 = vmatpush1.msra.mxu0 0.0
  %5303 = vmatprep.subr.mxu0 0.0
  %5304 = vmatpush1.msra.mxu0 0.0
  %5305 = vmatprep.subr.mxu0 0.0
  %5306 = vmatpush1.msra.mxu0 0.0
  %5307 = vmatprep.subr.mxu0 0.0
  %5308 = vmatpush1.msra.mxu0 0.0
  %5309 = vmatprep.subr.mxu0 0.0
  %5310 = vmatpush1.msra.mxu0 0.0
  %5311 = vmatprep.subr.mxu0 0.0
  %5312 = vmatpush1.msra.mxu0 0.0
  %5313 = vmatprep.subr.mxu0 0.0
  %5314 = vmatpush1.msra.mxu0 0.0
  %5315 = vmatprep.subr.mxu0 0.0
  %5316 = vmatpush1.msra.mxu0 0.0
  %5317 = vmatprep.subr.mxu0 0.0
  %5318 = vmatpush1.msra.mxu0 0.0
  %5319 = vmatprep.subr.mxu0 0.0
  %5320 = vmatpush1.msra.mxu0 0.0
  %5321 = vmatprep.subr.mxu0 0.0
  %5322 = vmatpush1.msra.mxu0 0.0
  %5323 = vmatprep.subr.mxu0 0.0
  %5324 = vmatpush1.msra.mxu0 0.0
  %5325 = vmatprep.subr.mxu0 0.0
  %5326 = vmatpush1.msra.mxu0 0.0
  %5327 = vmatprep.subr.mxu0 0.0
  %5328 = vmatpush1.msra.mxu0 0.0
  %5329 = vmatprep.subr.mxu0 0.0
  %5330 = vmatpush1.msra.mxu0 0.0
  %5331 = vmatprep.mubr.f32.mxu0 0.0
  %5332 = vmatmul.mubr.f32.gmra.mrb[0].mxu0 %v5256
  %v5333 = vpop.f32.mrb[0].mxu0
  %v5334 = vadd.f32 0.0, %v5333
  %v5335 = vpop.f32.mrb[0].mxu0
  %5336 = vmatprep.mubr.f32.mxu0 0.0
  %5337 = vmatmul.mubr.f32.gmra.mrb[0].mxu0 %v5259
  %v5338 = vpop.f32.mrb[0].mxu0
  %v5339 = vadd.f32 0.0, %v5338
  %v5340 = vpop.f32.mrb[0].mxu0
  %5341 = vmatprep.mubr.f32.mxu0 0.0
  %5342 = vmatmul.mubr.f32.gmra.mrb[0].mxu0 %v5262
  %v5343 = vpop.f32.mrb[0].mxu0
  %v5344 = vadd.f32 0.0, %v5343
  %v5345 = vpop.f32.mrb[0].mxu0
  %5346 = vmatprep.mubr.f32.mxu0 0.0
  %5347 = vmatmul.mubr.f32.gmra.mrb[0].mxu0 %v5265
  %v5348 = vpop.f32.mrb[0].mxu0
  %v5349 = vadd.f32 0.0, %v5348
  %v5350 = vpop.f32.mrb[0].mxu0
  %5351 = vdwg.mxu0
  %v5352 = vadd.f32 %v4925, %v5237
  %v5353 = vadd.f32 %v4926, %v5242
  %v5354 = vadd.f32 %v4927, %v5247
  %v5355 = vadd.f32 %v4928, %v5252
  %v5356 = vadd.f32 %v4929, %v5334
  %v5357 = vadd.f32 %v4930, %v5339
  %v5358 = vadd.f32 %v4931, %v5344
  %v5359 = vadd.f32 %v4932, %v5349
  %v5360 = vadd.s32 %v1099, 28
  %v5361 = vadd.s32 %v1100, 28
  %v5362 = vadd.s32 %v1101, 28
  %v5363 = vadd.s32 %v1102, 28
  %5364 = vset.pattern.permute.xlu0 0
  %5365 = vperm.xlu0 %5364, %v5360
  %v5366 = vpop.permute.xlu0 %5365
  %5367 = vset.pattern.permute.xlu0 0
  %5368 = vperm.xlu0 %5367, %v5361
  %v5369 = vpop.permute.xlu0 %5368
  %5370 = vset.pattern.permute.xlu0 0
  %5371 = vperm.xlu0 %5370, %v5362
  %v5372 = vpop.permute.xlu0 %5371
  %5373 = vset.pattern.permute.xlu0 0
  %5374 = vperm.xlu0 %5373, %v5363
  %v5375 = vpop.permute.xlu0 %5374
  %vm5376 = vcmp.eq.s32.totalorder %v1097, %v5366
  %vm5377 = vcmp.eq.s32.totalorder %v1098, %v5366
  %vm5378 = vcmp.eq.s32.totalorder %v1097, %v5369
  %vm5379 = vcmp.eq.s32.totalorder %v1098, %v5369
  %vm5380 = vcmp.eq.s32.totalorder %v1097, %v5372
  %vm5381 = vcmp.eq.s32.totalorder %v1098, %v5372
  %vm5382 = vcmp.eq.s32.totalorder %v1097, %v5375
  %vm5383 = vcmp.eq.s32.totalorder %v1098, %v5375
  %v5384 = vsel %vm5376, 1, 0
  %v5385 = vsel %vm5377, 1, 0
  %v5386 = vsel %vm5378, 1, 0
  %v5387 = vsel %vm5379, 1, 0
  %v5388 = vsel %vm5380, 1, 0
  %v5389 = vsel %vm5381, 1, 0
  %v5390 = vsel %vm5382, 1, 0
  %v5391 = vsel %vm5383, 1, 0
  %v5392 = vcvt.s32.f32 %v5384
  %v5393 = vcvt.s32.f32 %v5385
  %v5394 = vcvt.s32.f32 %v5386
  %v5395 = vcvt.s32.f32 %v5387
  %v5396 = vcvt.s32.f32 %v5388
  %v5397 = vcvt.s32.f32 %v5389
  %v5398 = vcvt.s32.f32 %v5390
  %v5399 = vcvt.s32.f32 %v5391
  %v5401 = vsel %vm1139, %v5393, 0
  %v5404 = vsel %vm1139, %v5395, 0
  %v5407 = vsel %vm1139, %v5397, 0
  %v5410 = vsel %vm1139, %v5399, 0
  %5412 = vmatprep.subr.mxu0 0.0
  %5413 = vmatpush1.msra.mxu0 %v1052
  %5414 = vmatprep.subr.mxu0 0.0
  %5415 = vmatpush1.msra.mxu0 %v1053
  %5416 = vmatprep.subr.mxu0 0.0
  %5417 = vmatpush1.msra.mxu0 %v1054
  %5418 = vmatprep.subr.mxu0 0.0
  %5419 = vmatpush1.msra.mxu0 %v1055
  %5420 = vmatprep.subr.mxu0 0.0
  %5421 = vmatpush1.msra.mxu0 %v1056
  %5422 = vmatprep.subr.mxu0 0.0
  %5423 = vmatpush1.msra.mxu0 %v1057
  %5424 = vmatprep.subr.mxu0 0.0
  %5425 = vmatpush1.msra.mxu0 %v1058
  %5426 = vmatprep.subr.mxu0 0.0
  %5427 = vmatpush1.msra.mxu0 %v1059
  %5428 = vmatprep.subr.mxu0 0.0
  %5429 = vmatpush1.msra.mxu0 %v1060
  %5430 = vmatprep.subr.mxu0 0.0
  %5431 = vmatpush1.msra.mxu0 %v1061
  %5432 = vmatprep.subr.mxu0 0.0
  %5433 = vmatpush1.msra.mxu0 %v1062
  %5434 = vmatprep.subr.mxu0 0.0
  %5435 = vmatpush1.msra.mxu0 %v1063
  %5436 = vmatprep.subr.mxu0 0.0
  %5437 = vmatpush1.msra.mxu0 %v1064
  %5438 = vmatprep.subr.mxu0 0.0
  %5439 = vmatpush1.msra.mxu0 %v1065
  %5440 = vmatprep.subr.mxu0 0.0
  %5441 = vmatpush1.msra.mxu0 %v1066
  %5442 = vmatprep.subr.mxu0 0.0
  %5443 = vmatpush1.msra.mxu0 %v1067
  %5444 = vmatprep.subr.mxu0 0.0
  %5445 = vmatpush1.msra.mxu0 %v1068
  %5446 = vmatprep.subr.mxu0 0.0
  %5447 = vmatpush1.msra.mxu0 %v1069
  %5448 = vmatprep.subr.mxu0 0.0
  %5449 = vmatpush1.msra.mxu0 %v1070
  %5450 = vmatprep.subr.mxu0 0.0
  %5451 = vmatpush1.msra.mxu0 %v1071
  %5452 = vmatprep.subr.mxu0 0.0
  %5453 = vmatpush1.msra.mxu0 %v1072
  %5454 = vmatprep.subr.mxu0 0.0
  %5455 = vmatpush1.msra.mxu0 %v1154
  %5456 = vmatprep.subr.mxu0 0.0
  %5457 = vmatpush1.msra.mxu0 0.0
  %5458 = vmatprep.subr.mxu0 0.0
  %5459 = vmatpush1.msra.mxu0 0.0
  %5460 = vmatprep.subr.mxu0 0.0
  %5461 = vmatpush1.msra.mxu0 0.0
  %5462 = vmatprep.subr.mxu0 0.0
  %5463 = vmatpush1.msra.mxu0 0.0
  %5464 = vmatprep.subr.mxu0 0.0
  %5465 = vmatpush1.msra.mxu0 0.0
  %5466 = vmatprep.subr.mxu0 0.0
  %5467 = vmatpush1.msra.mxu0 0.0
  %5468 = vmatprep.subr.mxu0 0.0
  %5469 = vmatpush1.msra.mxu0 0.0
  %5470 = vmatprep.subr.mxu0 0.0
  %5471 = vmatpush1.msra.mxu0 0.0
  %5472 = vmatprep.subr.mxu0 0.0
  %5473 = vmatpush1.msra.mxu0 0.0
  %5474 = vmatprep.subr.mxu0 0.0
  %5475 = vmatpush1.msra.mxu0 0.0
  %5476 = vmatprep.mubr.f32.mxu0 %v5401
  %5477 = vmatmul.mubr.f32.gmra.mrb[0].mxu0 %v5392
  %v5478 = vpop.f32.mrb[0].mxu0
  %v5479 = vadd.f32 0.0, %v5478
  %v5480 = vpop.f32.mrb[0].mxu0
  %5481 = vmatprep.mubr.f32.mxu0 %v5404
  %5482 = vmatmul.mubr.f32.gmra.mrb[0].mxu0 %v5394
  %v5483 = vpop.f32.mrb[0].mxu0
  %v5484 = vadd.f32 0.0, %v5483
  %v5485 = vpop.f32.mrb[0].mxu0
  %5486 = vmatprep.mubr.f32.mxu0 %v5407
  %5487 = vmatmul.mubr.f32.gmra.mrb[0].mxu0 %v5396
  %v5488 = vpop.f32.mrb[0].mxu0
  %v5489 = vadd.f32 0.0, %v5488
  %v5490 = vpop.f32.mrb[0].mxu0
  %5491 = vmatprep.mubr.f32.mxu0 %v5410
  %5492 = vmatmul.mubr.f32.gmra.mrb[0].mxu0 %v5398
  %v5493 = vpop.f32.mrb[0].mxu0
  %v5494 = vadd.f32 0.0, %v5493
  %v5495 = vpop.f32.mrb[0].mxu0
  %5496 = vdwg.mxu0
  %5497 = vmatprep.subr.mxu0 0.0
  %5498 = vmatpush1.msra.mxu0 %v1074
  %5499 = vmatprep.subr.mxu0 0.0
  %5500 = vmatpush1.msra.mxu0 %v1075
  %5501 = vmatprep.subr.mxu0 0.0
  %5502 = vmatpush1.msra.mxu0 %v1076
  %5503 = vmatprep.subr.mxu0 0.0
  %5504 = vmatpush1.msra.mxu0 %v1077
  %5505 = vmatprep.subr.mxu0 0.0
  %5506 = vmatpush1.msra.mxu0 %v1078
  %5507 = vmatprep.subr.mxu0 0.0
  %5508 = vmatpush1.msra.mxu0 %v1079
  %5509 = vmatprep.subr.mxu0 0.0
  %5510 = vmatpush1.msra.mxu0 %v1080
  %5511 = vmatprep.subr.mxu0 0.0
  %5512 = vmatpush1.msra.mxu0 %v1081
  %5513 = vmatprep.subr.mxu0 0.0
  %5514 = vmatpush1.msra.mxu0 %v1082
  %5515 = vmatprep.subr.mxu0 0.0
  %5516 = vmatpush1.msra.mxu0 %v1083
  %5517 = vmatprep.subr.mxu0 0.0
  %5518 = vmatpush1.msra.mxu0 %v1084
  %5519 = vmatprep.subr.mxu0 0.0
  %5520 = vmatpush1.msra.mxu0 %v1085
  %5521 = vmatprep.subr.mxu0 0.0
  %5522 = vmatpush1.msra.mxu0 %v1086
  %5523 = vmatprep.subr.mxu0 0.0
  %5524 = vmatpush1.msra.mxu0 %v1087
  %5525 = vmatprep.subr.mxu0 0.0
  %5526 = vmatpush1.msra.mxu0 %v1088
  %5527 = vmatprep.subr.mxu0 0.0
  %5528 = vmatpush1.msra.mxu0 %v1089
  %5529 = vmatprep.subr.mxu0 0.0
  %5530 = vmatpush1.msra.mxu0 %v1090
  %5531 = vmatprep.subr.mxu0 0.0
  %5532 = vmatpush1.msra.mxu0 %v1091
  %5533 = vmatprep.subr.mxu0 0.0
  %5534 = vmatpush1.msra.mxu0 %v1092
  %5535 = vmatprep.subr.mxu0 0.0
  %5536 = vmatpush1.msra.mxu0 %v1093
  %5537 = vmatprep.subr.mxu0 0.0
  %5538 = vmatpush1.msra.mxu0 %v1094
  %5539 = vmatprep.subr.mxu0 0.0
  %5540 = vmatpush1.msra.mxu0 %v1242
  %5541 = vmatprep.subr.mxu0 0.0
  %5542 = vmatpush1.msra.mxu0 0.0
  %5543 = vmatprep.subr.mxu0 0.0
  %5544 = vmatpush1.msra.mxu0 0.0
  %5545 = vmatprep.subr.mxu0 0.0
  %5546 = vmatpush1.msra.mxu0 0.0
  %5547 = vmatprep.subr.mxu0 0.0
  %5548 = vmatpush1.msra.mxu0 0.0
  %5549 = vmatprep.subr.mxu0 0.0
  %5550 = vmatpush1.msra.mxu0 0.0
  %5551 = vmatprep.subr.mxu0 0.0
  %5552 = vmatpush1.msra.mxu0 0.0
  %5553 = vmatprep.subr.mxu0 0.0
  %5554 = vmatpush1.msra.mxu0 0.0
  %5555 = vmatprep.subr.mxu0 0.0
  %5556 = vmatpush1.msra.mxu0 0.0
  %5557 = vmatprep.subr.mxu0 0.0
  %5558 = vmatpush1.msra.mxu0 0.0
  %5559 = vmatprep.subr.mxu0 0.0
  %5560 = vmatpush1.msra.mxu0 0.0
  %5561 = vmatprep.mubr.f32.mxu0 %v5401
  %5562 = vmatmul.mubr.f32.gmra.mrb[0].mxu0 %v5392
  %v5563 = vpop.f32.mrb[0].mxu0
  %v5564 = vadd.f32 0.0, %v5563
  %v5565 = vpop.f32.mrb[0].mxu0
  %5566 = vmatprep.mubr.f32.mxu0 %v5404
  %5567 = vmatmul.mubr.f32.gmra.mrb[0].mxu0 %v5394
  %v5568 = vpop.f32.mrb[0].mxu0
  %v5569 = vadd.f32 0.0, %v5568
  %v5570 = vpop.f32.mrb[0].mxu0
  %5571 = vmatprep.mubr.f32.mxu0 %v5407
  %5572 = vmatmul.mubr.f32.gmra.mrb[0].mxu0 %v5396
  %v5573 = vpop.f32.mrb[0].mxu0
  %v5574 = vadd.f32 0.0, %v5573
  %v5575 = vpop.f32.mrb[0].mxu0
  %5576 = vmatprep.mubr.f32.mxu0 %v5410
  %5577 = vmatmul.mubr.f32.gmra.mrb[0].mxu0 %v5398
  %v5578 = vpop.f32.mrb[0].mxu0
  %v5579 = vadd.f32 0.0, %v5578
  %v5580 = vpop.f32.mrb[0].mxu0
  %5581 = vdwg.mxu0
  %s5582 = scalar_lea.vmem %s5, 160
  %v5583 = vld [vmem:[%s5582] sm:$0xff]
  %v5584 = vld [vmem:[%s5582 + $0x8] sm:$0xff]
  %v5586 = vsel %vm83, %v5479, 0
  %v5589 = vsel %vm83, %v5484, 0
  %v5592 = vsel %vm83, %v5489, 0
  %v5595 = vsel %vm83, %v5494, 0
  %5597 = vmatprep.subr.mxu0 0.0
  %5598 = vmatpush1.msra.mxu0 %v5583
  %5599 = vmatprep.subr.mxu0 0.0
  %5600 = vmatpush1.msra.mxu0 %v5584
  %5601 = vmatprep.subr.mxu0 0.0
  %5602 = vmatpush1.msra.mxu0 0.0
  %5603 = vmatprep.subr.mxu0 0.0
  %5604 = vmatpush1.msra.mxu0 0.0
  %5605 = vmatprep.subr.mxu0 0.0
  %5606 = vmatpush1.msra.mxu0 0.0
  %5607 = vmatprep.subr.mxu0 0.0
  %5608 = vmatpush1.msra.mxu0 0.0
  %5609 = vmatprep.subr.mxu0 0.0
  %5610 = vmatpush1.msra.mxu0 0.0
  %5611 = vmatprep.subr.mxu0 0.0
  %5612 = vmatpush1.msra.mxu0 0.0
  %5613 = vmatprep.subr.mxu0 0.0
  %5614 = vmatpush1.msra.mxu0 0.0
  %5615 = vmatprep.subr.mxu0 0.0
  %5616 = vmatpush1.msra.mxu0 0.0
  %5617 = vmatprep.subr.mxu0 0.0
  %5618 = vmatpush1.msra.mxu0 0.0
  %5619 = vmatprep.subr.mxu0 0.0
  %5620 = vmatpush1.msra.mxu0 0.0
  %5621 = vmatprep.subr.mxu0 0.0
  %5622 = vmatpush1.msra.mxu0 0.0
  %5623 = vmatprep.subr.mxu0 0.0
  %5624 = vmatpush1.msra.mxu0 0.0
  %5625 = vmatprep.subr.mxu0 0.0
  %5626 = vmatpush1.msra.mxu0 0.0
  %5627 = vmatprep.subr.mxu0 0.0
  %5628 = vmatpush1.msra.mxu0 0.0
  %5629 = vmatprep.subr.mxu0 0.0
  %5630 = vmatpush1.msra.mxu0 0.0
  %5631 = vmatprep.subr.mxu0 0.0
  %5632 = vmatpush1.msra.mxu0 0.0
  %5633 = vmatprep.subr.mxu0 0.0
  %5634 = vmatpush1.msra.mxu0 0.0
  %5635 = vmatprep.subr.mxu0 0.0
  %5636 = vmatpush1.msra.mxu0 0.0
  %5637 = vmatprep.subr.mxu0 0.0
  %5638 = vmatpush1.msra.mxu0 0.0
  %5639 = vmatprep.subr.mxu0 0.0
  %5640 = vmatpush1.msra.mxu0 0.0
  %5641 = vmatprep.subr.mxu0 0.0
  %5642 = vmatpush1.msra.mxu0 0.0
  %5643 = vmatprep.subr.mxu0 0.0
  %5644 = vmatpush1.msra.mxu0 0.0
  %5645 = vmatprep.subr.mxu0 0.0
  %5646 = vmatpush1.msra.mxu0 0.0
  %5647 = vmatprep.subr.mxu0 0.0
  %5648 = vmatpush1.msra.mxu0 0.0
  %5649 = vmatprep.subr.mxu0 0.0
  %5650 = vmatpush1.msra.mxu0 0.0
  %5651 = vmatprep.subr.mxu0 0.0
  %5652 = vmatpush1.msra.mxu0 0.0
  %5653 = vmatprep.subr.mxu0 0.0
  %5654 = vmatpush1.msra.mxu0 0.0
  %5655 = vmatprep.subr.mxu0 0.0
  %5656 = vmatpush1.msra.mxu0 0.0
  %5657 = vmatprep.subr.mxu0 0.0
  %5658 = vmatpush1.msra.mxu0 0.0
  %5659 = vmatprep.subr.mxu0 0.0
  %5660 = vmatpush1.msra.mxu0 0.0
  %5661 = vmatprep.mubr.f32.mxu0 0.0
  %5662 = vmatmul.mubr.f32.gmra.mrb[0].mxu0 %v5586
  %v5663 = vpop.f32.mrb[0].mxu0
  %v5664 = vadd.f32 0.0, %v5663
  %v5665 = vpop.f32.mrb[0].mxu0
  %5666 = vmatprep.mubr.f32.mxu0 0.0
  %5667 = vmatmul.mubr.f32.gmra.mrb[0].mxu0 %v5589
  %v5668 = vpop.f32.mrb[0].mxu0
  %v5669 = vadd.f32 0.0, %v5668
  %v5670 = vpop.f32.mrb[0].mxu0
  %5671 = vmatprep.mubr.f32.mxu0 0.0
  %5672 = vmatmul.mubr.f32.gmra.mrb[0].mxu0 %v5592
  %v5673 = vpop.f32.mrb[0].mxu0
  %v5674 = vadd.f32 0.0, %v5673
  %v5675 = vpop.f32.mrb[0].mxu0
  %5676 = vmatprep.mubr.f32.mxu0 0.0
  %5677 = vmatmul.mubr.f32.gmra.mrb[0].mxu0 %v5595
  %v5678 = vpop.f32.mrb[0].mxu0
  %v5679 = vadd.f32 0.0, %v5678
  %v5680 = vpop.f32.mrb[0].mxu0
  %5681 = vdwg.mxu0
  %v5683 = vsel %vm83, %v5564, 0
  %v5686 = vsel %vm83, %v5569, 0
  %v5689 = vsel %vm83, %v5574, 0
  %v5692 = vsel %vm83, %v5579, 0
  %5694 = vmatprep.subr.mxu0 0.0
  %5695 = vmatpush1.msra.mxu0 %v5583
  %5696 = vmatprep.subr.mxu0 0.0
  %5697 = vmatpush1.msra.mxu0 %v5584
  %5698 = vmatprep.subr.mxu0 0.0
  %5699 = vmatpush1.msra.mxu0 0.0
  %5700 = vmatprep.subr.mxu0 0.0
  %5701 = vmatpush1.msra.mxu0 0.0
  %5702 = vmatprep.subr.mxu0 0.0
  %5703 = vmatpush1.msra.mxu0 0.0
  %5704 = vmatprep.subr.mxu0 0.0
  %5705 = vmatpush1.msra.mxu0 0.0
  %5706 = vmatprep.subr.mxu0 0.0
  %5707 = vmatpush1.msra.mxu0 0.0
  %5708 = vmatprep.subr.mxu0 0.0
  %5709 = vmatpush1.msra.mxu0 0.0
  %5710 = vmatprep.subr.mxu0 0.0
  %5711 = vmatpush1.msra.mxu0 0.0
  %5712 = vmatprep.subr.mxu0 0.0
  %5713 = vmatpush1.msra.mxu0 0.0
  %5714 = vmatprep.subr.mxu0 0.0
  %5715 = vmatpush1.msra.mxu0 0.0
  %5716 = vmatprep.subr.mxu0 0.0
  %5717 = vmatpush1.msra.mxu0 0.0
  %5718 = vmatprep.subr.mxu0 0.0
  %5719 = vmatpush1.msra.mxu0 0.0
  %5720 = vmatprep.subr.mxu0 0.0
  %5721 = vmatpush1.msra.mxu0 0.0
  %5722 = vmatprep.subr.mxu0 0.0
  %5723 = vmatpush1.msra.mxu0 0.0
  %5724 = vmatprep.subr.mxu0 0.0
  %5725 = vmatpush1.msra.mxu0 0.0
  %5726 = vmatprep.subr.mxu0 0.0
  %5727 = vmatpush1.msra.mxu0 0.0
  %5728 = vmatprep.subr.mxu0 0.0
  %5729 = vmatpush1.msra.mxu0 0.0
  %5730 = vmatprep.subr.mxu0 0.0
  %5731 = vmatpush1.msra.mxu0 0.0
  %5732 = vmatprep.subr.mxu0 0.0
  %5733 = vmatpush1.msra.mxu0 0.0
  %5734 = vmatprep.subr.mxu0 0.0
  %5735 = vmatpush1.msra.mxu0 0.0
  %5736 = vmatprep.subr.mxu0 0.0
  %5737 = vmatpush1.msra.mxu0 0.0
  %5738 = vmatprep.subr.mxu0 0.0
  %5739 = vmatpush1.msra.mxu0 0.0
  %5740 = vmatprep.subr.mxu0 0.0
  %5741 = vmatpush1.msra.mxu0 0.0
  %5742 = vmatprep.subr.mxu0 0.0
  %5743 = vmatpush1.msra.mxu0 0.0
  %5744 = vmatprep.subr.mxu0 0.0
  %5745 = vmatpush1.msra.mxu0 0.0
  %5746 = vmatprep.subr.mxu0 0.0
  %5747 = vmatpush1.msra.mxu0 0.0
  %5748 = vmatprep.subr.mxu0 0.0
  %5749 = vmatpush1.msra.mxu0 0.0
  %5750 = vmatprep.subr.mxu0 0.0
  %5751 = vmatpush1.msra.mxu0 0.0
  %5752 = vmatprep.subr.mxu0 0.0
  %5753 = vmatpush1.msra.mxu0 0.0
  %5754 = vmatprep.subr.mxu0 0.0
  %5755 = vmatpush1.msra.mxu0 0.0
  %5756 = vmatprep.subr.mxu0 0.0
  %5757 = vmatpush1.msra.mxu0 0.0
  %5758 = vmatprep.mubr.f32.mxu0 0.0
  %5759 = vmatmul.mubr.f32.gmra.mrb[0].mxu0 %v5683
  %v5760 = vpop.f32.mrb[0].mxu0
  %v5761 = vadd.f32 0.0, %v5760
  %v5762 = vpop.f32.mrb[0].mxu0
  %5763 = vmatprep.mubr.f32.mxu0 0.0
  %5764 = vmatmul.mubr.f32.gmra.mrb[0].mxu0 %v5686
  %v5765 = vpop.f32.mrb[0].mxu0
  %v5766 = vadd.f32 0.0, %v5765
  %v5767 = vpop.f32.mrb[0].mxu0
  %5768 = vmatprep.mubr.f32.mxu0 0.0
  %5769 = vmatmul.mubr.f32.gmra.mrb[0].mxu0 %v5689
  %v5770 = vpop.f32.mrb[0].mxu0
  %v5771 = vadd.f32 0.0, %v5770
  %v5772 = vpop.f32.mrb[0].mxu0
  %5773 = vmatprep.mubr.f32.mxu0 0.0
  %5774 = vmatmul.mubr.f32.gmra.mrb[0].mxu0 %v5692
  %v5775 = vpop.f32.mrb[0].mxu0
  %v5776 = vadd.f32 0.0, %v5775
  %v5777 = vpop.f32.mrb[0].mxu0
  %5778 = vdwg.mxu0
  %v5779 = vadd.f32 %v5352, %v5664
  %v5780 = vadd.f32 %v5353, %v5669
  %v5781 = vadd.f32 %v5354, %v5674
  %v5782 = vadd.f32 %v5355, %v5679
  %v5783 = vadd.f32 %v5356, %v5761
  %v5784 = vadd.f32 %v5357, %v5766
  %v5785 = vadd.f32 %v5358, %v5771
  %v5786 = vadd.f32 %v5359, %v5776
  %v5787 = vadd.s32 %v1099, 29
  %v5788 = vadd.s32 %v1100, 29
  %v5789 = vadd.s32 %v1101, 29
  %v5790 = vadd.s32 %v1102, 29
  %5791 = vset.pattern.permute.xlu0 0
  %5792 = vperm.xlu0 %5791, %v5787
  %v5793 = vpop.permute.xlu0 %5792
  %5794 = vset.pattern.permute.xlu0 0
  %5795 = vperm.xlu0 %5794, %v5788
  %v5796 = vpop.permute.xlu0 %5795
  %5797 = vset.pattern.permute.xlu0 0
  %5798 = vperm.xlu0 %5797, %v5789
  %v5799 = vpop.permute.xlu0 %5798
  %5800 = vset.pattern.permute.xlu0 0
  %5801 = vperm.xlu0 %5800, %v5790
  %v5802 = vpop.permute.xlu0 %5801
  %vm5803 = vcmp.eq.s32.totalorder %v1097, %v5793
  %vm5804 = vcmp.eq.s32.totalorder %v1098, %v5793
  %vm5805 = vcmp.eq.s32.totalorder %v1097, %v5796
  %vm5806 = vcmp.eq.s32.totalorder %v1098, %v5796
  %vm5807 = vcmp.eq.s32.totalorder %v1097, %v5799
  %vm5808 = vcmp.eq.s32.totalorder %v1098, %v5799
  %vm5809 = vcmp.eq.s32.totalorder %v1097, %v5802
  %vm5810 = vcmp.eq.s32.totalorder %v1098, %v5802
  %v5811 = vsel %vm5803, 1, 0
  %v5812 = vsel %vm5804, 1, 0
  %v5813 = vsel %vm5805, 1, 0
  %v5814 = vsel %vm5806, 1, 0
  %v5815 = vsel %vm5807, 1, 0
  %v5816 = vsel %vm5808, 1, 0
  %v5817 = vsel %vm5809, 1, 0
  %v5818 = vsel %vm5810, 1, 0
  %v5819 = vcvt.s32.f32 %v5811
  %v5820 = vcvt.s32.f32 %v5812
  %v5821 = vcvt.s32.f32 %v5813
  %v5822 = vcvt.s32.f32 %v5814
  %v5823 = vcvt.s32.f32 %v5815
  %v5824 = vcvt.s32.f32 %v5816
  %v5825 = vcvt.s32.f32 %v5817
  %v5826 = vcvt.s32.f32 %v5818
  %v5828 = vsel %vm1139, %v5820, 0
  %v5831 = vsel %vm1139, %v5822, 0
  %v5834 = vsel %vm1139, %v5824, 0
  %v5837 = vsel %vm1139, %v5826, 0
  %5839 = vmatprep.subr.mxu0 0.0
  %5840 = vmatpush1.msra.mxu0 %v1052
  %5841 = vmatprep.subr.mxu0 0.0
  %5842 = vmatpush1.msra.mxu0 %v1053
  %5843 = vmatprep.subr.mxu0 0.0
  %5844 = vmatpush1.msra.mxu0 %v1054
  %5845 = vmatprep.subr.mxu0 0.0
  %5846 = vmatpush1.msra.mxu0 %v1055
  %5847 = vmatprep.subr.mxu0 0.0
  %5848 = vmatpush1.msra.mxu0 %v1056
  %5849 = vmatprep.subr.mxu0 0.0
  %5850 = vmatpush1.msra.mxu0 %v1057
  %5851 = vmatprep.subr.mxu0 0.0
  %5852 = vmatpush1.msra.mxu0 %v1058
  %5853 = vmatprep.subr.mxu0 0.0
  %5854 = vmatpush1.msra.mxu0 %v1059
  %5855 = vmatprep.subr.mxu0 0.0
  %5856 = vmatpush1.msra.mxu0 %v1060
  %5857 = vmatprep.subr.mxu0 0.0
  %5858 = vmatpush1.msra.mxu0 %v1061
  %5859 = vmatprep.subr.mxu0 0.0
  %5860 = vmatpush1.msra.mxu0 %v1062
  %5861 = vmatprep.subr.mxu0 0.0
  %5862 = vmatpush1.msra.mxu0 %v1063
  %5863 = vmatprep.subr.mxu0 0.0
  %5864 = vmatpush1.msra.mxu0 %v1064
  %5865 = vmatprep.subr.mxu0 0.0
  %5866 = vmatpush1.msra.mxu0 %v1065
  %5867 = vmatprep.subr.mxu0 0.0
  %5868 = vmatpush1.msra.mxu0 %v1066
  %5869 = vmatprep.subr.mxu0 0.0
  %5870 = vmatpush1.msra.mxu0 %v1067
  %5871 = vmatprep.subr.mxu0 0.0
  %5872 = vmatpush1.msra.mxu0 %v1068
  %5873 = vmatprep.subr.mxu0 0.0
  %5874 = vmatpush1.msra.mxu0 %v1069
  %5875 = vmatprep.subr.mxu0 0.0
  %5876 = vmatpush1.msra.mxu0 %v1070
  %5877 = vmatprep.subr.mxu0 0.0
  %5878 = vmatpush1.msra.mxu0 %v1071
  %5879 = vmatprep.subr.mxu0 0.0
  %5880 = vmatpush1.msra.mxu0 %v1072
  %5881 = vmatprep.subr.mxu0 0.0
  %5882 = vmatpush1.msra.mxu0 %v1154
  %5883 = vmatprep.subr.mxu0 0.0
  %5884 = vmatpush1.msra.mxu0 0.0
  %5885 = vmatprep.subr.mxu0 0.0
  %5886 = vmatpush1.msra.mxu0 0.0
  %5887 = vmatprep.subr.mxu0 0.0
  %5888 = vmatpush1.msra.mxu0 0.0
  %5889 = vmatprep.subr.mxu0 0.0
  %5890 = vmatpush1.msra.mxu0 0.0
  %5891 = vmatprep.subr.mxu0 0.0
  %5892 = vmatpush1.msra.mxu0 0.0
  %5893 = vmatprep.subr.mxu0 0.0
  %5894 = vmatpush1.msra.mxu0 0.0
  %5895 = vmatprep.subr.mxu0 0.0
  %5896 = vmatpush1.msra.mxu0 0.0
  %5897 = vmatprep.subr.mxu0 0.0
  %5898 = vmatpush1.msra.mxu0 0.0
  %5899 = vmatprep.subr.mxu0 0.0
  %5900 = vmatpush1.msra.mxu0 0.0
  %5901 = vmatprep.subr.mxu0 0.0
  %5902 = vmatpush1.msra.mxu0 0.0
  %5903 = vmatprep.mubr.f32.mxu0 %v5828
  %5904 = vmatmul.mubr.f32.gmra.mrb[0].mxu0 %v5819
  %v5905 = vpop.f32.mrb[0].mxu0
  %v5906 = vadd.f32 0.0, %v5905
  %v5907 = vpop.f32.mrb[0].mxu0
  %5908 = vmatprep.mubr.f32.mxu0 %v5831
  %5909 = vmatmul.mubr.f32.gmra.mrb[0].mxu0 %v5821
  %v5910 = vpop.f32.mrb[0].mxu0
  %v5911 = vadd.f32 0.0, %v5910
  %v5912 = vpop.f32.mrb[0].mxu0
  %5913 = vmatprep.mubr.f32.mxu0 %v5834
  %5914 = vmatmul.mubr.f32.gmra.mrb[0].mxu0 %v5823
  %v5915 = vpop.f32.mrb[0].mxu0
  %v5916 = vadd.f32 0.0, %v5915
  %v5917 = vpop.f32.mrb[0].mxu0
  %5918 = vmatprep.mubr.f32.mxu0 %v5837
  %5919 = vmatmul.mubr.f32.gmra.mrb[0].mxu0 %v5825
  %v5920 = vpop.f32.mrb[0].mxu0
  %v5921 = vadd.f32 0.0, %v5920
  %v5922 = vpop.f32.mrb[0].mxu0
  %5923 = vdwg.mxu0
  %5924 = vmatprep.subr.mxu0 0.0
  %5925 = vmatpush1.msra.mxu0 %v1074
  %5926 = vmatprep.subr.mxu0 0.0
  %5927 = vmatpush1.msra.mxu0 %v1075
  %5928 = vmatprep.subr.mxu0 0.0
  %5929 = vmatpush1.msra.mxu0 %v1076
  %5930 = vmatprep.subr.mxu0 0.0
  %5931 = vmatpush1.msra.mxu0 %v1077
  %5932 = vmatprep.subr.mxu0 0.0
  %5933 = vmatpush1.msra.mxu0 %v1078
  %5934 = vmatprep.subr.mxu0 0.0
  %5935 = vmatpush1.msra.mxu0 %v1079
  %5936 = vmatprep.subr.mxu0 0.0
  %5937 = vmatpush1.msra.mxu0 %v1080
  %5938 = vmatprep.subr.mxu0 0.0
  %5939 = vmatpush1.msra.mxu0 %v1081
  %5940 = vmatprep.subr.mxu0 0.0
  %5941 = vmatpush1.msra.mxu0 %v1082
  %5942 = vmatprep.subr.mxu0 0.0
  %5943 = vmatpush1.msra.mxu0 %v1083
  %5944 = vmatprep.subr.mxu0 0.0
  %5945 = vmatpush1.msra.mxu0 %v1084
  %5946 = vmatprep.subr.mxu0 0.0
  %5947 = vmatpush1.msra.mxu0 %v1085
  %5948 = vmatprep.subr.mxu0 0.0
  %5949 = vmatpush1.msra.mxu0 %v1086
  %5950 = vmatprep.subr.mxu0 0.0
  %5951 = vmatpush1.msra.mxu0 %v1087
  %5952 = vmatprep.subr.mxu0 0.0
  %5953 = vmatpush1.msra.mxu0 %v1088
  %5954 = vmatprep.subr.mxu0 0.0
  %5955 = vmatpush1.msra.mxu0 %v1089
  %5956 = vmatprep.subr.mxu0 0.0
  %5957 = vmatpush1.msra.mxu0 %v1090
  %5958 = vmatprep.subr.mxu0 0.0
  %5959 = vmatpush1.msra.mxu0 %v1091
  %5960 = vmatprep.subr.mxu0 0.0
  %5961 = vmatpush1.msra.mxu0 %v1092
  %5962 = vmatprep.subr.mxu0 0.0
  %5963 = vmatpush1.msra.mxu0 %v1093
  %5964 = vmatprep.subr.mxu0 0.0
  %5965 = vmatpush1.msra.mxu0 %v1094
  %5966 = vmatprep.subr.mxu0 0.0
  %5967 = vmatpush1.msra.mxu0 %v1242
  %5968 = vmatprep.subr.mxu0 0.0
  %5969 = vmatpush1.msra.mxu0 0.0
  %5970 = vmatprep.subr.mxu0 0.0
  %5971 = vmatpush1.msra.mxu0 0.0
  %5972 = vmatprep.subr.mxu0 0.0
  %5973 = vmatpush1.msra.mxu0 0.0
  %5974 = vmatprep.subr.mxu0 0.0
  %5975 = vmatpush1.msra.mxu0 0.0
  %5976 = vmatprep.subr.mxu0 0.0
  %5977 = vmatpush1.msra.mxu0 0.0
  %5978 = vmatprep.subr.mxu0 0.0
  %5979 = vmatpush1.msra.mxu0 0.0
  %5980 = vmatprep.subr.mxu0 0.0
  %5981 = vmatpush1.msra.mxu0 0.0
  %5982 = vmatprep.subr.mxu0 0.0
  %5983 = vmatpush1.msra.mxu0 0.0
  %5984 = vmatprep.subr.mxu0 0.0
  %5985 = vmatpush1.msra.mxu0 0.0
  %5986 = vmatprep.subr.mxu0 0.0
  %5987 = vmatpush1.msra.mxu0 0.0
  %5988 = vmatprep.mubr.f32.mxu0 %v5828
  %5989 = vmatmul.mubr.f32.gmra.mrb[0].mxu0 %v5819
  %v5990 = vpop.f32.mrb[0].mxu0
  %v5991 = vadd.f32 0.0, %v5990
  %v5992 = vpop.f32.mrb[0].mxu0
  %5993 = vmatprep.mubr.f32.mxu0 %v5831
  %5994 = vmatmul.mubr.f32.gmra.mrb[0].mxu0 %v5821
  %v5995 = vpop.f32.mrb[0].mxu0
  %v5996 = vadd.f32 0.0, %v5995
  %v5997 = vpop.f32.mrb[0].mxu0
  %5998 = vmatprep.mubr.f32.mxu0 %v5834
  %5999 = vmatmul.mubr.f32.gmra.mrb[0].mxu0 %v5823
  %v6000 = vpop.f32.mrb[0].mxu0
  %v6001 = vadd.f32 0.0, %v6000
  %v6002 = vpop.f32.mrb[0].mxu0
  %6003 = vmatprep.mubr.f32.mxu0 %v5837
  %6004 = vmatmul.mubr.f32.gmra.mrb[0].mxu0 %v5825
  %v6005 = vpop.f32.mrb[0].mxu0
  %v6006 = vadd.f32 0.0, %v6005
  %v6007 = vpop.f32.mrb[0].mxu0
  %6008 = vdwg.mxu0
  %s6009 = scalar_lea.vmem %s5, 176
  %v6010 = vld [vmem:[%s6009] sm:$0xff]
  %v6011 = vld [vmem:[%s6009 + $0x8] sm:$0xff]
  %v6013 = vsel %vm83, %v5906, 0
  %v6016 = vsel %vm83, %v5911, 0
  %v6019 = vsel %vm83, %v5916, 0
  %v6022 = vsel %vm83, %v5921, 0
  %6024 = vmatprep.subr.mxu0 0.0
  %6025 = vmatpush1.msra.mxu0 %v6010
  %6026 = vmatprep.subr.mxu0 0.0
  %6027 = vmatpush1.msra.mxu0 %v6011
  %6028 = vmatprep.subr.mxu0 0.0
  %6029 = vmatpush1.msra.mxu0 0.0
  %6030 = vmatprep.subr.mxu0 0.0
  %6031 = vmatpush1.msra.mxu0 0.0
  %6032 = vmatprep.subr.mxu0 0.0
  %6033 = vmatpush1.msra.mxu0 0.0
  %6034 = vmatprep.subr.mxu0 0.0
  %6035 = vmatpush1.msra.mxu0 0.0
  %6036 = vmatprep.subr.mxu0 0.0
  %6037 = vmatpush1.msra.mxu0 0.0
  %6038 = vmatprep.subr.mxu0 0.0
  %6039 = vmatpush1.msra.mxu0 0.0
  %6040 = vmatprep.subr.mxu0 0.0
  %6041 = vmatpush1.msra.mxu0 0.0
  %6042 = vmatprep.subr.mxu0 0.0
  %6043 = vmatpush1.msra.mxu0 0.0
  %6044 = vmatprep.subr.mxu0 0.0
  %6045 = vmatpush1.msra.mxu0 0.0
  %6046 = vmatprep.subr.mxu0 0.0
  %6047 = vmatpush1.msra.mxu0 0.0
  %6048 = vmatprep.subr.mxu0 0.0
  %6049 = vmatpush1.msra.mxu0 0.0
  %6050 = vmatprep.subr.mxu0 0.0
  %6051 = vmatpush1.msra.mxu0 0.0
  %6052 = vmatprep.subr.mxu0 0.0
  %6053 = vmatpush1.msra.mxu0 0.0
  %6054 = vmatprep.subr.mxu0 0.0
  %6055 = vmatpush1.msra.mxu0 0.0
  %6056 = vmatprep.subr.mxu0 0.0
  %6057 = vmatpush1.msra.mxu0 0.0
  %6058 = vmatprep.subr.mxu0 0.0
  %6059 = vmatpush1.msra.mxu0 0.0
  %6060 = vmatprep.subr.mxu0 0.0
  %6061 = vmatpush1.msra.mxu0 0.0
  %6062 = vmatprep.subr.mxu0 0.0
  %6063 = vmatpush1.msra.mxu0 0.0
  %6064 = vmatprep.subr.mxu0 0.0
  %6065 = vmatpush1.msra.mxu0 0.0
  %6066 = vmatprep.subr.mxu0 0.0
  %6067 = vmatpush1.msra.mxu0 0.0
  %6068 = vmatprep.subr.mxu0 0.0
  %6069 = vmatpush1.msra.mxu0 0.0
  %6070 = vmatprep.subr.mxu0 0.0
  %6071 = vmatpush1.msra.mxu0 0.0
  %6072 = vmatprep.subr.mxu0 0.0
  %6073 = vmatpush1.msra.mxu0 0.0
  %6074 = vmatprep.subr.mxu0 0.0
  %6075 = vmatpush1.msra.mxu0 0.0
  %6076 = vmatprep.subr.mxu0 0.0
  %6077 = vmatpush1.msra.mxu0 0.0
  %6078 = vmatprep.subr.mxu0 0.0
  %6079 = vmatpush1.msra.mxu0 0.0
  %6080 = vmatprep.subr.mxu0 0.0
  %6081 = vmatpush1.msra.mxu0 0.0
  %6082 = vmatprep.subr.mxu0 0.0
  %6083 = vmatpush1.msra.mxu0 0.0
  %6084 = vmatprep.subr.mxu0 0.0
  %6085 = vmatpush1.msra.mxu0 0.0
  %6086 = vmatprep.subr.mxu0 0.0
  %6087 = vmatpush1.msra.mxu0 0.0
  %6088 = vmatprep.mubr.f32.mxu0 0.0
  %6089 = vmatmul.mubr.f32.gmra.mrb[0].mxu0 %v6013
  %v6090 = vpop.f32.mrb[0].mxu0
  %v6091 = vadd.f32 0.0, %v6090
  %v6092 = vpop.f32.mrb[0].mxu0
  %6093 = vmatprep.mubr.f32.mxu0 0.0
  %6094 = vmatmul.mubr.f32.gmra.mrb[0].mxu0 %v6016
  %v6095 = vpop.f32.mrb[0].mxu0
  %v6096 = vadd.f32 0.0, %v6095
  %v6097 = vpop.f32.mrb[0].mxu0
  %6098 = vmatprep.mubr.f32.mxu0 0.0
  %6099 = vmatmul.mubr.f32.gmra.mrb[0].mxu0 %v6019
  %v6100 = vpop.f32.mrb[0].mxu0
  %v6101 = vadd.f32 0.0, %v6100
  %v6102 = vpop.f32.mrb[0].mxu0
  %6103 = vmatprep.mubr.f32.mxu0 0.0
  %6104 = vmatmul.mubr.f32.gmra.mrb[0].mxu0 %v6022
  %v6105 = vpop.f32.mrb[0].mxu0
  %v6106 = vadd.f32 0.0, %v6105
  %v6107 = vpop.f32.mrb[0].mxu0
  %6108 = vdwg.mxu0
  %v6110 = vsel %vm83, %v5991, 0
  %v6113 = vsel %vm83, %v5996, 0
  %v6116 = vsel %vm83, %v6001, 0
  %v6119 = vsel %vm83, %v6006, 0
  %6121 = vmatprep.subr.mxu0 0.0
  %6122 = vmatpush1.msra.mxu0 %v6010
  %6123 = vmatprep.subr.mxu0 0.0
  %6124 = vmatpush1.msra.mxu0 %v6011
  %6125 = vmatprep.subr.mxu0 0.0
  %6126 = vmatpush1.msra.mxu0 0.0
  %6127 = vmatprep.subr.mxu0 0.0
  %6128 = vmatpush1.msra.mxu0 0.0
  %6129 = vmatprep.subr.mxu0 0.0
  %6130 = vmatpush1.msra.mxu0 0.0
  %6131 = vmatprep.subr.mxu0 0.0
  %6132 = vmatpush1.msra.mxu0 0.0
  %6133 = vmatprep.subr.mxu0 0.0
  %6134 = vmatpush1.msra.mxu0 0.0
  %6135 = vmatprep.subr.mxu0 0.0
  %6136 = vmatpush1.msra.mxu0 0.0
  %6137 = vmatprep.subr.mxu0 0.0
  %6138 = vmatpush1.msra.mxu0 0.0
  %6139 = vmatprep.subr.mxu0 0.0
  %6140 = vmatpush1.msra.mxu0 0.0
  %6141 = vmatprep.subr.mxu0 0.0
  %6142 = vmatpush1.msra.mxu0 0.0
  %6143 = vmatprep.subr.mxu0 0.0
  %6144 = vmatpush1.msra.mxu0 0.0
  %6145 = vmatprep.subr.mxu0 0.0
  %6146 = vmatpush1.msra.mxu0 0.0
  %6147 = vmatprep.subr.mxu0 0.0
  %6148 = vmatpush1.msra.mxu0 0.0
  %6149 = vmatprep.subr.mxu0 0.0
  %6150 = vmatpush1.msra.mxu0 0.0
  %6151 = vmatprep.subr.mxu0 0.0
  %6152 = vmatpush1.msra.mxu0 0.0
  %6153 = vmatprep.subr.mxu0 0.0
  %6154 = vmatpush1.msra.mxu0 0.0
  %6155 = vmatprep.subr.mxu0 0.0
  %6156 = vmatpush1.msra.mxu0 0.0
  %6157 = vmatprep.subr.mxu0 0.0
  %6158 = vmatpush1.msra.mxu0 0.0
  %6159 = vmatprep.subr.mxu0 0.0
  %6160 = vmatpush1.msra.mxu0 0.0
  %6161 = vmatprep.subr.mxu0 0.0
  %6162 = vmatpush1.msra.mxu0 0.0
  %6163 = vmatprep.subr.mxu0 0.0
  %6164 = vmatpush1.msra.mxu0 0.0
  %6165 = vmatprep.subr.mxu0 0.0
  %6166 = vmatpush1.msra.mxu0 0.0
  %6167 = vmatprep.subr.mxu0 0.0
  %6168 = vmatpush1.msra.mxu0 0.0
  %6169 = vmatprep.subr.mxu0 0.0
  %6170 = vmatpush1.msra.mxu0 0.0
  %6171 = vmatprep.subr.mxu0 0.0
  %6172 = vmatpush1.msra.mxu0 0.0
  %6173 = vmatprep.subr.mxu0 0.0
  %6174 = vmatpush1.msra.mxu0 0.0
  %6175 = vmatprep.subr.mxu0 0.0
  %6176 = vmatpush1.msra.mxu0 0.0
  %6177 = vmatprep.subr.mxu0 0.0
  %6178 = vmatpush1.msra.mxu0 0.0
  %6179 = vmatprep.subr.mxu0 0.0
  %6180 = vmatpush1.msra.mxu0 0.0
  %6181 = vmatprep.subr.mxu0 0.0
  %6182 = vmatpush1.msra.mxu0 0.0
  %6183 = vmatprep.subr.mxu0 0.0
  %6184 = vmatpush1.msra.mxu0 0.0
  %6185 = vmatprep.mubr.f32.mxu0 0.0
  %6186 = vmatmul.mubr.f32.gmra.mrb[0].mxu0 %v6110
  %v6187 = vpop.f32.mrb[0].mxu0
  %v6188 = vadd.f32 0.0, %v6187
  %v6189 = vpop.f32.mrb[0].mxu0
  %6190 = vmatprep.mubr.f32.mxu0 0.0
  %6191 = vmatmul.mubr.f32.gmra.mrb[0].mxu0 %v6113
  %v6192 = vpop.f32.mrb[0].mxu0
  %v6193 = vadd.f32 0.0, %v6192
  %v6194 = vpop.f32.mrb[0].mxu0
  %6195 = vmatprep.mubr.f32.mxu0 0.0
  %6196 = vmatmul.mubr.f32.gmra.mrb[0].mxu0 %v6116
  %v6197 = vpop.f32.mrb[0].mxu0
  %v6198 = vadd.f32 0.0, %v6197
  %v6199 = vpop.f32.mrb[0].mxu0
  %6200 = vmatprep.mubr.f32.mxu0 0.0
  %6201 = vmatmul.mubr.f32.gmra.mrb[0].mxu0 %v6119
  %v6202 = vpop.f32.mrb[0].mxu0
  %v6203 = vadd.f32 0.0, %v6202
  %v6204 = vpop.f32.mrb[0].mxu0
  %6205 = vdwg.mxu0
  %v6206 = vadd.f32 %v5779, %v6091
  %v6207 = vadd.f32 %v5780, %v6096
  %v6208 = vadd.f32 %v5781, %v6101
  %v6209 = vadd.f32 %v5782, %v6106
  %v6210 = vadd.f32 %v5783, %v6188
  %v6211 = vadd.f32 %v5784, %v6193
  %v6212 = vadd.f32 %v5785, %v6198
  %v6213 = vadd.f32 %v5786, %v6203
  %v6214 = vadd.s32 %v1099, 39
  %v6215 = vadd.s32 %v1100, 39
  %v6216 = vadd.s32 %v1101, 39
  %v6217 = vadd.s32 %v1102, 39
  %6218 = vset.pattern.permute.xlu0 0
  %6219 = vperm.xlu0 %6218, %v6214
  %v6220 = vpop.permute.xlu0 %6219
  %6221 = vset.pattern.permute.xlu0 0
  %6222 = vperm.xlu0 %6221, %v6215
  %v6223 = vpop.permute.xlu0 %6222
  %6224 = vset.pattern.permute.xlu0 0
  %6225 = vperm.xlu0 %6224, %v6216
  %v6226 = vpop.permute.xlu0 %6225
  %6227 = vset.pattern.permute.xlu0 0
  %6228 = vperm.xlu0 %6227, %v6217
  %v6229 = vpop.permute.xlu0 %6228
  %vm6230 = vcmp.eq.s32.totalorder %v1097, %v6220
  %vm6231 = vcmp.eq.s32.totalorder %v1098, %v6220
  %vm6232 = vcmp.eq.s32.totalorder %v1097, %v6223
  %vm6233 = vcmp.eq.s32.totalorder %v1098, %v6223
  %vm6234 = vcmp.eq.s32.totalorder %v1097, %v6226
  %vm6235 = vcmp.eq.s32.totalorder %v1098, %v6226
  %vm6236 = vcmp.eq.s32.totalorder %v1097, %v6229
  %vm6237 = vcmp.eq.s32.totalorder %v1098, %v6229
  %v6238 = vsel %vm6230, 1, 0
  %v6239 = vsel %vm6231, 1, 0
  %v6240 = vsel %vm6232, 1, 0
  %v6241 = vsel %vm6233, 1, 0
  %v6242 = vsel %vm6234, 1, 0
  %v6243 = vsel %vm6235, 1, 0
  %v6244 = vsel %vm6236, 1, 0
  %v6245 = vsel %vm6237, 1, 0
  %v6246 = vcvt.s32.f32 %v6238
  %v6247 = vcvt.s32.f32 %v6239
  %v6248 = vcvt.s32.f32 %v6240
  %v6249 = vcvt.s32.f32 %v6241
  %v6250 = vcvt.s32.f32 %v6242
  %v6251 = vcvt.s32.f32 %v6243
  %v6252 = vcvt.s32.f32 %v6244
  %v6253 = vcvt.s32.f32 %v6245
  %v6255 = vsel %vm1139, %v6247, 0
  %v6258 = vsel %vm1139, %v6249, 0
  %v6261 = vsel %vm1139, %v6251, 0
  %v6264 = vsel %vm1139, %v6253, 0
  %6266 = vmatprep.subr.mxu0 0.0
  %6267 = vmatpush1.msra.mxu0 %v1052
  %6268 = vmatprep.subr.mxu0 0.0
  %6269 = vmatpush1.msra.mxu0 %v1053
  %6270 = vmatprep.subr.mxu0 0.0
  %6271 = vmatpush1.msra.mxu0 %v1054
  %6272 = vmatprep.subr.mxu0 0.0
  %6273 = vmatpush1.msra.mxu0 %v1055
  %6274 = vmatprep.subr.mxu0 0.0
  %6275 = vmatpush1.msra.mxu0 %v1056
  %6276 = vmatprep.subr.mxu0 0.0
  %6277 = vmatpush1.msra.mxu0 %v1057
  %6278 = vmatprep.subr.mxu0 0.0
  %6279 = vmatpush1.msra.mxu0 %v1058
  %6280 = vmatprep.subr.mxu0 0.0
  %6281 = vmatpush1.msra.mxu0 %v1059
  %6282 = vmatprep.subr.mxu0 0.0
  %6283 = vmatpush1.msra.mxu0 %v1060
  %6284 = vmatprep.subr.mxu0 0.0
  %6285 = vmatpush1.msra.mxu0 %v1061
  %6286 = vmatprep.subr.mxu0 0.0
  %6287 = vmatpush1.msra.mxu0 %v1062
  %6288 = vmatprep.subr.mxu0 0.0
  %6289 = vmatpush1.msra.mxu0 %v1063
  %6290 = vmatprep.subr.mxu0 0.0
  %6291 = vmatpush1.msra.mxu0 %v1064
  %6292 = vmatprep.subr.mxu0 0.0
  %6293 = vmatpush1.msra.mxu0 %v1065
  %6294 = vmatprep.subr.mxu0 0.0
  %6295 = vmatpush1.msra.mxu0 %v1066
  %6296 = vmatprep.subr.mxu0 0.0
  %6297 = vmatpush1.msra.mxu0 %v1067
  %6298 = vmatprep.subr.mxu0 0.0
  %6299 = vmatpush1.msra.mxu0 %v1068
  %6300 = vmatprep.subr.mxu0 0.0
  %6301 = vmatpush1.msra.mxu0 %v1069
  %6302 = vmatprep.subr.mxu0 0.0
  %6303 = vmatpush1.msra.mxu0 %v1070
  %6304 = vmatprep.subr.mxu0 0.0
  %6305 = vmatpush1.msra.mxu0 %v1071
  %6306 = vmatprep.subr.mxu0 0.0
  %6307 = vmatpush1.msra.mxu0 %v1072
  %6308 = vmatprep.subr.mxu0 0.0
  %6309 = vmatpush1.msra.mxu0 %v1154
  %6310 = vmatprep.subr.mxu0 0.0
  %6311 = vmatpush1.msra.mxu0 0.0
  %6312 = vmatprep.subr.mxu0 0.0
  %6313 = vmatpush1.msra.mxu0 0.0
  %6314 = vmatprep.subr.mxu0 0.0
  %6315 = vmatpush1.msra.mxu0 0.0
  %6316 = vmatprep.subr.mxu0 0.0
  %6317 = vmatpush1.msra.mxu0 0.0
  %6318 = vmatprep.subr.mxu0 0.0
  %6319 = vmatpush1.msra.mxu0 0.0
  %6320 = vmatprep.subr.mxu0 0.0
  %6321 = vmatpush1.msra.mxu0 0.0
  %6322 = vmatprep.subr.mxu0 0.0
  %6323 = vmatpush1.msra.mxu0 0.0
  %6324 = vmatprep.subr.mxu0 0.0
  %6325 = vmatpush1.msra.mxu0 0.0
  %6326 = vmatprep.subr.mxu0 0.0
  %6327 = vmatpush1.msra.mxu0 0.0
  %6328 = vmatprep.subr.mxu0 0.0
  %6329 = vmatpush1.msra.mxu0 0.0
  %6330 = vmatprep.mubr.f32.mxu0 %v6255
  %6331 = vmatmul.mubr.f32.gmra.mrb[0].mxu0 %v6246
  %v6332 = vpop.f32.mrb[0].mxu0
  %v6333 = vadd.f32 0.0, %v6332
  %v6334 = vpop.f32.mrb[0].mxu0
  %6335 = vmatprep.mubr.f32.mxu0 %v6258
  %6336 = vmatmul.mubr.f32.gmra.mrb[0].mxu0 %v6248
  %v6337 = vpop.f32.mrb[0].mxu0
  %v6338 = vadd.f32 0.0, %v6337
  %v6339 = vpop.f32.mrb[0].mxu0
  %6340 = vmatprep.mubr.f32.mxu0 %v6261
  %6341 = vmatmul.mubr.f32.gmra.mrb[0].mxu0 %v6250
  %v6342 = vpop.f32.mrb[0].mxu0
  %v6343 = vadd.f32 0.0, %v6342
  %v6344 = vpop.f32.mrb[0].mxu0
  %6345 = vmatprep.mubr.f32.mxu0 %v6264
  %6346 = vmatmul.mubr.f32.gmra.mrb[0].mxu0 %v6252
  %v6347 = vpop.f32.mrb[0].mxu0
  %v6348 = vadd.f32 0.0, %v6347
  %v6349 = vpop.f32.mrb[0].mxu0
  %6350 = vdwg.mxu0
  %6351 = vmatprep.subr.mxu0 0.0
  %6352 = vmatpush1.msra.mxu0 %v1074
  %6353 = vmatprep.subr.mxu0 0.0
  %6354 = vmatpush1.msra.mxu0 %v1075
  %6355 = vmatprep.subr.mxu0 0.0
  %6356 = vmatpush1.msra.mxu0 %v1076
  %6357 = vmatprep.subr.mxu0 0.0
  %6358 = vmatpush1.msra.mxu0 %v1077
  %6359 = vmatprep.subr.mxu0 0.0
  %6360 = vmatpush1.msra.mxu0 %v1078
  %6361 = vmatprep.subr.mxu0 0.0
  %6362 = vmatpush1.msra.mxu0 %v1079
  %6363 = vmatprep.subr.mxu0 0.0
  %6364 = vmatpush1.msra.mxu0 %v1080
  %6365 = vmatprep.subr.mxu0 0.0
  %6366 = vmatpush1.msra.mxu0 %v1081
  %6367 = vmatprep.subr.mxu0 0.0
  %6368 = vmatpush1.msra.mxu0 %v1082
  %6369 = vmatprep.subr.mxu0 0.0
  %6370 = vmatpush1.msra.mxu0 %v1083
  %6371 = vmatprep.subr.mxu0 0.0
  %6372 = vmatpush1.msra.mxu0 %v1084
  %6373 = vmatprep.subr.mxu0 0.0
  %6374 = vmatpush1.msra.mxu0 %v1085
  %6375 = vmatprep.subr.mxu0 0.0
  %6376 = vmatpush1.msra.mxu0 %v1086
  %6377 = vmatprep.subr.mxu0 0.0
  %6378 = vmatpush1.msra.mxu0 %v1087
  %6379 = vmatprep.subr.mxu0 0.0
  %6380 = vmatpush1.msra.mxu0 %v1088
  %6381 = vmatprep.subr.mxu0 0.0
  %6382 = vmatpush1.msra.mxu0 %v1089
  %6383 = vmatprep.subr.mxu0 0.0
  %6384 = vmatpush1.msra.mxu0 %v1090
  %6385 = vmatprep.subr.mxu0 0.0
  %6386 = vmatpush1.msra.mxu0 %v1091
  %6387 = vmatprep.subr.mxu0 0.0
  %6388 = vmatpush1.msra.mxu0 %v1092
  %6389 = vmatprep.subr.mxu0 0.0
  %6390 = vmatpush1.msra.mxu0 %v1093
  %6391 = vmatprep.subr.mxu0 0.0
  %6392 = vmatpush1.msra.mxu0 %v1094
  %6393 = vmatprep.subr.mxu0 0.0
  %6394 = vmatpush1.msra.mxu0 %v1242
  %6395 = vmatprep.subr.mxu0 0.0
  %6396 = vmatpush1.msra.mxu0 0.0
  %6397 = vmatprep.subr.mxu0 0.0
  %6398 = vmatpush1.msra.mxu0 0.0
  %6399 = vmatprep.subr.mxu0 0.0
  %6400 = vmatpush1.msra.mxu0 0.0
  %6401 = vmatprep.subr.mxu0 0.0
  %6402 = vmatpush1.msra.mxu0 0.0
  %6403 = vmatprep.subr.mxu0 0.0
  %6404 = vmatpush1.msra.mxu0 0.0
  %6405 = vmatprep.subr.mxu0 0.0
  %6406 = vmatpush1.msra.mxu0 0.0
  %6407 = vmatprep.subr.mxu0 0.0
  %6408 = vmatpush1.msra.mxu0 0.0
  %6409 = vmatprep.subr.mxu0 0.0
  %6410 = vmatpush1.msra.mxu0 0.0
  %6411 = vmatprep.subr.mxu0 0.0
  %6412 = vmatpush1.msra.mxu0 0.0
  %6413 = vmatprep.subr.mxu0 0.0
  %6414 = vmatpush1.msra.mxu0 0.0
  %6415 = vmatprep.mubr.f32.mxu0 %v6255
  %6416 = vmatmul.mubr.f32.gmra.mrb[0].mxu0 %v6246
  %v6417 = vpop.f32.mrb[0].mxu0
  %v6418 = vadd.f32 0.0, %v6417
  %v6419 = vpop.f32.mrb[0].mxu0
  %6420 = vmatprep.mubr.f32.mxu0 %v6258
  %6421 = vmatmul.mubr.f32.gmra.mrb[0].mxu0 %v6248
  %v6422 = vpop.f32.mrb[0].mxu0
  %v6423 = vadd.f32 0.0, %v6422
  %v6424 = vpop.f32.mrb[0].mxu0
  %6425 = vmatprep.mubr.f32.mxu0 %v6261
  %6426 = vmatmul.mubr.f32.gmra.mrb[0].mxu0 %v6250
  %v6427 = vpop.f32.mrb[0].mxu0
  %v6428 = vadd.f32 0.0, %v6427
  %v6429 = vpop.f32.mrb[0].mxu0
  %6430 = vmatprep.mubr.f32.mxu0 %v6264
  %6431 = vmatmul.mubr.f32.gmra.mrb[0].mxu0 %v6252
  %v6432 = vpop.f32.mrb[0].mxu0
  %v6433 = vadd.f32 0.0, %v6432
  %v6434 = vpop.f32.mrb[0].mxu0
  %6435 = vdwg.mxu0
  %s6436 = scalar_lea.vmem %s5, 192
  %v6437 = vld [vmem:[%s6436] sm:$0xff]
  %v6438 = vld [vmem:[%s6436 + $0x8] sm:$0xff]
  %v6440 = vsel %vm83, %v6333, 0
  %v6443 = vsel %vm83, %v6338, 0
  %v6446 = vsel %vm83, %v6343, 0
  %v6449 = vsel %vm83, %v6348, 0
  %6451 = vmatprep.subr.mxu0 0.0
  %6452 = vmatpush1.msra.mxu0 %v6437
  %6453 = vmatprep.subr.mxu0 0.0
  %6454 = vmatpush1.msra.mxu0 %v6438
  %6455 = vmatprep.subr.mxu0 0.0
  %6456 = vmatpush1.msra.mxu0 0.0
  %6457 = vmatprep.subr.mxu0 0.0
  %6458 = vmatpush1.msra.mxu0 0.0
  %6459 = vmatprep.subr.mxu0 0.0
  %6460 = vmatpush1.msra.mxu0 0.0
  %6461 = vmatprep.subr.mxu0 0.0
  %6462 = vmatpush1.msra.mxu0 0.0
  %6463 = vmatprep.subr.mxu0 0.0
  %6464 = vmatpush1.msra.mxu0 0.0
  %6465 = vmatprep.subr.mxu0 0.0
  %6466 = vmatpush1.msra.mxu0 0.0
  %6467 = vmatprep.subr.mxu0 0.0
  %6468 = vmatpush1.msra.mxu0 0.0
  %6469 = vmatprep.subr.mxu0 0.0
  %6470 = vmatpush1.msra.mxu0 0.0
  %6471 = vmatprep.subr.mxu0 0.0
  %6472 = vmatpush1.msra.mxu0 0.0
  %6473 = vmatprep.subr.mxu0 0.0
  %6474 = vmatpush1.msra.mxu0 0.0
  %6475 = vmatprep.subr.mxu0 0.0
  %6476 = vmatpush1.msra.mxu0 0.0
  %6477 = vmatprep.subr.mxu0 0.0
  %6478 = vmatpush1.msra.mxu0 0.0
  %6479 = vmatprep.subr.mxu0 0.0
  %6480 = vmatpush1.msra.mxu0 0.0
  %6481 = vmatprep.subr.mxu0 0.0
  %6482 = vmatpush1.msra.mxu0 0.0
  %6483 = vmatprep.subr.mxu0 0.0
  %6484 = vmatpush1.msra.mxu0 0.0
  %6485 = vmatprep.subr.mxu0 0.0
  %6486 = vmatpush1.msra.mxu0 0.0
  %6487 = vmatprep.subr.mxu0 0.0
  %6488 = vmatpush1.msra.mxu0 0.0
  %6489 = vmatprep.subr.mxu0 0.0
  %6490 = vmatpush1.msra.mxu0 0.0
  %6491 = vmatprep.subr.mxu0 0.0
  %6492 = vmatpush1.msra.mxu0 0.0
  %6493 = vmatprep.subr.mxu0 0.0
  %6494 = vmatpush1.msra.mxu0 0.0
  %6495 = vmatprep.subr.mxu0 0.0
  %6496 = vmatpush1.msra.mxu0 0.0
  %6497 = vmatprep.subr.mxu0 0.0
  %6498 = vmatpush1.msra.mxu0 0.0
  %6499 = vmatprep.subr.mxu0 0.0
  %6500 = vmatpush1.msra.mxu0 0.0
  %6501 = vmatprep.subr.mxu0 0.0
  %6502 = vmatpush1.msra.mxu0 0.0
  %6503 = vmatprep.subr.mxu0 0.0
  %6504 = vmatpush1.msra.mxu0 0.0
  %6505 = vmatprep.subr.mxu0 0.0
  %6506 = vmatpush1.msra.mxu0 0.0
  %6507 = vmatprep.subr.mxu0 0.0
  %6508 = vmatpush1.msra.mxu0 0.0
  %6509 = vmatprep.subr.mxu0 0.0
  %6510 = vmatpush1.msra.mxu0 0.0
  %6511 = vmatprep.subr.mxu0 0.0
  %6512 = vmatpush1.msra.mxu0 0.0
  %6513 = vmatprep.subr.mxu0 0.0
  %6514 = vmatpush1.msra.mxu0 0.0
  %6515 = vmatprep.mubr.f32.mxu0 0.0
  %6516 = vmatmul.mubr.f32.gmra.mrb[0].mxu0 %v6440
  %v6517 = vpop.f32.mrb[0].mxu0
  %v6518 = vadd.f32 0.0, %v6517
  %v6519 = vpop.f32.mrb[0].mxu0
  %6520 = vmatprep.mubr.f32.mxu0 0.0
  %6521 = vmatmul.mubr.f32.gmra.mrb[0].mxu0 %v6443
  %v6522 = vpop.f32.mrb[0].mxu0
  %v6523 = vadd.f32 0.0, %v6522
  %v6524 = vpop.f32.mrb[0].mxu0
  %6525 = vmatprep.mubr.f32.mxu0 0.0
  %6526 = vmatmul.mubr.f32.gmra.mrb[0].mxu0 %v6446
  %v6527 = vpop.f32.mrb[0].mxu0
  %v6528 = vadd.f32 0.0, %v6527
  %v6529 = vpop.f32.mrb[0].mxu0
  %6530 = vmatprep.mubr.f32.mxu0 0.0
  %6531 = vmatmul.mubr.f32.gmra.mrb[0].mxu0 %v6449
  %v6532 = vpop.f32.mrb[0].mxu0
  %v6533 = vadd.f32 0.0, %v6532
  %v6534 = vpop.f32.mrb[0].mxu0
  %6535 = vdwg.mxu0
  %v6537 = vsel %vm83, %v6418, 0
  %v6540 = vsel %vm83, %v6423, 0
  %v6543 = vsel %vm83, %v6428, 0
  %v6546 = vsel %vm83, %v6433, 0
  %6548 = vmatprep.subr.mxu0 0.0
  %6549 = vmatpush1.msra.mxu0 %v6437
  %6550 = vmatprep.subr.mxu0 0.0
  %6551 = vmatpush1.msra.mxu0 %v6438
  %6552 = vmatprep.subr.mxu0 0.0
  %6553 = vmatpush1.msra.mxu0 0.0
  %6554 = vmatprep.subr.mxu0 0.0
  %6555 = vmatpush1.msra.mxu0 0.0
  %6556 = vmatprep.subr.mxu0 0.0
  %6557 = vmatpush1.msra.mxu0 0.0
  %6558 = vmatprep.subr.mxu0 0.0
  %6559 = vmatpush1.msra.mxu0 0.0
  %6560 = vmatprep.subr.mxu0 0.0
  %6561 = vmatpush1.msra.mxu0 0.0
  %6562 = vmatprep.subr.mxu0 0.0
  %6563 = vmatpush1.msra.mxu0 0.0
  %6564 = vmatprep.subr.mxu0 0.0
  %6565 = vmatpush1.msra.mxu0 0.0
  %6566 = vmatprep.subr.mxu0 0.0
  %6567 = vmatpush1.msra.mxu0 0.0
  %6568 = vmatprep.subr.mxu0 0.0
  %6569 = vmatpush1.msra.mxu0 0.0
  %6570 = vmatprep.subr.mxu0 0.0
  %6571 = vmatpush1.msra.mxu0 0.0
  %6572 = vmatprep.subr.mxu0 0.0
  %6573 = vmatpush1.msra.mxu0 0.0
  %6574 = vmatprep.subr.mxu0 0.0
  %6575 = vmatpush1.msra.mxu0 0.0
  %6576 = vmatprep.subr.mxu0 0.0
  %6577 = vmatpush1.msra.mxu0 0.0
  %6578 = vmatprep.subr.mxu0 0.0
  %6579 = vmatpush1.msra.mxu0 0.0
  %6580 = vmatprep.subr.mxu0 0.0
  %6581 = vmatpush1.msra.mxu0 0.0
  %6582 = vmatprep.subr.mxu0 0.0
  %6583 = vmatpush1.msra.mxu0 0.0
  %6584 = vmatprep.subr.mxu0 0.0
  %6585 = vmatpush1.msra.mxu0 0.0
  %6586 = vmatprep.subr.mxu0 0.0
  %6587 = vmatpush1.msra.mxu0 0.0
  %6588 = vmatprep.subr.mxu0 0.0
  %6589 = vmatpush1.msra.mxu0 0.0
  %6590 = vmatprep.subr.mxu0 0.0
  %6591 = vmatpush1.msra.mxu0 0.0
  %6592 = vmatprep.subr.mxu0 0.0
  %6593 = vmatpush1.msra.mxu0 0.0
  %6594 = vmatprep.subr.mxu0 0.0
  %6595 = vmatpush1.msra.mxu0 0.0
  %6596 = vmatprep.subr.mxu0 0.0
  %6597 = vmatpush1.msra.mxu0 0.0
  %6598 = vmatprep.subr.mxu0 0.0
  %6599 = vmatpush1.msra.mxu0 0.0
  %6600 = vmatprep.subr.mxu0 0.0
  %6601 = vmatpush1.msra.mxu0 0.0
  %6602 = vmatprep.subr.mxu0 0.0
  %6603 = vmatpush1.msra.mxu0 0.0
  %6604 = vmatprep.subr.mxu0 0.0
  %6605 = vmatpush1.msra.mxu0 0.0
  %6606 = vmatprep.subr.mxu0 0.0
  %6607 = vmatpush1.msra.mxu0 0.0
  %6608 = vmatprep.subr.mxu0 0.0
  %6609 = vmatpush1.msra.mxu0 0.0
  %6610 = vmatprep.subr.mxu0 0.0
  %6611 = vmatpush1.msra.mxu0 0.0
  %6612 = vmatprep.mubr.f32.mxu0 0.0
  %6613 = vmatmul.mubr.f32.gmra.mrb[0].mxu0 %v6537
  %v6614 = vpop.f32.mrb[0].mxu0
  %v6615 = vadd.f32 0.0, %v6614
  %v6616 = vpop.f32.mrb[0].mxu0
  %6617 = vmatprep.mubr.f32.mxu0 0.0
  %6618 = vmatmul.mubr.f32.gmra.mrb[0].mxu0 %v6540
  %v6619 = vpop.f32.mrb[0].mxu0
  %v6620 = vadd.f32 0.0, %v6619
  %v6621 = vpop.f32.mrb[0].mxu0
  %6622 = vmatprep.mubr.f32.mxu0 0.0
  %6623 = vmatmul.mubr.f32.gmra.mrb[0].mxu0 %v6543
  %v6624 = vpop.f32.mrb[0].mxu0
  %v6625 = vadd.f32 0.0, %v6624
  %v6626 = vpop.f32.mrb[0].mxu0
  %6627 = vmatprep.mubr.f32.mxu0 0.0
  %6628 = vmatmul.mubr.f32.gmra.mrb[0].mxu0 %v6546
  %v6629 = vpop.f32.mrb[0].mxu0
  %v6630 = vadd.f32 0.0, %v6629
  %v6631 = vpop.f32.mrb[0].mxu0
  %6632 = vdwg.mxu0
  %v6633 = vadd.f32 %v6206, %v6518
  %v6634 = vadd.f32 %v6207, %v6523
  %v6635 = vadd.f32 %v6208, %v6528
  %v6636 = vadd.f32 %v6209, %v6533
  %v6637 = vadd.f32 %v6210, %v6615
  %v6638 = vadd.f32 %v6211, %v6620
  %v6639 = vadd.f32 %v6212, %v6625
  %v6640 = vadd.f32 %v6213, %v6630
  %v6641 = vadd.s32 %v1099, 40
  %v6642 = vadd.s32 %v1100, 40
  %v6643 = vadd.s32 %v1101, 40
  %v6644 = vadd.s32 %v1102, 40
  %6645 = vset.pattern.permute.xlu0 0
  %6646 = vperm.xlu0 %6645, %v6641
  %v6647 = vpop.permute.xlu0 %6646
  %6648 = vset.pattern.permute.xlu0 0
  %6649 = vperm.xlu0 %6648, %v6642
  %v6650 = vpop.permute.xlu0 %6649
  %6651 = vset.pattern.permute.xlu0 0
  %6652 = vperm.xlu0 %6651, %v6643
  %v6653 = vpop.permute.xlu0 %6652
  %6654 = vset.pattern.permute.xlu0 0
  %6655 = vperm.xlu0 %6654, %v6644
  %v6656 = vpop.permute.xlu0 %6655
  %vm6657 = vcmp.eq.s32.totalorder %v1097, %v6647
  %vm6658 = vcmp.eq.s32.totalorder %v1098, %v6647
  %vm6659 = vcmp.eq.s32.totalorder %v1097, %v6650
  %vm6660 = vcmp.eq.s32.totalorder %v1098, %v6650
  %vm6661 = vcmp.eq.s32.totalorder %v1097, %v6653
  %vm6662 = vcmp.eq.s32.totalorder %v1098, %v6653
  %vm6663 = vcmp.eq.s32.totalorder %v1097, %v6656
  %vm6664 = vcmp.eq.s32.totalorder %v1098, %v6656
  %v6665 = vsel %vm6657, 1, 0
  %v6666 = vsel %vm6658, 1, 0
  %v6667 = vsel %vm6659, 1, 0
  %v6668 = vsel %vm6660, 1, 0
  %v6669 = vsel %vm6661, 1, 0
  %v6670 = vsel %vm6662, 1, 0
  %v6671 = vsel %vm6663, 1, 0
  %v6672 = vsel %vm6664, 1, 0
  %v6673 = vcvt.s32.f32 %v6665
  %v6674 = vcvt.s32.f32 %v6666
  %v6675 = vcvt.s32.f32 %v6667
  %v6676 = vcvt.s32.f32 %v6668
  %v6677 = vcvt.s32.f32 %v6669
  %v6678 = vcvt.s32.f32 %v6670
  %v6679 = vcvt.s32.f32 %v6671
  %v6680 = vcvt.s32.f32 %v6672
  %v6682 = vsel %vm1139, %v6674, 0
  %v6685 = vsel %vm1139, %v6676, 0
  %v6688 = vsel %vm1139, %v6678, 0
  %v6691 = vsel %vm1139, %v6680, 0
  %6693 = vmatprep.subr.mxu0 0.0
  %6694 = vmatpush1.msra.mxu0 %v1052
  %6695 = vmatprep.subr.mxu0 0.0
  %6696 = vmatpush1.msra.mxu0 %v1053
  %6697 = vmatprep.subr.mxu0 0.0
  %6698 = vmatpush1.msra.mxu0 %v1054
  %6699 = vmatprep.subr.mxu0 0.0
  %6700 = vmatpush1.msra.mxu0 %v1055
  %6701 = vmatprep.subr.mxu0 0.0
  %6702 = vmatpush1.msra.mxu0 %v1056
  %6703 = vmatprep.subr.mxu0 0.0
  %6704 = vmatpush1.msra.mxu0 %v1057
  %6705 = vmatprep.subr.mxu0 0.0
  %6706 = vmatpush1.msra.mxu0 %v1058
  %6707 = vmatprep.subr.mxu0 0.0
  %6708 = vmatpush1.msra.mxu0 %v1059
  %6709 = vmatprep.subr.mxu0 0.0
  %6710 = vmatpush1.msra.mxu0 %v1060
  %6711 = vmatprep.subr.mxu0 0.0
  %6712 = vmatpush1.msra.mxu0 %v1061
  %6713 = vmatprep.subr.mxu0 0.0
  %6714 = vmatpush1.msra.mxu0 %v1062
  %6715 = vmatprep.subr.mxu0 0.0
  %6716 = vmatpush1.msra.mxu0 %v1063
  %6717 = vmatprep.subr.mxu0 0.0
  %6718 = vmatpush1.msra.mxu0 %v1064
  %6719 = vmatprep.subr.mxu0 0.0
  %6720 = vmatpush1.msra.mxu0 %v1065
  %6721 = vmatprep.subr.mxu0 0.0
  %6722 = vmatpush1.msra.mxu0 %v1066
  %6723 = vmatprep.subr.mxu0 0.0
  %6724 = vmatpush1.msra.mxu0 %v1067
  %6725 = vmatprep.subr.mxu0 0.0
  %6726 = vmatpush1.msra.mxu0 %v1068
  %6727 = vmatprep.subr.mxu0 0.0
  %6728 = vmatpush1.msra.mxu0 %v1069
  %6729 = vmatprep.subr.mxu0 0.0
  %6730 = vmatpush1.msra.mxu0 %v1070
  %6731 = vmatprep.subr.mxu0 0.0
  %6732 = vmatpush1.msra.mxu0 %v1071
  %6733 = vmatprep.subr.mxu0 0.0
  %6734 = vmatpush1.msra.mxu0 %v1072
  %6735 = vmatprep.subr.mxu0 0.0
  %6736 = vmatpush1.msra.mxu0 %v1154
  %6737 = vmatprep.subr.mxu0 0.0
  %6738 = vmatpush1.msra.mxu0 0.0
  %6739 = vmatprep.subr.mxu0 0.0
  %6740 = vmatpush1.msra.mxu0 0.0
  %6741 = vmatprep.subr.mxu0 0.0
  %6742 = vmatpush1.msra.mxu0 0.0
  %6743 = vmatprep.subr.mxu0 0.0
  %6744 = vmatpush1.msra.mxu0 0.0
  %6745 = vmatprep.subr.mxu0 0.0
  %6746 = vmatpush1.msra.mxu0 0.0
  %6747 = vmatprep.subr.mxu0 0.0
  %6748 = vmatpush1.msra.mxu0 0.0
  %6749 = vmatprep.subr.mxu0 0.0
  %6750 = vmatpush1.msra.mxu0 0.0
  %6751 = vmatprep.subr.mxu0 0.0
  %6752 = vmatpush1.msra.mxu0 0.0
  %6753 = vmatprep.subr.mxu0 0.0
  %6754 = vmatpush1.msra.mxu0 0.0
  %6755 = vmatprep.subr.mxu0 0.0
  %6756 = vmatpush1.msra.mxu0 0.0
  %6757 = vmatprep.mubr.f32.mxu0 %v6682
  %6758 = vmatmul.mubr.f32.gmra.mrb[0].mxu0 %v6673
  %v6759 = vpop.f32.mrb[0].mxu0
  %v6760 = vadd.f32 0.0, %v6759
  %v6761 = vpop.f32.mrb[0].mxu0
  %6762 = vmatprep.mubr.f32.mxu0 %v6685
  %6763 = vmatmul.mubr.f32.gmra.mrb[0].mxu0 %v6675
  %v6764 = vpop.f32.mrb[0].mxu0
  %v6765 = vadd.f32 0.0, %v6764
  %v6766 = vpop.f32.mrb[0].mxu0
  %6767 = vmatprep.mubr.f32.mxu0 %v6688
  %6768 = vmatmul.mubr.f32.gmra.mrb[0].mxu0 %v6677
  %v6769 = vpop.f32.mrb[0].mxu0
  %v6770 = vadd.f32 0.0, %v6769
  %v6771 = vpop.f32.mrb[0].mxu0
  %6772 = vmatprep.mubr.f32.mxu0 %v6691
  %6773 = vmatmul.mubr.f32.gmra.mrb[0].mxu0 %v6679
  %v6774 = vpop.f32.mrb[0].mxu0
  %v6775 = vadd.f32 0.0, %v6774
  %v6776 = vpop.f32.mrb[0].mxu0
  %6777 = vdwg.mxu0
  %6778 = vmatprep.subr.mxu0 0.0
  %6779 = vmatpush1.msra.mxu0 %v1074
  %6780 = vmatprep.subr.mxu0 0.0
  %6781 = vmatpush1.msra.mxu0 %v1075
  %6782 = vmatprep.subr.mxu0 0.0
  %6783 = vmatpush1.msra.mxu0 %v1076
  %6784 = vmatprep.subr.mxu0 0.0
  %6785 = vmatpush1.msra.mxu0 %v1077
  %6786 = vmatprep.subr.mxu0 0.0
  %6787 = vmatpush1.msra.mxu0 %v1078
  %6788 = vmatprep.subr.mxu0 0.0
  %6789 = vmatpush1.msra.mxu0 %v1079
  %6790 = vmatprep.subr.mxu0 0.0
  %6791 = vmatpush1.msra.mxu0 %v1080
  %6792 = vmatprep.subr.mxu0 0.0
  %6793 = vmatpush1.msra.mxu0 %v1081
  %6794 = vmatprep.subr.mxu0 0.0
  %6795 = vmatpush1.msra.mxu0 %v1082
  %6796 = vmatprep.subr.mxu0 0.0
  %6797 = vmatpush1.msra.mxu0 %v1083
  %6798 = vmatprep.subr.mxu0 0.0
  %6799 = vmatpush1.msra.mxu0 %v1084
  %6800 = vmatprep.subr.mxu0 0.0
  %6801 = vmatpush1.msra.mxu0 %v1085
  %6802 = vmatprep.subr.mxu0 0.0
  %6803 = vmatpush1.msra.mxu0 %v1086
  %6804 = vmatprep.subr.mxu0 0.0
  %6805 = vmatpush1.msra.mxu0 %v1087
  %6806 = vmatprep.subr.mxu0 0.0
  %6807 = vmatpush1.msra.mxu0 %v1088
  %6808 = vmatprep.subr.mxu0 0.0
  %6809 = vmatpush1.msra.mxu0 %v1089
  %6810 = vmatprep.subr.mxu0 0.0
  %6811 = vmatpush1.msra.mxu0 %v1090
  %6812 = vmatprep.subr.mxu0 0.0
  %6813 = vmatpush1.msra.mxu0 %v1091
  %6814 = vmatprep.subr.mxu0 0.0
  %6815 = vmatpush1.msra.mxu0 %v1092
  %6816 = vmatprep.subr.mxu0 0.0
  %6817 = vmatpush1.msra.mxu0 %v1093
  %6818 = vmatprep.subr.mxu0 0.0
  %6819 = vmatpush1.msra.mxu0 %v1094
  %6820 = vmatprep.subr.mxu0 0.0
  %6821 = vmatpush1.msra.mxu0 %v1242
  %6822 = vmatprep.subr.mxu0 0.0
  %6823 = vmatpush1.msra.mxu0 0.0
  %6824 = vmatprep.subr.mxu0 0.0
  %6825 = vmatpush1.msra.mxu0 0.0
  %6826 = vmatprep.subr.mxu0 0.0
  %6827 = vmatpush1.msra.mxu0 0.0
  %6828 = vmatprep.subr.mxu0 0.0
  %6829 = vmatpush1.msra.mxu0 0.0
  %6830 = vmatprep.subr.mxu0 0.0
  %6831 = vmatpush1.msra.mxu0 0.0
  %6832 = vmatprep.subr.mxu0 0.0
  %6833 = vmatpush1.msra.mxu0 0.0
  %6834 = vmatprep.subr.mxu0 0.0
  %6835 = vmatpush1.msra.mxu0 0.0
  %6836 = vmatprep.subr.mxu0 0.0
  %6837 = vmatpush1.msra.mxu0 0.0
  %6838 = vmatprep.subr.mxu0 0.0
  %6839 = vmatpush1.msra.mxu0 0.0
  %6840 = vmatprep.subr.mxu0 0.0
  %6841 = vmatpush1.msra.mxu0 0.0
  %6842 = vmatprep.mubr.f32.mxu0 %v6682
  %6843 = vmatmul.mubr.f32.gmra.mrb[0].mxu0 %v6673
  %v6844 = vpop.f32.mrb[0].mxu0
  %v6845 = vadd.f32 0.0, %v6844
  %v6846 = vpop.f32.mrb[0].mxu0
  %6847 = vmatprep.mubr.f32.mxu0 %v6685
  %6848 = vmatmul.mubr.f32.gmra.mrb[0].mxu0 %v6675
  %v6849 = vpop.f32.mrb[0].mxu0
  %v6850 = vadd.f32 0.0, %v6849
  %v6851 = vpop.f32.mrb[0].mxu0
  %6852 = vmatprep.mubr.f32.mxu0 %v6688
  %6853 = vmatmul.mubr.f32.gmra.mrb[0].mxu0 %v6677
  %v6854 = vpop.f32.mrb[0].mxu0
  %v6855 = vadd.f32 0.0, %v6854
  %v6856 = vpop.f32.mrb[0].mxu0
  %6857 = vmatprep.mubr.f32.mxu0 %v6691
  %6858 = vmatmul.mubr.f32.gmra.mrb[0].mxu0 %v6679
  %v6859 = vpop.f32.mrb[0].mxu0
  %v6860 = vadd.f32 0.0, %v6859
  %v6861 = vpop.f32.mrb[0].mxu0
  %6862 = vdwg.mxu0
  %s6863 = scalar_lea.vmem %s5, 208
  %v6864 = vld [vmem:[%s6863] sm:$0xff]
  %v6865 = vld [vmem:[%s6863 + $0x8] sm:$0xff]
  %v6867 = vsel %vm83, %v6760, 0
  %v6870 = vsel %vm83, %v6765, 0
  %v6873 = vsel %vm83, %v6770, 0
  %v6876 = vsel %vm83, %v6775, 0
  %6878 = vmatprep.subr.mxu0 0.0
  %6879 = vmatpush1.msra.mxu0 %v6864
  %6880 = vmatprep.subr.mxu0 0.0
  %6881 = vmatpush1.msra.mxu0 %v6865
  %6882 = vmatprep.subr.mxu0 0.0
  %6883 = vmatpush1.msra.mxu0 0.0
  %6884 = vmatprep.subr.mxu0 0.0
  %6885 = vmatpush1.msra.mxu0 0.0
  %6886 = vmatprep.subr.mxu0 0.0
  %6887 = vmatpush1.msra.mxu0 0.0
  %6888 = vmatprep.subr.mxu0 0.0
  %6889 = vmatpush1.msra.mxu0 0.0
  %6890 = vmatprep.subr.mxu0 0.0
  %6891 = vmatpush1.msra.mxu0 0.0
  %6892 = vmatprep.subr.mxu0 0.0
  %6893 = vmatpush1.msra.mxu0 0.0
  %6894 = vmatprep.subr.mxu0 0.0
  %6895 = vmatpush1.msra.mxu0 0.0
  %6896 = vmatprep.subr.mxu0 0.0
  %6897 = vmatpush1.msra.mxu0 0.0
  %6898 = vmatprep.subr.mxu0 0.0
  %6899 = vmatpush1.msra.mxu0 0.0
  %6900 = vmatprep.subr.mxu0 0.0
  %6901 = vmatpush1.msra.mxu0 0.0
  %6902 = vmatprep.subr.mxu0 0.0
  %6903 = vmatpush1.msra.mxu0 0.0
  %6904 = vmatprep.subr.mxu0 0.0
  %6905 = vmatpush1.msra.mxu0 0.0
  %6906 = vmatprep.subr.mxu0 0.0
  %6907 = vmatpush1.msra.mxu0 0.0
  %6908 = vmatprep.subr.mxu0 0.0
  %6909 = vmatpush1.msra.mxu0 0.0
  %6910 = vmatprep.subr.mxu0 0.0
  %6911 = vmatpush1.msra.mxu0 0.0
  %6912 = vmatprep.subr.mxu0 0.0
  %6913 = vmatpush1.msra.mxu0 0.0
  %6914 = vmatprep.subr.mxu0 0.0
  %6915 = vmatpush1.msra.mxu0 0.0
  %6916 = vmatprep.subr.mxu0 0.0
  %6917 = vmatpush1.msra.mxu0 0.0
  %6918 = vmatprep.subr.mxu0 0.0
  %6919 = vmatpush1.msra.mxu0 0.0
  %6920 = vmatprep.subr.mxu0 0.0
  %6921 = vmatpush1.msra.mxu0 0.0
  %6922 = vmatprep.subr.mxu0 0.0
  %6923 = vmatpush1.msra.mxu0 0.0
  %6924 = vmatprep.subr.mxu0 0.0
  %6925 = vmatpush1.msra.mxu0 0.0
  %6926 = vmatprep.subr.mxu0 0.0
  %6927 = vmatpush1.msra.mxu0 0.0
  %6928 = vmatprep.subr.mxu0 0.0
  %6929 = vmatpush1.msra.mxu0 0.0
  %6930 = vmatprep.subr.mxu0 0.0
  %6931 = vmatpush1.msra.mxu0 0.0
  %6932 = vmatprep.subr.mxu0 0.0
  %6933 = vmatpush1.msra.mxu0 0.0
  %6934 = vmatprep.subr.mxu0 0.0
  %6935 = vmatpush1.msra.mxu0 0.0
  %6936 = vmatprep.subr.mxu0 0.0
  %6937 = vmatpush1.msra.mxu0 0.0
  %6938 = vmatprep.subr.mxu0 0.0
  %6939 = vmatpush1.msra.mxu0 0.0
  %6940 = vmatprep.subr.mxu0 0.0
  %6941 = vmatpush1.msra.mxu0 0.0
  %6942 = vmatprep.mubr.f32.mxu0 0.0
  %6943 = vmatmul.mubr.f32.gmra.mrb[0].mxu0 %v6867
  %v6944 = vpop.f32.mrb[0].mxu0
  %v6945 = vadd.f32 0.0, %v6944
  %v6946 = vpop.f32.mrb[0].mxu0
  %6947 = vmatprep.mubr.f32.mxu0 0.0
  %6948 = vmatmul.mubr.f32.gmra.mrb[0].mxu0 %v6870
  %v6949 = vpop.f32.mrb[0].mxu0
  %v6950 = vadd.f32 0.0, %v6949
  %v6951 = vpop.f32.mrb[0].mxu0
  %6952 = vmatprep.mubr.f32.mxu0 0.0
  %6953 = vmatmul.mubr.f32.gmra.mrb[0].mxu0 %v6873
  %v6954 = vpop.f32.mrb[0].mxu0
  %v6955 = vadd.f32 0.0, %v6954
  %v6956 = vpop.f32.mrb[0].mxu0
  %6957 = vmatprep.mubr.f32.mxu0 0.0
  %6958 = vmatmul.mubr.f32.gmra.mrb[0].mxu0 %v6876
  %v6959 = vpop.f32.mrb[0].mxu0
  %v6960 = vadd.f32 0.0, %v6959
  %v6961 = vpop.f32.mrb[0].mxu0
  %6962 = vdwg.mxu0
  %v6964 = vsel %vm83, %v6845, 0
  %v6967 = vsel %vm83, %v6850, 0
  %v6970 = vsel %vm83, %v6855, 0
  %v6973 = vsel %vm83, %v6860, 0
  %6975 = vmatprep.subr.mxu0 0.0
  %6976 = vmatpush1.msra.mxu0 %v6864
  %6977 = vmatprep.subr.mxu0 0.0
  %6978 = vmatpush1.msra.mxu0 %v6865
  %6979 = vmatprep.subr.mxu0 0.0
  %6980 = vmatpush1.msra.mxu0 0.0
  %6981 = vmatprep.subr.mxu0 0.0
  %6982 = vmatpush1.msra.mxu0 0.0
  %6983 = vmatprep.subr.mxu0 0.0
  %6984 = vmatpush1.msra.mxu0 0.0
  %6985 = vmatprep.subr.mxu0 0.0
  %6986 = vmatpush1.msra.mxu0 0.0
  %6987 = vmatprep.subr.mxu0 0.0
  %6988 = vmatpush1.msra.mxu0 0.0
  %6989 = vmatprep.subr.mxu0 0.0
  %6990 = vmatpush1.msra.mxu0 0.0
  %6991 = vmatprep.subr.mxu0 0.0
  %6992 = vmatpush1.msra.mxu0 0.0
  %6993 = vmatprep.subr.mxu0 0.0
  %6994 = vmatpush1.msra.mxu0 0.0
  %6995 = vmatprep.subr.mxu0 0.0
  %6996 = vmatpush1.msra.mxu0 0.0
  %6997 = vmatprep.subr.mxu0 0.0
  %6998 = vmatpush1.msra.mxu0 0.0
  %6999 = vmatprep.subr.mxu0 0.0
  %7000 = vmatpush1.msra.mxu0 0.0
  %7001 = vmatprep.subr.mxu0 0.0
  %7002 = vmatpush1.msra.mxu0 0.0
  %7003 = vmatprep.subr.mxu0 0.0
  %7004 = vmatpush1.msra.mxu0 0.0
  %7005 = vmatprep.subr.mxu0 0.0
  %7006 = vmatpush1.msra.mxu0 0.0
  %7007 = vmatprep.subr.mxu0 0.0
  %7008 = vmatpush1.msra.mxu0 0.0
  %7009 = vmatprep.subr.mxu0 0.0
  %7010 = vmatpush1.msra.mxu0 0.0
  %7011 = vmatprep.subr.mxu0 0.0
  %7012 = vmatpush1.msra.mxu0 0.0
  %7013 = vmatprep.subr.mxu0 0.0
  %7014 = vmatpush1.msra.mxu0 0.0
  %7015 = vmatprep.subr.mxu0 0.0
  %7016 = vmatpush1.msra.mxu0 0.0
  %7017 = vmatprep.subr.mxu0 0.0
  %7018 = vmatpush1.msra.mxu0 0.0
  %7019 = vmatprep.subr.mxu0 0.0
  %7020 = vmatpush1.msra.mxu0 0.0
  %7021 = vmatprep.subr.mxu0 0.0
  %7022 = vmatpush1.msra.mxu0 0.0
  %7023 = vmatprep.subr.mxu0 0.0
  %7024 = vmatpush1.msra.mxu0 0.0
  %7025 = vmatprep.subr.mxu0 0.0
  %7026 = vmatpush1.msra.mxu0 0.0
  %7027 = vmatprep.subr.mxu0 0.0
  %7028 = vmatpush1.msra.mxu0 0.0
  %7029 = vmatprep.subr.mxu0 0.0
  %7030 = vmatpush1.msra.mxu0 0.0
  %7031 = vmatprep.subr.mxu0 0.0
  %7032 = vmatpush1.msra.mxu0 0.0
  %7033 = vmatprep.subr.mxu0 0.0
  %7034 = vmatpush1.msra.mxu0 0.0
  %7035 = vmatprep.subr.mxu0 0.0
  %7036 = vmatpush1.msra.mxu0 0.0
  %7037 = vmatprep.subr.mxu0 0.0
  %7038 = vmatpush1.msra.mxu0 0.0
  %7039 = vmatprep.mubr.f32.mxu0 0.0
  %7040 = vmatmul.mubr.f32.gmra.mrb[0].mxu0 %v6964
  %v7041 = vpop.f32.mrb[0].mxu0
  %v7042 = vadd.f32 0.0, %v7041
  %v7043 = vpop.f32.mrb[0].mxu0
  %7044 = vmatprep.mubr.f32.mxu0 0.0
  %7045 = vmatmul.mubr.f32.gmra.mrb[0].mxu0 %v6967
  %v7046 = vpop.f32.mrb[0].mxu0
  %v7047 = vadd.f32 0.0, %v7046
  %v7048 = vpop.f32.mrb[0].mxu0
  %7049 = vmatprep.mubr.f32.mxu0 0.0
  %7050 = vmatmul.mubr.f32.gmra.mrb[0].mxu0 %v6970
  %v7051 = vpop.f32.mrb[0].mxu0
  %v7052 = vadd.f32 0.0, %v7051
  %v7053 = vpop.f32.mrb[0].mxu0
  %7054 = vmatprep.mubr.f32.mxu0 0.0
  %7055 = vmatmul.mubr.f32.gmra.mrb[0].mxu0 %v6973
  %v7056 = vpop.f32.mrb[0].mxu0
  %v7057 = vadd.f32 0.0, %v7056
  %v7058 = vpop.f32.mrb[0].mxu0
  %7059 = vdwg.mxu0
  %v7060 = vadd.f32 %v6633, %v6945
  %v7061 = vadd.f32 %v6634, %v6950
  %v7062 = vadd.f32 %v6635, %v6955
  %v7063 = vadd.f32 %v6636, %v6960
  %v7064 = vadd.f32 %v6637, %v7042
  %v7065 = vadd.f32 %v6638, %v7047
  %v7066 = vadd.f32 %v6639, %v7052
  %v7067 = vadd.f32 %v6640, %v7057
  %v7068 = vadd.s32 %v1099, 41
  %v7069 = vadd.s32 %v1100, 41
  %v7070 = vadd.s32 %v1101, 41
  %v7071 = vadd.s32 %v1102, 41
  %7072 = vset.pattern.permute.xlu0 0
  %7073 = vperm.xlu0 %7072, %v7068
  %v7074 = vpop.permute.xlu0 %7073
  %7075 = vset.pattern.permute.xlu0 0
  %7076 = vperm.xlu0 %7075, %v7069
  %v7077 = vpop.permute.xlu0 %7076
  %7078 = vset.pattern.permute.xlu0 0
  %7079 = vperm.xlu0 %7078, %v7070
  %v7080 = vpop.permute.xlu0 %7079
  %7081 = vset.pattern.permute.xlu0 0
  %7082 = vperm.xlu0 %7081, %v7071
  %v7083 = vpop.permute.xlu0 %7082
  %vm7084 = vcmp.eq.s32.totalorder %v1097, %v7074
  %vm7085 = vcmp.eq.s32.totalorder %v1098, %v7074
  %vm7086 = vcmp.eq.s32.totalorder %v1097, %v7077
  %vm7087 = vcmp.eq.s32.totalorder %v1098, %v7077
  %vm7088 = vcmp.eq.s32.totalorder %v1097, %v7080
  %vm7089 = vcmp.eq.s32.totalorder %v1098, %v7080
  %vm7090 = vcmp.eq.s32.totalorder %v1097, %v7083
  %vm7091 = vcmp.eq.s32.totalorder %v1098, %v7083
  %v7092 = vsel %vm7084, 1, 0
  %v7093 = vsel %vm7085, 1, 0
  %v7094 = vsel %vm7086, 1, 0
  %v7095 = vsel %vm7087, 1, 0
  %v7096 = vsel %vm7088, 1, 0
  %v7097 = vsel %vm7089, 1, 0
  %v7098 = vsel %vm7090, 1, 0
  %v7099 = vsel %vm7091, 1, 0
  %v7100 = vcvt.s32.f32 %v7092
  %v7101 = vcvt.s32.f32 %v7093
  %v7102 = vcvt.s32.f32 %v7094
  %v7103 = vcvt.s32.f32 %v7095
  %v7104 = vcvt.s32.f32 %v7096
  %v7105 = vcvt.s32.f32 %v7097
  %v7106 = vcvt.s32.f32 %v7098
  %v7107 = vcvt.s32.f32 %v7099
  %v7109 = vsel %vm1139, %v7101, 0
  %v7112 = vsel %vm1139, %v7103, 0
  %v7115 = vsel %vm1139, %v7105, 0
  %v7118 = vsel %vm1139, %v7107, 0
  %7120 = vmatprep.subr.mxu0 0.0
  %7121 = vmatpush1.msra.mxu0 %v1052
  %7122 = vmatprep.subr.mxu0 0.0
  %7123 = vmatpush1.msra.mxu0 %v1053
  %7124 = vmatprep.subr.mxu0 0.0
  %7125 = vmatpush1.msra.mxu0 %v1054
  %7126 = vmatprep.subr.mxu0 0.0
  %7127 = vmatpush1.msra.mxu0 %v1055
  %7128 = vmatprep.subr.mxu0 0.0
  %7129 = vmatpush1.msra.mxu0 %v1056
  %7130 = vmatprep.subr.mxu0 0.0
  %7131 = vmatpush1.msra.mxu0 %v1057
  %7132 = vmatprep.subr.mxu0 0.0
  %7133 = vmatpush1.msra.mxu0 %v1058
  %7134 = vmatprep.subr.mxu0 0.0
  %7135 = vmatpush1.msra.mxu0 %v1059
  %7136 = vmatprep.subr.mxu0 0.0
  %7137 = vmatpush1.msra.mxu0 %v1060
  %7138 = vmatprep.subr.mxu0 0.0
  %7139 = vmatpush1.msra.mxu0 %v1061
  %7140 = vmatprep.subr.mxu0 0.0
  %7141 = vmatpush1.msra.mxu0 %v1062
  %7142 = vmatprep.subr.mxu0 0.0
  %7143 = vmatpush1.msra.mxu0 %v1063
  %7144 = vmatprep.subr.mxu0 0.0
  %7145 = vmatpush1.msra.mxu0 %v1064
  %7146 = vmatprep.subr.mxu0 0.0
  %7147 = vmatpush1.msra.mxu0 %v1065
  %7148 = vmatprep.subr.mxu0 0.0
  %7149 = vmatpush1.msra.mxu0 %v1066
  %7150 = vmatprep.subr.mxu0 0.0
  %7151 = vmatpush1.msra.mxu0 %v1067
  %7152 = vmatprep.subr.mxu0 0.0
  %7153 = vmatpush1.msra.mxu0 %v1068
  %7154 = vmatprep.subr.mxu0 0.0
  %7155 = vmatpush1.msra.mxu0 %v1069
  %7156 = vmatprep.subr.mxu0 0.0
  %7157 = vmatpush1.msra.mxu0 %v1070
  %7158 = vmatprep.subr.mxu0 0.0
  %7159 = vmatpush1.msra.mxu0 %v1071
  %7160 = vmatprep.subr.mxu0 0.0
  %7161 = vmatpush1.msra.mxu0 %v1072
  %7162 = vmatprep.subr.mxu0 0.0
  %7163 = vmatpush1.msra.mxu0 %v1154
  %7164 = vmatprep.subr.mxu0 0.0
  %7165 = vmatpush1.msra.mxu0 0.0
  %7166 = vmatprep.subr.mxu0 0.0
  %7167 = vmatpush1.msra.mxu0 0.0
  %7168 = vmatprep.subr.mxu0 0.0
  %7169 = vmatpush1.msra.mxu0 0.0
  %7170 = vmatprep.subr.mxu0 0.0
  %7171 = vmatpush1.msra.mxu0 0.0
  %7172 = vmatprep.subr.mxu0 0.0
  %7173 = vmatpush1.msra.mxu0 0.0
  %7174 = vmatprep.subr.mxu0 0.0
  %7175 = vmatpush1.msra.mxu0 0.0
  %7176 = vmatprep.subr.mxu0 0.0
  %7177 = vmatpush1.msra.mxu0 0.0
  %7178 = vmatprep.subr.mxu0 0.0
  %7179 = vmatpush1.msra.mxu0 0.0
  %7180 = vmatprep.subr.mxu0 0.0
  %7181 = vmatpush1.msra.mxu0 0.0
  %7182 = vmatprep.subr.mxu0 0.0
  %7183 = vmatpush1.msra.mxu0 0.0
  %7184 = vmatprep.mubr.f32.mxu0 %v7109
  %7185 = vmatmul.mubr.f32.gmra.mrb[0].mxu0 %v7100
  %v7186 = vpop.f32.mrb[0].mxu0
  %v7187 = vadd.f32 0.0, %v7186
  %v7188 = vpop.f32.mrb[0].mxu0
  %7189 = vmatprep.mubr.f32.mxu0 %v7112
  %7190 = vmatmul.mubr.f32.gmra.mrb[0].mxu0 %v7102
  %v7191 = vpop.f32.mrb[0].mxu0
  %v7192 = vadd.f32 0.0, %v7191
  %v7193 = vpop.f32.mrb[0].mxu0
  %7194 = vmatprep.mubr.f32.mxu0 %v7115
  %7195 = vmatmul.mubr.f32.gmra.mrb[0].mxu0 %v7104
  %v7196 = vpop.f32.mrb[0].mxu0
  %v7197 = vadd.f32 0.0, %v7196
  %v7198 = vpop.f32.mrb[0].mxu0
  %7199 = vmatprep.mubr.f32.mxu0 %v7118
  %7200 = vmatmul.mubr.f32.gmra.mrb[0].mxu0 %v7106
  %v7201 = vpop.f32.mrb[0].mxu0
  %v7202 = vadd.f32 0.0, %v7201
  %v7203 = vpop.f32.mrb[0].mxu0
  %7204 = vdwg.mxu0
  %7205 = vmatprep.subr.mxu0 0.0
  %7206 = vmatpush1.msra.mxu0 %v1074
  %7207 = vmatprep.subr.mxu0 0.0
  %7208 = vmatpush1.msra.mxu0 %v1075
  %7209 = vmatprep.subr.mxu0 0.0
  %7210 = vmatpush1.msra.mxu0 %v1076
  %7211 = vmatprep.subr.mxu0 0.0
  %7212 = vmatpush1.msra.mxu0 %v1077
  %7213 = vmatprep.subr.mxu0 0.0
  %7214 = vmatpush1.msra.mxu0 %v1078
  %7215 = vmatprep.subr.mxu0 0.0
  %7216 = vmatpush1.msra.mxu0 %v1079
  %7217 = vmatprep.subr.mxu0 0.0
  %7218 = vmatpush1.msra.mxu0 %v1080
  %7219 = vmatprep.subr.mxu0 0.0
  %7220 = vmatpush1.msra.mxu0 %v1081
  %7221 = vmatprep.subr.mxu0 0.0
  %7222 = vmatpush1.msra.mxu0 %v1082
  %7223 = vmatprep.subr.mxu0 0.0
  %7224 = vmatpush1.msra.mxu0 %v1083
  %7225 = vmatprep.subr.mxu0 0.0
  %7226 = vmatpush1.msra.mxu0 %v1084
  %7227 = vmatprep.subr.mxu0 0.0
  %7228 = vmatpush1.msra.mxu0 %v1085
  %7229 = vmatprep.subr.mxu0 0.0
  %7230 = vmatpush1.msra.mxu0 %v1086
  %7231 = vmatprep.subr.mxu0 0.0
  %7232 = vmatpush1.msra.mxu0 %v1087
  %7233 = vmatprep.subr.mxu0 0.0
  %7234 = vmatpush1.msra.mxu0 %v1088
  %7235 = vmatprep.subr.mxu0 0.0
  %7236 = vmatpush1.msra.mxu0 %v1089
  %7237 = vmatprep.subr.mxu0 0.0
  %7238 = vmatpush1.msra.mxu0 %v1090
  %7239 = vmatprep.subr.mxu0 0.0
  %7240 = vmatpush1.msra.mxu0 %v1091
  %7241 = vmatprep.subr.mxu0 0.0
  %7242 = vmatpush1.msra.mxu0 %v1092
  %7243 = vmatprep.subr.mxu0 0.0
  %7244 = vmatpush1.msra.mxu0 %v1093
  %7245 = vmatprep.subr.mxu0 0.0
  %7246 = vmatpush1.msra.mxu0 %v1094
  %7247 = vmatprep.subr.mxu0 0.0
  %7248 = vmatpush1.msra.mxu0 %v1242
  %7249 = vmatprep.subr.mxu0 0.0
  %7250 = vmatpush1.msra.mxu0 0.0
  %7251 = vmatprep.subr.mxu0 0.0
  %7252 = vmatpush1.msra.mxu0 0.0
  %7253 = vmatprep.subr.mxu0 0.0
  %7254 = vmatpush1.msra.mxu0 0.0
  %7255 = vmatprep.subr.mxu0 0.0
  %7256 = vmatpush1.msra.mxu0 0.0
  %7257 = vmatprep.subr.mxu0 0.0
  %7258 = vmatpush1.msra.mxu0 0.0
  %7259 = vmatprep.subr.mxu0 0.0
  %7260 = vmatpush1.msra.mxu0 0.0
  %7261 = vmatprep.subr.mxu0 0.0
  %7262 = vmatpush1.msra.mxu0 0.0
  %7263 = vmatprep.subr.mxu0 0.0
  %7264 = vmatpush1.msra.mxu0 0.0
  %7265 = vmatprep.subr.mxu0 0.0
  %7266 = vmatpush1.msra.mxu0 0.0
  %7267 = vmatprep.subr.mxu0 0.0
  %7268 = vmatpush1.msra.mxu0 0.0
  %7269 = vmatprep.mubr.f32.mxu0 %v7109
  %7270 = vmatmul.mubr.f32.gmra.mrb[0].mxu0 %v7100
  %v7271 = vpop.f32.mrb[0].mxu0
  %v7272 = vadd.f32 0.0, %v7271
  %v7273 = vpop.f32.mrb[0].mxu0
  %7274 = vmatprep.mubr.f32.mxu0 %v7112
  %7275 = vmatmul.mubr.f32.gmra.mrb[0].mxu0 %v7102
  %v7276 = vpop.f32.mrb[0].mxu0
  %v7277 = vadd.f32 0.0, %v7276
  %v7278 = vpop.f32.mrb[0].mxu0
  %7279 = vmatprep.mubr.f32.mxu0 %v7115
  %7280 = vmatmul.mubr.f32.gmra.mrb[0].mxu0 %v7104
  %v7281 = vpop.f32.mrb[0].mxu0
  %v7282 = vadd.f32 0.0, %v7281
  %v7283 = vpop.f32.mrb[0].mxu0
  %7284 = vmatprep.mubr.f32.mxu0 %v7118
  %7285 = vmatmul.mubr.f32.gmra.mrb[0].mxu0 %v7106
  %v7286 = vpop.f32.mrb[0].mxu0
  %v7287 = vadd.f32 0.0, %v7286
  %v7288 = vpop.f32.mrb[0].mxu0
  %7289 = vdwg.mxu0
  %s7290 = scalar_lea.vmem %s5, 224
  %v7291 = vld [vmem:[%s7290] sm:$0xff]
  %v7292 = vld [vmem:[%s7290 + $0x8] sm:$0xff]
  %v7294 = vsel %vm83, %v7187, 0
  %v7297 = vsel %vm83, %v7192, 0
  %v7300 = vsel %vm83, %v7197, 0
  %v7303 = vsel %vm83, %v7202, 0
  %7305 = vmatprep.subr.mxu0 0.0
  %7306 = vmatpush1.msra.mxu0 %v7291
  %7307 = vmatprep.subr.mxu0 0.0
  %7308 = vmatpush1.msra.mxu0 %v7292
  %7309 = vmatprep.subr.mxu0 0.0
  %7310 = vmatpush1.msra.mxu0 0.0
  %7311 = vmatprep.subr.mxu0 0.0
  %7312 = vmatpush1.msra.mxu0 0.0
  %7313 = vmatprep.subr.mxu0 0.0
  %7314 = vmatpush1.msra.mxu0 0.0
  %7315 = vmatprep.subr.mxu0 0.0
  %7316 = vmatpush1.msra.mxu0 0.0
  %7317 = vmatprep.subr.mxu0 0.0
  %7318 = vmatpush1.msra.mxu0 0.0
  %7319 = vmatprep.subr.mxu0 0.0
  %7320 = vmatpush1.msra.mxu0 0.0
  %7321 = vmatprep.subr.mxu0 0.0
  %7322 = vmatpush1.msra.mxu0 0.0
  %7323 = vmatprep.subr.mxu0 0.0
  %7324 = vmatpush1.msra.mxu0 0.0
  %7325 = vmatprep.subr.mxu0 0.0
  %7326 = vmatpush1.msra.mxu0 0.0
  %7327 = vmatprep.subr.mxu0 0.0
  %7328 = vmatpush1.msra.mxu0 0.0
  %7329 = vmatprep.subr.mxu0 0.0
  %7330 = vmatpush1.msra.mxu0 0.0
  %7331 = vmatprep.subr.mxu0 0.0
  %7332 = vmatpush1.msra.mxu0 0.0
  %7333 = vmatprep.subr.mxu0 0.0
  %7334 = vmatpush1.msra.mxu0 0.0
  %7335 = vmatprep.subr.mxu0 0.0
  %7336 = vmatpush1.msra.mxu0 0.0
  %7337 = vmatprep.subr.mxu0 0.0
  %7338 = vmatpush1.msra.mxu0 0.0
  %7339 = vmatprep.subr.mxu0 0.0
  %7340 = vmatpush1.msra.mxu0 0.0
  %7341 = vmatprep.subr.mxu0 0.0
  %7342 = vmatpush1.msra.mxu0 0.0
  %7343 = vmatprep.subr.mxu0 0.0
  %7344 = vmatpush1.msra.mxu0 0.0
  %7345 = vmatprep.subr.mxu0 0.0
  %7346 = vmatpush1.msra.mxu0 0.0
  %7347 = vmatprep.subr.mxu0 0.0
  %7348 = vmatpush1.msra.mxu0 0.0
  %7349 = vmatprep.subr.mxu0 0.0
  %7350 = vmatpush1.msra.mxu0 0.0
  %7351 = vmatprep.subr.mxu0 0.0
  %7352 = vmatpush1.msra.mxu0 0.0
  %7353 = vmatprep.subr.mxu0 0.0
  %7354 = vmatpush1.msra.mxu0 0.0
  %7355 = vmatprep.subr.mxu0 0.0
  %7356 = vmatpush1.msra.mxu0 0.0
  %7357 = vmatprep.subr.mxu0 0.0
  %7358 = vmatpush1.msra.mxu0 0.0
  %7359 = vmatprep.subr.mxu0 0.0
  %7360 = vmatpush1.msra.mxu0 0.0
  %7361 = vmatprep.subr.mxu0 0.0
  %7362 = vmatpush1.msra.mxu0 0.0
  %7363 = vmatprep.subr.mxu0 0.0
  %7364 = vmatpush1.msra.mxu0 0.0
  %7365 = vmatprep.subr.mxu0 0.0
  %7366 = vmatpush1.msra.mxu0 0.0
  %7367 = vmatprep.subr.mxu0 0.0
  %7368 = vmatpush1.msra.mxu0 0.0
  %7369 = vmatprep.mubr.f32.mxu0 0.0
  %7370 = vmatmul.mubr.f32.gmra.mrb[0].mxu0 %v7294
  %v7371 = vpop.f32.mrb[0].mxu0
  %v7372 = vadd.f32 0.0, %v7371
  %v7373 = vpop.f32.mrb[0].mxu0
  %7374 = vmatprep.mubr.f32.mxu0 0.0
  %7375 = vmatmul.mubr.f32.gmra.mrb[0].mxu0 %v7297
  %v7376 = vpop.f32.mrb[0].mxu0
  %v7377 = vadd.f32 0.0, %v7376
  %v7378 = vpop.f32.mrb[0].mxu0
  %7379 = vmatprep.mubr.f32.mxu0 0.0
  %7380 = vmatmul.mubr.f32.gmra.mrb[0].mxu0 %v7300
  %v7381 = vpop.f32.mrb[0].mxu0
  %v7382 = vadd.f32 0.0, %v7381
  %v7383 = vpop.f32.mrb[0].mxu0
  %7384 = vmatprep.mubr.f32.mxu0 0.0
  %7385 = vmatmul.mubr.f32.gmra.mrb[0].mxu0 %v7303
  %v7386 = vpop.f32.mrb[0].mxu0
  %v7387 = vadd.f32 0.0, %v7386
  %v7388 = vpop.f32.mrb[0].mxu0
  %7389 = vdwg.mxu0
  %v7391 = vsel %vm83, %v7272, 0
  %v7394 = vsel %vm83, %v7277, 0
  %v7397 = vsel %vm83, %v7282, 0
  %v7400 = vsel %vm83, %v7287, 0
  %7402 = vmatprep.subr.mxu0 0.0
  %7403 = vmatpush1.msra.mxu0 %v7291
  %7404 = vmatprep.subr.mxu0 0.0
  %7405 = vmatpush1.msra.mxu0 %v7292
  %7406 = vmatprep.subr.mxu0 0.0
  %7407 = vmatpush1.msra.mxu0 0.0
  %7408 = vmatprep.subr.mxu0 0.0
  %7409 = vmatpush1.msra.mxu0 0.0
  %7410 = vmatprep.subr.mxu0 0.0
  %7411 = vmatpush1.msra.mxu0 0.0
  %7412 = vmatprep.subr.mxu0 0.0
  %7413 = vmatpush1.msra.mxu0 0.0
  %7414 = vmatprep.subr.mxu0 0.0
  %7415 = vmatpush1.msra.mxu0 0.0
  %7416 = vmatprep.subr.mxu0 0.0
  %7417 = vmatpush1.msra.mxu0 0.0
  %7418 = vmatprep.subr.mxu0 0.0
  %7419 = vmatpush1.msra.mxu0 0.0
  %7420 = vmatprep.subr.mxu0 0.0
  %7421 = vmatpush1.msra.mxu0 0.0
  %7422 = vmatprep.subr.mxu0 0.0
  %7423 = vmatpush1.msra.mxu0 0.0
  %7424 = vmatprep.subr.mxu0 0.0
  %7425 = vmatpush1.msra.mxu0 0.0
  %7426 = vmatprep.subr.mxu0 0.0
  %7427 = vmatpush1.msra.mxu0 0.0
  %7428 = vmatprep.subr.mxu0 0.0
  %7429 = vmatpush1.msra.mxu0 0.0
  %7430 = vmatprep.subr.mxu0 0.0
  %7431 = vmatpush1.msra.mxu0 0.0
  %7432 = vmatprep.subr.mxu0 0.0
  %7433 = vmatpush1.msra.mxu0 0.0
  %7434 = vmatprep.subr.mxu0 0.0
  %7435 = vmatpush1.msra.mxu0 0.0
  %7436 = vmatprep.subr.mxu0 0.0
  %7437 = vmatpush1.msra.mxu0 0.0
  %7438 = vmatprep.subr.mxu0 0.0
  %7439 = vmatpush1.msra.mxu0 0.0
  %7440 = vmatprep.subr.mxu0 0.0
  %7441 = vmatpush1.msra.mxu0 0.0
  %7442 = vmatprep.subr.mxu0 0.0
  %7443 = vmatpush1.msra.mxu0 0.0
  %7444 = vmatprep.subr.mxu0 0.0
  %7445 = vmatpush1.msra.mxu0 0.0
  %7446 = vmatprep.subr.mxu0 0.0
  %7447 = vmatpush1.msra.mxu0 0.0
  %7448 = vmatprep.subr.mxu0 0.0
  %7449 = vmatpush1.msra.mxu0 0.0
  %7450 = vmatprep.subr.mxu0 0.0
  %7451 = vmatpush1.msra.mxu0 0.0
  %7452 = vmatprep.subr.mxu0 0.0
  %7453 = vmatpush1.msra.mxu0 0.0
  %7454 = vmatprep.subr.mxu0 0.0
  %7455 = vmatpush1.msra.mxu0 0.0
  %7456 = vmatprep.subr.mxu0 0.0
  %7457 = vmatpush1.msra.mxu0 0.0
  %7458 = vmatprep.subr.mxu0 0.0
  %7459 = vmatpush1.msra.mxu0 0.0
  %7460 = vmatprep.subr.mxu0 0.0
  %7461 = vmatpush1.msra.mxu0 0.0
  %7462 = vmatprep.subr.mxu0 0.0
  %7463 = vmatpush1.msra.mxu0 0.0
  %7464 = vmatprep.subr.mxu0 0.0
  %7465 = vmatpush1.msra.mxu0 0.0
  %7466 = vmatprep.mubr.f32.mxu0 0.0
  %7467 = vmatmul.mubr.f32.gmra.mrb[0].mxu0 %v7391
  %v7468 = vpop.f32.mrb[0].mxu0
  %v7469 = vadd.f32 0.0, %v7468
  %v7470 = vpop.f32.mrb[0].mxu0
  %7471 = vmatprep.mubr.f32.mxu0 0.0
  %7472 = vmatmul.mubr.f32.gmra.mrb[0].mxu0 %v7394
  %v7473 = vpop.f32.mrb[0].mxu0
  %v7474 = vadd.f32 0.0, %v7473
  %v7475 = vpop.f32.mrb[0].mxu0
  %7476 = vmatprep.mubr.f32.mxu0 0.0
  %7477 = vmatmul.mubr.f32.gmra.mrb[0].mxu0 %v7397
  %v7478 = vpop.f32.mrb[0].mxu0
  %v7479 = vadd.f32 0.0, %v7478
  %v7480 = vpop.f32.mrb[0].mxu0
  %7481 = vmatprep.mubr.f32.mxu0 0.0
  %7482 = vmatmul.mubr.f32.gmra.mrb[0].mxu0 %v7400
  %v7483 = vpop.f32.mrb[0].mxu0
  %v7484 = vadd.f32 0.0, %v7483
  %v7485 = vpop.f32.mrb[0].mxu0
  %7486 = vdwg.mxu0
  %v7487 = vadd.f32 %v7060, %v7372
  %v7488 = vadd.f32 %v7061, %v7377
  %v7489 = vadd.f32 %v7062, %v7382
  %v7490 = vadd.f32 %v7063, %v7387
  %v7491 = vadd.f32 %v7064, %v7469
  %v7492 = vadd.f32 %v7065, %v7474
  %v7493 = vadd.f32 %v7066, %v7479
  %v7494 = vadd.f32 %v7067, %v7484
  %v7495 = vadd.s32 %v1099, 42
  %v7496 = vadd.s32 %v1100, 42
  %v7497 = vadd.s32 %v1101, 42
  %v7498 = vadd.s32 %v1102, 42
  %7499 = vset.pattern.permute.xlu0 0
  %7500 = vperm.xlu0 %7499, %v7495
  %v7501 = vpop.permute.xlu0 %7500
  %7502 = vset.pattern.permute.xlu0 0
  %7503 = vperm.xlu0 %7502, %v7496
  %v7504 = vpop.permute.xlu0 %7503
  %7505 = vset.pattern.permute.xlu0 0
  %7506 = vperm.xlu0 %7505, %v7497
  %v7507 = vpop.permute.xlu0 %7506
  %7508 = vset.pattern.permute.xlu0 0
  %7509 = vperm.xlu0 %7508, %v7498
  %v7510 = vpop.permute.xlu0 %7509
  %vm7511 = vcmp.eq.s32.totalorder %v1097, %v7501
  %vm7512 = vcmp.eq.s32.totalorder %v1098, %v7501
  %vm7513 = vcmp.eq.s32.totalorder %v1097, %v7504
  %vm7514 = vcmp.eq.s32.totalorder %v1098, %v7504
  %vm7515 = vcmp.eq.s32.totalorder %v1097, %v7507
  %vm7516 = vcmp.eq.s32.totalorder %v1098, %v7507
  %vm7517 = vcmp.eq.s32.totalorder %v1097, %v7510
  %vm7518 = vcmp.eq.s32.totalorder %v1098, %v7510
  %v7519 = vsel %vm7511, 1, 0
  %v7520 = vsel %vm7512, 1, 0
  %v7521 = vsel %vm7513, 1, 0
  %v7522 = vsel %vm7514, 1, 0
  %v7523 = vsel %vm7515, 1, 0
  %v7524 = vsel %vm7516, 1, 0
  %v7525 = vsel %vm7517, 1, 0
  %v7526 = vsel %vm7518, 1, 0
  %v7527 = vcvt.s32.f32 %v7519
  %v7528 = vcvt.s32.f32 %v7520
  %v7529 = vcvt.s32.f32 %v7521
  %v7530 = vcvt.s32.f32 %v7522
  %v7531 = vcvt.s32.f32 %v7523
  %v7532 = vcvt.s32.f32 %v7524
  %v7533 = vcvt.s32.f32 %v7525
  %v7534 = vcvt.s32.f32 %v7526
  %v7536 = vsel %vm1139, %v7528, 0
  %v7539 = vsel %vm1139, %v7530, 0
  %v7542 = vsel %vm1139, %v7532, 0
  %v7545 = vsel %vm1139, %v7534, 0
  %7547 = vmatprep.subr.mxu0 0.0
  %7548 = vmatpush1.msra.mxu0 %v1052
  %7549 = vmatprep.subr.mxu0 0.0
  %7550 = vmatpush1.msra.mxu0 %v1053
  %7551 = vmatprep.subr.mxu0 0.0
  %7552 = vmatpush1.msra.mxu0 %v1054
  %7553 = vmatprep.subr.mxu0 0.0
  %7554 = vmatpush1.msra.mxu0 %v1055
  %7555 = vmatprep.subr.mxu0 0.0
  %7556 = vmatpush1.msra.mxu0 %v1056
  %7557 = vmatprep.subr.mxu0 0.0
  %7558 = vmatpush1.msra.mxu0 %v1057
  %7559 = vmatprep.subr.mxu0 0.0
  %7560 = vmatpush1.msra.mxu0 %v1058
  %7561 = vmatprep.subr.mxu0 0.0
  %7562 = vmatpush1.msra.mxu0 %v1059
  %7563 = vmatprep.subr.mxu0 0.0
  %7564 = vmatpush1.msra.mxu0 %v1060
  %7565 = vmatprep.subr.mxu0 0.0
  %7566 = vmatpush1.msra.mxu0 %v1061
  %7567 = vmatprep.subr.mxu0 0.0
  %7568 = vmatpush1.msra.mxu0 %v1062
  %7569 = vmatprep.subr.mxu0 0.0
  %7570 = vmatpush1.msra.mxu0 %v1063
  %7571 = vmatprep.subr.mxu0 0.0
  %7572 = vmatpush1.msra.mxu0 %v1064
  %7573 = vmatprep.subr.mxu0 0.0
  %7574 = vmatpush1.msra.mxu0 %v1065
  %7575 = vmatprep.subr.mxu0 0.0
  %7576 = vmatpush1.msra.mxu0 %v1066
  %7577 = vmatprep.subr.mxu0 0.0
  %7578 = vmatpush1.msra.mxu0 %v1067
  %7579 = vmatprep.subr.mxu0 0.0
  %7580 = vmatpush1.msra.mxu0 %v1068
  %7581 = vmatprep.subr.mxu0 0.0
  %7582 = vmatpush1.msra.mxu0 %v1069
  %7583 = vmatprep.subr.mxu0 0.0
  %7584 = vmatpush1.msra.mxu0 %v1070
  %7585 = vmatprep.subr.mxu0 0.0
  %7586 = vmatpush1.msra.mxu0 %v1071
  %7587 = vmatprep.subr.mxu0 0.0
  %7588 = vmatpush1.msra.mxu0 %v1072
  %7589 = vmatprep.subr.mxu0 0.0
  %7590 = vmatpush1.msra.mxu0 %v1154
  %7591 = vmatprep.subr.mxu0 0.0
  %7592 = vmatpush1.msra.mxu0 0.0
  %7593 = vmatprep.subr.mxu0 0.0
  %7594 = vmatpush1.msra.mxu0 0.0
  %7595 = vmatprep.subr.mxu0 0.0
  %7596 = vmatpush1.msra.mxu0 0.0
  %7597 = vmatprep.subr.mxu0 0.0
  %7598 = vmatpush1.msra.mxu0 0.0
  %7599 = vmatprep.subr.mxu0 0.0
  %7600 = vmatpush1.msra.mxu0 0.0
  %7601 = vmatprep.subr.mxu0 0.0
  %7602 = vmatpush1.msra.mxu0 0.0
  %7603 = vmatprep.subr.mxu0 0.0
  %7604 = vmatpush1.msra.mxu0 0.0
  %7605 = vmatprep.subr.mxu0 0.0
  %7606 = vmatpush1.msra.mxu0 0.0
  %7607 = vmatprep.subr.mxu0 0.0
  %7608 = vmatpush1.msra.mxu0 0.0
  %7609 = vmatprep.subr.mxu0 0.0
  %7610 = vmatpush1.msra.mxu0 0.0
  %7611 = vmatprep.mubr.f32.mxu0 %v7536
  %7612 = vmatmul.mubr.f32.gmra.mrb[0].mxu0 %v7527
  %v7613 = vpop.f32.mrb[0].mxu0
  %v7614 = vadd.f32 0.0, %v7613
  %v7615 = vpop.f32.mrb[0].mxu0
  %7616 = vmatprep.mubr.f32.mxu0 %v7539
  %7617 = vmatmul.mubr.f32.gmra.mrb[0].mxu0 %v7529
  %v7618 = vpop.f32.mrb[0].mxu0
  %v7619 = vadd.f32 0.0, %v7618
  %v7620 = vpop.f32.mrb[0].mxu0
  %7621 = vmatprep.mubr.f32.mxu0 %v7542
  %7622 = vmatmul.mubr.f32.gmra.mrb[0].mxu0 %v7531
  %v7623 = vpop.f32.mrb[0].mxu0
  %v7624 = vadd.f32 0.0, %v7623
  %v7625 = vpop.f32.mrb[0].mxu0
  %7626 = vmatprep.mubr.f32.mxu0 %v7545
  %7627 = vmatmul.mubr.f32.gmra.mrb[0].mxu0 %v7533
  %v7628 = vpop.f32.mrb[0].mxu0
  %v7629 = vadd.f32 0.0, %v7628
  %v7630 = vpop.f32.mrb[0].mxu0
  %7631 = vdwg.mxu0
  %7632 = vmatprep.subr.mxu0 0.0
  %7633 = vmatpush1.msra.mxu0 %v1074
  %7634 = vmatprep.subr.mxu0 0.0
  %7635 = vmatpush1.msra.mxu0 %v1075
  %7636 = vmatprep.subr.mxu0 0.0
  %7637 = vmatpush1.msra.mxu0 %v1076
  %7638 = vmatprep.subr.mxu0 0.0
  %7639 = vmatpush1.msra.mxu0 %v1077
  %7640 = vmatprep.subr.mxu0 0.0
  %7641 = vmatpush1.msra.mxu0 %v1078
  %7642 = vmatprep.subr.mxu0 0.0
  %7643 = vmatpush1.msra.mxu0 %v1079
  %7644 = vmatprep.subr.mxu0 0.0
  %7645 = vmatpush1.msra.mxu0 %v1080
  %7646 = vmatprep.subr.mxu0 0.0
  %7647 = vmatpush1.msra.mxu0 %v1081
  %7648 = vmatprep.subr.mxu0 0.0
  %7649 = vmatpush1.msra.mxu0 %v1082
  %7650 = vmatprep.subr.mxu0 0.0
  %7651 = vmatpush1.msra.mxu0 %v1083
  %7652 = vmatprep.subr.mxu0 0.0
  %7653 = vmatpush1.msra.mxu0 %v1084
  %7654 = vmatprep.subr.mxu0 0.0
  %7655 = vmatpush1.msra.mxu0 %v1085
  %7656 = vmatprep.subr.mxu0 0.0
  %7657 = vmatpush1.msra.mxu0 %v1086
  %7658 = vmatprep.subr.mxu0 0.0
  %7659 = vmatpush1.msra.mxu0 %v1087
  %7660 = vmatprep.subr.mxu0 0.0
  %7661 = vmatpush1.msra.mxu0 %v1088
  %7662 = vmatprep.subr.mxu0 0.0
  %7663 = vmatpush1.msra.mxu0 %v1089
  %7664 = vmatprep.subr.mxu0 0.0
  %7665 = vmatpush1.msra.mxu0 %v1090
  %7666 = vmatprep.subr.mxu0 0.0
  %7667 = vmatpush1.msra.mxu0 %v1091
  %7668 = vmatprep.subr.mxu0 0.0
  %7669 = vmatpush1.msra.mxu0 %v1092
  %7670 = vmatprep.subr.mxu0 0.0
  %7671 = vmatpush1.msra.mxu0 %v1093
  %7672 = vmatprep.subr.mxu0 0.0
  %7673 = vmatpush1.msra.mxu0 %v1094
  %7674 = vmatprep.subr.mxu0 0.0
  %7675 = vmatpush1.msra.mxu0 %v1242
  %7676 = vmatprep.subr.mxu0 0.0
  %7677 = vmatpush1.msra.mxu0 0.0
  %7678 = vmatprep.subr.mxu0 0.0
  %7679 = vmatpush1.msra.mxu0 0.0
  %7680 = vmatprep.subr.mxu0 0.0
  %7681 = vmatpush1.msra.mxu0 0.0
  %7682 = vmatprep.subr.mxu0 0.0
  %7683 = vmatpush1.msra.mxu0 0.0
  %7684 = vmatprep.subr.mxu0 0.0
  %7685 = vmatpush1.msra.mxu0 0.0
  %7686 = vmatprep.subr.mxu0 0.0
  %7687 = vmatpush1.msra.mxu0 0.0
  %7688 = vmatprep.subr.mxu0 0.0
  %7689 = vmatpush1.msra.mxu0 0.0
  %7690 = vmatprep.subr.mxu0 0.0
  %7691 = vmatpush1.msra.mxu0 0.0
  %7692 = vmatprep.subr.mxu0 0.0
  %7693 = vmatpush1.msra.mxu0 0.0
  %7694 = vmatprep.subr.mxu0 0.0
  %7695 = vmatpush1.msra.mxu0 0.0
  %7696 = vmatprep.mubr.f32.mxu0 %v7536
  %7697 = vmatmul.mubr.f32.gmra.mrb[0].mxu0 %v7527
  %v7698 = vpop.f32.mrb[0].mxu0
  %v7699 = vadd.f32 0.0, %v7698
  %v7700 = vpop.f32.mrb[0].mxu0
  %7701 = vmatprep.mubr.f32.mxu0 %v7539
  %7702 = vmatmul.mubr.f32.gmra.mrb[0].mxu0 %v7529
  %v7703 = vpop.f32.mrb[0].mxu0
  %v7704 = vadd.f32 0.0, %v7703
  %v7705 = vpop.f32.mrb[0].mxu0
  %7706 = vmatprep.mubr.f32.mxu0 %v7542
  %7707 = vmatmul.mubr.f32.gmra.mrb[0].mxu0 %v7531
  %v7708 = vpop.f32.mrb[0].mxu0
  %v7709 = vadd.f32 0.0, %v7708
  %v7710 = vpop.f32.mrb[0].mxu0
  %7711 = vmatprep.mubr.f32.mxu0 %v7545
  %7712 = vmatmul.mubr.f32.gmra.mrb[0].mxu0 %v7533
  %v7713 = vpop.f32.mrb[0].mxu0
  %v7714 = vadd.f32 0.0, %v7713
  %v7715 = vpop.f32.mrb[0].mxu0
  %7716 = vdwg.mxu0
  %s7717 = scalar_lea.vmem %s5, 240
  %v7718 = vld [vmem:[%s7717] sm:$0xff]
  %v7719 = vld [vmem:[%s7717 + $0x8] sm:$0xff]
  %v7721 = vsel %vm83, %v7614, 0
  %v7724 = vsel %vm83, %v7619, 0
  %v7727 = vsel %vm83, %v7624, 0
  %v7730 = vsel %vm83, %v7629, 0
  %7732 = vmatprep.subr.mxu0 0.0
  %7733 = vmatpush1.msra.mxu0 %v7718
  %7734 = vmatprep.subr.mxu0 0.0
  %7735 = vmatpush1.msra.mxu0 %v7719
  %7736 = vmatprep.subr.mxu0 0.0
  %7737 = vmatpush1.msra.mxu0 0.0
  %7738 = vmatprep.subr.mxu0 0.0
  %7739 = vmatpush1.msra.mxu0 0.0
  %7740 = vmatprep.subr.mxu0 0.0
  %7741 = vmatpush1.msra.mxu0 0.0
  %7742 = vmatprep.subr.mxu0 0.0
  %7743 = vmatpush1.msra.mxu0 0.0
  %7744 = vmatprep.subr.mxu0 0.0
  %7745 = vmatpush1.msra.mxu0 0.0
  %7746 = vmatprep.subr.mxu0 0.0
  %7747 = vmatpush1.msra.mxu0 0.0
  %7748 = vmatprep.subr.mxu0 0.0
  %7749 = vmatpush1.msra.mxu0 0.0
  %7750 = vmatprep.subr.mxu0 0.0
  %7751 = vmatpush1.msra.mxu0 0.0
  %7752 = vmatprep.subr.mxu0 0.0
  %7753 = vmatpush1.msra.mxu0 0.0
  %7754 = vmatprep.subr.mxu0 0.0
  %7755 = vmatpush1.msra.mxu0 0.0
  %7756 = vmatprep.subr.mxu0 0.0
  %7757 = vmatpush1.msra.mxu0 0.0
  %7758 = vmatprep.subr.mxu0 0.0
  %7759 = vmatpush1.msra.mxu0 0.0
  %7760 = vmatprep.subr.mxu0 0.0
  %7761 = vmatpush1.msra.mxu0 0.0
  %7762 = vmatprep.subr.mxu0 0.0
  %7763 = vmatpush1.msra.mxu0 0.0
  %7764 = vmatprep.subr.mxu0 0.0
  %7765 = vmatpush1.msra.mxu0 0.0
  %7766 = vmatprep.subr.mxu0 0.0
  %7767 = vmatpush1.msra.mxu0 0.0
  %7768 = vmatprep.subr.mxu0 0.0
  %7769 = vmatpush1.msra.mxu0 0.0
  %7770 = vmatprep.subr.mxu0 0.0
  %7771 = vmatpush1.msra.mxu0 0.0
  %7772 = vmatprep.subr.mxu0 0.0
  %7773 = vmatpush1.msra.mxu0 0.0
  %7774 = vmatprep.subr.mxu0 0.0
  %7775 = vmatpush1.msra.mxu0 0.0
  %7776 = vmatprep.subr.mxu0 0.0
  %7777 = vmatpush1.msra.mxu0 0.0
  %7778 = vmatprep.subr.mxu0 0.0
  %7779 = vmatpush1.msra.mxu0 0.0
  %7780 = vmatprep.subr.mxu0 0.0
  %7781 = vmatpush1.msra.mxu0 0.0
  %7782 = vmatprep.subr.mxu0 0.0
  %7783 = vmatpush1.msra.mxu0 0.0
  %7784 = vmatprep.subr.mxu0 0.0
  %7785 = vmatpush1.msra.mxu0 0.0
  %7786 = vmatprep.subr.mxu0 0.0
  %7787 = vmatpush1.msra.mxu0 0.0
  %7788 = vmatprep.subr.mxu0 0.0
  %7789 = vmatpush1.msra.mxu0 0.0
  %7790 = vmatprep.subr.mxu0 0.0
  %7791 = vmatpush1.msra.mxu0 0.0
  %7792 = vmatprep.subr.mxu0 0.0
  %7793 = vmatpush1.msra.mxu0 0.0
  %7794 = vmatprep.subr.mxu0 0.0
  %7795 = vmatpush1.msra.mxu0 0.0
  %7796 = vmatprep.mubr.f32.mxu0 0.0
  %7797 = vmatmul.mubr.f32.gmra.mrb[0].mxu0 %v7721
  %v7798 = vpop.f32.mrb[0].mxu0
  %v7799 = vadd.f32 0.0, %v7798
  %v7800 = vpop.f32.mrb[0].mxu0
  %7801 = vmatprep.mubr.f32.mxu0 0.0
  %7802 = vmatmul.mubr.f32.gmra.mrb[0].mxu0 %v7724
  %v7803 = vpop.f32.mrb[0].mxu0
  %v7804 = vadd.f32 0.0, %v7803
  %v7805 = vpop.f32.mrb[0].mxu0
  %7806 = vmatprep.mubr.f32.mxu0 0.0
  %7807 = vmatmul.mubr.f32.gmra.mrb[0].mxu0 %v7727
  %v7808 = vpop.f32.mrb[0].mxu0
  %v7809 = vadd.f32 0.0, %v7808
  %v7810 = vpop.f32.mrb[0].mxu0
  %7811 = vmatprep.mubr.f32.mxu0 0.0
  %7812 = vmatmul.mubr.f32.gmra.mrb[0].mxu0 %v7730
  %v7813 = vpop.f32.mrb[0].mxu0
  %v7814 = vadd.f32 0.0, %v7813
  %v7815 = vpop.f32.mrb[0].mxu0
  %7816 = vdwg.mxu0
  %v7818 = vsel %vm83, %v7699, 0
  %v7821 = vsel %vm83, %v7704, 0
  %v7824 = vsel %vm83, %v7709, 0
  %v7827 = vsel %vm83, %v7714, 0
  %7829 = vmatprep.subr.mxu0 0.0
  %7830 = vmatpush1.msra.mxu0 %v7718
  %7831 = vmatprep.subr.mxu0 0.0
  %7832 = vmatpush1.msra.mxu0 %v7719
  %7833 = vmatprep.subr.mxu0 0.0
  %7834 = vmatpush1.msra.mxu0 0.0
  %7835 = vmatprep.subr.mxu0 0.0
  %7836 = vmatpush1.msra.mxu0 0.0
  %7837 = vmatprep.subr.mxu0 0.0
  %7838 = vmatpush1.msra.mxu0 0.0
  %7839 = vmatprep.subr.mxu0 0.0
  %7840 = vmatpush1.msra.mxu0 0.0
  %7841 = vmatprep.subr.mxu0 0.0
  %7842 = vmatpush1.msra.mxu0 0.0
  %7843 = vmatprep.subr.mxu0 0.0
  %7844 = vmatpush1.msra.mxu0 0.0
  %7845 = vmatprep.subr.mxu0 0.0
  %7846 = vmatpush1.msra.mxu0 0.0
  %7847 = vmatprep.subr.mxu0 0.0
  %7848 = vmatpush1.msra.mxu0 0.0
  %7849 = vmatprep.subr.mxu0 0.0
  %7850 = vmatpush1.msra.mxu0 0.0
  %7851 = vmatprep.subr.mxu0 0.0
  %7852 = vmatpush1.msra.mxu0 0.0
  %7853 = vmatprep.subr.mxu0 0.0
  %7854 = vmatpush1.msra.mxu0 0.0
  %7855 = vmatprep.subr.mxu0 0.0
  %7856 = vmatpush1.msra.mxu0 0.0
  %7857 = vmatprep.subr.mxu0 0.0
  %7858 = vmatpush1.msra.mxu0 0.0
  %7859 = vmatprep.subr.mxu0 0.0
  %7860 = vmatpush1.msra.mxu0 0.0
  %7861 = vmatprep.subr.mxu0 0.0
  %7862 = vmatpush1.msra.mxu0 0.0
  %7863 = vmatprep.subr.mxu0 0.0
  %7864 = vmatpush1.msra.mxu0 0.0
  %7865 = vmatprep.subr.mxu0 0.0
  %7866 = vmatpush1.msra.mxu0 0.0
  %7867 = vmatprep.subr.mxu0 0.0
  %7868 = vmatpush1.msra.mxu0 0.0
  %7869 = vmatprep.subr.mxu0 0.0
  %7870 = vmatpush1.msra.mxu0 0.0
  %7871 = vmatprep.subr.mxu0 0.0
  %7872 = vmatpush1.msra.mxu0 0.0
  %7873 = vmatprep.subr.mxu0 0.0
  %7874 = vmatpush1.msra.mxu0 0.0
  %7875 = vmatprep.subr.mxu0 0.0
  %7876 = vmatpush1.msra.mxu0 0.0
  %7877 = vmatprep.subr.mxu0 0.0
  %7878 = vmatpush1.msra.mxu0 0.0
  %7879 = vmatprep.subr.mxu0 0.0
  %7880 = vmatpush1.msra.mxu0 0.0
  %7881 = vmatprep.subr.mxu0 0.0
  %7882 = vmatpush1.msra.mxu0 0.0
  %7883 = vmatprep.subr.mxu0 0.0
  %7884 = vmatpush1.msra.mxu0 0.0
  %7885 = vmatprep.subr.mxu0 0.0
  %7886 = vmatpush1.msra.mxu0 0.0
  %7887 = vmatprep.subr.mxu0 0.0
  %7888 = vmatpush1.msra.mxu0 0.0
  %7889 = vmatprep.subr.mxu0 0.0
  %7890 = vmatpush1.msra.mxu0 0.0
  %7891 = vmatprep.subr.mxu0 0.0
  %7892 = vmatpush1.msra.mxu0 0.0
  %7893 = vmatprep.mubr.f32.mxu0 0.0
  %7894 = vmatmul.mubr.f32.gmra.mrb[0].mxu0 %v7818
  %v7895 = vpop.f32.mrb[0].mxu0
  %v7896 = vadd.f32 0.0, %v7895
  %v7897 = vpop.f32.mrb[0].mxu0
  %7898 = vmatprep.mubr.f32.mxu0 0.0
  %7899 = vmatmul.mubr.f32.gmra.mrb[0].mxu0 %v7821
  %v7900 = vpop.f32.mrb[0].mxu0
  %v7901 = vadd.f32 0.0, %v7900
  %v7902 = vpop.f32.mrb[0].mxu0
  %7903 = vmatprep.mubr.f32.mxu0 0.0
  %7904 = vmatmul.mubr.f32.gmra.mrb[0].mxu0 %v7824
  %v7905 = vpop.f32.mrb[0].mxu0
  %v7906 = vadd.f32 0.0, %v7905
  %v7907 = vpop.f32.mrb[0].mxu0
  %7908 = vmatprep.mubr.f32.mxu0 0.0
  %7909 = vmatmul.mubr.f32.gmra.mrb[0].mxu0 %v7827
  %v7910 = vpop.f32.mrb[0].mxu0
  %v7911 = vadd.f32 0.0, %v7910
  %v7912 = vpop.f32.mrb[0].mxu0
  %7913 = vdwg.mxu0
  %v7914 = vadd.f32 %v7487, %v7799
  %v7915 = vadd.f32 %v7488, %v7804
  %v7916 = vadd.f32 %v7489, %v7809
  %v7917 = vadd.f32 %v7490, %v7814
  %v7918 = vadd.f32 %v7491, %v7896
  %v7919 = vadd.f32 %v7492, %v7901
  %v7920 = vadd.f32 %v7493, %v7906
  %v7921 = vadd.f32 %v7494, %v7911
  %v7922 = vld [vmem:[%s6] sm:$0x1]
  %v7923 = vld [vmem:[%s7] sm:$0x1]
  %vm7924 = vcmask 261120
  %v7925 = vsel %vm7924, %v7914, 0.0
  %v7926 = vsel %vm7924, %v7915, 0.0
  %v7927 = vadd.f32 %v7925, %v7926
  %v7928 = vsel %vm7924, %v7916, 0.0
  %v7929 = vadd.f32 %v7927, %v7928
  %vm7930 = vcmask 253952
  %v7931 = vsel %vm7930, %v7917, 0.0
  %v7932 = vadd.f32 %v7929, %v7931
  %v7933 = vrot.slane %v7932, 4
  %v7934 = vadd.f32 %v7932, %v7933
  %v7935 = vrot.slane %v7934, 2
  %v7936 = vadd.f32 %v7934, %v7935
  %v7937 = vrot.slane %v7936, 1
  %v7938 = vadd.f32 %v7936, %v7937
  %v7939 = vsel %vm7924, %v7918, 0.0
  %v7940 = vsel %vm7924, %v7919, 0.0
  %v7941 = vadd.f32 %v7939, %v7940
  %v7942 = vsel %vm7924, %v7920, 0.0
  %v7943 = vadd.f32 %v7941, %v7942
  %v7944 = vsel %vm7930, %v7921, 0.0
  %v7945 = vadd.f32 %v7943, %v7944
  %v7946 = vrot.slane %v7945, 4
  %v7947 = vadd.f32 %v7945, %v7946
  %v7948 = vrot.slane %v7947, 2
  %v7949 = vadd.f32 %v7947, %v7948
  %v7950 = vrot.slane %v7949, 1
  %v7951 = vadd.f32 %v7949, %v7950
  %v7952 = vsel %vm7924, %v7938, 0.0
  %v7953 = vsel %vm7924, %v7951, 0.0
  %v7954 = vadd.f32 %v7952, %v7953
  %v7955 = vmul.f32 %v7954, 0.02
  %v7956 = vsub.f32 %v7914, %v7955
  %v7957 = vsub.f32 %v7915, %v7955
  %v7958 = vsub.f32 %v7916, %v7955
  %v7959 = vsub.f32 %v7917, %v7955
  %v7960 = vsub.f32 %v7918, %v7955
  %v7961 = vsub.f32 %v7919, %v7955
  %v7962 = vsub.f32 %v7920, %v7955
  %v7963 = vsub.f32 %v7921, %v7955
  %v7964 = vmul.f32 %v7956, %v7956
  %v7965 = vmul.f32 %v7957, %v7957
  %v7966 = vmul.f32 %v7958, %v7958
  %v7967 = vmul.f32 %v7959, %v7959
  %v7968 = vmul.f32 %v7960, %v7960
  %v7969 = vmul.f32 %v7961, %v7961
  %v7970 = vmul.f32 %v7962, %v7962
  %v7971 = vmul.f32 %v7963, %v7963
  %v7972 = vsel %vm7924, %v7964, 0.0
  %v7973 = vsel %vm7924, %v7965, 0.0
  %v7974 = vadd.f32 %v7972, %v7973
  %v7975 = vsel %vm7924, %v7966, 0.0
  %v7976 = vadd.f32 %v7974, %v7975
  %v7977 = vsel %vm7930, %v7967, 0.0
  %v7978 = vadd.f32 %v7976, %v7977
  %v7979 = vrot.slane %v7978, 4
  %v7980 = vadd.f32 %v7978, %v7979
  %v7981 = vrot.slane %v7980, 2
  %v7982 = vadd.f32 %v7980, %v7981
  %v7983 = vrot.slane %v7982, 1
  %v7984 = vadd.f32 %v7982, %v7983
  %v7985 = vsel %vm7924, %v7968, 0.0
  %v7986 = vsel %vm7924, %v7969, 0.0
  %v7987 = vadd.f32 %v7985, %v7986
  %v7988 = vsel %vm7924, %v7970, 0.0
  %v7989 = vadd.f32 %v7987, %v7988
  %v7990 = vsel %vm7930, %v7971, 0.0
  %v7991 = vadd.f32 %v7989, %v7990
  %v7992 = vrot.slane %v7991, 4
  %v7993 = vadd.f32 %v7991, %v7992
  %v7994 = vrot.slane %v7993, 2
  %v7995 = vadd.f32 %v7993, %v7994
  %v7996 = vrot.slane %v7995, 1
  %v7997 = vadd.f32 %v7995, %v7996
  %v7998 = vsel %vm7924, %v7984, 0.0
  %v7999 = vsel %vm7924, %v7997, 0.0
  %v8000 = vadd.f32 %v7998, %v7999
  %v8001 = vmul.f32 %v8000, 0.02
  %v8002 = vadd.f32 %v8001, 1e-05
  %v8003 = vrsqrt.pop %v8002
  %v8004 = vmul.f32 %v7922, %v8003
  %v8006 = vlaneseq
  %v8007 = vshrl.u32 %v8006, 7
  %v8008 = vsub.s32 0, %v8007
  %v8009 = vrot.slane %v8004, %v8008
  %v8011 = vmul.f32 %v7956, %v8009
  %v8012 = vmul.f32 %v7957, %v8009
  %v8013 = vmul.f32 %v7958, %v8009
  %v8014 = vmul.f32 %v7959, %v8009
  %v8015 = vmul.f32 %v7960, %v8009
  %v8016 = vmul.f32 %v7961, %v8009
  %v8017 = vmul.f32 %v7962, %v8009
  %v8018 = vmul.f32 %v7963, %v8009
  %v8020 = vlaneseq
  %v8021 = vshrl.u32 %v8020, 7
  %v8022 = vsub.s32 0, %v8021
  %v8023 = vrot.slane %v7923, %v8022
  %v8025 = vadd.f32 %v8011, %v8023
  %v8026 = vadd.f32 %v8012, %v8023
  %v8027 = vadd.f32 %v8013, %v8023
  %v8028 = vadd.f32 %v8014, %v8023
  %v8029 = vadd.f32 %v8015, %v8023
  %v8030 = vadd.f32 %v8016, %v8023
  %v8031 = vadd.f32 %v8017, %v8023
  %v8032 = vadd.f32 %v8018, %v8023
  %vm8033 = vcmp.ge.f32.partialorder %v8025, 0.0
  %vm8034 = vcmp.ge.f32.partialorder %v8026, 0.0
  %vm8035 = vcmp.ge.f32.partialorder %v8027, 0.0
  %vm8036 = vcmp.ge.f32.partialorder %v8028, 0.0
  %vm8037 = vcmp.ge.f32.partialorder %v8029, 0.0
  %vm8038 = vcmp.ge.f32.partialorder %v8030, 0.0
  %vm8039 = vcmp.ge.f32.partialorder %v8031, 0.0
  %vm8040 = vcmp.ge.f32.partialorder %v8032, 0.0
  %v8041 = vmul.f32 %v8025, 0.2
  %v8042 = vmul.f32 %v8026, 0.2
  %v8043 = vmul.f32 %v8027, 0.2
  %v8044 = vmul.f32 %v8028, 0.2
  %v8045 = vmul.f32 %v8029, 0.2
  %v8046 = vmul.f32 %v8030, 0.2
  %v8047 = vmul.f32 %v8031, 0.2
  %v8048 = vmul.f32 %v8032, 0.2
  %v8049 = vsel %vm8033, %v8025, %v8041
  %v8050 = vsel %vm8034, %v8026, %v8042
  %v8051 = vsel %vm8035, %v8027, %v8043
  %v8052 = vsel %vm8036, %v8028, %v8044
  %v8053 = vsel %vm8037, %v8029, %v8045
  %v8054 = vsel %vm8038, %v8030, %v8046
  %v8055 = vsel %vm8039, %v8031, %v8047
  %v8056 = vsel %vm8040, %v8032, %v8048
  %v8057 = vld [vmem:[%s8] sm:$0xff]
  %v8058 = vld [vmem:[%s8 + $0x8] sm:$0xff]
  %v8059 = vld [vmem:[%s8 + $0x10] sm:$0xff]
  %v8060 = vld [vmem:[%s8 + $0x18] sm:$0x1]
  %v8061 = vmul.f32 %v8049, %v8057
  %v8062 = vmul.f32 %v8050, %v8058
  %v8063 = vmul.f32 %v8051, %v8059
  %v8064 = vmul.f32 %v8052, %v8060
  %v8065 = vmul.f32 %v8053, %v8057
  %v8066 = vmul.f32 %v8054, %v8058
  %v8067 = vmul.f32 %v8055, %v8059
  %v8068 = vmul.f32 %v8056, %v8060
  %v8069 = vsel %vm7924, %v8061, 0.0
  %8070 = vadd.xlane.f32.xlu0 %v8069
  %v8071 = vpop.xlane.xlu0 %8070
  %v8072 = vsel %vm7924, %v8062, 0.0
  %8073 = vadd.xlane.f32.xlu0 %v8072
  %v8074 = vpop.xlane.xlu0 %8073
  %v8075 = vsel %vm7924, %v8063, 0.0
  %8076 = vadd.xlane.f32.xlu0 %v8075
  %v8077 = vpop.xlane.xlu0 %8076
  %v8078 = vsel %vm7930, %v8064, 0.0
  %8079 = vadd.xlane.f32.xlu0 %v8078
  %v8080 = vpop.xlane.xlu0 %8079
  %v8081 = vsel %vm7924, %v8065, 0.0
  %8082 = vadd.xlane.f32.xlu0 %v8081
  %v8083 = vpop.xlane.xlu0 %8082
  %v8084 = vsel %vm7924, %v8066, 0.0
  %8085 = vadd.xlane.f32.xlu0 %v8084
  %v8086 = vpop.xlane.xlu0 %8085
  %v8087 = vsel %vm7924, %v8067, 0.0
  %8088 = vadd.xlane.f32.xlu0 %v8087
  %v8089 = vpop.xlane.xlu0 %8088
  %v8090 = vsel %vm7930, %v8068, 0.0
  %8091 = vadd.xlane.f32.xlu0 %v8090
  %v8092 = vpop.xlane.xlu0 %8091
  %v8093 = vadd.f32 %v8071, %v8074
  %v8094 = vadd.f32 %v8093, %v8077
  %v8095 = vsel %vm1152, %v8080, 0.0
  %v8096 = vadd.f32 %v8094, %v8095
  %v8097 = vrot.slane %v8096, 4
  %v8098 = vadd.f32 %v8096, %v8097
  %v8099 = vrot.slane %v8098, 2
  %v8100 = vadd.f32 %v8098, %v8099
  %v8101 = vrot.slane %v8100, 1
  %v8102 = vadd.f32 %v8100, %v8101
  %v8103 = vadd.f32 %v8083, %v8086
  %v8104 = vadd.f32 %v8103, %v8089
  %v8105 = vsel %vm1152, %v8092, 0.0
  %v8106 = vadd.f32 %v8104, %v8105
  %v8107 = vrot.slane %v8106, 4
  %v8108 = vadd.f32 %v8106, %v8107
  %v8109 = vrot.slane %v8108, 2
  %v8110 = vadd.f32 %v8108, %v8109
  %v8111 = vrot.slane %v8110, 1
  %v8112 = vadd.f32 %v8110, %v8111
  %v8113 = vld [vmem:[#allocation2] sm:$0x1]
  %v8115 = vlaneseq
  %v8116 = vshrl.u32 %v8115, 7
  %v8117 = vsub.s32 0, %v8116
  %v8118 = vrot.slane %v8113, %v8117
  %v8120 = vadd.f32 %v8102, %v8118
  %v8121 = vadd.f32 %v8112, %v8118
  %v8124 = vrot.slane %v8121, 7
  %vm8125 = vcmask 1041409
  %v8126 = vsel %vm8125, %v8124, %v8120
  %vm8128 = vcmask 1024
  %8129 = vst.msk [vmem:[%s10] sm:$0x3] %vm8128, %v8126
  // Predicated region
  $region42: #{critic_forward.1} parent=0 // pred_check
    _
  $region43: #{critic_forward.1} parent=0 // pred_check_branch
    %8131 = sbr.rel (0) target = $region45
  $region44: #{critic_forward.1} parent=0 // pred_region
    _
  $region45: #{critic_forward.1} parent=0 // pred_fallthru
    _
  // Predicated region
  $region46: #{critic_forward.1} parent=0 // pred_check
    _
  $region47: #{critic_forward.1} parent=0 // pred_check_branch
    %8133 = sbr.rel (0) target = $region49
  $region48: #{critic_forward.1} parent=0 // pred_region
    _
  $region49: #{critic_forward.1} parent=0 // pred_fallthru
    _

</llo_original>
